<compile_context>
chip_gen: v7x
topology: tpu7x:2x2x1
jax: 0.10.0
libtpu: 0.0.40
codegen_flags: <defaults>
</compile_context>

<pallas_src>
import functools

import jax
import jax.numpy as jnp
from jax.experimental import pallas as pl
from jax.experimental.pallas import tpu as pltpu

LANE = 128      # one gate per 128-lane block
SUBLANE = 8     # batch padded to a full sublane group


def _lstm_gates(g, c_prev, GP):
    """PyTorch-ordered (i, f, g, o) gate nonlinearities on gate-per-vreg layout.

    Each gate occupies its own GP-lane block (GP a multiple of 128), so every
    slice is a whole, lane-aligned vreg block.  `c_prev=None` encodes an
    exactly-zero previous cell state (the f * c_prev term is skipped).  All
    elementwise math stays in f32 (v5e has no bf16 VPU/EUP).
    """
    i = jax.nn.sigmoid(g[:, 0 * GP:1 * GP])
    gg = jnp.tanh(g[:, 2 * GP:3 * GP])
    o = jax.nn.sigmoid(g[:, 3 * GP:4 * GP])
    if c_prev is None:
        c_new = i * gg
    else:
        f = jax.nn.sigmoid(g[:, 1 * GP:2 * GP])
        c_new = f * c_prev + i * gg
    h_new = o * jnp.tanh(c_new)
    return h_new, c_new


def bi_lstm_kernel(x_ref,       # (T*Bp, E)   bf16  time-major flattened embeddings
                   wih1_ref,    # (E, 8*GP)   bf16  [l1 fwd i|f|g|o | l1 bwd i|f|g|o]
                   b1_ref,      # (1, 8*GP)   f32
                   whh1f_ref,   # (GP, 4*GP)  bf16
                   whh1b_ref,   # (GP, 4*GP)  bf16
                   w2ff_ref,    # (GP, 4*GP)  bf16  l2-fwd gates fed by l1 fwd half
                   w2fb_ref,    # (GP, 4*GP)  bf16  l2-fwd gates fed by l1 bwd half
                   w2bf_ref,    # (GP, 4*GP)  bf16  l2-bwd gates fed by l1 fwd half
                   w2bb_ref,    # (GP, 4*GP)  bf16  l2-bwd gates fed by l1 bwd half
                   b2f_ref,     # (1, 4*GP)   f32
                   b2b_ref,     # (1, 4*GP)   f32
                   whh2f_ref,   # (GP, 4*GP)  bf16
                   fcwf_ref,    # (GP, OPAD)  bf16
                   fcwb_ref,    # (GP, OPAD)  bf16
                   fcb_ref,     # (1, OPAD)   f32
                   out_ref,     # (Bp, OPAD)  f32
                   l1f_ref,     # scratch (T, Bp, GP)    f32  layer-1 fwd h
                   l1b_ref,     # scratch (T, Bp, GP)    f32  layer-1 bwd h
                   pre1_ref):   # scratch (T*Bp, 8*GP)   f32  hoisted l1 pre-activations
    T, Bp, GP = l1f_ref.shape
    G = 4 * GP
    f32 = jnp.float32
    bf16 = jnp.bfloat16

    # ---- hoisted layer-1 input projection, both directions, bias folded ----
    pre1_ref[...] = (jnp.dot(x_ref[...], wih1_ref[...], preferred_element_type=f32)
                     + b1_ref[...])                               # (T*Bp, 8*GP)

    # ---- fused layer-1 fwd + bwd recurrence (fully unrolled, aligned tiles) ----
    h1f = c1f = h1b = c1b = None
    for t in range(T):
        rt = T - 1 - t
        gf = pre1_ref[t * Bp:(t + 1) * Bp, 0:G]        # forward dir, time t
        gb = pre1_ref[rt * Bp:(rt + 1) * Bp, G:2 * G]  # backward dir, time T-1-t
        if h1f is not None:                            # step 0: h_prev == 0
            gf = gf + jnp.dot(h1f.astype(bf16), whh1f_ref[...],
                              preferred_element_type=f32)
            gb = gb + jnp.dot(h1b.astype(bf16), whh1b_ref[...],
                              preferred_element_type=f32)
        h1f, c1f = _lstm_gates(gf, c1f, GP)
        h1b, c1b = _lstm_gates(gb, c1b, GP)
        l1f_ref[t] = h1f
        l1b_ref[rt] = h1b

    # ---- layer-2 forward: per-step input projection fused into the loop.
    #      The input dots depend only on already-finished layer-1 rows, so the
    #      VLIW scheduler can overlap them with the recurrent gate math. ----
    h2f = c2f = None
    for t in range(T):
        g = (jnp.dot(l1f_ref[t].astype(bf16), w2ff_ref[...],
                     preferred_element_type=f32)
             + jnp.dot(l1b_ref[t].astype(bf16), w2fb_ref[...],
                       preferred_element_type=f32)
             + b2f_ref[...])
        if h2f is not None:
            g = g + jnp.dot(h2f.astype(bf16), whh2f_ref[...],
                            preferred_element_type=f32)
        h2f, c2f = _lstm_gates(g, c2f, GP)

    # ---- layer-2 backward at the last time step == its FIRST reverse step
    #      from a zero state: h_prev @ W_hh == 0 and f*c_prev == 0 ----
    g2b = (jnp.dot(l1f_ref[T - 1].astype(bf16), w2bf_ref[...],
                   preferred_element_type=f32)
           + jnp.dot(l1b_ref[T - 1].astype(bf16), w2bb_ref[...],
                     preferred_element_type=f32)
           + b2b_ref[...])
    h2b, _ = _lstm_gates(g2b, None, GP)

    # ---- fc on concat(h2f, h2b) as two row-split dots; lane-dense output ----
    out_ref[...] = (jnp.dot(h2f.astype(bf16), fcwf_ref[...],
                            preferred_element_type=f32)
                    + jnp.dot(h2b.astype(bf16), fcwb_ref[...],
                              preferred_element_type=f32)
                    + fcb_ref[...])


def prepare_params(params):
    """One-time weight fusion / padding / bf16 cast (hoisted out of the per-call jit).

    * each gate gets its own GP = max(128, ceil(H/128)*128) lane block (zero-padded),
      so in-kernel gate slices are whole aligned vreg blocks (only matters for H < 128);
    * hidden-feeding weight rows are zero-padded H -> GP so the (exactly zero) padded
      h lanes contribute nothing;
    * matmul operands cast to bf16 (f32 accumulation happens in the kernel);
    * fc output padded to a lane-dense 128-wide block.
    """
    H = params["whh_l1_f"].shape[0]
    O = params["fc_w"].shape[1]
    GP = max(LANE, ((H + LANE - 1) // LANE) * LANE)
    OPAD = ((O + LANE - 1) // LANE) * LANE
    bf16, f32 = jnp.bfloat16, jnp.float32

    def pad_gate_cols(w):                           # (R, 4H) -> (R, 4*GP)
        blocks = jnp.split(w, 4, axis=1)
        return jnp.concatenate(
            [jnp.pad(b, ((0, 0), (0, GP - H))) for b in blocks], axis=1)

    def pad_rows(w):                                # (H, C) -> (GP, C)
        return jnp.pad(w, ((0, GP - H), (0, 0)))

    return {
        "embedding": params["embedding"].astype(bf16),
        # layer 1: both directions fused into one hoisted input projection
        "wih1": jnp.concatenate([pad_gate_cols(params["wih_l1_f"]),
                                 pad_gate_cols(params["wih_l1_b"])],
                                axis=1).astype(bf16),
        "b1": jnp.concatenate([pad_gate_cols(params["b_l1_f"]),
                               pad_gate_cols(params["b_l1_b"])],
                              axis=1).astype(f32),
        "whh1f": pad_rows(pad_gate_cols(params["whh_l1_f"])).astype(bf16),
        "whh1b": pad_rows(pad_gate_cols(params["whh_l1_b"])).astype(bf16),
        # layer 2: input weights row-split by which layer-1 half feeds them
        "w2ff": pad_rows(pad_gate_cols(params["wih_l2_f"][:H])).astype(bf16),
        "w2fb": pad_rows(pad_gate_cols(params["wih_l2_f"][H:])).astype(bf16),
        "w2bf": pad_rows(pad_gate_cols(params["wih_l2_b"][:H])).astype(bf16),
        "w2bb": pad_rows(pad_gate_cols(params["wih_l2_b"][H:])).astype(bf16),
        "b2f": pad_gate_cols(params["b_l2_f"]).astype(f32),
        "b2b": pad_gate_cols(params["b_l2_b"]).astype(f32),
        "whh2f": pad_rows(pad_gate_cols(params["whh_l2_f"])).astype(bf16),
        # whh_l2_b is unused: the layer-2 backward cell only needs its first
        # (zero-state) reverse step, where h_prev @ W_hh == 0.
        "fcwf": jnp.pad(params["fc_w"][:H],
                        ((0, GP - H), (0, OPAD - O))).astype(bf16),
        "fcwb": jnp.pad(params["fc_w"][H:],
                        ((0, GP - H), (0, OPAD - O))).astype(bf16),
        "fcb": jnp.pad(params["fc_b"], ((0, 0), (0, OPAD - O))).astype(f32),
    }


@functools.partial(jax.jit, static_argnames=("n_out",))
def bi_emotion_lstm_forward(tokens, prep, *, n_out):
    B, T = tokens.shape
    E = prep["embedding"].shape[1]
    GP = prep["whh1f"].shape[0]
    OPAD = prep["fcb"].shape[1]
    Bp = ((B + SUBLANE - 1) // SUBLANE) * SUBLANE     # full sublane group

    # Embedding gather + layout plumbing (glue, not compute).
    emb = prep["embedding"][tokens]                   # (B, T, E) bf16
    x = jnp.transpose(emb, (1, 0, 2))                 # (T, B, E) time-major
    x = jnp.pad(x, ((0, 0), (0, Bp - B), (0, 0)))     # batch -> Bp rows
    x_flat = x.reshape(T * Bp, E)

    args = (x_flat, prep["wih1"], prep["b1"], prep["whh1f"], prep["whh1b"],
            prep["w2ff"], prep["w2fb"], prep["w2bf"], prep["w2bb"],
            prep["b2f"], prep["b2b"], prep["whh2f"],
            prep["fcwf"], prep["fcwb"], prep["fcb"])
    vmem = pl.BlockSpec(memory_space=pltpu.MemorySpace.VMEM)

    # TODO(synk): at production sizes add a 'parallel' batch-group grid axis
    # (v7x dual TensorCores), tile the hoisted projection over time, and size
    # vmem_limit_bytes per generation (v7x has 64 MiB physical VMEM).
    out_pad = pl.pallas_call(
        bi_lstm_kernel,
        out_shape=jax.ShapeDtypeStruct((Bp, OPAD), jnp.float32),
        in_specs=[vmem] * len(args),
        out_specs=vmem,
        scratch_shapes=[pltpu.VMEM((T, Bp, GP), jnp.float32),        # layer-1 fwd h
                        pltpu.VMEM((T, Bp, GP), jnp.float32),        # layer-1 bwd h
                        pltpu.VMEM((T * Bp, 8 * GP), jnp.float32)],  # hoisted l1 pre-acts
        compiler_params=pltpu.CompilerParams(vmem_limit_bytes=32 * 1024 * 1024),
    )(*args)
    return out_pad[:B, :n_out]


def init_params(key, vocab, E, H, O):
    ks = iter(jax.random.split(key, 20))

    def nrm(shape):
        return (0.1 * jax.random.normal(next(ks), shape)).astype(jnp.float32)

    p = {"embedding": nrm((vocab, E))}
    # Layer 1 (input size E), layer 2 (input size 2H). Weights pre-transposed to
    # (in, 4H); bias is the fused (b_ih + b_hh) stored as (1, 4H).
    for layer, in_dim in (("l1", E), ("l2", 2 * H)):
        for d in ("f", "b"):
            p[f"wih_{layer}_{d}"] = nrm((in_dim, 4 * H))
            p[f"whh_{layer}_{d}"] = nrm((H, 4 * H))
            p[f"b_{layer}_{d}"] = nrm((1, 4 * H))
    p["fc_w"] = nrm((2 * H, O))
    p["fc_b"] = nrm((1, O))
    return p


def reference_forward(tokens, params):
    """Pure-JAX f32 reference mirroring PyTorch bidirectional-LSTM eval semantics."""
    emb = params["embedding"][tokens].astype(jnp.float32)
    B, T, E = emb.shape
    H = params["whh_l1_f"].shape[0]

    def cell(x_t, h, c, wih, whh, b):
        g = x_t @ wih + h @ whh + b
        i = jax.nn.sigmoid(g[:, :H]); f = jax.nn.sigmoid(g[:, H:2 * H])
        gg = jnp.tanh(g[:, 2 * H:3 * H]); o = jax.nn.sigmoid(g[:, 3 * H:])
        c = f * c + i * gg
        return o * jnp.tanh(c), c

    def run_dir(xs, wih, whh, b, reverse):
        h = jnp.zeros((B, H), jnp.float32); c = jnp.zeros((B, H), jnp.float32)
        T_ = xs.shape[1]
        outs = [None] * T_
        order = range(T_ - 1, -1, -1) if reverse else range(T_)
        for t in order:
            h, c = cell(xs[:, t], h, c, wih, whh, b)
            outs[t] = h
        return jnp.stack(outs, axis=1)                            # (B, T, H)

    l1f = run_dir(emb, params["wih_l1_f"], params["whh_l1_f"], params["b_l1_f"], False)
    l1b = run_dir(emb, params["wih_l1_b"], params["whh_l1_b"], params["b_l1_b"], True)
    l1 = jnp.concatenate([l1f, l1b], axis=-1)
    l2f = run_dir(l1, params["wih_l2_f"], params["whh_l2_f"], params["b_l2_f"], False)
    l2b = run_dir(l1, params["wih_l2_b"], params["whh_l2_b"], params["b_l2_b"], True)
    last = jnp.concatenate([l2f[:, -1], l2b[:, -1]], axis=-1)     # output[:, -1, :]
    return last @ params["fc_w"] + params["fc_b"]


if __name__ == "__main__":
    VOCAB, EMBED, HIDDEN, OUT = 32, 32, 32, 4
    BATCH, SEQ = 2, 8

    key = jax.random.PRNGKey(0)
    k_tok, k_par = jax.random.split(key)
    tokens = jax.random.randint(k_tok, (BATCH, SEQ), 0, VOCAB, dtype=jnp.int32)
    params = init_params(k_par, VOCAB, EMBED, HIDDEN, OUT)

    prep = prepare_params(params)   # one-time weight fusion / padding / bf16 cast
    out = jax.block_until_ready(bi_emotion_lstm_forward(tokens, prep, n_out=OUT))
    ref = jax.block_until_ready(reference_forward(tokens, params))

    assert out.shape == (BATCH, OUT), out.shape
    # bf16 matmul operands vs. an all-f32 reference -> slightly looser tolerance.
    assert jnp.allclose(out, ref, rtol=5e-3, atol=5e-3), (out, ref)
    print("KERNEL_OK")
</pallas_src>

<mosaic_0001>
module attributes {stable_mosaic.version = 11 : i64} {
  func.func @bi_lstm_kernel(%arg0: memref<64x32xbf16, #tpu.memory_space<vmem>>, %arg1: memref<32x1024xbf16, #tpu.memory_space<vmem>>, %arg2: memref<1x1024xf32, #tpu.memory_space<vmem>>, %arg3: memref<128x512xbf16, #tpu.memory_space<vmem>>, %arg4: memref<128x512xbf16, #tpu.memory_space<vmem>>, %arg5: memref<128x512xbf16, #tpu.memory_space<vmem>>, %arg6: memref<128x512xbf16, #tpu.memory_space<vmem>>, %arg7: memref<128x512xbf16, #tpu.memory_space<vmem>>, %arg8: memref<128x512xbf16, #tpu.memory_space<vmem>>, %arg9: memref<1x512xf32, #tpu.memory_space<vmem>>, %arg10: memref<1x512xf32, #tpu.memory_space<vmem>>, %arg11: memref<128x512xbf16, #tpu.memory_space<vmem>>, %arg12: memref<128x128xbf16, #tpu.memory_space<vmem>>, %arg13: memref<128x128xbf16, #tpu.memory_space<vmem>>, %arg14: memref<1x128xf32, #tpu.memory_space<vmem>>, %arg15: memref<8x128xf32, #tpu.memory_space<vmem>>, %arg16: memref<8x8x128xf32, #tpu.memory_space<vmem>>, %arg17: memref<8x8x128xf32, #tpu.memory_space<vmem>>, %arg18: memref<64x1024xf32, #tpu.memory_space<vmem>>) attributes {dimension_semantics = [], scalar_prefetch = 0 : i64, scratch_operands = 3 : i64, tpu.core_type = #tpu.core_type<tc>} {
    %c0 = arith.constant 0 : index
    %c0_0 = arith.constant 0 : index
    %0 = vector.load %arg0[%c0, %c0_0] : memref<64x32xbf16, #tpu.memory_space<vmem>>, vector<64x32xbf16>
    %c0_1 = arith.constant 0 : index
    %c0_2 = arith.constant 0 : index
    %1 = vector.load %arg1[%c0_1, %c0_2] : memref<32x1024xbf16, #tpu.memory_space<vmem>>, vector<32x1024xbf16>
    %cst = arith.constant dense<0.000000e+00> : vector<64x1024xf32>
    %2 = tpu.matmul %0, %1, %cst {dimension_numbers = #tpu.dot_dimension_numbers<[1], [0], [0], [1], [0, 0, 1, 1], [], []>} : vector<64x32xbf16>, vector<32x1024xbf16>, vector<64x1024xf32> -> vector<64x1024xf32>
    %c0_3 = arith.constant 0 : index
    %c0_4 = arith.constant 0 : index
    %3 = vector.load %arg2[%c0_3, %c0_4] : memref<1x1024xf32, #tpu.memory_space<vmem>>, vector<1x1024xf32>
    %4 = vector.broadcast %3 : vector<1x1024xf32> to vector<64x1024xf32>
    %5 = arith.addf %2, %4 : vector<64x1024xf32>
    %c0_5 = arith.constant 0 : index
    %c0_6 = arith.constant 0 : index
    %6 = vector.load %arg18[%c0_5, %c0_6] : memref<64x1024xf32, #tpu.memory_space<vmem>>, vector<64x1024xf32>
    tpu.vector_store %arg18[%c0_5, %c0_6], %5 {strides = array<i32>} : memref<64x1024xf32, #tpu.memory_space<vmem>>, vector<64x1024xf32>,
    %c0_7 = arith.constant 0 : index
    %c0_8 = arith.constant 0 : index
    %7 = vector.load %arg18[%c0_7, %c0_8] : memref<64x1024xf32, #tpu.memory_space<vmem>>, vector<8x512xf32>
    %c56 = arith.constant 56 : index
    %c512 = arith.constant 512 : index
    %8 = vector.load %arg18[%c56, %c512] : memref<64x1024xf32, #tpu.memory_space<vmem>>, vector<8x512xf32>
    %9 = vector.extract_strided_slice %7 {offsets = [0, 0], sizes = [8, 128], strides = [1, 1]} : vector<8x512xf32> to vector<8x128xf32>
    %10 = arith.negf %9 : vector<8x128xf32>
    %11 = math.exp %10 : vector<8x128xf32>
    %cst_9 = arith.constant 1.000000e+00 : f32
    %12 = vector.broadcast %cst_9 : f32 to vector<8x128xf32>
    %13 = arith.addf %12, %11 : vector<8x128xf32>
    %14 = arith.divf %12, %13 : vector<8x128xf32>
    %15 = vector.extract_strided_slice %7 {offsets = [0, 256], sizes = [8, 128], strides = [1, 1]} : vector<8x512xf32> to vector<8x128xf32>
    %16 = math.tanh %15 : vector<8x128xf32>
    %17 = vector.extract_strided_slice %7 {offsets = [0, 384], sizes = [8, 128], strides = [1, 1]} : vector<8x512xf32> to vector<8x128xf32>
    %18 = arith.negf %17 : vector<8x128xf32>
    %19 = math.exp %18 : vector<8x128xf32>
    %cst_10 = arith.constant 1.000000e+00 : f32
    %20 = vector.broadcast %cst_10 : f32 to vector<8x128xf32>
    %21 = arith.addf %20, %19 : vector<8x128xf32>
    %22 = arith.divf %20, %21 : vector<8x128xf32>
    %23 = arith.mulf %14, %16 : vector<8x128xf32>
    %24 = math.tanh %23 : vector<8x128xf32>
    %25 = arith.mulf %22, %24 : vector<8x128xf32>
    %26 = vector.extract_strided_slice %8 {offsets = [0, 0], sizes = [8, 128], strides = [1, 1]} : vector<8x512xf32> to vector<8x128xf32>
    %27 = arith.negf %26 : vector<8x128xf32>
    %28 = math.exp %27 : vector<8x128xf32>
    %cst_11 = arith.constant 1.000000e+00 : f32
    %29 = vector.broadcast %cst_11 : f32 to vector<8x128xf32>
    %30 = arith.addf %29, %28 : vector<8x128xf32>
    %31 = arith.divf %29, %30 : vector<8x128xf32>
    %32 = vector.extract_strided_slice %8 {offsets = [0, 256], sizes = [8, 128], strides = [1, 1]} : vector<8x512xf32> to vector<8x128xf32>
    %33 = math.tanh %32 : vector<8x128xf32>
    %34 = vector.extract_strided_slice %8 {offsets = [0, 384], sizes = [8, 128], strides = [1, 1]} : vector<8x512xf32> to vector<8x128xf32>
    %35 = arith.negf %34 : vector<8x128xf32>
    %36 = math.exp %35 : vector<8x128xf32>
    %cst_12 = arith.constant 1.000000e+00 : f32
    %37 = vector.broadcast %cst_12 : f32 to vector<8x128xf32>
    %38 = arith.addf %37, %36 : vector<8x128xf32>
    %39 = arith.divf %37, %38 : vector<8x128xf32>
    %40 = arith.mulf %31, %33 : vector<8x128xf32>
    %41 = math.tanh %40 : vector<8x128xf32>
    %42 = arith.mulf %39, %41 : vector<8x128xf32>
    %c0_13 = arith.constant 0 : index
    %c0_14 = arith.constant 0 : index
    %c0_15 = arith.constant 0 : index
    %43 = vector.load %arg16[%c0_13, %c0_14, %c0_15] : memref<8x8x128xf32, #tpu.memory_space<vmem>>, vector<1x8x128xf32>
    %44 = vector.shape_cast %43 : vector<1x8x128xf32> to vector<8x128xf32>
    %45 = vector.shape_cast %25 : vector<8x128xf32> to vector<1x8x128xf32>
    tpu.vector_store %arg16[%c0_13, %c0_14, %c0_15], %45 {strides = array<i32>} : memref<8x8x128xf32, #tpu.memory_space<vmem>>, vector<1x8x128xf32>,
    %c7 = arith.constant 7 : index
    %c0_16 = arith.constant 0 : index
    %c0_17 = arith.constant 0 : index
    %46 = vector.load %arg17[%c7, %c0_16, %c0_17] : memref<8x8x128xf32, #tpu.memory_space<vmem>>, vector<1x8x128xf32>
    %47 = vector.shape_cast %46 : vector<1x8x128xf32> to vector<8x128xf32>
    %48 = vector.shape_cast %42 : vector<8x128xf32> to vector<1x8x128xf32>
    tpu.vector_store %arg17[%c7, %c0_16, %c0_17], %48 {strides = array<i32>} : memref<8x8x128xf32, #tpu.memory_space<vmem>>, vector<1x8x128xf32>,
    %c8 = arith.constant 8 : index
    %c0_18 = arith.constant 0 : index
    %49 = vector.load %arg18[%c8, %c0_18] : memref<64x1024xf32, #tpu.memory_space<vmem>>, vector<8x512xf32>
    %c48 = arith.constant 48 : index
    %c512_19 = arith.constant 512 : index
    %50 = vector.load %arg18[%c48, %c512_19] : memref<64x1024xf32, #tpu.memory_space<vmem>>, vector<8x512xf32>
    %51 = arith.truncf %25 : vector<8x128xf32> to vector<8x128xbf16>
    %c0_20 = arith.constant 0 : index
    %c0_21 = arith.constant 0 : index
    %52 = vector.load %arg3[%c0_20, %c0_21] : memref<128x512xbf16, #tpu.memory_space<vmem>>, vector<128x512xbf16>
    %cst_22 = arith.constant dense<0.000000e+00> : vector<8x512xf32>
    %53 = tpu.matmul %51, %52, %cst_22 {dimension_numbers = #tpu.dot_dimension_numbers<[1], [0], [0], [1], [0, 0, 1, 1], [], []>} : vector<8x128xbf16>, vector<128x512xbf16>, vector<8x512xf32> -> vector<8x512xf32>
    %54 = arith.addf %49, %53 : vector<8x512xf32>
    %55 = arith.truncf %42 : vector<8x128xf32> to vector<8x128xbf16>
    %c0_23 = arith.constant 0 : index
    %c0_24 = arith.constant 0 : index
    %56 = vector.load %arg4[%c0_23, %c0_24] : memref<128x512xbf16, #tpu.memory_space<vmem>>, vector<128x512xbf16>
    %cst_25 = arith.constant dense<0.000000e+00> : vector<8x512xf32>
    %57 = tpu.matmul %55, %56, %cst_25 {dimension_numbers = #tpu.dot_dimension_numbers<[1], [0], [0], [1], [0, 0, 1, 1], [], []>} : vector<8x128xbf16>, vector<128x512xbf16>, vector<8x512xf32> -> vector<8x512xf32>
    %58 = arith.addf %50, %57 : vector<8x512xf32>
    %59 = vector.extract_strided_slice %54 {offsets = [0, 0], sizes = [8, 128], strides = [1, 1]} : vector<8x512xf32> to vector<8x128xf32>
    %60 = arith.negf %59 : vector<8x128xf32>
    %61 = math.exp %60 : vector<8x128xf32>
    %cst_26 = arith.constant 1.000000e+00 : f32
    %62 = vector.broadcast %cst_26 : f32 to vector<8x128xf32>
    %63 = arith.addf %62, %61 : vector<8x128xf32>
    %64 = arith.divf %62, %63 : vector<8x128xf32>
    %65 = vector.extract_strided_slice %54 {offsets = [0, 256], sizes = [8, 128], strides = [1, 1]} : vector<8x512xf32> to vector<8x128xf32>
    %66 = math.tanh %65 : vector<8x128xf32>
    %67 = vector.extract_strided_slice %54 {offsets = [0, 384], sizes = [8, 128], strides = [1, 1]} : vector<8x512xf32> to vector<8x128xf32>
    %68 = arith.negf %67 : vector<8x128xf32>
    %69 = math.exp %68 : vector<8x128xf32>
    %cst_27 = arith.constant 1.000000e+00 : f32
    %70 = vector.broadcast %cst_27 : f32 to vector<8x128xf32>
    %71 = arith.addf %70, %69 : vector<8x128xf32>
    %72 = arith.divf %70, %71 : vector<8x128xf32>
    %73 = vector.extract_strided_slice %54 {offsets = [0, 128], sizes = [8, 128], strides = [1, 1]} : vector<8x512xf32> to vector<8x128xf32>
    %74 = arith.negf %73 : vector<8x128xf32>
    %75 = math.exp %74 : vector<8x128xf32>
    %cst_28 = arith.constant 1.000000e+00 : f32
    %76 = vector.broadcast %cst_28 : f32 to vector<8x128xf32>
    %77 = arith.addf %76, %75 : vector<8x128xf32>
    %78 = arith.divf %76, %77 : vector<8x128xf32>
    %79 = arith.mulf %78, %23 : vector<8x128xf32>
    %80 = arith.mulf %64, %66 : vector<8x128xf32>
    %81 = arith.addf %79, %80 : vector<8x128xf32>
    %82 = math.tanh %81 : vector<8x128xf32>
    %83 = arith.mulf %72, %82 : vector<8x128xf32>
    %84 = vector.extract_strided_slice %58 {offsets = [0, 0], sizes = [8, 128], strides = [1, 1]} : vector<8x512xf32> to vector<8x128xf32>
    %85 = arith.negf %84 : vector<8x128xf32>
    %86 = math.exp %85 : vector<8x128xf32>
    %cst_29 = arith.constant 1.000000e+00 : f32
    %87 = vector.broadcast %cst_29 : f32 to vector<8x128xf32>
    %88 = arith.addf %87, %86 : vector<8x128xf32>
    %89 = arith.divf %87, %88 : vector<8x128xf32>
    %90 = vector.extract_strided_slice %58 {offsets = [0, 256], sizes = [8, 128], strides = [1, 1]} : vector<8x512xf32> to vector<8x128xf32>
    %91 = math.tanh %90 : vector<8x128xf32>
    %92 = vector.extract_strided_slice %58 {offsets = [0, 384], sizes = [8, 128], strides = [1, 1]} : vector<8x512xf32> to vector<8x128xf32>
    %93 = arith.negf %92 : vector<8x128xf32>
    %94 = math.exp %93 : vector<8x128xf32>
    %cst_30 = arith.constant 1.000000e+00 : f32
    %95 = vector.broadcast %cst_30 : f32 to vector<8x128xf32>
    %96 = arith.addf %95, %94 : vector<8x128xf32>
    %97 = arith.divf %95, %96 : vector<8x128xf32>
    %98 = vector.extract_strided_slice %58 {offsets = [0, 128], sizes = [8, 128], strides = [1, 1]} : vector<8x512xf32> to vector<8x128xf32>
    %99 = arith.negf %98 : vector<8x128xf32>
    %100 = math.exp %99 : vector<8x128xf32>
    %cst_31 = arith.constant 1.000000e+00 : f32
    %101 = vector.broadcast %cst_31 : f32 to vector<8x128xf32>
    %102 = arith.addf %101, %100 : vector<8x128xf32>
    %103 = arith.divf %101, %102 : vector<8x128xf32>
    %104 = arith.mulf %103, %40 : vector<8x128xf32>
    %105 = arith.mulf %89, %91 : vector<8x128xf32>
    %106 = arith.addf %104, %105 : vector<8x128xf32>
    %107 = math.tanh %106 : vector<8x128xf32>
    %108 = arith.mulf %97, %107 : vector<8x128xf32>
    %c1 = arith.constant 1 : index
    %c0_32 = arith.constant 0 : index
    %c0_33 = arith.constant 0 : index
    %109 = vector.load %arg16[%c1, %c0_32, %c0_33] : memref<8x8x128xf32, #tpu.memory_space<vmem>>, vector<1x8x128xf32>
    %110 = vector.shape_cast %109 : vector<1x8x128xf32> to vector<8x128xf32>
    %111 = vector.shape_cast %83 : vector<8x128xf32> to vector<1x8x128xf32>
    tpu.vector_store %arg16[%c1, %c0_32, %c0_33], %111 {strides = array<i32>} : memref<8x8x128xf32, #tpu.memory_space<vmem>>, vector<1x8x128xf32>,
    %c6 = arith.constant 6 : index
    %c0_34 = arith.constant 0 : index
    %c0_35 = arith.constant 0 : index
    %112 = vector.load %arg17[%c6, %c0_34, %c0_35] : memref<8x8x128xf32, #tpu.memory_space<vmem>>, vector<1x8x128xf32>
    %113 = vector.shape_cast %112 : vector<1x8x128xf32> to vector<8x128xf32>
    %114 = vector.shape_cast %108 : vector<8x128xf32> to vector<1x8x128xf32>
    tpu.vector_store %arg17[%c6, %c0_34, %c0_35], %114 {strides = array<i32>} : memref<8x8x128xf32, #tpu.memory_space<vmem>>, vector<1x8x128xf32>,
    %c16 = arith.constant 16 : index
    %c0_36 = arith.constant 0 : index
    %115 = vector.load %arg18[%c16, %c0_36] : memref<64x1024xf32, #tpu.memory_space<vmem>>, vector<8x512xf32>
    %c40 = arith.constant 40 : index
    %c512_37 = arith.constant 512 : index
    %116 = vector.load %arg18[%c40, %c512_37] : memref<64x1024xf32, #tpu.memory_space<vmem>>, vector<8x512xf32>
    %117 = arith.truncf %83 : vector<8x128xf32> to vector<8x128xbf16>
    %c0_38 = arith.constant 0 : index
    %c0_39 = arith.constant 0 : index
    %118 = vector.load %arg3[%c0_38, %c0_39] : memref<128x512xbf16, #tpu.memory_space<vmem>>, vector<128x512xbf16>
    %cst_40 = arith.constant dense<0.000000e+00> : vector<8x512xf32>
    %119 = tpu.matmul %117, %118, %cst_40 {dimension_numbers = #tpu.dot_dimension_numbers<[1], [0], [0], [1], [0, 0, 1, 1], [], []>} : vector<8x128xbf16>, vector<128x512xbf16>, vector<8x512xf32> -> vector<8x512xf32>
    %120 = arith.addf %115, %119 : vector<8x512xf32>
    %121 = arith.truncf %108 : vector<8x128xf32> to vector<8x128xbf16>
    %c0_41 = arith.constant 0 : index
    %c0_42 = arith.constant 0 : index
    %122 = vector.load %arg4[%c0_41, %c0_42] : memref<128x512xbf16, #tpu.memory_space<vmem>>, vector<128x512xbf16>
    %cst_43 = arith.constant dense<0.000000e+00> : vector<8x512xf32>
    %123 = tpu.matmul %121, %122, %cst_43 {dimension_numbers = #tpu.dot_dimension_numbers<[1], [0], [0], [1], [0, 0, 1, 1], [], []>} : vector<8x128xbf16>, vector<128x512xbf16>, vector<8x512xf32> -> vector<8x512xf32>
    %124 = arith.addf %116, %123 : vector<8x512xf32>
    %125 = vector.extract_strided_slice %120 {offsets = [0, 0], sizes = [8, 128], strides = [1, 1]} : vector<8x512xf32> to vector<8x128xf32>
    %126 = arith.negf %125 : vector<8x128xf32>
    %127 = math.exp %126 : vector<8x128xf32>
    %cst_44 = arith.constant 1.000000e+00 : f32
    %128 = vector.broadcast %cst_44 : f32 to vector<8x128xf32>
    %129 = arith.addf %128, %127 : vector<8x128xf32>
    %130 = arith.divf %128, %129 : vector<8x128xf32>
    %131 = vector.extract_strided_slice %120 {offsets = [0, 256], sizes = [8, 128], strides = [1, 1]} : vector<8x512xf32> to vector<8x128xf32>
    %132 = math.tanh %131 : vector<8x128xf32>
    %133 = vector.extract_strided_slice %120 {offsets = [0, 384], sizes = [8, 128], strides = [1, 1]} : vector<8x512xf32> to vector<8x128xf32>
    %134 = arith.negf %133 : vector<8x128xf32>
    %135 = math.exp %134 : vector<8x128xf32>
    %cst_45 = arith.constant 1.000000e+00 : f32
    %136 = vector.broadcast %cst_45 : f32 to vector<8x128xf32>
    %137 = arith.addf %136, %135 : vector<8x128xf32>
    %138 = arith.divf %136, %137 : vector<8x128xf32>
    %139 = vector.extract_strided_slice %120 {offsets = [0, 128], sizes = [8, 128], strides = [1, 1]} : vector<8x512xf32> to vector<8x128xf32>
    %140 = arith.negf %139 : vector<8x128xf32>
    %141 = math.exp %140 : vector<8x128xf32>
    %cst_46 = arith.constant 1.000000e+00 : f32
    %142 = vector.broadcast %cst_46 : f32 to vector<8x128xf32>
    %143 = arith.addf %142, %141 : vector<8x128xf32>
    %144 = arith.divf %142, %143 : vector<8x128xf32>
    %145 = arith.mulf %144, %81 : vector<8x128xf32>
    %146 = arith.mulf %130, %132 : vector<8x128xf32>
    %147 = arith.addf %145, %146 : vector<8x128xf32>
    %148 = math.tanh %147 : vector<8x128xf32>
    %149 = arith.mulf %138, %148 : vector<8x128xf32>
    %150 = vector.extract_strided_slice %124 {offsets = [0, 0], sizes = [8, 128], strides = [1, 1]} : vector<8x512xf32> to vector<8x128xf32>
    %151 = arith.negf %150 : vector<8x128xf32>
    %152 = math.exp %151 : vector<8x128xf32>
    %cst_47 = arith.constant 1.000000e+00 : f32
    %153 = vector.broadcast %cst_47 : f32 to vector<8x128xf32>
    %154 = arith.addf %153, %152 : vector<8x128xf32>
    %155 = arith.divf %153, %154 : vector<8x128xf32>
    %156 = vector.extract_strided_slice %124 {offsets = [0, 256], sizes = [8, 128], strides = [1, 1]} : vector<8x512xf32> to vector<8x128xf32>
    %157 = math.tanh %156 : vector<8x128xf32>
    %158 = vector.extract_strided_slice %124 {offsets = [0, 384], sizes = [8, 128], strides = [1, 1]} : vector<8x512xf32> to vector<8x128xf32>
    %159 = arith.negf %158 : vector<8x128xf32>
    %160 = math.exp %159 : vector<8x128xf32>
    %cst_48 = arith.constant 1.000000e+00 : f32
    %161 = vector.broadcast %cst_48 : f32 to vector<8x128xf32>
    %162 = arith.addf %161, %160 : vector<8x128xf32>
    %163 = arith.divf %161, %162 : vector<8x128xf32>
    %164 = vector.extract_strided_slice %124 {offsets = [0, 128], sizes = [8, 128], strides = [1, 1]} : vector<8x512xf32> to vector<8x128xf32>
    %165 = arith.negf %164 : vector<8x128xf32>
    %166 = math.exp %165 : vector<8x128xf32>
    %cst_49 = arith.constant 1.000000e+00 : f32
    %167 = vector.broadcast %cst_49 : f32 to vector<8x128xf32>
    %168 = arith.addf %167, %166 : vector<8x128xf32>
    %169 = arith.divf %167, %168 : vector<8x128xf32>
    %170 = arith.mulf %169, %106 : vector<8x128xf32>
    %171 = arith.mulf %155, %157 : vector<8x128xf32>
    %172 = arith.addf %170, %171 : vector<8x128xf32>
    %173 = math.tanh %172 : vector<8x128xf32>
    %174 = arith.mulf %163, %173 : vector<8x128xf32>
    %c2 = arith.constant 2 : index
    %c0_50 = arith.constant 0 : index
    %c0_51 = arith.constant 0 : index
    %175 = vector.load %arg16[%c2, %c0_50, %c0_51] : memref<8x8x128xf32, #tpu.memory_space<vmem>>, vector<1x8x128xf32>
    %176 = vector.shape_cast %175 : vector<1x8x128xf32> to vector<8x128xf32>
    %177 = vector.shape_cast %149 : vector<8x128xf32> to vector<1x8x128xf32>
    tpu.vector_store %arg16[%c2, %c0_50, %c0_51], %177 {strides = array<i32>} : memref<8x8x128xf32, #tpu.memory_space<vmem>>, vector<1x8x128xf32>,
    %c5 = arith.constant 5 : index
    %c0_52 = arith.constant 0 : index
    %c0_53 = arith.constant 0 : index
    %178 = vector.load %arg17[%c5, %c0_52, %c0_53] : memref<8x8x128xf32, #tpu.memory_space<vmem>>, vector<1x8x128xf32>
    %179 = vector.shape_cast %178 : vector<1x8x128xf32> to vector<8x128xf32>
    %180 = vector.shape_cast %174 : vector<8x128xf32> to vector<1x8x128xf32>
    tpu.vector_store %arg17[%c5, %c0_52, %c0_53], %180 {strides = array<i32>} : memref<8x8x128xf32, #tpu.memory_space<vmem>>, vector<1x8x128xf32>,
    %c24 = arith.constant 24 : index
    %c0_54 = arith.constant 0 : index
    %181 = vector.load %arg18[%c24, %c0_54] : memref<64x1024xf32, #tpu.memory_space<vmem>>, vector<8x512xf32>
    %c32 = arith.constant 32 : index
    %c512_55 = arith.constant 512 : index
    %182 = vector.load %arg18[%c32, %c512_55] : memref<64x1024xf32, #tpu.memory_space<vmem>>, vector<8x512xf32>
    %183 = arith.truncf %149 : vector<8x128xf32> to vector<8x128xbf16>
    %c0_56 = arith.constant 0 : index
    %c0_57 = arith.constant 0 : index
    %184 = vector.load %arg3[%c0_56, %c0_57] : memref<128x512xbf16, #tpu.memory_space<vmem>>, vector<128x512xbf16>
    %cst_58 = arith.constant dense<0.000000e+00> : vector<8x512xf32>
    %185 = tpu.matmul %183, %184, %cst_58 {dimension_numbers = #tpu.dot_dimension_numbers<[1], [0], [0], [1], [0, 0, 1, 1], [], []>} : vector<8x128xbf16>, vector<128x512xbf16>, vector<8x512xf32> -> vector<8x512xf32>
    %186 = arith.addf %181, %185 : vector<8x512xf32>
    %187 = arith.truncf %174 : vector<8x128xf32> to vector<8x128xbf16>
    %c0_59 = arith.constant 0 : index
    %c0_60 = arith.constant 0 : index
    %188 = vector.load %arg4[%c0_59, %c0_60] : memref<128x512xbf16, #tpu.memory_space<vmem>>, vector<128x512xbf16>
    %cst_61 = arith.constant dense<0.000000e+00> : vector<8x512xf32>
    %189 = tpu.matmul %187, %188, %cst_61 {dimension_numbers = #tpu.dot_dimension_numbers<[1], [0], [0], [1], [0, 0, 1, 1], [], []>} : vector<8x128xbf16>, vector<128x512xbf16>, vector<8x512xf32> -> vector<8x512xf32>
    %190 = arith.addf %182, %189 : vector<8x512xf32>
    %191 = vector.extract_strided_slice %186 {offsets = [0, 0], sizes = [8, 128], strides = [1, 1]} : vector<8x512xf32> to vector<8x128xf32>
    %192 = arith.negf %191 : vector<8x128xf32>
    %193 = math.exp %192 : vector<8x128xf32>
    %cst_62 = arith.constant 1.000000e+00 : f32
    %194 = vector.broadcast %cst_62 : f32 to vector<8x128xf32>
    %195 = arith.addf %194, %193 : vector<8x128xf32>
    %196 = arith.divf %194, %195 : vector<8x128xf32>
    %197 = vector.extract_strided_slice %186 {offsets = [0, 256], sizes = [8, 128], strides = [1, 1]} : vector<8x512xf32> to vector<8x128xf32>
    %198 = math.tanh %197 : vector<8x128xf32>
    %199 = vector.extract_strided_slice %186 {offsets = [0, 384], sizes = [8, 128], strides = [1, 1]} : vector<8x512xf32> to vector<8x128xf32>
    %200 = arith.negf %199 : vector<8x128xf32>
    %201 = math.exp %200 : vector<8x128xf32>
    %cst_63 = arith.constant 1.000000e+00 : f32
    %202 = vector.broadcast %cst_63 : f32 to vector<8x128xf32>
    %203 = arith.addf %202, %201 : vector<8x128xf32>
    %204 = arith.divf %202, %203 : vector<8x128xf32>
    %205 = vector.extract_strided_slice %186 {offsets = [0, 128], sizes = [8, 128], strides = [1, 1]} : vector<8x512xf32> to vector<8x128xf32>
    %206 = arith.negf %205 : vector<8x128xf32>
    %207 = math.exp %206 : vector<8x128xf32>
    %cst_64 = arith.constant 1.000000e+00 : f32
    %208 = vector.broadcast %cst_64 : f32 to vector<8x128xf32>
    %209 = arith.addf %208, %207 : vector<8x128xf32>
    %210 = arith.divf %208, %209 : vector<8x128xf32>
    %211 = arith.mulf %210, %147 : vector<8x128xf32>
    %212 = arith.mulf %196, %198 : vector<8x128xf32>
    %213 = arith.addf %211, %212 : vector<8x128xf32>
    %214 = math.tanh %213 : vector<8x128xf32>
    %215 = arith.mulf %204, %214 : vector<8x128xf32>
    %216 = vector.extract_strided_slice %190 {offsets = [0, 0], sizes = [8, 128], strides = [1, 1]} : vector<8x512xf32> to vector<8x128xf32>
    %217 = arith.negf %216 : vector<8x128xf32>
    %218 = math.exp %217 : vector<8x128xf32>
    %cst_65 = arith.constant 1.000000e+00 : f32
    %219 = vector.broadcast %cst_65 : f32 to vector<8x128xf32>
    %220 = arith.addf %219, %218 : vector<8x128xf32>
    %221 = arith.divf %219, %220 : vector<8x128xf32>
    %222 = vector.extract_strided_slice %190 {offsets = [0, 256], sizes = [8, 128], strides = [1, 1]} : vector<8x512xf32> to vector<8x128xf32>
    %223 = math.tanh %222 : vector<8x128xf32>
    %224 = vector.extract_strided_slice %190 {offsets = [0, 384], sizes = [8, 128], strides = [1, 1]} : vector<8x512xf32> to vector<8x128xf32>
    %225 = arith.negf %224 : vector<8x128xf32>
    %226 = math.exp %225 : vector<8x128xf32>
    %cst_66 = arith.constant 1.000000e+00 : f32
    %227 = vector.broadcast %cst_66 : f32 to vector<8x128xf32>
    %228 = arith.addf %227, %226 : vector<8x128xf32>
    %229 = arith.divf %227, %228 : vector<8x128xf32>
    %230 = vector.extract_strided_slice %190 {offsets = [0, 128], sizes = [8, 128], strides = [1, 1]} : vector<8x512xf32> to vector<8x128xf32>
    %231 = arith.negf %230 : vector<8x128xf32>
    %232 = math.exp %231 : vector<8x128xf32>
    %cst_67 = arith.constant 1.000000e+00 : f32
    %233 = vector.broadcast %cst_67 : f32 to vector<8x128xf32>
    %234 = arith.addf %233, %232 : vector<8x128xf32>
    %235 = arith.divf %233, %234 : vector<8x128xf32>
    %236 = arith.mulf %235, %172 : vector<8x128xf32>
    %237 = arith.mulf %221, %223 : vector<8x128xf32>
    %238 = arith.addf %236, %237 : vector<8x128xf32>
    %239 = math.tanh %238 : vector<8x128xf32>
    %240 = arith.mulf %229, %239 : vector<8x128xf32>
    %c3 = arith.constant 3 : index
    %c0_68 = arith.constant 0 : index
    %c0_69 = arith.constant 0 : index
    %241 = vector.load %arg16[%c3, %c0_68, %c0_69] : memref<8x8x128xf32, #tpu.memory_space<vmem>>, vector<1x8x128xf32>
    %242 = vector.shape_cast %241 : vector<1x8x128xf32> to vector<8x128xf32>
    %243 = vector.shape_cast %215 : vector<8x128xf32> to vector<1x8x128xf32>
    tpu.vector_store %arg16[%c3, %c0_68, %c0_69], %243 {strides = array<i32>} : memref<8x8x128xf32, #tpu.memory_space<vmem>>, vector<1x8x128xf32>,
    %c4 = arith.constant 4 : index
    %c0_70 = arith.constant 0 : index
    %c0_71 = arith.constant 0 : index
    %244 = vector.load %arg17[%c4, %c0_70, %c0_71] : memref<8x8x128xf32, #tpu.memory_space<vmem>>, vector<1x8x128xf32>
    %245 = vector.shape_cast %244 : vector<1x8x128xf32> to vector<8x128xf32>
    %246 = vector.shape_cast %240 : vector<8x128xf32> to vector<1x8x128xf32>
    tpu.vector_store %arg17[%c4, %c0_70, %c0_71], %246 {strides = array<i32>} : memref<8x8x128xf32, #tpu.memory_space<vmem>>, vector<1x8x128xf32>,
    %c32_72 = arith.constant 32 : index
    %c0_73 = arith.constant 0 : index
    %247 = vector.load %arg18[%c32_72, %c0_73] : memref<64x1024xf32, #tpu.memory_space<vmem>>, vector<8x512xf32>
    %c24_74 = arith.constant 24 : index
    %c512_75 = arith.constant 512 : index
    %248 = vector.load %arg18[%c24_74, %c512_75] : memref<64x1024xf32, #tpu.memory_space<vmem>>, vector<8x512xf32>
    %249 = arith.truncf %215 : vector<8x128xf32> to vector<8x128xbf16>
    %c0_76 = arith.constant 0 : index
    %c0_77 = arith.constant 0 : index
    %250 = vector.load %arg3[%c0_76, %c0_77] : memref<128x512xbf16, #tpu.memory_space<vmem>>, vector<128x512xbf16>
    %cst_78 = arith.constant dense<0.000000e+00> : vector<8x512xf32>
    %251 = tpu.matmul %249, %250, %cst_78 {dimension_numbers = #tpu.dot_dimension_numbers<[1], [0], [0], [1], [0, 0, 1, 1], [], []>} : vector<8x128xbf16>, vector<128x512xbf16>, vector<8x512xf32> -> vector<8x512xf32>
    %252 = arith.addf %247, %251 : vector<8x512xf32>
    %253 = arith.truncf %240 : vector<8x128xf32> to vector<8x128xbf16>
    %c0_79 = arith.constant 0 : index
    %c0_80 = arith.constant 0 : index
    %254 = vector.load %arg4[%c0_79, %c0_80] : memref<128x512xbf16, #tpu.memory_space<vmem>>, vector<128x512xbf16>
    %cst_81 = arith.constant dense<0.000000e+00> : vector<8x512xf32>
    %255 = tpu.matmul %253, %254, %cst_81 {dimension_numbers = #tpu.dot_dimension_numbers<[1], [0], [0], [1], [0, 0, 1, 1], [], []>} : vector<8x128xbf16>, vector<128x512xbf16>, vector<8x512xf32> -> vector<8x512xf32>
    %256 = arith.addf %248, %255 : vector<8x512xf32>
    %257 = vector.extract_strided_slice %252 {offsets = [0, 0], sizes = [8, 128], strides = [1, 1]} : vector<8x512xf32> to vector<8x128xf32>
    %258 = arith.negf %257 : vector<8x128xf32>
    %259 = math.exp %258 : vector<8x128xf32>
    %cst_82 = arith.constant 1.000000e+00 : f32
    %260 = vector.broadcast %cst_82 : f32 to vector<8x128xf32>
    %261 = arith.addf %260, %259 : vector<8x128xf32>
    %262 = arith.divf %260, %261 : vector<8x128xf32>
    %263 = vector.extract_strided_slice %252 {offsets = [0, 256], sizes = [8, 128], strides = [1, 1]} : vector<8x512xf32> to vector<8x128xf32>
    %264 = math.tanh %263 : vector<8x128xf32>
    %265 = vector.extract_strided_slice %252 {offsets = [0, 384], sizes = [8, 128], strides = [1, 1]} : vector<8x512xf32> to vector<8x128xf32>
    %266 = arith.negf %265 : vector<8x128xf32>
    %267 = math.exp %266 : vector<8x128xf32>
    %cst_83 = arith.constant 1.000000e+00 : f32
    %268 = vector.broadcast %cst_83 : f32 to vector<8x128xf32>
    %269 = arith.addf %268, %267 : vector<8x128xf32>
    %270 = arith.divf %268, %269 : vector<8x128xf32>
    %271 = vector.extract_strided_slice %252 {offsets = [0, 128], sizes = [8, 128], strides = [1, 1]} : vector<8x512xf32> to vector<8x128xf32>
    %272 = arith.negf %271 : vector<8x128xf32>
    %273 = math.exp %272 : vector<8x128xf32>
    %cst_84 = arith.constant 1.000000e+00 : f32
    %274 = vector.broadcast %cst_84 : f32 to vector<8x128xf32>
    %275 = arith.addf %274, %273 : vector<8x128xf32>
    %276 = arith.divf %274, %275 : vector<8x128xf32>
    %277 = arith.mulf %276, %213 : vector<8x128xf32>
    %278 = arith.mulf %262, %264 : vector<8x128xf32>
    %279 = arith.addf %277, %278 : vector<8x128xf32>
    %280 = math.tanh %279 : vector<8x128xf32>
    %281 = arith.mulf %270, %280 : vector<8x128xf32>
    %282 = vector.extract_strided_slice %256 {offsets = [0, 0], sizes = [8, 128], strides = [1, 1]} : vector<8x512xf32> to vector<8x128xf32>
    %283 = arith.negf %282 : vector<8x128xf32>
    %284 = math.exp %283 : vector<8x128xf32>
    %cst_85 = arith.constant 1.000000e+00 : f32
    %285 = vector.broadcast %cst_85 : f32 to vector<8x128xf32>
    %286 = arith.addf %285, %284 : vector<8x128xf32>
    %287 = arith.divf %285, %286 : vector<8x128xf32>
    %288 = vector.extract_strided_slice %256 {offsets = [0, 256], sizes = [8, 128], strides = [1, 1]} : vector<8x512xf32> to vector<8x128xf32>
    %289 = math.tanh %288 : vector<8x128xf32>
    %290 = vector.extract_strided_slice %256 {offsets = [0, 384], sizes = [8, 128], strides = [1, 1]} : vector<8x512xf32> to vector<8x128xf32>
    %291 = arith.negf %290 : vector<8x128xf32>
    %292 = math.exp %291 : vector<8x128xf32>
    %cst_86 = arith.constant 1.000000e+00 : f32
    %293 = vector.broadcast %cst_86 : f32 to vector<8x128xf32>
    %294 = arith.addf %293, %292 : vector<8x128xf32>
    %295 = arith.divf %293, %294 : vector<8x128xf32>
    %296 = vector.extract_strided_slice %256 {offsets = [0, 128], sizes = [8, 128], strides = [1, 1]} : vector<8x512xf32> to vector<8x128xf32>
    %297 = arith.negf %296 : vector<8x128xf32>
    %298 = math.exp %297 : vector<8x128xf32>
    %cst_87 = arith.constant 1.000000e+00 : f32
    %299 = vector.broadcast %cst_87 : f32 to vector<8x128xf32>
    %300 = arith.addf %299, %298 : vector<8x128xf32>
    %301 = arith.divf %299, %300 : vector<8x128xf32>
    %302 = arith.mulf %301, %238 : vector<8x128xf32>
    %303 = arith.mulf %287, %289 : vector<8x128xf32>
    %304 = arith.addf %302, %303 : vector<8x128xf32>
    %305 = math.tanh %304 : vector<8x128xf32>
    %306 = arith.mulf %295, %305 : vector<8x128xf32>
    %c4_88 = arith.constant 4 : index
    %c0_89 = arith.constant 0 : index
    %c0_90 = arith.constant 0 : index
    %307 = vector.load %arg16[%c4_88, %c0_89, %c0_90] : memref<8x8x128xf32, #tpu.memory_space<vmem>>, vector<1x8x128xf32>
    %308 = vector.shape_cast %307 : vector<1x8x128xf32> to vector<8x128xf32>
    %309 = vector.shape_cast %281 : vector<8x128xf32> to vector<1x8x128xf32>
    tpu.vector_store %arg16[%c4_88, %c0_89, %c0_90], %309 {strides = array<i32>} : memref<8x8x128xf32, #tpu.memory_space<vmem>>, vector<1x8x128xf32>,
    %c3_91 = arith.constant 3 : index
    %c0_92 = arith.constant 0 : index
    %c0_93 = arith.constant 0 : index
    %310 = vector.load %arg17[%c3_91, %c0_92, %c0_93] : memref<8x8x128xf32, #tpu.memory_space<vmem>>, vector<1x8x128xf32>
    %311 = vector.shape_cast %310 : vector<1x8x128xf32> to vector<8x128xf32>
    %312 = vector.shape_cast %306 : vector<8x128xf32> to vector<1x8x128xf32>
    tpu.vector_store %arg17[%c3_91, %c0_92, %c0_93], %312 {strides = array<i32>} : memref<8x8x128xf32, #tpu.memory_space<vmem>>, vector<1x8x128xf32>,
    %c40_94 = arith.constant 40 : index
    %c0_95 = arith.constant 0 : index
    %313 = vector.load %arg18[%c40_94, %c0_95] : memref<64x1024xf32, #tpu.memory_space<vmem>>, vector<8x512xf32>
    %c16_96 = arith.constant 16 : index
    %c512_97 = arith.constant 512 : index
    %314 = vector.load %arg18[%c16_96, %c512_97] : memref<64x1024xf32, #tpu.memory_space<vmem>>, vector<8x512xf32>
    %315 = arith.truncf %281 : vector<8x128xf32> to vector<8x128xbf16>
    %c0_98 = arith.constant 0 : index
    %c0_99 = arith.constant 0 : index
    %316 = vector.load %arg3[%c0_98, %c0_99] : memref<128x512xbf16, #tpu.memory_space<vmem>>, vector<128x512xbf16>
    %cst_100 = arith.constant dense<0.000000e+00> : vector<8x512xf32>
    %317 = tpu.matmul %315, %316, %cst_100 {dimension_numbers = #tpu.dot_dimension_numbers<[1], [0], [0], [1], [0, 0, 1, 1], [], []>} : vector<8x128xbf16>, vector<128x512xbf16>, vector<8x512xf32> -> vector<8x512xf32>
    %318 = arith.addf %313, %317 : vector<8x512xf32>
    %319 = arith.truncf %306 : vector<8x128xf32> to vector<8x128xbf16>
    %c0_101 = arith.constant 0 : index
    %c0_102 = arith.constant 0 : index
    %320 = vector.load %arg4[%c0_101, %c0_102] : memref<128x512xbf16, #tpu.memory_space<vmem>>, vector<128x512xbf16>
    %cst_103 = arith.constant dense<0.000000e+00> : vector<8x512xf32>
    %321 = tpu.matmul %319, %320, %cst_103 {dimension_numbers = #tpu.dot_dimension_numbers<[1], [0], [0], [1], [0, 0, 1, 1], [], []>} : vector<8x128xbf16>, vector<128x512xbf16>, vector<8x512xf32> -> vector<8x512xf32>
    %322 = arith.addf %314, %321 : vector<8x512xf32>
    %323 = vector.extract_strided_slice %318 {offsets = [0, 0], sizes = [8, 128], strides = [1, 1]} : vector<8x512xf32> to vector<8x128xf32>
    %324 = arith.negf %323 : vector<8x128xf32>
    %325 = math.exp %324 : vector<8x128xf32>
    %cst_104 = arith.constant 1.000000e+00 : f32
    %326 = vector.broadcast %cst_104 : f32 to vector<8x128xf32>
    %327 = arith.addf %326, %325 : vector<8x128xf32>
    %328 = arith.divf %326, %327 : vector<8x128xf32>
    %329 = vector.extract_strided_slice %318 {offsets = [0, 256], sizes = [8, 128], strides = [1, 1]} : vector<8x512xf32> to vector<8x128xf32>
    %330 = math.tanh %329 : vector<8x128xf32>
    %331 = vector.extract_strided_slice %318 {offsets = [0, 384], sizes = [8, 128], strides = [1, 1]} : vector<8x512xf32> to vector<8x128xf32>
    %332 = arith.negf %331 : vector<8x128xf32>
    %333 = math.exp %332 : vector<8x128xf32>
    %cst_105 = arith.constant 1.000000e+00 : f32
    %334 = vector.broadcast %cst_105 : f32 to vector<8x128xf32>
    %335 = arith.addf %334, %333 : vector<8x128xf32>
    %336 = arith.divf %334, %335 : vector<8x128xf32>
    %337 = vector.extract_strided_slice %318 {offsets = [0, 128], sizes = [8, 128], strides = [1, 1]} : vector<8x512xf32> to vector<8x128xf32>
    %338 = arith.negf %337 : vector<8x128xf32>
    %339 = math.exp %338 : vector<8x128xf32>
    %cst_106 = arith.constant 1.000000e+00 : f32
    %340 = vector.broadcast %cst_106 : f32 to vector<8x128xf32>
    %341 = arith.addf %340, %339 : vector<8x128xf32>
    %342 = arith.divf %340, %341 : vector<8x128xf32>
    %343 = arith.mulf %342, %279 : vector<8x128xf32>
    %344 = arith.mulf %328, %330 : vector<8x128xf32>
    %345 = arith.addf %343, %344 : vector<8x128xf32>
    %346 = math.tanh %345 : vector<8x128xf32>
    %347 = arith.mulf %336, %346 : vector<8x128xf32>
    %348 = vector.extract_strided_slice %322 {offsets = [0, 0], sizes = [8, 128], strides = [1, 1]} : vector<8x512xf32> to vector<8x128xf32>
    %349 = arith.negf %348 : vector<8x128xf32>
    %350 = math.exp %349 : vector<8x128xf32>
    %cst_107 = arith.constant 1.000000e+00 : f32
    %351 = vector.broadcast %cst_107 : f32 to vector<8x128xf32>
    %352 = arith.addf %351, %350 : vector<8x128xf32>
    %353 = arith.divf %351, %352 : vector<8x128xf32>
    %354 = vector.extract_strided_slice %322 {offsets = [0, 256], sizes = [8, 128], strides = [1, 1]} : vector<8x512xf32> to vector<8x128xf32>
    %355 = math.tanh %354 : vector<8x128xf32>
    %356 = vector.extract_strided_slice %322 {offsets = [0, 384], sizes = [8, 128], strides = [1, 1]} : vector<8x512xf32> to vector<8x128xf32>
    %357 = arith.negf %356 : vector<8x128xf32>
    %358 = math.exp %357 : vector<8x128xf32>
    %cst_108 = arith.constant 1.000000e+00 : f32
    %359 = vector.broadcast %cst_108 : f32 to vector<8x128xf32>
    %360 = arith.addf %359, %358 : vector<8x128xf32>
    %361 = arith.divf %359, %360 : vector<8x128xf32>
    %362 = vector.extract_strided_slice %322 {offsets = [0, 128], sizes = [8, 128], strides = [1, 1]} : vector<8x512xf32> to vector<8x128xf32>
    %363 = arith.negf %362 : vector<8x128xf32>
    %364 = math.exp %363 : vector<8x128xf32>
    %cst_109 = arith.constant 1.000000e+00 : f32
    %365 = vector.broadcast %cst_109 : f32 to vector<8x128xf32>
    %366 = arith.addf %365, %364 : vector<8x128xf32>
    %367 = arith.divf %365, %366 : vector<8x128xf32>
    %368 = arith.mulf %367, %304 : vector<8x128xf32>
    %369 = arith.mulf %353, %355 : vector<8x128xf32>
    %370 = arith.addf %368, %369 : vector<8x128xf32>
    %371 = math.tanh %370 : vector<8x128xf32>
    %372 = arith.mulf %361, %371 : vector<8x128xf32>
    %c5_110 = arith.constant 5 : index
    %c0_111 = arith.constant 0 : index
    %c0_112 = arith.constant 0 : index
    %373 = vector.load %arg16[%c5_110, %c0_111, %c0_112] : memref<8x8x128xf32, #tpu.memory_space<vmem>>, vector<1x8x128xf32>
    %374 = vector.shape_cast %373 : vector<1x8x128xf32> to vector<8x128xf32>
    %375 = vector.shape_cast %347 : vector<8x128xf32> to vector<1x8x128xf32>
    tpu.vector_store %arg16[%c5_110, %c0_111, %c0_112], %375 {strides = array<i32>} : memref<8x8x128xf32, #tpu.memory_space<vmem>>, vector<1x8x128xf32>,
    %c2_113 = arith.constant 2 : index
    %c0_114 = arith.constant 0 : index
    %c0_115 = arith.constant 0 : index
    %376 = vector.load %arg17[%c2_113, %c0_114, %c0_115] : memref<8x8x128xf32, #tpu.memory_space<vmem>>, vector<1x8x128xf32>
    %377 = vector.shape_cast %376 : vector<1x8x128xf32> to vector<8x128xf32>
    %378 = vector.shape_cast %372 : vector<8x128xf32> to vector<1x8x128xf32>
    tpu.vector_store %arg17[%c2_113, %c0_114, %c0_115], %378 {strides = array<i32>} : memref<8x8x128xf32, #tpu.memory_space<vmem>>, vector<1x8x128xf32>,
    %c48_116 = arith.constant 48 : index
    %c0_117 = arith.constant 0 : index
    %379 = vector.load %arg18[%c48_116, %c0_117] : memref<64x1024xf32, #tpu.memory_space<vmem>>, vector<8x512xf32>
    %c8_118 = arith.constant 8 : index
    %c512_119 = arith.constant 512 : index
    %380 = vector.load %arg18[%c8_118, %c512_119] : memref<64x1024xf32, #tpu.memory_space<vmem>>, vector<8x512xf32>
    %381 = arith.truncf %347 : vector<8x128xf32> to vector<8x128xbf16>
    %c0_120 = arith.constant 0 : index
    %c0_121 = arith.constant 0 : index
    %382 = vector.load %arg3[%c0_120, %c0_121] : memref<128x512xbf16, #tpu.memory_space<vmem>>, vector<128x512xbf16>
    %cst_122 = arith.constant dense<0.000000e+00> : vector<8x512xf32>
    %383 = tpu.matmul %381, %382, %cst_122 {dimension_numbers = #tpu.dot_dimension_numbers<[1], [0], [0], [1], [0, 0, 1, 1], [], []>} : vector<8x128xbf16>, vector<128x512xbf16>, vector<8x512xf32> -> vector<8x512xf32>
    %384 = arith.addf %379, %383 : vector<8x512xf32>
    %385 = arith.truncf %372 : vector<8x128xf32> to vector<8x128xbf16>
    %c0_123 = arith.constant 0 : index
    %c0_124 = arith.constant 0 : index
    %386 = vector.load %arg4[%c0_123, %c0_124] : memref<128x512xbf16, #tpu.memory_space<vmem>>, vector<128x512xbf16>
    %cst_125 = arith.constant dense<0.000000e+00> : vector<8x512xf32>
    %387 = tpu.matmul %385, %386, %cst_125 {dimension_numbers = #tpu.dot_dimension_numbers<[1], [0], [0], [1], [0, 0, 1, 1], [], []>} : vector<8x128xbf16>, vector<128x512xbf16>, vector<8x512xf32> -> vector<8x512xf32>
    %388 = arith.addf %380, %387 : vector<8x512xf32>
    %389 = vector.extract_strided_slice %384 {offsets = [0, 0], sizes = [8, 128], strides = [1, 1]} : vector<8x512xf32> to vector<8x128xf32>
    %390 = arith.negf %389 : vector<8x128xf32>
    %391 = math.exp %390 : vector<8x128xf32>
    %cst_126 = arith.constant 1.000000e+00 : f32
    %392 = vector.broadcast %cst_126 : f32 to vector<8x128xf32>
    %393 = arith.addf %392, %391 : vector<8x128xf32>
    %394 = arith.divf %392, %393 : vector<8x128xf32>
    %395 = vector.extract_strided_slice %384 {offsets = [0, 256], sizes = [8, 128], strides = [1, 1]} : vector<8x512xf32> to vector<8x128xf32>
    %396 = math.tanh %395 : vector<8x128xf32>
    %397 = vector.extract_strided_slice %384 {offsets = [0, 384], sizes = [8, 128], strides = [1, 1]} : vector<8x512xf32> to vector<8x128xf32>
    %398 = arith.negf %397 : vector<8x128xf32>
    %399 = math.exp %398 : vector<8x128xf32>
    %cst_127 = arith.constant 1.000000e+00 : f32
    %400 = vector.broadcast %cst_127 : f32 to vector<8x128xf32>
    %401 = arith.addf %400, %399 : vector<8x128xf32>
    %402 = arith.divf %400, %401 : vector<8x128xf32>
    %403 = vector.extract_strided_slice %384 {offsets = [0, 128], sizes = [8, 128], strides = [1, 1]} : vector<8x512xf32> to vector<8x128xf32>
    %404 = arith.negf %403 : vector<8x128xf32>
    %405 = math.exp %404 : vector<8x128xf32>
    %cst_128 = arith.constant 1.000000e+00 : f32
    %406 = vector.broadcast %cst_128 : f32 to vector<8x128xf32>
    %407 = arith.addf %406, %405 : vector<8x128xf32>
    %408 = arith.divf %406, %407 : vector<8x128xf32>
    %409 = arith.mulf %408, %345 : vector<8x128xf32>
    %410 = arith.mulf %394, %396 : vector<8x128xf32>
    %411 = arith.addf %409, %410 : vector<8x128xf32>
    %412 = math.tanh %411 : vector<8x128xf32>
    %413 = arith.mulf %402, %412 : vector<8x128xf32>
    %414 = vector.extract_strided_slice %388 {offsets = [0, 0], sizes = [8, 128], strides = [1, 1]} : vector<8x512xf32> to vector<8x128xf32>
    %415 = arith.negf %414 : vector<8x128xf32>
    %416 = math.exp %415 : vector<8x128xf32>
    %cst_129 = arith.constant 1.000000e+00 : f32
    %417 = vector.broadcast %cst_129 : f32 to vector<8x128xf32>
    %418 = arith.addf %417, %416 : vector<8x128xf32>
    %419 = arith.divf %417, %418 : vector<8x128xf32>
    %420 = vector.extract_strided_slice %388 {offsets = [0, 256], sizes = [8, 128], strides = [1, 1]} : vector<8x512xf32> to vector<8x128xf32>
    %421 = math.tanh %420 : vector<8x128xf32>
    %422 = vector.extract_strided_slice %388 {offsets = [0, 384], sizes = [8, 128], strides = [1, 1]} : vector<8x512xf32> to vector<8x128xf32>
    %423 = arith.negf %422 : vector<8x128xf32>
    %424 = math.exp %423 : vector<8x128xf32>
    %cst_130 = arith.constant 1.000000e+00 : f32
    %425 = vector.broadcast %cst_130 : f32 to vector<8x128xf32>
    %426 = arith.addf %425, %424 : vector<8x128xf32>
    %427 = arith.divf %425, %426 : vector<8x128xf32>
    %428 = vector.extract_strided_slice %388 {offsets = [0, 128], sizes = [8, 128], strides = [1, 1]} : vector<8x512xf32> to vector<8x128xf32>
    %429 = arith.negf %428 : vector<8x128xf32>
    %430 = math.exp %429 : vector<8x128xf32>
    %cst_131 = arith.constant 1.000000e+00 : f32
    %431 = vector.broadcast %cst_131 : f32 to vector<8x128xf32>
    %432 = arith.addf %431, %430 : vector<8x128xf32>
    %433 = arith.divf %431, %432 : vector<8x128xf32>
    %434 = arith.mulf %433, %370 : vector<8x128xf32>
    %435 = arith.mulf %419, %421 : vector<8x128xf32>
    %436 = arith.addf %434, %435 : vector<8x128xf32>
    %437 = math.tanh %436 : vector<8x128xf32>
    %438 = arith.mulf %427, %437 : vector<8x128xf32>
    %c6_132 = arith.constant 6 : index
    %c0_133 = arith.constant 0 : index
    %c0_134 = arith.constant 0 : index
    %439 = vector.load %arg16[%c6_132, %c0_133, %c0_134] : memref<8x8x128xf32, #tpu.memory_space<vmem>>, vector<1x8x128xf32>
    %440 = vector.shape_cast %439 : vector<1x8x128xf32> to vector<8x128xf32>
    %441 = vector.shape_cast %413 : vector<8x128xf32> to vector<1x8x128xf32>
    tpu.vector_store %arg16[%c6_132, %c0_133, %c0_134], %441 {strides = array<i32>} : memref<8x8x128xf32, #tpu.memory_space<vmem>>, vector<1x8x128xf32>,
    %c1_135 = arith.constant 1 : index
    %c0_136 = arith.constant 0 : index
    %c0_137 = arith.constant 0 : index
    %442 = vector.load %arg17[%c1_135, %c0_136, %c0_137] : memref<8x8x128xf32, #tpu.memory_space<vmem>>, vector<1x8x128xf32>
    %443 = vector.shape_cast %442 : vector<1x8x128xf32> to vector<8x128xf32>
    %444 = vector.shape_cast %438 : vector<8x128xf32> to vector<1x8x128xf32>
    tpu.vector_store %arg17[%c1_135, %c0_136, %c0_137], %444 {strides = array<i32>} : memref<8x8x128xf32, #tpu.memory_space<vmem>>, vector<1x8x128xf32>,
    %c56_138 = arith.constant 56 : index
    %c0_139 = arith.constant 0 : index
    %445 = vector.load %arg18[%c56_138, %c0_139] : memref<64x1024xf32, #tpu.memory_space<vmem>>, vector<8x512xf32>
    %c0_140 = arith.constant 0 : index
    %c512_141 = arith.constant 512 : index
    %446 = vector.load %arg18[%c0_140, %c512_141] : memref<64x1024xf32, #tpu.memory_space<vmem>>, vector<8x512xf32>
    %447 = arith.truncf %413 : vector<8x128xf32> to vector<8x128xbf16>
    %c0_142 = arith.constant 0 : index
    %c0_143 = arith.constant 0 : index
    %448 = vector.load %arg3[%c0_142, %c0_143] : memref<128x512xbf16, #tpu.memory_space<vmem>>, vector<128x512xbf16>
    %cst_144 = arith.constant dense<0.000000e+00> : vector<8x512xf32>
    %449 = tpu.matmul %447, %448, %cst_144 {dimension_numbers = #tpu.dot_dimension_numbers<[1], [0], [0], [1], [0, 0, 1, 1], [], []>} : vector<8x128xbf16>, vector<128x512xbf16>, vector<8x512xf32> -> vector<8x512xf32>
    %450 = arith.addf %445, %449 : vector<8x512xf32>
    %451 = arith.truncf %438 : vector<8x128xf32> to vector<8x128xbf16>
    %c0_145 = arith.constant 0 : index
    %c0_146 = arith.constant 0 : index
    %452 = vector.load %arg4[%c0_145, %c0_146] : memref<128x512xbf16, #tpu.memory_space<vmem>>, vector<128x512xbf16>
    %cst_147 = arith.constant dense<0.000000e+00> : vector<8x512xf32>
    %453 = tpu.matmul %451, %452, %cst_147 {dimension_numbers = #tpu.dot_dimension_numbers<[1], [0], [0], [1], [0, 0, 1, 1], [], []>} : vector<8x128xbf16>, vector<128x512xbf16>, vector<8x512xf32> -> vector<8x512xf32>
    %454 = arith.addf %446, %453 : vector<8x512xf32>
    %455 = vector.extract_strided_slice %450 {offsets = [0, 0], sizes = [8, 128], strides = [1, 1]} : vector<8x512xf32> to vector<8x128xf32>
    %456 = arith.negf %455 : vector<8x128xf32>
    %457 = math.exp %456 : vector<8x128xf32>
    %cst_148 = arith.constant 1.000000e+00 : f32
    %458 = vector.broadcast %cst_148 : f32 to vector<8x128xf32>
    %459 = arith.addf %458, %457 : vector<8x128xf32>
    %460 = arith.divf %458, %459 : vector<8x128xf32>
    %461 = vector.extract_strided_slice %450 {offsets = [0, 256], sizes = [8, 128], strides = [1, 1]} : vector<8x512xf32> to vector<8x128xf32>
    %462 = math.tanh %461 : vector<8x128xf32>
    %463 = vector.extract_strided_slice %450 {offsets = [0, 384], sizes = [8, 128], strides = [1, 1]} : vector<8x512xf32> to vector<8x128xf32>
    %464 = arith.negf %463 : vector<8x128xf32>
    %465 = math.exp %464 : vector<8x128xf32>
    %cst_149 = arith.constant 1.000000e+00 : f32
    %466 = vector.broadcast %cst_149 : f32 to vector<8x128xf32>
    %467 = arith.addf %466, %465 : vector<8x128xf32>
    %468 = arith.divf %466, %467 : vector<8x128xf32>
    %469 = vector.extract_strided_slice %450 {offsets = [0, 128], sizes = [8, 128], strides = [1, 1]} : vector<8x512xf32> to vector<8x128xf32>
    %470 = arith.negf %469 : vector<8x128xf32>
    %471 = math.exp %470 : vector<8x128xf32>
    %cst_150 = arith.constant 1.000000e+00 : f32
    %472 = vector.broadcast %cst_150 : f32 to vector<8x128xf32>
    %473 = arith.addf %472, %471 : vector<8x128xf32>
    %474 = arith.divf %472, %473 : vector<8x128xf32>
    %475 = arith.mulf %474, %411 : vector<8x128xf32>
    %476 = arith.mulf %460, %462 : vector<8x128xf32>
    %477 = arith.addf %475, %476 : vector<8x128xf32>
    %478 = math.tanh %477 : vector<8x128xf32>
    %479 = arith.mulf %468, %478 : vector<8x128xf32>
    %480 = vector.extract_strided_slice %454 {offsets = [0, 0], sizes = [8, 128], strides = [1, 1]} : vector<8x512xf32> to vector<8x128xf32>
    %481 = arith.negf %480 : vector<8x128xf32>
    %482 = math.exp %481 : vector<8x128xf32>
    %cst_151 = arith.constant 1.000000e+00 : f32
    %483 = vector.broadcast %cst_151 : f32 to vector<8x128xf32>
    %484 = arith.addf %483, %482 : vector<8x128xf32>
    %485 = arith.divf %483, %484 : vector<8x128xf32>
    %486 = vector.extract_strided_slice %454 {offsets = [0, 256], sizes = [8, 128], strides = [1, 1]} : vector<8x512xf32> to vector<8x128xf32>
    %487 = math.tanh %486 : vector<8x128xf32>
    %488 = vector.extract_strided_slice %454 {offsets = [0, 384], sizes = [8, 128], strides = [1, 1]} : vector<8x512xf32> to vector<8x128xf32>
    %489 = arith.negf %488 : vector<8x128xf32>
    %490 = math.exp %489 : vector<8x128xf32>
    %cst_152 = arith.constant 1.000000e+00 : f32
    %491 = vector.broadcast %cst_152 : f32 to vector<8x128xf32>
    %492 = arith.addf %491, %490 : vector<8x128xf32>
    %493 = arith.divf %491, %492 : vector<8x128xf32>
    %494 = vector.extract_strided_slice %454 {offsets = [0, 128], sizes = [8, 128], strides = [1, 1]} : vector<8x512xf32> to vector<8x128xf32>
    %495 = arith.negf %494 : vector<8x128xf32>
    %496 = math.exp %495 : vector<8x128xf32>
    %cst_153 = arith.constant 1.000000e+00 : f32
    %497 = vector.broadcast %cst_153 : f32 to vector<8x128xf32>
    %498 = arith.addf %497, %496 : vector<8x128xf32>
    %499 = arith.divf %497, %498 : vector<8x128xf32>
    %500 = arith.mulf %499, %436 : vector<8x128xf32>
    %501 = arith.mulf %485, %487 : vector<8x128xf32>
    %502 = arith.addf %500, %501 : vector<8x128xf32>
    %503 = math.tanh %502 : vector<8x128xf32>
    %504 = arith.mulf %493, %503 : vector<8x128xf32>
    %c7_154 = arith.constant 7 : index
    %c0_155 = arith.constant 0 : index
    %c0_156 = arith.constant 0 : index
    %505 = vector.load %arg16[%c7_154, %c0_155, %c0_156] : memref<8x8x128xf32, #tpu.memory_space<vmem>>, vector<1x8x128xf32>
    %506 = vector.shape_cast %505 : vector<1x8x128xf32> to vector<8x128xf32>
    %507 = vector.shape_cast %479 : vector<8x128xf32> to vector<1x8x128xf32>
    tpu.vector_store %arg16[%c7_154, %c0_155, %c0_156], %507 {strides = array<i32>} : memref<8x8x128xf32, #tpu.memory_space<vmem>>, vector<1x8x128xf32>,
    %c0_157 = arith.constant 0 : index
    %c0_158 = arith.constant 0 : index
    %c0_159 = arith.constant 0 : index
    %508 = vector.load %arg17[%c0_157, %c0_158, %c0_159] : memref<8x8x128xf32, #tpu.memory_space<vmem>>, vector<1x8x128xf32>
    %509 = vector.shape_cast %508 : vector<1x8x128xf32> to vector<8x128xf32>
    %510 = vector.shape_cast %504 : vector<8x128xf32> to vector<1x8x128xf32>
    tpu.vector_store %arg17[%c0_157, %c0_158, %c0_159], %510 {strides = array<i32>} : memref<8x8x128xf32, #tpu.memory_space<vmem>>, vector<1x8x128xf32>,
    %c0_160 = arith.constant 0 : index
    %c0_161 = arith.constant 0 : index
    %c0_162 = arith.constant 0 : index
    %511 = vector.load %arg16[%c0_160, %c0_161, %c0_162] : memref<8x8x128xf32, #tpu.memory_space<vmem>>, vector<1x8x128xf32>
    %512 = vector.shape_cast %511 : vector<1x8x128xf32> to vector<8x128xf32>
    %513 = arith.truncf %512 : vector<8x128xf32> to vector<8x128xbf16>
    %c0_163 = arith.constant 0 : index
    %c0_164 = arith.constant 0 : index
    %514 = vector.load %arg5[%c0_163, %c0_164] : memref<128x512xbf16, #tpu.memory_space<vmem>>, vector<128x512xbf16>
    %cst_165 = arith.constant dense<0.000000e+00> : vector<8x512xf32>
    %515 = tpu.matmul %513, %514, %cst_165 {dimension_numbers = #tpu.dot_dimension_numbers<[1], [0], [0], [1], [0, 0, 1, 1], [], []>} : vector<8x128xbf16>, vector<128x512xbf16>, vector<8x512xf32> -> vector<8x512xf32>
    %c0_166 = arith.constant 0 : index
    %c0_167 = arith.constant 0 : index
    %c0_168 = arith.constant 0 : index
    %516 = vector.load %arg17[%c0_166, %c0_167, %c0_168] : memref<8x8x128xf32, #tpu.memory_space<vmem>>, vector<1x8x128xf32>
    %517 = vector.shape_cast %516 : vector<1x8x128xf32> to vector<8x128xf32>
    %518 = arith.truncf %517 : vector<8x128xf32> to vector<8x128xbf16>
    %c0_169 = arith.constant 0 : index
    %c0_170 = arith.constant 0 : index
    %519 = vector.load %arg6[%c0_169, %c0_170] : memref<128x512xbf16, #tpu.memory_space<vmem>>, vector<128x512xbf16>
    %cst_171 = arith.constant dense<0.000000e+00> : vector<8x512xf32>
    %520 = tpu.matmul %518, %519, %cst_171 {dimension_numbers = #tpu.dot_dimension_numbers<[1], [0], [0], [1], [0, 0, 1, 1], [], []>} : vector<8x128xbf16>, vector<128x512xbf16>, vector<8x512xf32> -> vector<8x512xf32>
    %521 = arith.addf %515, %520 : vector<8x512xf32>
    %c0_172 = arith.constant 0 : index
    %c0_173 = arith.constant 0 : index
    %522 = vector.load %arg9[%c0_172, %c0_173] : memref<1x512xf32, #tpu.memory_space<vmem>>, vector<1x512xf32>
    %523 = vector.broadcast %522 : vector<1x512xf32> to vector<8x512xf32>
    %524 = arith.addf %521, %523 : vector<8x512xf32>
    %525 = vector.extract_strided_slice %524 {offsets = [0, 0], sizes = [8, 128], strides = [1, 1]} : vector<8x512xf32> to vector<8x128xf32>
    %526 = arith.negf %525 : vector<8x128xf32>
    %527 = math.exp %526 : vector<8x128xf32>
    %cst_174 = arith.constant 1.000000e+00 : f32
    %528 = vector.broadcast %cst_174 : f32 to vector<8x128xf32>
    %529 = arith.addf %528, %527 : vector<8x128xf32>
    %530 = arith.divf %528, %529 : vector<8x128xf32>
    %531 = vector.extract_strided_slice %524 {offsets = [0, 256], sizes = [8, 128], strides = [1, 1]} : vector<8x512xf32> to vector<8x128xf32>
    %532 = math.tanh %531 : vector<8x128xf32>
    %533 = vector.extract_strided_slice %524 {offsets = [0, 384], sizes = [8, 128], strides = [1, 1]} : vector<8x512xf32> to vector<8x128xf32>
    %534 = arith.negf %533 : vector<8x128xf32>
    %535 = math.exp %534 : vector<8x128xf32>
    %cst_175 = arith.constant 1.000000e+00 : f32
    %536 = vector.broadcast %cst_175 : f32 to vector<8x128xf32>
    %537 = arith.addf %536, %535 : vector<8x128xf32>
    %538 = arith.divf %536, %537 : vector<8x128xf32>
    %539 = arith.mulf %530, %532 : vector<8x128xf32>
    %540 = math.tanh %539 : vector<8x128xf32>
    %541 = arith.mulf %538, %540 : vector<8x128xf32>
    %c1_176 = arith.constant 1 : index
    %c0_177 = arith.constant 0 : index
    %c0_178 = arith.constant 0 : index
    %542 = vector.load %arg16[%c1_176, %c0_177, %c0_178] : memref<8x8x128xf32, #tpu.memory_space<vmem>>, vector<1x8x128xf32>
    %543 = vector.shape_cast %542 : vector<1x8x128xf32> to vector<8x128xf32>
    %544 = arith.truncf %543 : vector<8x128xf32> to vector<8x128xbf16>
    %c0_179 = arith.constant 0 : index
    %c0_180 = arith.constant 0 : index
    %545 = vector.load %arg5[%c0_179, %c0_180] : memref<128x512xbf16, #tpu.memory_space<vmem>>, vector<128x512xbf16>
    %cst_181 = arith.constant dense<0.000000e+00> : vector<8x512xf32>
    %546 = tpu.matmul %544, %545, %cst_181 {dimension_numbers = #tpu.dot_dimension_numbers<[1], [0], [0], [1], [0, 0, 1, 1], [], []>} : vector<8x128xbf16>, vector<128x512xbf16>, vector<8x512xf32> -> vector<8x512xf32>
    %c1_182 = arith.constant 1 : index
    %c0_183 = arith.constant 0 : index
    %c0_184 = arith.constant 0 : index
    %547 = vector.load %arg17[%c1_182, %c0_183, %c0_184] : memref<8x8x128xf32, #tpu.memory_space<vmem>>, vector<1x8x128xf32>
    %548 = vector.shape_cast %547 : vector<1x8x128xf32> to vector<8x128xf32>
    %549 = arith.truncf %548 : vector<8x128xf32> to vector<8x128xbf16>
    %c0_185 = arith.constant 0 : index
    %c0_186 = arith.constant 0 : index
    %550 = vector.load %arg6[%c0_185, %c0_186] : memref<128x512xbf16, #tpu.memory_space<vmem>>, vector<128x512xbf16>
    %cst_187 = arith.constant dense<0.000000e+00> : vector<8x512xf32>
    %551 = tpu.matmul %549, %550, %cst_187 {dimension_numbers = #tpu.dot_dimension_numbers<[1], [0], [0], [1], [0, 0, 1, 1], [], []>} : vector<8x128xbf16>, vector<128x512xbf16>, vector<8x512xf32> -> vector<8x512xf32>
    %552 = arith.addf %546, %551 : vector<8x512xf32>
    %c0_188 = arith.constant 0 : index
    %c0_189 = arith.constant 0 : index
    %553 = vector.load %arg9[%c0_188, %c0_189] : memref<1x512xf32, #tpu.memory_space<vmem>>, vector<1x512xf32>
    %554 = vector.broadcast %553 : vector<1x512xf32> to vector<8x512xf32>
    %555 = arith.addf %552, %554 : vector<8x512xf32>
    %556 = arith.truncf %541 : vector<8x128xf32> to vector<8x128xbf16>
    %c0_190 = arith.constant 0 : index
    %c0_191 = arith.constant 0 : index
    %557 = vector.load %arg11[%c0_190, %c0_191] : memref<128x512xbf16, #tpu.memory_space<vmem>>, vector<128x512xbf16>
    %cst_192 = arith.constant dense<0.000000e+00> : vector<8x512xf32>
    %558 = tpu.matmul %556, %557, %cst_192 {dimension_numbers = #tpu.dot_dimension_numbers<[1], [0], [0], [1], [0, 0, 1, 1], [], []>} : vector<8x128xbf16>, vector<128x512xbf16>, vector<8x512xf32> -> vector<8x512xf32>
    %559 = arith.addf %555, %558 : vector<8x512xf32>
    %560 = vector.extract_strided_slice %559 {offsets = [0, 0], sizes = [8, 128], strides = [1, 1]} : vector<8x512xf32> to vector<8x128xf32>
    %561 = arith.negf %560 : vector<8x128xf32>
    %562 = math.exp %561 : vector<8x128xf32>
    %cst_193 = arith.constant 1.000000e+00 : f32
    %563 = vector.broadcast %cst_193 : f32 to vector<8x128xf32>
    %564 = arith.addf %563, %562 : vector<8x128xf32>
    %565 = arith.divf %563, %564 : vector<8x128xf32>
    %566 = vector.extract_strided_slice %559 {offsets = [0, 256], sizes = [8, 128], strides = [1, 1]} : vector<8x512xf32> to vector<8x128xf32>
    %567 = math.tanh %566 : vector<8x128xf32>
    %568 = vector.extract_strided_slice %559 {offsets = [0, 384], sizes = [8, 128], strides = [1, 1]} : vector<8x512xf32> to vector<8x128xf32>
    %569 = arith.negf %568 : vector<8x128xf32>
    %570 = math.exp %569 : vector<8x128xf32>
    %cst_194 = arith.constant 1.000000e+00 : f32
    %571 = vector.broadcast %cst_194 : f32 to vector<8x128xf32>
    %572 = arith.addf %571, %570 : vector<8x128xf32>
    %573 = arith.divf %571, %572 : vector<8x128xf32>
    %574 = vector.extract_strided_slice %559 {offsets = [0, 128], sizes = [8, 128], strides = [1, 1]} : vector<8x512xf32> to vector<8x128xf32>
    %575 = arith.negf %574 : vector<8x128xf32>
    %576 = math.exp %575 : vector<8x128xf32>
    %cst_195 = arith.constant 1.000000e+00 : f32
    %577 = vector.broadcast %cst_195 : f32 to vector<8x128xf32>
    %578 = arith.addf %577, %576 : vector<8x128xf32>
    %579 = arith.divf %577, %578 : vector<8x128xf32>
    %580 = arith.mulf %579, %539 : vector<8x128xf32>
    %581 = arith.mulf %565, %567 : vector<8x128xf32>
    %582 = arith.addf %580, %581 : vector<8x128xf32>
    %583 = math.tanh %582 : vector<8x128xf32>
    %584 = arith.mulf %573, %583 : vector<8x128xf32>
    %c2_196 = arith.constant 2 : index
    %c0_197 = arith.constant 0 : index
    %c0_198 = arith.constant 0 : index
    %585 = vector.load %arg16[%c2_196, %c0_197, %c0_198] : memref<8x8x128xf32, #tpu.memory_space<vmem>>, vector<1x8x128xf32>
    %586 = vector.shape_cast %585 : vector<1x8x128xf32> to vector<8x128xf32>
    %587 = arith.truncf %586 : vector<8x128xf32> to vector<8x128xbf16>
    %c0_199 = arith.constant 0 : index
    %c0_200 = arith.constant 0 : index
    %588 = vector.load %arg5[%c0_199, %c0_200] : memref<128x512xbf16, #tpu.memory_space<vmem>>, vector<128x512xbf16>
    %cst_201 = arith.constant dense<0.000000e+00> : vector<8x512xf32>
    %589 = tpu.matmul %587, %588, %cst_201 {dimension_numbers = #tpu.dot_dimension_numbers<[1], [0], [0], [1], [0, 0, 1, 1], [], []>} : vector<8x128xbf16>, vector<128x512xbf16>, vector<8x512xf32> -> vector<8x512xf32>
    %c2_202 = arith.constant 2 : index
    %c0_203 = arith.constant 0 : index
    %c0_204 = arith.constant 0 : index
    %590 = vector.load %arg17[%c2_202, %c0_203, %c0_204] : memref<8x8x128xf32, #tpu.memory_space<vmem>>, vector<1x8x128xf32>
    %591 = vector.shape_cast %590 : vector<1x8x128xf32> to vector<8x128xf32>
    %592 = arith.truncf %591 : vector<8x128xf32> to vector<8x128xbf16>
    %c0_205 = arith.constant 0 : index
    %c0_206 = arith.constant 0 : index
    %593 = vector.load %arg6[%c0_205, %c0_206] : memref<128x512xbf16, #tpu.memory_space<vmem>>, vector<128x512xbf16>
    %cst_207 = arith.constant dense<0.000000e+00> : vector<8x512xf32>
    %594 = tpu.matmul %592, %593, %cst_207 {dimension_numbers = #tpu.dot_dimension_numbers<[1], [0], [0], [1], [0, 0, 1, 1], [], []>} : vector<8x128xbf16>, vector<128x512xbf16>, vector<8x512xf32> -> vector<8x512xf32>
    %595 = arith.addf %589, %594 : vector<8x512xf32>
    %c0_208 = arith.constant 0 : index
    %c0_209 = arith.constant 0 : index
    %596 = vector.load %arg9[%c0_208, %c0_209] : memref<1x512xf32, #tpu.memory_space<vmem>>, vector<1x512xf32>
    %597 = vector.broadcast %596 : vector<1x512xf32> to vector<8x512xf32>
    %598 = arith.addf %595, %597 : vector<8x512xf32>
    %599 = arith.truncf %584 : vector<8x128xf32> to vector<8x128xbf16>
    %c0_210 = arith.constant 0 : index
    %c0_211 = arith.constant 0 : index
    %600 = vector.load %arg11[%c0_210, %c0_211] : memref<128x512xbf16, #tpu.memory_space<vmem>>, vector<128x512xbf16>
    %cst_212 = arith.constant dense<0.000000e+00> : vector<8x512xf32>
    %601 = tpu.matmul %599, %600, %cst_212 {dimension_numbers = #tpu.dot_dimension_numbers<[1], [0], [0], [1], [0, 0, 1, 1], [], []>} : vector<8x128xbf16>, vector<128x512xbf16>, vector<8x512xf32> -> vector<8x512xf32>
    %602 = arith.addf %598, %601 : vector<8x512xf32>
    %603 = vector.extract_strided_slice %602 {offsets = [0, 0], sizes = [8, 128], strides = [1, 1]} : vector<8x512xf32> to vector<8x128xf32>
    %604 = arith.negf %603 : vector<8x128xf32>
    %605 = math.exp %604 : vector<8x128xf32>
    %cst_213 = arith.constant 1.000000e+00 : f32
    %606 = vector.broadcast %cst_213 : f32 to vector<8x128xf32>
    %607 = arith.addf %606, %605 : vector<8x128xf32>
    %608 = arith.divf %606, %607 : vector<8x128xf32>
    %609 = vector.extract_strided_slice %602 {offsets = [0, 256], sizes = [8, 128], strides = [1, 1]} : vector<8x512xf32> to vector<8x128xf32>
    %610 = math.tanh %609 : vector<8x128xf32>
    %611 = vector.extract_strided_slice %602 {offsets = [0, 384], sizes = [8, 128], strides = [1, 1]} : vector<8x512xf32> to vector<8x128xf32>
    %612 = arith.negf %611 : vector<8x128xf32>
    %613 = math.exp %612 : vector<8x128xf32>
    %cst_214 = arith.constant 1.000000e+00 : f32
    %614 = vector.broadcast %cst_214 : f32 to vector<8x128xf32>
    %615 = arith.addf %614, %613 : vector<8x128xf32>
    %616 = arith.divf %614, %615 : vector<8x128xf32>
    %617 = vector.extract_strided_slice %602 {offsets = [0, 128], sizes = [8, 128], strides = [1, 1]} : vector<8x512xf32> to vector<8x128xf32>
    %618 = arith.negf %617 : vector<8x128xf32>
    %619 = math.exp %618 : vector<8x128xf32>
    %cst_215 = arith.constant 1.000000e+00 : f32
    %620 = vector.broadcast %cst_215 : f32 to vector<8x128xf32>
    %621 = arith.addf %620, %619 : vector<8x128xf32>
    %622 = arith.divf %620, %621 : vector<8x128xf32>
    %623 = arith.mulf %622, %582 : vector<8x128xf32>
    %624 = arith.mulf %608, %610 : vector<8x128xf32>
    %625 = arith.addf %623, %624 : vector<8x128xf32>
    %626 = math.tanh %625 : vector<8x128xf32>
    %627 = arith.mulf %616, %626 : vector<8x128xf32>
    %c3_216 = arith.constant 3 : index
    %c0_217 = arith.constant 0 : index
    %c0_218 = arith.constant 0 : index
    %628 = vector.load %arg16[%c3_216, %c0_217, %c0_218] : memref<8x8x128xf32, #tpu.memory_space<vmem>>, vector<1x8x128xf32>
    %629 = vector.shape_cast %628 : vector<1x8x128xf32> to vector<8x128xf32>
    %630 = arith.truncf %629 : vector<8x128xf32> to vector<8x128xbf16>
    %c0_219 = arith.constant 0 : index
    %c0_220 = arith.constant 0 : index
    %631 = vector.load %arg5[%c0_219, %c0_220] : memref<128x512xbf16, #tpu.memory_space<vmem>>, vector<128x512xbf16>
    %cst_221 = arith.constant dense<0.000000e+00> : vector<8x512xf32>
    %632 = tpu.matmul %630, %631, %cst_221 {dimension_numbers = #tpu.dot_dimension_numbers<[1], [0], [0], [1], [0, 0, 1, 1], [], []>} : vector<8x128xbf16>, vector<128x512xbf16>, vector<8x512xf32> -> vector<8x512xf32>
    %c3_222 = arith.constant 3 : index
    %c0_223 = arith.constant 0 : index
    %c0_224 = arith.constant 0 : index
    %633 = vector.load %arg17[%c3_222, %c0_223, %c0_224] : memref<8x8x128xf32, #tpu.memory_space<vmem>>, vector<1x8x128xf32>
    %634 = vector.shape_cast %633 : vector<1x8x128xf32> to vector<8x128xf32>
    %635 = arith.truncf %634 : vector<8x128xf32> to vector<8x128xbf16>
    %c0_225 = arith.constant 0 : index
    %c0_226 = arith.constant 0 : index
    %636 = vector.load %arg6[%c0_225, %c0_226] : memref<128x512xbf16, #tpu.memory_space<vmem>>, vector<128x512xbf16>
    %cst_227 = arith.constant dense<0.000000e+00> : vector<8x512xf32>
    %637 = tpu.matmul %635, %636, %cst_227 {dimension_numbers = #tpu.dot_dimension_numbers<[1], [0], [0], [1], [0, 0, 1, 1], [], []>} : vector<8x128xbf16>, vector<128x512xbf16>, vector<8x512xf32> -> vector<8x512xf32>
    %638 = arith.addf %632, %637 : vector<8x512xf32>
    %c0_228 = arith.constant 0 : index
    %c0_229 = arith.constant 0 : index
    %639 = vector.load %arg9[%c0_228, %c0_229] : memref<1x512xf32, #tpu.memory_space<vmem>>, vector<1x512xf32>
    %640 = vector.broadcast %639 : vector<1x512xf32> to vector<8x512xf32>
    %641 = arith.addf %638, %640 : vector<8x512xf32>
    %642 = arith.truncf %627 : vector<8x128xf32> to vector<8x128xbf16>
    %c0_230 = arith.constant 0 : index
    %c0_231 = arith.constant 0 : index
    %643 = vector.load %arg11[%c0_230, %c0_231] : memref<128x512xbf16, #tpu.memory_space<vmem>>, vector<128x512xbf16>
    %cst_232 = arith.constant dense<0.000000e+00> : vector<8x512xf32>
    %644 = tpu.matmul %642, %643, %cst_232 {dimension_numbers = #tpu.dot_dimension_numbers<[1], [0], [0], [1], [0, 0, 1, 1], [], []>} : vector<8x128xbf16>, vector<128x512xbf16>, vector<8x512xf32> -> vector<8x512xf32>
    %645 = arith.addf %641, %644 : vector<8x512xf32>
    %646 = vector.extract_strided_slice %645 {offsets = [0, 0], sizes = [8, 128], strides = [1, 1]} : vector<8x512xf32> to vector<8x128xf32>
    %647 = arith.negf %646 : vector<8x128xf32>
    %648 = math.exp %647 : vector<8x128xf32>
    %cst_233 = arith.constant 1.000000e+00 : f32
    %649 = vector.broadcast %cst_233 : f32 to vector<8x128xf32>
    %650 = arith.addf %649, %648 : vector<8x128xf32>
    %651 = arith.divf %649, %650 : vector<8x128xf32>
    %652 = vector.extract_strided_slice %645 {offsets = [0, 256], sizes = [8, 128], strides = [1, 1]} : vector<8x512xf32> to vector<8x128xf32>
    %653 = math.tanh %652 : vector<8x128xf32>
    %654 = vector.extract_strided_slice %645 {offsets = [0, 384], sizes = [8, 128], strides = [1, 1]} : vector<8x512xf32> to vector<8x128xf32>
    %655 = arith.negf %654 : vector<8x128xf32>
    %656 = math.exp %655 : vector<8x128xf32>
    %cst_234 = arith.constant 1.000000e+00 : f32
    %657 = vector.broadcast %cst_234 : f32 to vector<8x128xf32>
    %658 = arith.addf %657, %656 : vector<8x128xf32>
    %659 = arith.divf %657, %658 : vector<8x128xf32>
    %660 = vector.extract_strided_slice %645 {offsets = [0, 128], sizes = [8, 128], strides = [1, 1]} : vector<8x512xf32> to vector<8x128xf32>
    %661 = arith.negf %660 : vector<8x128xf32>
    %662 = math.exp %661 : vector<8x128xf32>
    %cst_235 = arith.constant 1.000000e+00 : f32
    %663 = vector.broadcast %cst_235 : f32 to vector<8x128xf32>
    %664 = arith.addf %663, %662 : vector<8x128xf32>
    %665 = arith.divf %663, %664 : vector<8x128xf32>
    %666 = arith.mulf %665, %625 : vector<8x128xf32>
    %667 = arith.mulf %651, %653 : vector<8x128xf32>
    %668 = arith.addf %666, %667 : vector<8x128xf32>
    %669 = math.tanh %668 : vector<8x128xf32>
    %670 = arith.mulf %659, %669 : vector<8x128xf32>
    %c4_236 = arith.constant 4 : index
    %c0_237 = arith.constant 0 : index
    %c0_238 = arith.constant 0 : index
    %671 = vector.load %arg16[%c4_236, %c0_237, %c0_238] : memref<8x8x128xf32, #tpu.memory_space<vmem>>, vector<1x8x128xf32>
    %672 = vector.shape_cast %671 : vector<1x8x128xf32> to vector<8x128xf32>
    %673 = arith.truncf %672 : vector<8x128xf32> to vector<8x128xbf16>
    %c0_239 = arith.constant 0 : index
    %c0_240 = arith.constant 0 : index
    %674 = vector.load %arg5[%c0_239, %c0_240] : memref<128x512xbf16, #tpu.memory_space<vmem>>, vector<128x512xbf16>
    %cst_241 = arith.constant dense<0.000000e+00> : vector<8x512xf32>
    %675 = tpu.matmul %673, %674, %cst_241 {dimension_numbers = #tpu.dot_dimension_numbers<[1], [0], [0], [1], [0, 0, 1, 1], [], []>} : vector<8x128xbf16>, vector<128x512xbf16>, vector<8x512xf32> -> vector<8x512xf32>
    %c4_242 = arith.constant 4 : index
    %c0_243 = arith.constant 0 : index
    %c0_244 = arith.constant 0 : index
    %676 = vector.load %arg17[%c4_242, %c0_243, %c0_244] : memref<8x8x128xf32, #tpu.memory_space<vmem>>, vector<1x8x128xf32>
    %677 = vector.shape_cast %676 : vector<1x8x128xf32> to vector<8x128xf32>
    %678 = arith.truncf %677 : vector<8x128xf32> to vector<8x128xbf16>
    %c0_245 = arith.constant 0 : index
    %c0_246 = arith.constant 0 : index
    %679 = vector.load %arg6[%c0_245, %c0_246] : memref<128x512xbf16, #tpu.memory_space<vmem>>, vector<128x512xbf16>
    %cst_247 = arith.constant dense<0.000000e+00> : vector<8x512xf32>
    %680 = tpu.matmul %678, %679, %cst_247 {dimension_numbers = #tpu.dot_dimension_numbers<[1], [0], [0], [1], [0, 0, 1, 1], [], []>} : vector<8x128xbf16>, vector<128x512xbf16>, vector<8x512xf32> -> vector<8x512xf32>
    %681 = arith.addf %675, %680 : vector<8x512xf32>
    %c0_248 = arith.constant 0 : index
    %c0_249 = arith.constant 0 : index
    %682 = vector.load %arg9[%c0_248, %c0_249] : memref<1x512xf32, #tpu.memory_space<vmem>>, vector<1x512xf32>
    %683 = vector.broadcast %682 : vector<1x512xf32> to vector<8x512xf32>
    %684 = arith.addf %681, %683 : vector<8x512xf32>
    %685 = arith.truncf %670 : vector<8x128xf32> to vector<8x128xbf16>
    %c0_250 = arith.constant 0 : index
    %c0_251 = arith.constant 0 : index
    %686 = vector.load %arg11[%c0_250, %c0_251] : memref<128x512xbf16, #tpu.memory_space<vmem>>, vector<128x512xbf16>
    %cst_252 = arith.constant dense<0.000000e+00> : vector<8x512xf32>
    %687 = tpu.matmul %685, %686, %cst_252 {dimension_numbers = #tpu.dot_dimension_numbers<[1], [0], [0], [1], [0, 0, 1, 1], [], []>} : vector<8x128xbf16>, vector<128x512xbf16>, vector<8x512xf32> -> vector<8x512xf32>
    %688 = arith.addf %684, %687 : vector<8x512xf32>
    %689 = vector.extract_strided_slice %688 {offsets = [0, 0], sizes = [8, 128], strides = [1, 1]} : vector<8x512xf32> to vector<8x128xf32>
    %690 = arith.negf %689 : vector<8x128xf32>
    %691 = math.exp %690 : vector<8x128xf32>
    %cst_253 = arith.constant 1.000000e+00 : f32
    %692 = vector.broadcast %cst_253 : f32 to vector<8x128xf32>
    %693 = arith.addf %692, %691 : vector<8x128xf32>
    %694 = arith.divf %692, %693 : vector<8x128xf32>
    %695 = vector.extract_strided_slice %688 {offsets = [0, 256], sizes = [8, 128], strides = [1, 1]} : vector<8x512xf32> to vector<8x128xf32>
    %696 = math.tanh %695 : vector<8x128xf32>
    %697 = vector.extract_strided_slice %688 {offsets = [0, 384], sizes = [8, 128], strides = [1, 1]} : vector<8x512xf32> to vector<8x128xf32>
    %698 = arith.negf %697 : vector<8x128xf32>
    %699 = math.exp %698 : vector<8x128xf32>
    %cst_254 = arith.constant 1.000000e+00 : f32
    %700 = vector.broadcast %cst_254 : f32 to vector<8x128xf32>
    %701 = arith.addf %700, %699 : vector<8x128xf32>
    %702 = arith.divf %700, %701 : vector<8x128xf32>
    %703 = vector.extract_strided_slice %688 {offsets = [0, 128], sizes = [8, 128], strides = [1, 1]} : vector<8x512xf32> to vector<8x128xf32>
    %704 = arith.negf %703 : vector<8x128xf32>
    %705 = math.exp %704 : vector<8x128xf32>
    %cst_255 = arith.constant 1.000000e+00 : f32
    %706 = vector.broadcast %cst_255 : f32 to vector<8x128xf32>
    %707 = arith.addf %706, %705 : vector<8x128xf32>
    %708 = arith.divf %706, %707 : vector<8x128xf32>
    %709 = arith.mulf %708, %668 : vector<8x128xf32>
    %710 = arith.mulf %694, %696 : vector<8x128xf32>
    %711 = arith.addf %709, %710 : vector<8x128xf32>
    %712 = math.tanh %711 : vector<8x128xf32>
    %713 = arith.mulf %702, %712 : vector<8x128xf32>
    %c5_256 = arith.constant 5 : index
    %c0_257 = arith.constant 0 : index
    %c0_258 = arith.constant 0 : index
    %714 = vector.load %arg16[%c5_256, %c0_257, %c0_258] : memref<8x8x128xf32, #tpu.memory_space<vmem>>, vector<1x8x128xf32>
    %715 = vector.shape_cast %714 : vector<1x8x128xf32> to vector<8x128xf32>
    %716 = arith.truncf %715 : vector<8x128xf32> to vector<8x128xbf16>
    %c0_259 = arith.constant 0 : index
    %c0_260 = arith.constant 0 : index
    %717 = vector.load %arg5[%c0_259, %c0_260] : memref<128x512xbf16, #tpu.memory_space<vmem>>, vector<128x512xbf16>
    %cst_261 = arith.constant dense<0.000000e+00> : vector<8x512xf32>
    %718 = tpu.matmul %716, %717, %cst_261 {dimension_numbers = #tpu.dot_dimension_numbers<[1], [0], [0], [1], [0, 0, 1, 1], [], []>} : vector<8x128xbf16>, vector<128x512xbf16>, vector<8x512xf32> -> vector<8x512xf32>
    %c5_262 = arith.constant 5 : index
    %c0_263 = arith.constant 0 : index
    %c0_264 = arith.constant 0 : index
    %719 = vector.load %arg17[%c5_262, %c0_263, %c0_264] : memref<8x8x128xf32, #tpu.memory_space<vmem>>, vector<1x8x128xf32>
    %720 = vector.shape_cast %719 : vector<1x8x128xf32> to vector<8x128xf32>
    %721 = arith.truncf %720 : vector<8x128xf32> to vector<8x128xbf16>
    %c0_265 = arith.constant 0 : index
    %c0_266 = arith.constant 0 : index
    %722 = vector.load %arg6[%c0_265, %c0_266] : memref<128x512xbf16, #tpu.memory_space<vmem>>, vector<128x512xbf16>
    %cst_267 = arith.constant dense<0.000000e+00> : vector<8x512xf32>
    %723 = tpu.matmul %721, %722, %cst_267 {dimension_numbers = #tpu.dot_dimension_numbers<[1], [0], [0], [1], [0, 0, 1, 1], [], []>} : vector<8x128xbf16>, vector<128x512xbf16>, vector<8x512xf32> -> vector<8x512xf32>
    %724 = arith.addf %718, %723 : vector<8x512xf32>
    %c0_268 = arith.constant 0 : index
    %c0_269 = arith.constant 0 : index
    %725 = vector.load %arg9[%c0_268, %c0_269] : memref<1x512xf32, #tpu.memory_space<vmem>>, vector<1x512xf32>
    %726 = vector.broadcast %725 : vector<1x512xf32> to vector<8x512xf32>
    %727 = arith.addf %724, %726 : vector<8x512xf32>
    %728 = arith.truncf %713 : vector<8x128xf32> to vector<8x128xbf16>
    %c0_270 = arith.constant 0 : index
    %c0_271 = arith.constant 0 : index
    %729 = vector.load %arg11[%c0_270, %c0_271] : memref<128x512xbf16, #tpu.memory_space<vmem>>, vector<128x512xbf16>
    %cst_272 = arith.constant dense<0.000000e+00> : vector<8x512xf32>
    %730 = tpu.matmul %728, %729, %cst_272 {dimension_numbers = #tpu.dot_dimension_numbers<[1], [0], [0], [1], [0, 0, 1, 1], [], []>} : vector<8x128xbf16>, vector<128x512xbf16>, vector<8x512xf32> -> vector<8x512xf32>
    %731 = arith.addf %727, %730 : vector<8x512xf32>
    %732 = vector.extract_strided_slice %731 {offsets = [0, 0], sizes = [8, 128], strides = [1, 1]} : vector<8x512xf32> to vector<8x128xf32>
    %733 = arith.negf %732 : vector<8x128xf32>
    %734 = math.exp %733 : vector<8x128xf32>
    %cst_273 = arith.constant 1.000000e+00 : f32
    %735 = vector.broadcast %cst_273 : f32 to vector<8x128xf32>
    %736 = arith.addf %735, %734 : vector<8x128xf32>
    %737 = arith.divf %735, %736 : vector<8x128xf32>
    %738 = vector.extract_strided_slice %731 {offsets = [0, 256], sizes = [8, 128], strides = [1, 1]} : vector<8x512xf32> to vector<8x128xf32>
    %739 = math.tanh %738 : vector<8x128xf32>
    %740 = vector.extract_strided_slice %731 {offsets = [0, 384], sizes = [8, 128], strides = [1, 1]} : vector<8x512xf32> to vector<8x128xf32>
    %741 = arith.negf %740 : vector<8x128xf32>
    %742 = math.exp %741 : vector<8x128xf32>
    %cst_274 = arith.constant 1.000000e+00 : f32
    %743 = vector.broadcast %cst_274 : f32 to vector<8x128xf32>
    %744 = arith.addf %743, %742 : vector<8x128xf32>
    %745 = arith.divf %743, %744 : vector<8x128xf32>
    %746 = vector.extract_strided_slice %731 {offsets = [0, 128], sizes = [8, 128], strides = [1, 1]} : vector<8x512xf32> to vector<8x128xf32>
    %747 = arith.negf %746 : vector<8x128xf32>
    %748 = math.exp %747 : vector<8x128xf32>
    %cst_275 = arith.constant 1.000000e+00 : f32
    %749 = vector.broadcast %cst_275 : f32 to vector<8x128xf32>
    %750 = arith.addf %749, %748 : vector<8x128xf32>
    %751 = arith.divf %749, %750 : vector<8x128xf32>
    %752 = arith.mulf %751, %711 : vector<8x128xf32>
    %753 = arith.mulf %737, %739 : vector<8x128xf32>
    %754 = arith.addf %752, %753 : vector<8x128xf32>
    %755 = math.tanh %754 : vector<8x128xf32>
    %756 = arith.mulf %745, %755 : vector<8x128xf32>
    %c6_276 = arith.constant 6 : index
    %c0_277 = arith.constant 0 : index
    %c0_278 = arith.constant 0 : index
    %757 = vector.load %arg16[%c6_276, %c0_277, %c0_278] : memref<8x8x128xf32, #tpu.memory_space<vmem>>, vector<1x8x128xf32>
    %758 = vector.shape_cast %757 : vector<1x8x128xf32> to vector<8x128xf32>
    %759 = arith.truncf %758 : vector<8x128xf32> to vector<8x128xbf16>
    %c0_279 = arith.constant 0 : index
    %c0_280 = arith.constant 0 : index
    %760 = vector.load %arg5[%c0_279, %c0_280] : memref<128x512xbf16, #tpu.memory_space<vmem>>, vector<128x512xbf16>
    %cst_281 = arith.constant dense<0.000000e+00> : vector<8x512xf32>
    %761 = tpu.matmul %759, %760, %cst_281 {dimension_numbers = #tpu.dot_dimension_numbers<[1], [0], [0], [1], [0, 0, 1, 1], [], []>} : vector<8x128xbf16>, vector<128x512xbf16>, vector<8x512xf32> -> vector<8x512xf32>
    %c6_282 = arith.constant 6 : index
    %c0_283 = arith.constant 0 : index
    %c0_284 = arith.constant 0 : index
    %762 = vector.load %arg17[%c6_282, %c0_283, %c0_284] : memref<8x8x128xf32, #tpu.memory_space<vmem>>, vector<1x8x128xf32>
    %763 = vector.shape_cast %762 : vector<1x8x128xf32> to vector<8x128xf32>
    %764 = arith.truncf %763 : vector<8x128xf32> to vector<8x128xbf16>
    %c0_285 = arith.constant 0 : index
    %c0_286 = arith.constant 0 : index
    %765 = vector.load %arg6[%c0_285, %c0_286] : memref<128x512xbf16, #tpu.memory_space<vmem>>, vector<128x512xbf16>
    %cst_287 = arith.constant dense<0.000000e+00> : vector<8x512xf32>
    %766 = tpu.matmul %764, %765, %cst_287 {dimension_numbers = #tpu.dot_dimension_numbers<[1], [0], [0], [1], [0, 0, 1, 1], [], []>} : vector<8x128xbf16>, vector<128x512xbf16>, vector<8x512xf32> -> vector<8x512xf32>
    %767 = arith.addf %761, %766 : vector<8x512xf32>
    %c0_288 = arith.constant 0 : index
    %c0_289 = arith.constant 0 : index
    %768 = vector.load %arg9[%c0_288, %c0_289] : memref<1x512xf32, #tpu.memory_space<vmem>>, vector<1x512xf32>
    %769 = vector.broadcast %768 : vector<1x512xf32> to vector<8x512xf32>
    %770 = arith.addf %767, %769 : vector<8x512xf32>
    %771 = arith.truncf %756 : vector<8x128xf32> to vector<8x128xbf16>
    %c0_290 = arith.constant 0 : index
    %c0_291 = arith.constant 0 : index
    %772 = vector.load %arg11[%c0_290, %c0_291] : memref<128x512xbf16, #tpu.memory_space<vmem>>, vector<128x512xbf16>
    %cst_292 = arith.constant dense<0.000000e+00> : vector<8x512xf32>
    %773 = tpu.matmul %771, %772, %cst_292 {dimension_numbers = #tpu.dot_dimension_numbers<[1], [0], [0], [1], [0, 0, 1, 1], [], []>} : vector<8x128xbf16>, vector<128x512xbf16>, vector<8x512xf32> -> vector<8x512xf32>
    %774 = arith.addf %770, %773 : vector<8x512xf32>
    %775 = vector.extract_strided_slice %774 {offsets = [0, 0], sizes = [8, 128], strides = [1, 1]} : vector<8x512xf32> to vector<8x128xf32>
    %776 = arith.negf %775 : vector<8x128xf32>
    %777 = math.exp %776 : vector<8x128xf32>
    %cst_293 = arith.constant 1.000000e+00 : f32
    %778 = vector.broadcast %cst_293 : f32 to vector<8x128xf32>
    %779 = arith.addf %778, %777 : vector<8x128xf32>
    %780 = arith.divf %778, %779 : vector<8x128xf32>
    %781 = vector.extract_strided_slice %774 {offsets = [0, 256], sizes = [8, 128], strides = [1, 1]} : vector<8x512xf32> to vector<8x128xf32>
    %782 = math.tanh %781 : vector<8x128xf32>
    %783 = vector.extract_strided_slice %774 {offsets = [0, 384], sizes = [8, 128], strides = [1, 1]} : vector<8x512xf32> to vector<8x128xf32>
    %784 = arith.negf %783 : vector<8x128xf32>
    %785 = math.exp %784 : vector<8x128xf32>
    %cst_294 = arith.constant 1.000000e+00 : f32
    %786 = vector.broadcast %cst_294 : f32 to vector<8x128xf32>
    %787 = arith.addf %786, %785 : vector<8x128xf32>
    %788 = arith.divf %786, %787 : vector<8x128xf32>
    %789 = vector.extract_strided_slice %774 {offsets = [0, 128], sizes = [8, 128], strides = [1, 1]} : vector<8x512xf32> to vector<8x128xf32>
    %790 = arith.negf %789 : vector<8x128xf32>
    %791 = math.exp %790 : vector<8x128xf32>
    %cst_295 = arith.constant 1.000000e+00 : f32
    %792 = vector.broadcast %cst_295 : f32 to vector<8x128xf32>
    %793 = arith.addf %792, %791 : vector<8x128xf32>
    %794 = arith.divf %792, %793 : vector<8x128xf32>
    %795 = arith.mulf %794, %754 : vector<8x128xf32>
    %796 = arith.mulf %780, %782 : vector<8x128xf32>
    %797 = arith.addf %795, %796 : vector<8x128xf32>
    %798 = math.tanh %797 : vector<8x128xf32>
    %799 = arith.mulf %788, %798 : vector<8x128xf32>
    %c7_296 = arith.constant 7 : index
    %c0_297 = arith.constant 0 : index
    %c0_298 = arith.constant 0 : index
    %800 = vector.load %arg16[%c7_296, %c0_297, %c0_298] : memref<8x8x128xf32, #tpu.memory_space<vmem>>, vector<1x8x128xf32>
    %801 = vector.shape_cast %800 : vector<1x8x128xf32> to vector<8x128xf32>
    %802 = arith.truncf %801 : vector<8x128xf32> to vector<8x128xbf16>
    %c0_299 = arith.constant 0 : index
    %c0_300 = arith.constant 0 : index
    %803 = vector.load %arg5[%c0_299, %c0_300] : memref<128x512xbf16, #tpu.memory_space<vmem>>, vector<128x512xbf16>
    %cst_301 = arith.constant dense<0.000000e+00> : vector<8x512xf32>
    %804 = tpu.matmul %802, %803, %cst_301 {dimension_numbers = #tpu.dot_dimension_numbers<[1], [0], [0], [1], [0, 0, 1, 1], [], []>} : vector<8x128xbf16>, vector<128x512xbf16>, vector<8x512xf32> -> vector<8x512xf32>
    %c7_302 = arith.constant 7 : index
    %c0_303 = arith.constant 0 : index
    %c0_304 = arith.constant 0 : index
    %805 = vector.load %arg17[%c7_302, %c0_303, %c0_304] : memref<8x8x128xf32, #tpu.memory_space<vmem>>, vector<1x8x128xf32>
    %806 = vector.shape_cast %805 : vector<1x8x128xf32> to vector<8x128xf32>
    %807 = arith.truncf %806 : vector<8x128xf32> to vector<8x128xbf16>
    %c0_305 = arith.constant 0 : index
    %c0_306 = arith.constant 0 : index
    %808 = vector.load %arg6[%c0_305, %c0_306] : memref<128x512xbf16, #tpu.memory_space<vmem>>, vector<128x512xbf16>
    %cst_307 = arith.constant dense<0.000000e+00> : vector<8x512xf32>
    %809 = tpu.matmul %807, %808, %cst_307 {dimension_numbers = #tpu.dot_dimension_numbers<[1], [0], [0], [1], [0, 0, 1, 1], [], []>} : vector<8x128xbf16>, vector<128x512xbf16>, vector<8x512xf32> -> vector<8x512xf32>
    %810 = arith.addf %804, %809 : vector<8x512xf32>
    %c0_308 = arith.constant 0 : index
    %c0_309 = arith.constant 0 : index
    %811 = vector.load %arg9[%c0_308, %c0_309] : memref<1x512xf32, #tpu.memory_space<vmem>>, vector<1x512xf32>
    %812 = vector.broadcast %811 : vector<1x512xf32> to vector<8x512xf32>
    %813 = arith.addf %810, %812 : vector<8x512xf32>
    %814 = arith.truncf %799 : vector<8x128xf32> to vector<8x128xbf16>
    %c0_310 = arith.constant 0 : index
    %c0_311 = arith.constant 0 : index
    %815 = vector.load %arg11[%c0_310, %c0_311] : memref<128x512xbf16, #tpu.memory_space<vmem>>, vector<128x512xbf16>
    %cst_312 = arith.constant dense<0.000000e+00> : vector<8x512xf32>
    %816 = tpu.matmul %814, %815, %cst_312 {dimension_numbers = #tpu.dot_dimension_numbers<[1], [0], [0], [1], [0, 0, 1, 1], [], []>} : vector<8x128xbf16>, vector<128x512xbf16>, vector<8x512xf32> -> vector<8x512xf32>
    %817 = arith.addf %813, %816 : vector<8x512xf32>
    %818 = vector.extract_strided_slice %817 {offsets = [0, 0], sizes = [8, 128], strides = [1, 1]} : vector<8x512xf32> to vector<8x128xf32>
    %819 = arith.negf %818 : vector<8x128xf32>
    %820 = math.exp %819 : vector<8x128xf32>
    %cst_313 = arith.constant 1.000000e+00 : f32
    %821 = vector.broadcast %cst_313 : f32 to vector<8x128xf32>
    %822 = arith.addf %821, %820 : vector<8x128xf32>
    %823 = arith.divf %821, %822 : vector<8x128xf32>
    %824 = vector.extract_strided_slice %817 {offsets = [0, 256], sizes = [8, 128], strides = [1, 1]} : vector<8x512xf32> to vector<8x128xf32>
    %825 = math.tanh %824 : vector<8x128xf32>
    %826 = vector.extract_strided_slice %817 {offsets = [0, 384], sizes = [8, 128], strides = [1, 1]} : vector<8x512xf32> to vector<8x128xf32>
    %827 = arith.negf %826 : vector<8x128xf32>
    %828 = math.exp %827 : vector<8x128xf32>
    %cst_314 = arith.constant 1.000000e+00 : f32
    %829 = vector.broadcast %cst_314 : f32 to vector<8x128xf32>
    %830 = arith.addf %829, %828 : vector<8x128xf32>
    %831 = arith.divf %829, %830 : vector<8x128xf32>
    %832 = vector.extract_strided_slice %817 {offsets = [0, 128], sizes = [8, 128], strides = [1, 1]} : vector<8x512xf32> to vector<8x128xf32>
    %833 = arith.negf %832 : vector<8x128xf32>
    %834 = math.exp %833 : vector<8x128xf32>
    %cst_315 = arith.constant 1.000000e+00 : f32
    %835 = vector.broadcast %cst_315 : f32 to vector<8x128xf32>
    %836 = arith.addf %835, %834 : vector<8x128xf32>
    %837 = arith.divf %835, %836 : vector<8x128xf32>
    %838 = arith.mulf %837, %797 : vector<8x128xf32>
    %839 = arith.mulf %823, %825 : vector<8x128xf32>
    %840 = arith.addf %838, %839 : vector<8x128xf32>
    %841 = math.tanh %840 : vector<8x128xf32>
    %842 = arith.mulf %831, %841 : vector<8x128xf32>
    %c7_316 = arith.constant 7 : index
    %c0_317 = arith.constant 0 : index
    %c0_318 = arith.constant 0 : index
    %843 = vector.load %arg16[%c7_316, %c0_317, %c0_318] : memref<8x8x128xf32, #tpu.memory_space<vmem>>, vector<1x8x128xf32>
    %844 = vector.shape_cast %843 : vector<1x8x128xf32> to vector<8x128xf32>
    %845 = arith.truncf %844 : vector<8x128xf32> to vector<8x128xbf16>
    %c0_319 = arith.constant 0 : index
    %c0_320 = arith.constant 0 : index
    %846 = vector.load %arg7[%c0_319, %c0_320] : memref<128x512xbf16, #tpu.memory_space<vmem>>, vector<128x512xbf16>
    %cst_321 = arith.constant dense<0.000000e+00> : vector<8x512xf32>
    %847 = tpu.matmul %845, %846, %cst_321 {dimension_numbers = #tpu.dot_dimension_numbers<[1], [0], [0], [1], [0, 0, 1, 1], [], []>} : vector<8x128xbf16>, vector<128x512xbf16>, vector<8x512xf32> -> vector<8x512xf32>
    %c7_322 = arith.constant 7 : index
    %c0_323 = arith.constant 0 : index
    %c0_324 = arith.constant 0 : index
    %848 = vector.load %arg17[%c7_322, %c0_323, %c0_324] : memref<8x8x128xf32, #tpu.memory_space<vmem>>, vector<1x8x128xf32>
    %849 = vector.shape_cast %848 : vector<1x8x128xf32> to vector<8x128xf32>
    %850 = arith.truncf %849 : vector<8x128xf32> to vector<8x128xbf16>
    %c0_325 = arith.constant 0 : index
    %c0_326 = arith.constant 0 : index
    %851 = vector.load %arg8[%c0_325, %c0_326] : memref<128x512xbf16, #tpu.memory_space<vmem>>, vector<128x512xbf16>
    %cst_327 = arith.constant dense<0.000000e+00> : vector<8x512xf32>
    %852 = tpu.matmul %850, %851, %cst_327 {dimension_numbers = #tpu.dot_dimension_numbers<[1], [0], [0], [1], [0, 0, 1, 1], [], []>} : vector<8x128xbf16>, vector<128x512xbf16>, vector<8x512xf32> -> vector<8x512xf32>
    %853 = arith.addf %847, %852 : vector<8x512xf32>
    %c0_328 = arith.constant 0 : index
    %c0_329 = arith.constant 0 : index
    %854 = vector.load %arg10[%c0_328, %c0_329] : memref<1x512xf32, #tpu.memory_space<vmem>>, vector<1x512xf32>
    %855 = vector.broadcast %854 : vector<1x512xf32> to vector<8x512xf32>
    %856 = arith.addf %853, %855 : vector<8x512xf32>
    %857 = vector.extract_strided_slice %856 {offsets = [0, 0], sizes = [8, 128], strides = [1, 1]} : vector<8x512xf32> to vector<8x128xf32>
    %858 = arith.negf %857 : vector<8x128xf32>
    %859 = math.exp %858 : vector<8x128xf32>
    %cst_330 = arith.constant 1.000000e+00 : f32
    %860 = vector.broadcast %cst_330 : f32 to vector<8x128xf32>
    %861 = arith.addf %860, %859 : vector<8x128xf32>
    %862 = arith.divf %860, %861 : vector<8x128xf32>
    %863 = vector.extract_strided_slice %856 {offsets = [0, 256], sizes = [8, 128], strides = [1, 1]} : vector<8x512xf32> to vector<8x128xf32>
    %864 = math.tanh %863 : vector<8x128xf32>
    %865 = vector.extract_strided_slice %856 {offsets = [0, 384], sizes = [8, 128], strides = [1, 1]} : vector<8x512xf32> to vector<8x128xf32>
    %866 = arith.negf %865 : vector<8x128xf32>
    %867 = math.exp %866 : vector<8x128xf32>
    %cst_331 = arith.constant 1.000000e+00 : f32
    %868 = vector.broadcast %cst_331 : f32 to vector<8x128xf32>
    %869 = arith.addf %868, %867 : vector<8x128xf32>
    %870 = arith.divf %868, %869 : vector<8x128xf32>
    %871 = arith.mulf %862, %864 : vector<8x128xf32>
    %872 = math.tanh %871 : vector<8x128xf32>
    %873 = arith.mulf %870, %872 : vector<8x128xf32>
    %874 = arith.truncf %842 : vector<8x128xf32> to vector<8x128xbf16>
    %c0_332 = arith.constant 0 : index
    %c0_333 = arith.constant 0 : index
    %875 = vector.load %arg12[%c0_332, %c0_333] : memref<128x128xbf16, #tpu.memory_space<vmem>>, vector<128x128xbf16>
    %cst_334 = arith.constant dense<0.000000e+00> : vector<8x128xf32>
    %876 = tpu.matmul %874, %875, %cst_334 {dimension_numbers = #tpu.dot_dimension_numbers<[1], [0], [0], [1], [0, 0, 1, 1], [], []>} : vector<8x128xbf16>, vector<128x128xbf16>, vector<8x128xf32> -> vector<8x128xf32>
    %877 = arith.truncf %873 : vector<8x128xf32> to vector<8x128xbf16>
    %c0_335 = arith.constant 0 : index
    %c0_336 = arith.constant 0 : index
    %878 = vector.load %arg13[%c0_335, %c0_336] : memref<128x128xbf16, #tpu.memory_space<vmem>>, vector<128x128xbf16>
    %cst_337 = arith.constant dense<0.000000e+00> : vector<8x128xf32>
    %879 = tpu.matmul %877, %878, %cst_337 {dimension_numbers = #tpu.dot_dimension_numbers<[1], [0], [0], [1], [0, 0, 1, 1], [], []>} : vector<8x128xbf16>, vector<128x128xbf16>, vector<8x128xf32> -> vector<8x128xf32>
    %880 = arith.addf %876, %879 : vector<8x128xf32>
    %c0_338 = arith.constant 0 : index
    %c0_339 = arith.constant 0 : index
    %881 = vector.load %arg14[%c0_338, %c0_339] : memref<1x128xf32, #tpu.memory_space<vmem>>, vector<1x128xf32>
    %882 = vector.broadcast %881 : vector<1x128xf32> to vector<8x128xf32>
    %883 = arith.addf %880, %882 : vector<8x128xf32>
    %c0_340 = arith.constant 0 : index
    %c0_341 = arith.constant 0 : index
    %884 = vector.load %arg15[%c0_340, %c0_341] : memref<8x128xf32, #tpu.memory_space<vmem>>, vector<8x128xf32>
    tpu.vector_store %arg15[%c0_340, %c0_341], %883 {strides = array<i32>} : memref<8x128xf32, #tpu.memory_space<vmem>>, vector<8x128xf32>,
    return
  }
}

</mosaic_0001>

<llo_original>
// kernel: bi_emotion_lstm_forward.1
$region0: #{bi_emotion_lstm_forward.1}
  #allocation0 [shape = 'u32[]', space=smem, size = 0x4, offset = 0x4, fixed_abs, tag = 'smem constant byte address 0x4 - core index']
  #allocation1 [shape = 'u32[144,128]{1,0:T(1,128)}', space=vmem, size = 0x12000, scoped, tag = 'internal scratch']
  #allocation2 [shape = 'f32[8,8,128]{2,1,0:T(8,128)}', space=vmem, size = 0x8000, scoped, tag = 'scratch operand']
  #allocation3 [shape = 'f32[8,8,128]{2,1,0:T(8,128)}', space=vmem, size = 0x8000, scoped, tag = 'scratch operand']
  #allocation4 [shape = 'f32[64,1024]{1,0:T(8,128)}', space=vmem, size = 0x40000, scoped, tag = 'scratch operand']
  %s0 = inlined_call_operand.vmem [shape: bf16[64,32], index: 0, kind: input, shape index: {}]
  %s1 = inlined_call_operand.vmem [shape: bf16[32,1024], index: 1, kind: input, shape index: {}]
  %s2 = inlined_call_operand.vmem [shape: f32[1,1024], index: 2, kind: input, shape index: {}]
  %s3 = inlined_call_operand.hbm [shape: bf16[128,512], index: 3, kind: input, shape index: {}]
  %s4 = inlined_call_operand.hbm [shape: bf16[128,512], index: 4, kind: input, shape index: {}]
  %s5 = inlined_call_operand.hbm [shape: bf16[128,512], index: 5, kind: input, shape index: {}]
  %s6 = inlined_call_operand.hbm [shape: bf16[128,512], index: 6, kind: input, shape index: {}]
  %s7 = inlined_call_operand.hbm [shape: bf16[128,512], index: 7, kind: input, shape index: {}]
  %s8 = inlined_call_operand.hbm [shape: bf16[128,512], index: 8, kind: input, shape index: {}]
  %s9 = inlined_call_operand.vmem [shape: f32[1,512], index: 9, kind: input, shape index: {}]
  %s10 = inlined_call_operand.hbm [shape: f32[1,512], index: 10, kind: input, shape index: {}]
  %s11 = inlined_call_operand.hbm [shape: bf16[128,512], index: 11, kind: input, shape index: {}]
  %s12 = inlined_call_operand.vmem [shape: bf16[128,128], index: 12, kind: input, shape index: {}]
  %s13 = inlined_call_operand.hbm [shape: bf16[128,128], index: 13, kind: input, shape index: {}]
  %s14 = inlined_call_operand.vmem [shape: f32[1,128], index: 14, kind: input, shape index: {}]
  %s15 = inlined_call_operand.vmem [shape: f32[8,128], index: 15, kind: output, shape index: {}]
  %s16 = sld [smem:[#allocation0]]
  $region106: #{bi_emotion_lstm_forward.1} parent=0
    _
  %s18 = ssub.s32 1, %s16
  %s19 = scalar_select 0, %s18, %s16
  $region1: #{bi_emotion_lstm_forward.1} parent=0
    #allocation5 [shape = 'u8[131072]{0}', space=vmem, size = 0x20000, scoped, tag = 'input window, operand 3, single buffered']
    #allocation6 [shape = 's32[1]{0}', space=sflag, size = 0x4, scoped, tag = 'scoped memory for bi_emotion_lstm_forward.1']
    #allocation7 [shape = 'u8[131072]{0}', space=vmem, size = 0x20000, scoped, tag = 'input window, operand 4, single buffered']
    #allocation8 [shape = 's32[1]{0}', space=sflag, size = 0x4, scoped, tag = 'scoped memory for bi_emotion_lstm_forward.1']
    #allocation9 [shape = 'u8[131072]{0}', space=vmem, size = 0x20000, scoped, tag = 'input window, operand 5, single buffered']
    #allocation10 [shape = 'u8[131072]{0}', space=vmem, size = 0x20000, scoped, tag = 'input window, operand 6, single buffered']
    #allocation11 [shape = 's32[1]{0}', space=sflag, size = 0x4, scoped, tag = 'scoped memory for bi_emotion_lstm_forward.1']
    #allocation12 [shape = 'u8[131072]{0}', space=vmem, size = 0x20000, scoped, tag = 'input window, operand 7, single buffered']
    #allocation13 [shape = 'u8[131072]{0}', space=vmem, size = 0x20000, scoped, tag = 'input window, operand 8, single buffered']
    #allocation14 [shape = 's32[1]{0}', space=sflag, size = 0x4, scoped, tag = 'scoped memory for bi_emotion_lstm_forward.1']
    #allocation15 [shape = 'u8[2048]{0}', space=vmem, size = 0x800, scoped, tag = 'input window, operand 10, single buffered']
    #allocation16 [shape = 'u8[131072]{0}', space=vmem, size = 0x20000, scoped, tag = 'input window, operand 11, single buffered']
    #allocation17 [shape = 's32[1]{0}', space=sflag, size = 0x4, scoped, tag = 'scoped memory for bi_emotion_lstm_forward.1']
    #allocation18 [shape = 'u8[32768]{0}', space=vmem, size = 0x8000, scoped, tag = 'input window, operand 13, single buffered']
    %20 = vsyncpa [#allocation6], 0
    %21 = vsyncpa [#allocation8], 0
    %22 = vsyncpa [#allocation11], 0
    %23 = vsyncpa [#allocation14], 0
    %24 = vsyncpa [#allocation17], 0
    // Predicated region
    $region2: #{bi_emotion_lstm_forward.1} parent=1 // pred_check
      _
    $region3: #{bi_emotion_lstm_forward.1} parent=1 // pred_check_branch
      %26 = sbr.rel (0) target = $region5
    $region4: #{bi_emotion_lstm_forward.1} parent=1 // pred_region
      _
    $region5: #{bi_emotion_lstm_forward.1} parent=1 // pred_fallthru
      _
    // Predicated region
    $region6: #{bi_emotion_lstm_forward.1} parent=1 // pred_check
      _
    $region7: #{bi_emotion_lstm_forward.1} parent=1 // pred_check_branch
      %28 = sbr.rel (0) target = $region9
    $region8: #{bi_emotion_lstm_forward.1} parent=1 // pred_region
      _
    $region9: #{bi_emotion_lstm_forward.1} parent=1 // pred_fallthru
      _
    // Predicated region
    $region10: #{bi_emotion_lstm_forward.1} parent=1 // pred_check
      _
    $region11: #{bi_emotion_lstm_forward.1} parent=1 // pred_check_branch
      %30 = sbr.rel (0) target = $region13
    $region12: #{bi_emotion_lstm_forward.1} parent=1 // pred_region
      _
    $region13: #{bi_emotion_lstm_forward.1} parent=1 // pred_fallthru
      _
    // Predicated region
    $region14: #{bi_emotion_lstm_forward.1} parent=1 // pred_check
      _
    $region15: #{bi_emotion_lstm_forward.1} parent=1 // pred_check_branch
      %32 = sbr.rel (0) target = $region17
    $region16: #{bi_emotion_lstm_forward.1} parent=1 // pred_region
      %s34 = ssub.s32 4096, 4096
      %35 = vsyncadd [#allocation6], %s34
      %s36 = sshll.u32 [#allocation5], 4
      %s37 = int_to_ptr.vmem [resolvable:$true] %s36
      %42 = dma.hbm_to_vmem [thread:$0]  %s3, 4096, %s37, [#allocation6], 256, 256, 16
    $region17: #{bi_emotion_lstm_forward.1} parent=1 // pred_fallthru
      _
    // Predicated region
    $region18: #{bi_emotion_lstm_forward.1} parent=1 // pred_check
      _
    $region19: #{bi_emotion_lstm_forward.1} parent=1 // pred_check_branch
      %44 = sbr.rel (0) target = $region21
    $region20: #{bi_emotion_lstm_forward.1} parent=1 // pred_region
      %s46 = ssub.s32 4096, 4096
      %47 = vsyncadd [#allocation8], %s46
      %s48 = sshll.u32 [#allocation7], 4
      %s49 = int_to_ptr.vmem [resolvable:$true] %s48
      %54 = dma.hbm_to_vmem [thread:$0]  %s4, 4096, %s49, [#allocation8], 256, 256, 16
    $region21: #{bi_emotion_lstm_forward.1} parent=1 // pred_fallthru
      _
    // Predicated region
    $region22: #{bi_emotion_lstm_forward.1} parent=1 // pred_check
      _
    $region23: #{bi_emotion_lstm_forward.1} parent=1 // pred_check_branch
      %56 = sbr.rel (0) target = $region25
    $region24: #{bi_emotion_lstm_forward.1} parent=1 // pred_region
      %s58 = ssub.s32 4096, 4096
      %59 = vsyncadd [#allocation8], %s58
      %s60 = sshll.u32 [#allocation9], 4
      %s61 = int_to_ptr.vmem [resolvable:$true] %s60
      %66 = dma.hbm_to_vmem [thread:$0]  %s5, 4096, %s61, [#allocation8], 256, 256, 16
    $region25: #{bi_emotion_lstm_forward.1} parent=1 // pred_fallthru
      _
    // Predicated region
    $region26: #{bi_emotion_lstm_forward.1} parent=1 // pred_check
      _
    $region27: #{bi_emotion_lstm_forward.1} parent=1 // pred_check_branch
      %68 = sbr.rel (0) target = $region29
    $region28: #{bi_emotion_lstm_forward.1} parent=1 // pred_region
      %s70 = ssub.s32 4096, 4096
      %71 = vsyncadd [#allocation11], %s70
      %s72 = sshll.u32 [#allocation10], 4
      %s73 = int_to_ptr.vmem [resolvable:$true] %s72
      %78 = dma.hbm_to_vmem [thread:$0]  %s6, 4096, %s73, [#allocation11], 256, 256, 16
    $region29: #{bi_emotion_lstm_forward.1} parent=1 // pred_fallthru
      _
    // Predicated region
    $region30: #{bi_emotion_lstm_forward.1} parent=1 // pred_check
      _
    $region31: #{bi_emotion_lstm_forward.1} parent=1 // pred_check_branch
      %80 = sbr.rel (0) target = $region33
    $region32: #{bi_emotion_lstm_forward.1} parent=1 // pred_region
      %s82 = ssub.s32 4096, 4096
      %83 = vsyncadd [#allocation11], %s82
      %s84 = sshll.u32 [#allocation12], 4
      %s85 = int_to_ptr.vmem [resolvable:$true] %s84
      %90 = dma.hbm_to_vmem [thread:$0]  %s7, 4096, %s85, [#allocation11], 256, 256, 16
    $region33: #{bi_emotion_lstm_forward.1} parent=1 // pred_fallthru
      _
    // Predicated region
    $region34: #{bi_emotion_lstm_forward.1} parent=1 // pred_check
      _
    $region35: #{bi_emotion_lstm_forward.1} parent=1 // pred_check_branch
      %92 = sbr.rel (0) target = $region37
    $region36: #{bi_emotion_lstm_forward.1} parent=1 // pred_region
      %s94 = ssub.s32 4096, 4096
      %95 = vsyncadd [#allocation14], %s94
      %s96 = sshll.u32 [#allocation13], 4
      %s97 = int_to_ptr.vmem [resolvable:$true] %s96
      %102 = dma.hbm_to_vmem [thread:$0]  %s8, 4096, %s97, [#allocation14], 256, 256, 16
    $region37: #{bi_emotion_lstm_forward.1} parent=1 // pred_fallthru
      _
    // Predicated region
    $region38: #{bi_emotion_lstm_forward.1} parent=1 // pred_check
      _
    $region39: #{bi_emotion_lstm_forward.1} parent=1 // pred_check_branch
      %104 = sbr.rel (0) target = $region41
    $region40: #{bi_emotion_lstm_forward.1} parent=1 // pred_region
      _
    $region41: #{bi_emotion_lstm_forward.1} parent=1 // pred_fallthru
      _
    // Predicated region
    $region42: #{bi_emotion_lstm_forward.1} parent=1 // pred_check
      _
    $region43: #{bi_emotion_lstm_forward.1} parent=1 // pred_check_branch
      %106 = sbr.rel (0) target = $region45
    $region44: #{bi_emotion_lstm_forward.1} parent=1 // pred_region
      %s108 = ssub.s32 64, 64
      %109 = vsyncadd [#allocation14], %s108
      %s111 = sshll.u32 [#allocation15], 4
      %s112 = int_to_ptr.vmem [resolvable:$true] %s111
      %114 = dma.hbm_to_vmem [thread:$0]  %s10, 64, %s112, [#allocation14]
    $region45: #{bi_emotion_lstm_forward.1} parent=1 // pred_fallthru
      _
    // Predicated region
    $region46: #{bi_emotion_lstm_forward.1} parent=1 // pred_check
      _
    $region47: #{bi_emotion_lstm_forward.1} parent=1 // pred_check_branch
      %116 = sbr.rel (0) target = $region49
    $region48: #{bi_emotion_lstm_forward.1} parent=1 // pred_region
      %s118 = ssub.s32 4096, 4096
      %119 = vsyncadd [#allocation17], %s118
      %s120 = sshll.u32 [#allocation16], 4
      %s121 = int_to_ptr.vmem [resolvable:$true] %s120
      %126 = dma.hbm_to_vmem [thread:$0]  %s11, 4096, %s121, [#allocation17], 256, 256, 16
    $region49: #{bi_emotion_lstm_forward.1} parent=1 // pred_fallthru
      _
    // Predicated region
    $region50: #{bi_emotion_lstm_forward.1} parent=1 // pred_check
      _
    $region51: #{bi_emotion_lstm_forward.1} parent=1 // pred_check_branch
      %128 = sbr.rel (0) target = $region53
    $region52: #{bi_emotion_lstm_forward.1} parent=1 // pred_region
      _
    $region53: #{bi_emotion_lstm_forward.1} parent=1 // pred_fallthru
      _
    // Predicated region
    $region54: #{bi_emotion_lstm_forward.1} parent=1 // pred_check
      _
    $region55: #{bi_emotion_lstm_forward.1} parent=1 // pred_check_branch
      %130 = sbr.rel (0) target = $region57
    $region56: #{bi_emotion_lstm_forward.1} parent=1 // pred_region
      %s132 = ssub.s32 1024, 1024
      %133 = vsyncadd [#allocation17], %s132
      %s134 = sshll.u32 [#allocation18], 4
      %s135 = int_to_ptr.vmem [resolvable:$true] %s134
      %140 = dma.hbm_to_vmem [thread:$0]  %s13, 1024, %s135, [#allocation17], 64, 64, 4
    $region57: #{bi_emotion_lstm_forward.1} parent=1 // pred_fallthru
      _
    // Predicated region
    $region58: #{bi_emotion_lstm_forward.1} parent=1 // pred_check
      _
    $region59: #{bi_emotion_lstm_forward.1} parent=1 // pred_check_branch
      %142 = sbr.rel (0) target = $region61
    $region60: #{bi_emotion_lstm_forward.1} parent=1 // pred_region
      _
    $region61: #{bi_emotion_lstm_forward.1} parent=1 // pred_fallthru
      _
    // Predicated region
    $region62: #{bi_emotion_lstm_forward.1} parent=1 // pred_check
      _
    $region63: #{bi_emotion_lstm_forward.1} parent=1 // pred_check_branch
      %144 = sbr.rel (0) target = $region65
    $region64: #{bi_emotion_lstm_forward.1} parent=1 // pred_region
      %145 = dma.done [#allocation6], 4096
    $region65: #{bi_emotion_lstm_forward.1} parent=1 // pred_fallthru
      _
    // Predicated region
    $region66: #{bi_emotion_lstm_forward.1} parent=1 // pred_check
      _
    $region67: #{bi_emotion_lstm_forward.1} parent=1 // pred_check_branch
      %147 = sbr.rel (0) target = $region69
    $region68: #{bi_emotion_lstm_forward.1} parent=1 // pred_region
      %148 = dma.done [#allocation8], 4096
    $region69: #{bi_emotion_lstm_forward.1} parent=1 // pred_fallthru
      _
    // Predicated region
    $region70: #{bi_emotion_lstm_forward.1} parent=1 // pred_check
      _
    $region71: #{bi_emotion_lstm_forward.1} parent=1 // pred_check_branch
      %150 = sbr.rel (0) target = $region73
    $region72: #{bi_emotion_lstm_forward.1} parent=1 // pred_region
      %151 = dma.done [#allocation8], 4096
    $region73: #{bi_emotion_lstm_forward.1} parent=1 // pred_fallthru
      _
    // Predicated region
    $region74: #{bi_emotion_lstm_forward.1} parent=1 // pred_check
      _
    $region75: #{bi_emotion_lstm_forward.1} parent=1 // pred_check_branch
      %153 = sbr.rel (0) target = $region77
    $region76: #{bi_emotion_lstm_forward.1} parent=1 // pred_region
      %154 = dma.done [#allocation11], 4096
    $region77: #{bi_emotion_lstm_forward.1} parent=1 // pred_fallthru
      _
    // Predicated region
    $region78: #{bi_emotion_lstm_forward.1} parent=1 // pred_check
      _
    $region79: #{bi_emotion_lstm_forward.1} parent=1 // pred_check_branch
      %156 = sbr.rel (0) target = $region81
    $region80: #{bi_emotion_lstm_forward.1} parent=1 // pred_region
      %157 = dma.done [#allocation11], 4096
    $region81: #{bi_emotion_lstm_forward.1} parent=1 // pred_fallthru
      _
    // Predicated region
    $region82: #{bi_emotion_lstm_forward.1} parent=1 // pred_check
      _
    $region83: #{bi_emotion_lstm_forward.1} parent=1 // pred_check_branch
      %159 = sbr.rel (0) target = $region85
    $region84: #{bi_emotion_lstm_forward.1} parent=1 // pred_region
      %160 = dma.done [#allocation14], 4096
    $region85: #{bi_emotion_lstm_forward.1} parent=1 // pred_fallthru
      _
    // Predicated region
    $region86: #{bi_emotion_lstm_forward.1} parent=1 // pred_check
      _
    $region87: #{bi_emotion_lstm_forward.1} parent=1 // pred_check_branch
      %162 = sbr.rel (0) target = $region89
    $region88: #{bi_emotion_lstm_forward.1} parent=1 // pred_region
      %163 = dma.done [#allocation14], 64
    $region89: #{bi_emotion_lstm_forward.1} parent=1 // pred_fallthru
      _
    // Predicated region
    $region90: #{bi_emotion_lstm_forward.1} parent=1 // pred_check
      _
    $region91: #{bi_emotion_lstm_forward.1} parent=1 // pred_check_branch
      %165 = sbr.rel (0) target = $region93
    $region92: #{bi_emotion_lstm_forward.1} parent=1 // pred_region
      %166 = dma.done [#allocation17], 4096
    $region93: #{bi_emotion_lstm_forward.1} parent=1 // pred_fallthru
      _
    // Predicated region
    $region94: #{bi_emotion_lstm_forward.1} parent=1 // pred_check
      _
    $region95: #{bi_emotion_lstm_forward.1} parent=1 // pred_check_branch
      %168 = sbr.rel (0) target = $region97
    $region96: #{bi_emotion_lstm_forward.1} parent=1 // pred_region
      %169 = dma.done [#allocation17], 1024
    $region97: #{bi_emotion_lstm_forward.1} parent=1 // pred_fallthru
      _
    %v171 = vld [vmem:[%s0] sm:$0xf]
    %v172 = vld [vmem:[%s0 + $0x4] sm:$0xf]
    %v173 = vld [vmem:[%s0 + $0x8] sm:$0xf]
    %v174 = vld [vmem:[%s0 + $0xc] sm:$0xf]
    %v175 = vld [vmem:[%s0 + $0x10] sm:$0xf]
    %v176 = vld [vmem:[%s0 + $0x14] sm:$0xf]
    %v177 = vld [vmem:[%s0 + $0x18] sm:$0xf]
    %v178 = vld [vmem:[%s0 + $0x1c] sm:$0xf]
    %v179 = vld [vmem:[%s1] sm:$0xff]
    %v180 = vld [vmem:[%s1 + $0x8] sm:$0xff]
    %v181 = vld [vmem:[%s1 + $0x10] sm:$0xff]
    %v182 = vld [vmem:[%s1 + $0x18] sm:$0xff]
    %v183 = vld [vmem:[%s1 + $0x20] sm:$0xff]
    %v184 = vld [vmem:[%s1 + $0x28] sm:$0xff]
    %v185 = vld [vmem:[%s1 + $0x30] sm:$0xff]
    %v186 = vld [vmem:[%s1 + $0x38] sm:$0xff]
    %v187 = vld [vmem:[%s1 + $0x40] sm:$0xff]
    %v188 = vld [vmem:[%s1 + $0x48] sm:$0xff]
    %v189 = vld [vmem:[%s1 + $0x50] sm:$0xff]
    %v190 = vld [vmem:[%s1 + $0x58] sm:$0xff]
    %v191 = vld [vmem:[%s1 + $0x60] sm:$0xff]
    %v192 = vld [vmem:[%s1 + $0x68] sm:$0xff]
    %v193 = vld [vmem:[%s1 + $0x70] sm:$0xff]
    %v194 = vld [vmem:[%s1 + $0x78] sm:$0xff]
    %v195 = vld [vmem:[%s2] sm:$0xff]
    %v197 = vlaneseq
    %v198 = vshrl.u32 %v197, 7
    %v199 = vsub.s32 0, %v198
    %v200 = vrot.slane %v195, %v199
    %v201 = vlaneseq
    %v202 = vshrl.u32 %v201, 7
    %v203 = vsub.s32 1, %v202
    %v204 = vrot.slane %v195, %v203
    %v205 = vlaneseq
    %v206 = vshrl.u32 %v205, 7
    %v207 = vsub.s32 2, %v206
    %v208 = vrot.slane %v195, %v207
    %v209 = vlaneseq
    %v210 = vshrl.u32 %v209, 7
    %v211 = vsub.s32 3, %v210
    %v212 = vrot.slane %v195, %v211
    %v213 = vlaneseq
    %v214 = vshrl.u32 %v213, 7
    %v215 = vsub.s32 4, %v214
    %v216 = vrot.slane %v195, %v215
    %v217 = vlaneseq
    %v218 = vshrl.u32 %v217, 7
    %v219 = vsub.s32 5, %v218
    %v220 = vrot.slane %v195, %v219
    %v221 = vlaneseq
    %v222 = vshrl.u32 %v221, 7
    %v223 = vsub.s32 6, %v222
    %v224 = vrot.slane %v195, %v223
    %v225 = vlaneseq
    %v226 = vshrl.u32 %v225, 7
    %v227 = vsub.s32 7, %v226
    %v228 = vrot.slane %v195, %v227
    %v245 = vunpack.c.l.b16 %v171
    %v246 = vunpack.c.l.b16 %v172
    %v247 = vunpack.c.l.b16 %v173
    %v248 = vunpack.c.l.b16 %v174
    %v249 = vunpack.c.l.b16 %v175
    %v250 = vunpack.c.l.b16 %v176
    %v251 = vunpack.c.l.b16 %v177
    %v252 = vunpack.c.l.b16 %v178
    %v253 = vpack.c.b16 %v246, %v245
    %v254 = vpack.c.b16 %v248, %v247
    %v255 = vpack.c.b16 %v250, %v249
    %v256 = vpack.c.b16 %v252, %v251
    %v273 = vunpack.c.l.b16 %v179
    %v274 = vunpack.c.h.b16 %v179
    %v275 = vunpack.c.l.b16 %v180
    %v276 = vunpack.c.h.b16 %v180
    %v277 = vunpack.c.l.b16 %v181
    %v278 = vunpack.c.h.b16 %v181
    %v279 = vunpack.c.l.b16 %v182
    %v280 = vunpack.c.h.b16 %v182
    %v281 = vunpack.c.l.b16 %v183
    %v282 = vunpack.c.h.b16 %v183
    %v283 = vunpack.c.l.b16 %v184
    %v284 = vunpack.c.h.b16 %v184
    %v285 = vunpack.c.l.b16 %v185
    %v286 = vunpack.c.h.b16 %v185
    %v287 = vunpack.c.l.b16 %v186
    %v288 = vunpack.c.h.b16 %v186
    %v289 = vunpack.c.l.b16 %v187
    %v290 = vunpack.c.h.b16 %v187
    %v291 = vunpack.c.l.b16 %v188
    %v292 = vunpack.c.h.b16 %v188
    %v293 = vunpack.c.l.b16 %v189
    %v294 = vunpack.c.h.b16 %v189
    %v295 = vunpack.c.l.b16 %v190
    %v296 = vunpack.c.h.b16 %v190
    %v297 = vunpack.c.l.b16 %v191
    %v298 = vunpack.c.h.b16 %v191
    %v299 = vunpack.c.l.b16 %v192
    %v300 = vunpack.c.h.b16 %v192
    %v301 = vunpack.c.l.b16 %v193
    %v302 = vunpack.c.h.b16 %v193
    %v303 = vunpack.c.l.b16 %v194
    %v304 = vunpack.c.h.b16 %v194
    %v305 = vpack.c.b16 %v281, %v273
    %v306 = vpack.c.b16 %v282, %v274
    %v307 = vpack.c.b16 %v283, %v275
    %v308 = vpack.c.b16 %v284, %v276
    %v309 = vpack.c.b16 %v285, %v277
    %v310 = vpack.c.b16 %v286, %v278
    %v311 = vpack.c.b16 %v287, %v279
    %v312 = vpack.c.b16 %v288, %v280
    %v313 = vpack.c.b16 %v297, %v289
    %v314 = vpack.c.b16 %v298, %v290
    %v315 = vpack.c.b16 %v299, %v291
    %v316 = vpack.c.b16 %v300, %v292
    %v317 = vpack.c.b16 %v301, %v293
    %v318 = vpack.c.b16 %v302, %v294
    %v319 = vpack.c.b16 %v303, %v295
    %v320 = vpack.c.b16 %v304, %v296
    %vm337 = vcmask 261120
    %v339 = vsel %vm337, %v253, 0
    %v342 = vsel %vm337, %v254, 0
    %v345 = vsel %vm337, %v255, 0
    %v348 = vsel %vm337, %v256, 0
    %350 = vmatprep.subr.bf16.mxu0 %v306
    %351 = vmatpush1.bf16.msra.mxu0 %v305
    %352 = vmatprep.subr.bf16.mxu0 %v314
    %353 = vmatpush1.bf16.msra.mxu0 %v313
    %354 = vmatprep.subr.bf16.mxu0 0
    %355 = vmatpush1.bf16.msra.mxu0 0
    %356 = vmatprep.subr.bf16.mxu0 0
    %357 = vmatpush1.bf16.msra.mxu0 0
    %358 = vmatprep.subr.bf16.mxu0 0
    %359 = vmatpush1.bf16.msra.mxu0 0
    %360 = vmatprep.subr.bf16.mxu0 0
    %361 = vmatpush1.bf16.msra.mxu0 0
    %362 = vmatprep.subr.bf16.mxu0 0
    %363 = vmatpush1.bf16.msra.mxu0 0
    %364 = vmatprep.subr.bf16.mxu0 0
    %365 = vmatpush1.bf16.msra.mxu0 0
    %366 = vmatprep.subr.bf16.mxu0 0
    %367 = vmatpush1.bf16.msra.mxu0 0
    %368 = vmatprep.subr.bf16.mxu0 0
    %369 = vmatpush1.bf16.msra.mxu0 0
    %370 = vmatprep.subr.bf16.mxu0 0
    %371 = vmatpush1.bf16.msra.mxu0 0
    %372 = vmatprep.subr.bf16.mxu0 0
    %373 = vmatpush1.bf16.msra.mxu0 0
    %374 = vmatprep.subr.bf16.mxu0 0
    %375 = vmatpush1.bf16.msra.mxu0 0
    %376 = vmatprep.subr.bf16.mxu0 0
    %377 = vmatpush1.bf16.msra.mxu0 0
    %378 = vmatprep.subr.bf16.mxu0 0
    %379 = vmatpush1.bf16.msra.mxu0 0
    %380 = vmatprep.subr.bf16.mxu0 0
    %381 = vmatpush1.bf16.msra.mxu0 0
    %382 = vmatprep.mubr.bf16.mxu0 0
    %383 = vmatmul.mubr.bf16.gmra.mrb[0].mxu0 %v339
    %v384 = vpop.f32.mrb[0].mxu0
    %v385 = vadd.f32 %v200, %v384
    %v386 = vpop.f32.mrb[0].mxu0
    %v387 = vadd.f32 %v204, %v386
    %v388 = vpop.f32.mrb[0].mxu0
    %v389 = vadd.f32 %v200, %v388
    %v390 = vpop.f32.mrb[0].mxu0
    %v391 = vadd.f32 %v204, %v390
    %392 = vmatprep.mubr.bf16.mxu0 0
    %393 = vmatmul.mubr.bf16.gmra.mrb[0].mxu0 %v342
    %v394 = vpop.f32.mrb[0].mxu0
    %v395 = vadd.f32 %v200, %v394
    %v396 = vpop.f32.mrb[0].mxu0
    %v397 = vadd.f32 %v204, %v396
    %v398 = vpop.f32.mrb[0].mxu0
    %v399 = vadd.f32 %v200, %v398
    %v400 = vpop.f32.mrb[0].mxu0
    %v401 = vadd.f32 %v204, %v400
    %402 = vmatprep.mubr.bf16.mxu0 0
    %403 = vmatmul.mubr.bf16.gmra.mrb[0].mxu0 %v345
    %v404 = vpop.f32.mrb[0].mxu0
    %v405 = vadd.f32 %v200, %v404
    %v406 = vpop.f32.mrb[0].mxu0
    %v407 = vadd.f32 %v204, %v406
    %v408 = vpop.f32.mrb[0].mxu0
    %v409 = vadd.f32 %v200, %v408
    %v410 = vpop.f32.mrb[0].mxu0
    %v411 = vadd.f32 %v204, %v410
    %412 = vmatprep.mubr.bf16.mxu0 0
    %413 = vmatmul.mubr.bf16.gmra.mrb[0].mxu0 %v348
    %v414 = vpop.f32.mrb[0].mxu0
    %v415 = vadd.f32 %v200, %v414
    %v416 = vpop.f32.mrb[0].mxu0
    %v417 = vadd.f32 %v204, %v416
    %v418 = vpop.f32.mrb[0].mxu0
    %v419 = vadd.f32 %v200, %v418
    %v420 = vpop.f32.mrb[0].mxu0
    %v421 = vadd.f32 %v204, %v420
    %422 = vdwg.mxu0
    %423 = vmatprep.subr.bf16.mxu0 %v308
    %424 = vmatpush1.bf16.msra.mxu0 %v307
    %425 = vmatprep.subr.bf16.mxu0 %v316
    %426 = vmatpush1.bf16.msra.mxu0 %v315
    %427 = vmatprep.subr.bf16.mxu0 0
    %428 = vmatpush1.bf16.msra.mxu0 0
    %429 = vmatprep.subr.bf16.mxu0 0
    %430 = vmatpush1.bf16.msra.mxu0 0
    %431 = vmatprep.subr.bf16.mxu0 0
    %432 = vmatpush1.bf16.msra.mxu0 0
    %433 = vmatprep.subr.bf16.mxu0 0
    %434 = vmatpush1.bf16.msra.mxu0 0
    %435 = vmatprep.subr.bf16.mxu0 0
    %436 = vmatpush1.bf16.msra.mxu0 0
    %437 = vmatprep.subr.bf16.mxu0 0
    %438 = vmatpush1.bf16.msra.mxu0 0
    %439 = vmatprep.subr.bf16.mxu0 0
    %440 = vmatpush1.bf16.msra.mxu0 0
    %441 = vmatprep.subr.bf16.mxu0 0
    %442 = vmatpush1.bf16.msra.mxu0 0
    %443 = vmatprep.subr.bf16.mxu0 0
    %444 = vmatpush1.bf16.msra.mxu0 0
    %445 = vmatprep.subr.bf16.mxu0 0
    %446 = vmatpush1.bf16.msra.mxu0 0
    %447 = vmatprep.subr.bf16.mxu0 0
    %448 = vmatpush1.bf16.msra.mxu0 0
    %449 = vmatprep.subr.bf16.mxu0 0
    %450 = vmatpush1.bf16.msra.mxu0 0
    %451 = vmatprep.subr.bf16.mxu0 0
    %452 = vmatpush1.bf16.msra.mxu0 0
    %453 = vmatprep.subr.bf16.mxu0 0
    %454 = vmatpush1.bf16.msra.mxu0 0
    %455 = vmatprep.mubr.bf16.mxu0 0
    %456 = vmatmul.mubr.bf16.gmra.mrb[0].mxu0 %v339
    %v457 = vpop.f32.mrb[0].mxu0
    %v458 = vadd.f32 %v208, %v457
    %v459 = vpop.f32.mrb[0].mxu0
    %v460 = vadd.f32 %v212, %v459
    %v461 = vpop.f32.mrb[0].mxu0
    %v462 = vadd.f32 %v208, %v461
    %v463 = vpop.f32.mrb[0].mxu0
    %v464 = vadd.f32 %v212, %v463
    %465 = vmatprep.mubr.bf16.mxu0 0
    %466 = vmatmul.mubr.bf16.gmra.mrb[0].mxu0 %v342
    %v467 = vpop.f32.mrb[0].mxu0
    %v468 = vadd.f32 %v208, %v467
    %v469 = vpop.f32.mrb[0].mxu0
    %v470 = vadd.f32 %v212, %v469
    %v471 = vpop.f32.mrb[0].mxu0
    %v472 = vadd.f32 %v208, %v471
    %v473 = vpop.f32.mrb[0].mxu0
    %v474 = vadd.f32 %v212, %v473
    %475 = vmatprep.mubr.bf16.mxu0 0
    %476 = vmatmul.mubr.bf16.gmra.mrb[0].mxu0 %v345
    %v477 = vpop.f32.mrb[0].mxu0
    %v478 = vadd.f32 %v208, %v477
    %v479 = vpop.f32.mrb[0].mxu0
    %v480 = vadd.f32 %v212, %v479
    %v481 = vpop.f32.mrb[0].mxu0
    %v482 = vadd.f32 %v208, %v481
    %v483 = vpop.f32.mrb[0].mxu0
    %v484 = vadd.f32 %v212, %v483
    %485 = vmatprep.mubr.bf16.mxu0 0
    %486 = vmatmul.mubr.bf16.gmra.mrb[0].mxu0 %v348
    %v487 = vpop.f32.mrb[0].mxu0
    %v488 = vadd.f32 %v208, %v487
    %v489 = vpop.f32.mrb[0].mxu0
    %v490 = vadd.f32 %v212, %v489
    %v491 = vpop.f32.mrb[0].mxu0
    %v492 = vadd.f32 %v208, %v491
    %v493 = vpop.f32.mrb[0].mxu0
    %v494 = vadd.f32 %v212, %v493
    %495 = vdwg.mxu0
    %496 = vmatprep.subr.bf16.mxu0 %v310
    %497 = vmatpush1.bf16.msra.mxu0 %v309
    %498 = vmatprep.subr.bf16.mxu0 %v318
    %499 = vmatpush1.bf16.msra.mxu0 %v317
    %500 = vmatprep.subr.bf16.mxu0 0
    %501 = vmatpush1.bf16.msra.mxu0 0
    %502 = vmatprep.subr.bf16.mxu0 0
    %503 = vmatpush1.bf16.msra.mxu0 0
    %504 = vmatprep.subr.bf16.mxu0 0
    %505 = vmatpush1.bf16.msra.mxu0 0
    %506 = vmatprep.subr.bf16.mxu0 0
    %507 = vmatpush1.bf16.msra.mxu0 0
    %508 = vmatprep.subr.bf16.mxu0 0
    %509 = vmatpush1.bf16.msra.mxu0 0
    %510 = vmatprep.subr.bf16.mxu0 0
    %511 = vmatpush1.bf16.msra.mxu0 0
    %512 = vmatprep.subr.bf16.mxu0 0
    %513 = vmatpush1.bf16.msra.mxu0 0
    %514 = vmatprep.subr.bf16.mxu0 0
    %515 = vmatpush1.bf16.msra.mxu0 0
    %516 = vmatprep.subr.bf16.mxu0 0
    %517 = vmatpush1.bf16.msra.mxu0 0
    %518 = vmatprep.subr.bf16.mxu0 0
    %519 = vmatpush1.bf16.msra.mxu0 0
    %520 = vmatprep.subr.bf16.mxu0 0
    %521 = vmatpush1.bf16.msra.mxu0 0
    %522 = vmatprep.subr.bf16.mxu0 0
    %523 = vmatpush1.bf16.msra.mxu0 0
    %524 = vmatprep.subr.bf16.mxu0 0
    %525 = vmatpush1.bf16.msra.mxu0 0
    %526 = vmatprep.subr.bf16.mxu0 0
    %527 = vmatpush1.bf16.msra.mxu0 0
    %528 = vmatprep.mubr.bf16.mxu0 0
    %529 = vmatmul.mubr.bf16.gmra.mrb[0].mxu0 %v339
    %v530 = vpop.f32.mrb[0].mxu0
    %v531 = vadd.f32 %v216, %v530
    %v532 = vpop.f32.mrb[0].mxu0
    %v533 = vadd.f32 %v220, %v532
    %v534 = vpop.f32.mrb[0].mxu0
    %v535 = vadd.f32 %v216, %v534
    %v536 = vpop.f32.mrb[0].mxu0
    %v537 = vadd.f32 %v220, %v536
    %538 = vmatprep.mubr.bf16.mxu0 0
    %539 = vmatmul.mubr.bf16.gmra.mrb[0].mxu0 %v342
    %v540 = vpop.f32.mrb[0].mxu0
    %v541 = vadd.f32 %v216, %v540
    %v542 = vpop.f32.mrb[0].mxu0
    %v543 = vadd.f32 %v220, %v542
    %v544 = vpop.f32.mrb[0].mxu0
    %v545 = vadd.f32 %v216, %v544
    %v546 = vpop.f32.mrb[0].mxu0
    %v547 = vadd.f32 %v220, %v546
    %548 = vmatprep.mubr.bf16.mxu0 0
    %549 = vmatmul.mubr.bf16.gmra.mrb[0].mxu0 %v345
    %v550 = vpop.f32.mrb[0].mxu0
    %v551 = vadd.f32 %v216, %v550
    %v552 = vpop.f32.mrb[0].mxu0
    %v553 = vadd.f32 %v220, %v552
    %v554 = vpop.f32.mrb[0].mxu0
    %v555 = vadd.f32 %v216, %v554
    %v556 = vpop.f32.mrb[0].mxu0
    %v557 = vadd.f32 %v220, %v556
    %558 = vmatprep.mubr.bf16.mxu0 0
    %559 = vmatmul.mubr.bf16.gmra.mrb[0].mxu0 %v348
    %v560 = vpop.f32.mrb[0].mxu0
    %v561 = vadd.f32 %v216, %v560
    %v562 = vpop.f32.mrb[0].mxu0
    %v563 = vadd.f32 %v220, %v562
    %v564 = vpop.f32.mrb[0].mxu0
    %v565 = vadd.f32 %v216, %v564
    %v566 = vpop.f32.mrb[0].mxu0
    %v567 = vadd.f32 %v220, %v566
    %568 = vdwg.mxu0
    %569 = vmatprep.subr.bf16.mxu0 %v312
    %570 = vmatpush1.bf16.msra.mxu0 %v311
    %571 = vmatprep.subr.bf16.mxu0 %v320
    %572 = vmatpush1.bf16.msra.mxu0 %v319
    %573 = vmatprep.subr.bf16.mxu0 0
    %574 = vmatpush1.bf16.msra.mxu0 0
    %575 = vmatprep.subr.bf16.mxu0 0
    %576 = vmatpush1.bf16.msra.mxu0 0
    %577 = vmatprep.subr.bf16.mxu0 0
    %578 = vmatpush1.bf16.msra.mxu0 0
    %579 = vmatprep.subr.bf16.mxu0 0
    %580 = vmatpush1.bf16.msra.mxu0 0
    %581 = vmatprep.subr.bf16.mxu0 0
    %582 = vmatpush1.bf16.msra.mxu0 0
    %583 = vmatprep.subr.bf16.mxu0 0
    %584 = vmatpush1.bf16.msra.mxu0 0
    %585 = vmatprep.subr.bf16.mxu0 0
    %586 = vmatpush1.bf16.msra.mxu0 0
    %587 = vmatprep.subr.bf16.mxu0 0
    %588 = vmatpush1.bf16.msra.mxu0 0
    %589 = vmatprep.subr.bf16.mxu0 0
    %590 = vmatpush1.bf16.msra.mxu0 0
    %591 = vmatprep.subr.bf16.mxu0 0
    %592 = vmatpush1.bf16.msra.mxu0 0
    %593 = vmatprep.subr.bf16.mxu0 0
    %594 = vmatpush1.bf16.msra.mxu0 0
    %595 = vmatprep.subr.bf16.mxu0 0
    %596 = vmatpush1.bf16.msra.mxu0 0
    %597 = vmatprep.subr.bf16.mxu0 0
    %598 = vmatpush1.bf16.msra.mxu0 0
    %599 = vmatprep.subr.bf16.mxu0 0
    %600 = vmatpush1.bf16.msra.mxu0 0
    %601 = vmatprep.mubr.bf16.mxu0 0
    %602 = vmatmul.mubr.bf16.gmra.mrb[0].mxu0 %v339
    %v603 = vpop.f32.mrb[0].mxu0
    %v604 = vadd.f32 %v224, %v603
    %v605 = vpop.f32.mrb[0].mxu0
    %v606 = vadd.f32 %v228, %v605
    %v607 = vpop.f32.mrb[0].mxu0
    %v608 = vadd.f32 %v224, %v607
    %v609 = vpop.f32.mrb[0].mxu0
    %v610 = vadd.f32 %v228, %v609
    %611 = vmatprep.mubr.bf16.mxu0 0
    %612 = vmatmul.mubr.bf16.gmra.mrb[0].mxu0 %v342
    %v613 = vpop.f32.mrb[0].mxu0
    %v614 = vadd.f32 %v224, %v613
    %v615 = vpop.f32.mrb[0].mxu0
    %v616 = vadd.f32 %v228, %v615
    %v617 = vpop.f32.mrb[0].mxu0
    %v618 = vadd.f32 %v224, %v617
    %v619 = vpop.f32.mrb[0].mxu0
    %v620 = vadd.f32 %v228, %v619
    %621 = vmatprep.mubr.bf16.mxu0 0
    %622 = vmatmul.mubr.bf16.gmra.mrb[0].mxu0 %v345
    %v623 = vpop.f32.mrb[0].mxu0
    %v624 = vadd.f32 %v224, %v623
    %v625 = vpop.f32.mrb[0].mxu0
    %v626 = vadd.f32 %v228, %v625
    %v627 = vpop.f32.mrb[0].mxu0
    %v628 = vadd.f32 %v224, %v627
    %v629 = vpop.f32.mrb[0].mxu0
    %v630 = vadd.f32 %v228, %v629
    %631 = vmatprep.mubr.bf16.mxu0 0
    %632 = vmatmul.mubr.bf16.gmra.mrb[0].mxu0 %v348
    %v633 = vpop.f32.mrb[0].mxu0
    %v634 = vadd.f32 %v224, %v633
    %v635 = vpop.f32.mrb[0].mxu0
    %v636 = vadd.f32 %v228, %v635
    %v637 = vpop.f32.mrb[0].mxu0
    %v638 = vadd.f32 %v224, %v637
    %v639 = vpop.f32.mrb[0].mxu0
    %v640 = vadd.f32 %v228, %v639
    %641 = vdwg.mxu0
    %642 = vst [vmem:[#allocation4] sm:$0xff] %v385
    %643 = vst [vmem:[#allocation4 + $0x8] sm:$0xff] %v387
    %644 = vst [vmem:[#allocation4 + $0x10] sm:$0xff] %v458
    %645 = vst [vmem:[#allocation4 + $0x18] sm:$0xff] %v460
    %646 = vst [vmem:[#allocation4 + $0x20] sm:$0xff] %v531
    %647 = vst [vmem:[#allocation4 + $0x28] sm:$0xff] %v533
    %648 = vst [vmem:[#allocation4 + $0x30] sm:$0xff] %v604
    %649 = vst [vmem:[#allocation4 + $0x38] sm:$0xff] %v606
    %650 = vst [vmem:[#allocation4 + $0x40] sm:$0xff] %v389
    %651 = vst [vmem:[#allocation4 + $0x48] sm:$0xff] %v391
    %652 = vst [vmem:[#allocation4 + $0x50] sm:$0xff] %v462
    %653 = vst [vmem:[#allocation4 + $0x58] sm:$0xff] %v464
    %654 = vst [vmem:[#allocation4 + $0x60] sm:$0xff] %v535
    %655 = vst [vmem:[#allocation4 + $0x68] sm:$0xff] %v537
    %656 = vst [vmem:[#allocation4 + $0x70] sm:$0xff] %v608
    %657 = vst [vmem:[#allocation4 + $0x78] sm:$0xff] %v610
    %658 = vst [vmem:[#allocation4 + $0x80] sm:$0xff] %v395
    %659 = vst [vmem:[#allocation4 + $0x88] sm:$0xff] %v397
    %660 = vst [vmem:[#allocation4 + $0x90] sm:$0xff] %v468
    %661 = vst [vmem:[#allocation4 + $0x98] sm:$0xff] %v470
    %662 = vst [vmem:[#allocation4 + $0xa0] sm:$0xff] %v541
    %663 = vst [vmem:[#allocation4 + $0xa8] sm:$0xff] %v543
    %664 = vst [vmem:[#allocation4 + $0xb0] sm:$0xff] %v614
    %665 = vst [vmem:[#allocation4 + $0xb8] sm:$0xff] %v616
    %666 = vst [vmem:[#allocation4 + $0xc0] sm:$0xff] %v399
    %667 = vst [vmem:[#allocation4 + $0xc8] sm:$0xff] %v401
    %668 = vst [vmem:[#allocation4 + $0xd0] sm:$0xff] %v472
    %669 = vst [vmem:[#allocation4 + $0xd8] sm:$0xff] %v474
    %670 = vst [vmem:[#allocation4 + $0xe0] sm:$0xff] %v545
    %671 = vst [vmem:[#allocation4 + $0xe8] sm:$0xff] %v547
    %672 = vst [vmem:[#allocation4 + $0xf0] sm:$0xff] %v618
    %673 = vst [vmem:[#allocation4 + $0xf8] sm:$0xff] %v620
    %674 = vst [vmem:[#allocation4 + $0x100] sm:$0xff] %v405
    %675 = vst [vmem:[#allocation4 + $0x108] sm:$0xff] %v407
    %676 = vst [vmem:[#allocation4 + $0x110] sm:$0xff] %v478
    %677 = vst [vmem:[#allocation4 + $0x118] sm:$0xff] %v480
    %678 = vst [vmem:[#allocation4 + $0x120] sm:$0xff] %v551
    %679 = vst [vmem:[#allocation4 + $0x128] sm:$0xff] %v553
    %680 = vst [vmem:[#allocation4 + $0x130] sm:$0xff] %v624
    %681 = vst [vmem:[#allocation4 + $0x138] sm:$0xff] %v626
    %682 = vst [vmem:[#allocation4 + $0x140] sm:$0xff] %v409
    %683 = vst [vmem:[#allocation4 + $0x148] sm:$0xff] %v411
    %684 = vst [vmem:[#allocation4 + $0x150] sm:$0xff] %v482
    %685 = vst [vmem:[#allocation4 + $0x158] sm:$0xff] %v484
    %686 = vst [vmem:[#allocation4 + $0x160] sm:$0xff] %v555
    %687 = vst [vmem:[#allocation4 + $0x168] sm:$0xff] %v557
    %688 = vst [vmem:[#allocation4 + $0x170] sm:$0xff] %v628
    %689 = vst [vmem:[#allocation4 + $0x178] sm:$0xff] %v630
    %690 = vst [vmem:[#allocation4 + $0x180] sm:$0xff] %v415
    %691 = vst [vmem:[#allocation4 + $0x188] sm:$0xff] %v417
    %692 = vst [vmem:[#allocation4 + $0x190] sm:$0xff] %v488
    %693 = vst [vmem:[#allocation4 + $0x198] sm:$0xff] %v490
    %694 = vst [vmem:[#allocation4 + $0x1a0] sm:$0xff] %v561
    %695 = vst [vmem:[#allocation4 + $0x1a8] sm:$0xff] %v563
    %696 = vst [vmem:[#allocation4 + $0x1b0] sm:$0xff] %v634
    %697 = vst [vmem:[#allocation4 + $0x1b8] sm:$0xff] %v636
    %698 = vst [vmem:[#allocation4 + $0x1c0] sm:$0xff] %v419
    %699 = vst [vmem:[#allocation4 + $0x1c8] sm:$0xff] %v421
    %700 = vst [vmem:[#allocation4 + $0x1d0] sm:$0xff] %v492
    %701 = vst [vmem:[#allocation4 + $0x1d8] sm:$0xff] %v494
    %702 = vst [vmem:[#allocation4 + $0x1e0] sm:$0xff] %v565
    %703 = vst [vmem:[#allocation4 + $0x1e8] sm:$0xff] %v567
    %704 = vst [vmem:[#allocation4 + $0x1f0] sm:$0xff] %v638
    %705 = vst [vmem:[#allocation4 + $0x1f8] sm:$0xff] %v640
    %v706 = vld [vmem:[#allocation4] sm:$0xff]
    %v707 = vld [vmem:[#allocation4 + $0x10] sm:$0xff]
    %v708 = vld [vmem:[#allocation4 + $0x18] sm:$0xff]
    %v709 = vld [vmem:[#allocation4 + $0x1e0] sm:$0xff]
    %v710 = vld [vmem:[#allocation4 + $0x1f0] sm:$0xff]
    %v711 = vld [vmem:[#allocation4 + $0x1f8] sm:$0xff]
    %v712 = vxor.u32 %v706, 2147483648
    %v713 = vmul.f32 %v712, 1.442695
    %v714 = vpow.pop %v713
    %v715 = vadd.f32 %v714, 1.0
    %v716 = vrcp.pop %v715
    %v717 = vmul.f32 1.0, %v716
    %v718 = vtanh.pop %v707
    %v719 = vxor.u32 %v708, 2147483648
    %v720 = vmul.f32 %v719, 1.442695
    %v721 = vpow.pop %v720
    %v722 = vadd.f32 %v721, 1.0
    %v723 = vrcp.pop %v722
    %v724 = vmul.f32 1.0, %v723
    %v725 = vmul.f32 %v717, %v718
    %v726 = vtanh.pop %v725
    %v727 = vmul.f32 %v724, %v726
    %v728 = vxor.u32 %v709, 2147483648
    %v729 = vmul.f32 %v728, 1.442695
    %v730 = vpow.pop %v729
    %v731 = vadd.f32 %v730, 1.0
    %v732 = vrcp.pop %v731
    %v733 = vmul.f32 1.0, %v732
    %v734 = vtanh.pop %v710
    %v735 = vxor.u32 %v711, 2147483648
    %v736 = vmul.f32 %v735, 1.442695
    %v737 = vpow.pop %v736
    %v738 = vadd.f32 %v737, 1.0
    %v739 = vrcp.pop %v738
    %v740 = vmul.f32 1.0, %v739
    %v741 = vmul.f32 %v733, %v734
    %v742 = vtanh.pop %v741
    %v743 = vmul.f32 %v740, %v742
    %744 = vst [vmem:[#allocation2] sm:$0xff] %v727
    %s745 = scalar_lea.vmem [#allocation3], 56
    %746 = vst [vmem:[%s745] sm:$0xff] %v743
    %v747 = vld [vmem:[#allocation4 + $0x40] sm:$0xff]
    %v748 = vld [vmem:[#allocation4 + $0x48] sm:$0xff]
    %v749 = vld [vmem:[#allocation4 + $0x50] sm:$0xff]
    %v750 = vld [vmem:[#allocation4 + $0x58] sm:$0xff]
    %v751 = vld [vmem:[#allocation4 + $0x1a0] sm:$0xff]
    %v752 = vld [vmem:[#allocation4 + $0x1a8] sm:$0xff]
    %v753 = vld [vmem:[#allocation4 + $0x1b0] sm:$0xff]
    %v754 = vld [vmem:[#allocation4 + $0x1b8] sm:$0xff]
    %v755 = vpack.c.bf16 %v727, %v727
    %v756 = vld [vmem:[#allocation5] sm:$0xff]
    %v757 = vld [vmem:[#allocation5 + $0x8] sm:$0xff]
    %v758 = vld [vmem:[#allocation5 + $0x10] sm:$0xff]
    %v759 = vld [vmem:[#allocation5 + $0x18] sm:$0xff]
    %v760 = vld [vmem:[#allocation5 + $0x20] sm:$0xff]
    %v761 = vld [vmem:[#allocation5 + $0x28] sm:$0xff]
    %v762 = vld [vmem:[#allocation5 + $0x30] sm:$0xff]
    %v763 = vld [vmem:[#allocation5 + $0x38] sm:$0xff]
    %v764 = vld [vmem:[#allocation5 + $0x40] sm:$0xff]
    %v765 = vld [vmem:[#allocation5 + $0x48] sm:$0xff]
    %v766 = vld [vmem:[#allocation5 + $0x50] sm:$0xff]
    %v767 = vld [vmem:[#allocation5 + $0x58] sm:$0xff]
    %v768 = vld [vmem:[#allocation5 + $0x60] sm:$0xff]
    %v769 = vld [vmem:[#allocation5 + $0x68] sm:$0xff]
    %v770 = vld [vmem:[#allocation5 + $0x70] sm:$0xff]
    %v771 = vld [vmem:[#allocation5 + $0x78] sm:$0xff]
    %v772 = vld [vmem:[#allocation5 + $0x80] sm:$0xff]
    %v773 = vld [vmem:[#allocation5 + $0x88] sm:$0xff]
    %v774 = vld [vmem:[#allocation5 + $0x90] sm:$0xff]
    %v775 = vld [vmem:[#allocation5 + $0x98] sm:$0xff]
    %v776 = vld [vmem:[#allocation5 + $0xa0] sm:$0xff]
    %v777 = vld [vmem:[#allocation5 + $0xa8] sm:$0xff]
    %v778 = vld [vmem:[#allocation5 + $0xb0] sm:$0xff]
    %v779 = vld [vmem:[#allocation5 + $0xb8] sm:$0xff]
    %v780 = vld [vmem:[#allocation5 + $0xc0] sm:$0xff]
    %v781 = vld [vmem:[#allocation5 + $0xc8] sm:$0xff]
    %v782 = vld [vmem:[#allocation5 + $0xd0] sm:$0xff]
    %v783 = vld [vmem:[#allocation5 + $0xd8] sm:$0xff]
    %v784 = vld [vmem:[#allocation5 + $0xe0] sm:$0xff]
    %v785 = vld [vmem:[#allocation5 + $0xe8] sm:$0xff]
    %v786 = vld [vmem:[#allocation5 + $0xf0] sm:$0xff]
    %v787 = vld [vmem:[#allocation5 + $0xf8] sm:$0xff]
    %v820 = vunpack.c.l.b16 %v756
    %v821 = vunpack.c.h.b16 %v756
    %v822 = vunpack.c.l.b16 %v757
    %v823 = vunpack.c.h.b16 %v757
    %v824 = vunpack.c.l.b16 %v758
    %v825 = vunpack.c.h.b16 %v758
    %v826 = vunpack.c.l.b16 %v759
    %v827 = vunpack.c.h.b16 %v759
    %v828 = vunpack.c.l.b16 %v760
    %v829 = vunpack.c.h.b16 %v760
    %v830 = vunpack.c.l.b16 %v761
    %v831 = vunpack.c.h.b16 %v761
    %v832 = vunpack.c.l.b16 %v762
    %v833 = vunpack.c.h.b16 %v762
    %v834 = vunpack.c.l.b16 %v763
    %v835 = vunpack.c.h.b16 %v763
    %v836 = vunpack.c.l.b16 %v764
    %v837 = vunpack.c.h.b16 %v764
    %v838 = vunpack.c.l.b16 %v765
    %v839 = vunpack.c.h.b16 %v765
    %v840 = vunpack.c.l.b16 %v766
    %v841 = vunpack.c.h.b16 %v766
    %v842 = vunpack.c.l.b16 %v767
    %v843 = vunpack.c.h.b16 %v767
    %v844 = vunpack.c.l.b16 %v768
    %v845 = vunpack.c.h.b16 %v768
    %v846 = vunpack.c.l.b16 %v769
    %v847 = vunpack.c.h.b16 %v769
    %v848 = vunpack.c.l.b16 %v770
    %v849 = vunpack.c.h.b16 %v770
    %v850 = vunpack.c.l.b16 %v771
    %v851 = vunpack.c.h.b16 %v771
    %v852 = vunpack.c.l.b16 %v772
    %v853 = vunpack.c.h.b16 %v772
    %v854 = vunpack.c.l.b16 %v773
    %v855 = vunpack.c.h.b16 %v773
    %v856 = vunpack.c.l.b16 %v774
    %v857 = vunpack.c.h.b16 %v774
    %v858 = vunpack.c.l.b16 %v775
    %v859 = vunpack.c.h.b16 %v775
    %v860 = vunpack.c.l.b16 %v776
    %v861 = vunpack.c.h.b16 %v776
    %v862 = vunpack.c.l.b16 %v777
    %v863 = vunpack.c.h.b16 %v777
    %v864 = vunpack.c.l.b16 %v778
    %v865 = vunpack.c.h.b16 %v778
    %v866 = vunpack.c.l.b16 %v779
    %v867 = vunpack.c.h.b16 %v779
    %v868 = vunpack.c.l.b16 %v780
    %v869 = vunpack.c.h.b16 %v780
    %v870 = vunpack.c.l.b16 %v781
    %v871 = vunpack.c.h.b16 %v781
    %v872 = vunpack.c.l.b16 %v782
    %v873 = vunpack.c.h.b16 %v782
    %v874 = vunpack.c.l.b16 %v783
    %v875 = vunpack.c.h.b16 %v783
    %v876 = vunpack.c.l.b16 %v784
    %v877 = vunpack.c.h.b16 %v784
    %v878 = vunpack.c.l.b16 %v785
    %v879 = vunpack.c.h.b16 %v785
    %v880 = vunpack.c.l.b16 %v786
    %v881 = vunpack.c.h.b16 %v786
    %v882 = vunpack.c.l.b16 %v787
    %v883 = vunpack.c.h.b16 %v787
    %v884 = vpack.c.b16 %v824, %v820
    %v885 = vpack.c.b16 %v825, %v821
    %v886 = vpack.c.b16 %v826, %v822
    %v887 = vpack.c.b16 %v827, %v823
    %v888 = vpack.c.b16 %v832, %v828
    %v889 = vpack.c.b16 %v833, %v829
    %v890 = vpack.c.b16 %v834, %v830
    %v891 = vpack.c.b16 %v835, %v831
    %v892 = vpack.c.b16 %v840, %v836
    %v893 = vpack.c.b16 %v841, %v837
    %v894 = vpack.c.b16 %v842, %v838
    %v895 = vpack.c.b16 %v843, %v839
    %v896 = vpack.c.b16 %v848, %v844
    %v897 = vpack.c.b16 %v849, %v845
    %v898 = vpack.c.b16 %v850, %v846
    %v899 = vpack.c.b16 %v851, %v847
    %v900 = vpack.c.b16 %v856, %v852
    %v901 = vpack.c.b16 %v857, %v853
    %v902 = vpack.c.b16 %v858, %v854
    %v903 = vpack.c.b16 %v859, %v855
    %v904 = vpack.c.b16 %v864, %v860
    %v905 = vpack.c.b16 %v865, %v861
    %v906 = vpack.c.b16 %v866, %v862
    %v907 = vpack.c.b16 %v867, %v863
    %v908 = vpack.c.b16 %v872, %v868
    %v909 = vpack.c.b16 %v873, %v869
    %v910 = vpack.c.b16 %v874, %v870
    %v911 = vpack.c.b16 %v875, %v871
    %v912 = vpack.c.b16 %v880, %v876
    %v913 = vpack.c.b16 %v881, %v877
    %v914 = vpack.c.b16 %v882, %v878
    %v915 = vpack.c.b16 %v883, %v879
    %948 = vmatprep.subr.bf16.mxu0 %v885
    %949 = vmatpush1.bf16.msra.mxu0 %v884
    %950 = vmatprep.subr.bf16.mxu0 %v889
    %951 = vmatpush1.bf16.msra.mxu0 %v888
    %952 = vmatprep.subr.bf16.mxu0 %v893
    %953 = vmatpush1.bf16.msra.mxu0 %v892
    %954 = vmatprep.subr.bf16.mxu0 %v897
    %955 = vmatpush1.bf16.msra.mxu0 %v896
    %956 = vmatprep.subr.bf16.mxu0 %v901
    %957 = vmatpush1.bf16.msra.mxu0 %v900
    %958 = vmatprep.subr.bf16.mxu0 %v905
    %959 = vmatpush1.bf16.msra.mxu0 %v904
    %960 = vmatprep.subr.bf16.mxu0 %v909
    %961 = vmatpush1.bf16.msra.mxu0 %v908
    %962 = vmatprep.subr.bf16.mxu0 %v913
    %963 = vmatpush1.bf16.msra.mxu0 %v912
    %964 = vmatprep.subr.bf16.mxu0 0
    %965 = vmatpush1.bf16.msra.mxu0 0
    %966 = vmatprep.subr.bf16.mxu0 0
    %967 = vmatpush1.bf16.msra.mxu0 0
    %968 = vmatprep.subr.bf16.mxu0 0
    %969 = vmatpush1.bf16.msra.mxu0 0
    %970 = vmatprep.subr.bf16.mxu0 0
    %971 = vmatpush1.bf16.msra.mxu0 0
    %972 = vmatprep.subr.bf16.mxu0 0
    %973 = vmatpush1.bf16.msra.mxu0 0
    %974 = vmatprep.subr.bf16.mxu0 0
    %975 = vmatpush1.bf16.msra.mxu0 0
    %976 = vmatprep.subr.bf16.mxu0 0
    %977 = vmatpush1.bf16.msra.mxu0 0
    %978 = vmatprep.subr.bf16.mxu0 0
    %979 = vmatpush1.bf16.msra.mxu0 0
    %980 = vmatprep.mubr.bf16.mxu0 0
    %981 = vmatmul.mubr.bf16.gmra.mrb[0].mxu0 %v755
    %v982 = vpop.f32.mrb[0].mxu0
    %v983 = vadd.f32 0.0, %v982
    %v984 = vpop.f32.mrb[0].mxu0
    %v985 = vadd.f32 0.0, %v984
    %v986 = vpop.f32.mrb[0].mxu0
    %v987 = vpop.f32.mrb[0].mxu0
    %988 = vdwg.mxu0
    %989 = vmatprep.subr.bf16.mxu0 %v887
    %990 = vmatpush1.bf16.msra.mxu0 %v886
    %991 = vmatprep.subr.bf16.mxu0 %v891
    %992 = vmatpush1.bf16.msra.mxu0 %v890
    %993 = vmatprep.subr.bf16.mxu0 %v895
    %994 = vmatpush1.bf16.msra.mxu0 %v894
    %995 = vmatprep.subr.bf16.mxu0 %v899
    %996 = vmatpush1.bf16.msra.mxu0 %v898
    %997 = vmatprep.subr.bf16.mxu0 %v903
    %998 = vmatpush1.bf16.msra.mxu0 %v902
    %999 = vmatprep.subr.bf16.mxu0 %v907
    %1000 = vmatpush1.bf16.msra.mxu0 %v906
    %1001 = vmatprep.subr.bf16.mxu0 %v911
    %1002 = vmatpush1.bf16.msra.mxu0 %v910
    %1003 = vmatprep.subr.bf16.mxu0 %v915
    %1004 = vmatpush1.bf16.msra.mxu0 %v914
    %1005 = vmatprep.subr.bf16.mxu0 0
    %1006 = vmatpush1.bf16.msra.mxu0 0
    %1007 = vmatprep.subr.bf16.mxu0 0
    %1008 = vmatpush1.bf16.msra.mxu0 0
    %1009 = vmatprep.subr.bf16.mxu0 0
    %1010 = vmatpush1.bf16.msra.mxu0 0
    %1011 = vmatprep.subr.bf16.mxu0 0
    %1012 = vmatpush1.bf16.msra.mxu0 0
    %1013 = vmatprep.subr.bf16.mxu0 0
    %1014 = vmatpush1.bf16.msra.mxu0 0
    %1015 = vmatprep.subr.bf16.mxu0 0
    %1016 = vmatpush1.bf16.msra.mxu0 0
    %1017 = vmatprep.subr.bf16.mxu0 0
    %1018 = vmatpush1.bf16.msra.mxu0 0
    %1019 = vmatprep.subr.bf16.mxu0 0
    %1020 = vmatpush1.bf16.msra.mxu0 0
    %1021 = vmatprep.mubr.bf16.mxu0 0
    %1022 = vmatmul.mubr.bf16.gmra.mrb[0].mxu0 %v755
    %v1023 = vpop.f32.mrb[0].mxu0
    %v1024 = vadd.f32 0.0, %v1023
    %v1025 = vpop.f32.mrb[0].mxu0
    %v1026 = vadd.f32 0.0, %v1025
    %v1027 = vpop.f32.mrb[0].mxu0
    %v1028 = vpop.f32.mrb[0].mxu0
    %1029 = vdwg.mxu0
    %v1030 = vadd.f32 %v747, %v983
    %v1031 = vadd.f32 %v748, %v985
    %v1032 = vadd.f32 %v749, %v1024
    %v1033 = vadd.f32 %v750, %v1026
    %v1034 = vpack.c.bf16 %v743, %v743
    %v1035 = vld [vmem:[#allocation7] sm:$0xff]
    %v1036 = vld [vmem:[#allocation7 + $0x8] sm:$0xff]
    %v1037 = vld [vmem:[#allocation7 + $0x10] sm:$0xff]
    %v1038 = vld [vmem:[#allocation7 + $0x18] sm:$0xff]
    %v1039 = vld [vmem:[#allocation7 + $0x20] sm:$0xff]
    %v1040 = vld [vmem:[#allocation7 + $0x28] sm:$0xff]
    %v1041 = vld [vmem:[#allocation7 + $0x30] sm:$0xff]
    %v1042 = vld [vmem:[#allocation7 + $0x38] sm:$0xff]
    %v1043 = vld [vmem:[#allocation7 + $0x40] sm:$0xff]
    %v1044 = vld [vmem:[#allocation7 + $0x48] sm:$0xff]
    %v1045 = vld [vmem:[#allocation7 + $0x50] sm:$0xff]
    %v1046 = vld [vmem:[#allocation7 + $0x58] sm:$0xff]
    %v1047 = vld [vmem:[#allocation7 + $0x60] sm:$0xff]
    %v1048 = vld [vmem:[#allocation7 + $0x68] sm:$0xff]
    %v1049 = vld [vmem:[#allocation7 + $0x70] sm:$0xff]
    %v1050 = vld [vmem:[#allocation7 + $0x78] sm:$0xff]
    %v1051 = vld [vmem:[#allocation7 + $0x80] sm:$0xff]
    %v1052 = vld [vmem:[#allocation7 + $0x88] sm:$0xff]
    %v1053 = vld [vmem:[#allocation7 + $0x90] sm:$0xff]
    %v1054 = vld [vmem:[#allocation7 + $0x98] sm:$0xff]
    %v1055 = vld [vmem:[#allocation7 + $0xa0] sm:$0xff]
    %v1056 = vld [vmem:[#allocation7 + $0xa8] sm:$0xff]
    %v1057 = vld [vmem:[#allocation7 + $0xb0] sm:$0xff]
    %v1058 = vld [vmem:[#allocation7 + $0xb8] sm:$0xff]
    %v1059 = vld [vmem:[#allocation7 + $0xc0] sm:$0xff]
    %v1060 = vld [vmem:[#allocation7 + $0xc8] sm:$0xff]
    %v1061 = vld [vmem:[#allocation7 + $0xd0] sm:$0xff]
    %v1062 = vld [vmem:[#allocation7 + $0xd8] sm:$0xff]
    %v1063 = vld [vmem:[#allocation7 + $0xe0] sm:$0xff]
    %v1064 = vld [vmem:[#allocation7 + $0xe8] sm:$0xff]
    %v1065 = vld [vmem:[#allocation7 + $0xf0] sm:$0xff]
    %v1066 = vld [vmem:[#allocation7 + $0xf8] sm:$0xff]
    %v1099 = vunpack.c.l.b16 %v1035
    %v1100 = vunpack.c.h.b16 %v1035
    %v1101 = vunpack.c.l.b16 %v1036
    %v1102 = vunpack.c.h.b16 %v1036
    %v1103 = vunpack.c.l.b16 %v1037
    %v1104 = vunpack.c.h.b16 %v1037
    %v1105 = vunpack.c.l.b16 %v1038
    %v1106 = vunpack.c.h.b16 %v1038
    %v1107 = vunpack.c.l.b16 %v1039
    %v1108 = vunpack.c.h.b16 %v1039
    %v1109 = vunpack.c.l.b16 %v1040
    %v1110 = vunpack.c.h.b16 %v1040
    %v1111 = vunpack.c.l.b16 %v1041
    %v1112 = vunpack.c.h.b16 %v1041
    %v1113 = vunpack.c.l.b16 %v1042
    %v1114 = vunpack.c.h.b16 %v1042
    %v1115 = vunpack.c.l.b16 %v1043
    %v1116 = vunpack.c.h.b16 %v1043
    %v1117 = vunpack.c.l.b16 %v1044
    %v1118 = vunpack.c.h.b16 %v1044
    %v1119 = vunpack.c.l.b16 %v1045
    %v1120 = vunpack.c.h.b16 %v1045
    %v1121 = vunpack.c.l.b16 %v1046
    %v1122 = vunpack.c.h.b16 %v1046
    %v1123 = vunpack.c.l.b16 %v1047
    %v1124 = vunpack.c.h.b16 %v1047
    %v1125 = vunpack.c.l.b16 %v1048
    %v1126 = vunpack.c.h.b16 %v1048
    %v1127 = vunpack.c.l.b16 %v1049
    %v1128 = vunpack.c.h.b16 %v1049
    %v1129 = vunpack.c.l.b16 %v1050
    %v1130 = vunpack.c.h.b16 %v1050
    %v1131 = vunpack.c.l.b16 %v1051
    %v1132 = vunpack.c.h.b16 %v1051
    %v1133 = vunpack.c.l.b16 %v1052
    %v1134 = vunpack.c.h.b16 %v1052
    %v1135 = vunpack.c.l.b16 %v1053
    %v1136 = vunpack.c.h.b16 %v1053
    %v1137 = vunpack.c.l.b16 %v1054
    %v1138 = vunpack.c.h.b16 %v1054
    %v1139 = vunpack.c.l.b16 %v1055
    %v1140 = vunpack.c.h.b16 %v1055
    %v1141 = vunpack.c.l.b16 %v1056
    %v1142 = vunpack.c.h.b16 %v1056
    %v1143 = vunpack.c.l.b16 %v1057
    %v1144 = vunpack.c.h.b16 %v1057
    %v1145 = vunpack.c.l.b16 %v1058
    %v1146 = vunpack.c.h.b16 %v1058
    %v1147 = vunpack.c.l.b16 %v1059
    %v1148 = vunpack.c.h.b16 %v1059
    %v1149 = vunpack.c.l.b16 %v1060
    %v1150 = vunpack.c.h.b16 %v1060
    %v1151 = vunpack.c.l.b16 %v1061
    %v1152 = vunpack.c.h.b16 %v1061
    %v1153 = vunpack.c.l.b16 %v1062
    %v1154 = vunpack.c.h.b16 %v1062
    %v1155 = vunpack.c.l.b16 %v1063
    %v1156 = vunpack.c.h.b16 %v1063
    %v1157 = vunpack.c.l.b16 %v1064
    %v1158 = vunpack.c.h.b16 %v1064
    %v1159 = vunpack.c.l.b16 %v1065
    %v1160 = vunpack.c.h.b16 %v1065
    %v1161 = vunpack.c.l.b16 %v1066
    %v1162 = vunpack.c.h.b16 %v1066
    %v1163 = vpack.c.b16 %v1103, %v1099
    %v1164 = vpack.c.b16 %v1104, %v1100
    %v1165 = vpack.c.b16 %v1105, %v1101
    %v1166 = vpack.c.b16 %v1106, %v1102
    %v1167 = vpack.c.b16 %v1111, %v1107
    %v1168 = vpack.c.b16 %v1112, %v1108
    %v1169 = vpack.c.b16 %v1113, %v1109
    %v1170 = vpack.c.b16 %v1114, %v1110
    %v1171 = vpack.c.b16 %v1119, %v1115
    %v1172 = vpack.c.b16 %v1120, %v1116
    %v1173 = vpack.c.b16 %v1121, %v1117
    %v1174 = vpack.c.b16 %v1122, %v1118
    %v1175 = vpack.c.b16 %v1127, %v1123
    %v1176 = vpack.c.b16 %v1128, %v1124
    %v1177 = vpack.c.b16 %v1129, %v1125
    %v1178 = vpack.c.b16 %v1130, %v1126
    %v1179 = vpack.c.b16 %v1135, %v1131
    %v1180 = vpack.c.b16 %v1136, %v1132
    %v1181 = vpack.c.b16 %v1137, %v1133
    %v1182 = vpack.c.b16 %v1138, %v1134
    %v1183 = vpack.c.b16 %v1143, %v1139
    %v1184 = vpack.c.b16 %v1144, %v1140
    %v1185 = vpack.c.b16 %v1145, %v1141
    %v1186 = vpack.c.b16 %v1146, %v1142
    %v1187 = vpack.c.b16 %v1151, %v1147
    %v1188 = vpack.c.b16 %v1152, %v1148
    %v1189 = vpack.c.b16 %v1153, %v1149
    %v1190 = vpack.c.b16 %v1154, %v1150
    %v1191 = vpack.c.b16 %v1159, %v1155
    %v1192 = vpack.c.b16 %v1160, %v1156
    %v1193 = vpack.c.b16 %v1161, %v1157
    %v1194 = vpack.c.b16 %v1162, %v1158
    %1227 = vmatprep.subr.bf16.mxu0 %v1164
    %1228 = vmatpush1.bf16.msra.mxu0 %v1163
    %1229 = vmatprep.subr.bf16.mxu0 %v1168
    %1230 = vmatpush1.bf16.msra.mxu0 %v1167
    %1231 = vmatprep.subr.bf16.mxu0 %v1172
    %1232 = vmatpush1.bf16.msra.mxu0 %v1171
    %1233 = vmatprep.subr.bf16.mxu0 %v1176
    %1234 = vmatpush1.bf16.msra.mxu0 %v1175
    %1235 = vmatprep.subr.bf16.mxu0 %v1180
    %1236 = vmatpush1.bf16.msra.mxu0 %v1179
    %1237 = vmatprep.subr.bf16.mxu0 %v1184
    %1238 = vmatpush1.bf16.msra.mxu0 %v1183
    %1239 = vmatprep.subr.bf16.mxu0 %v1188
    %1240 = vmatpush1.bf16.msra.mxu0 %v1187
    %1241 = vmatprep.subr.bf16.mxu0 %v1192
    %1242 = vmatpush1.bf16.msra.mxu0 %v1191
    %1243 = vmatprep.subr.bf16.mxu0 0
    %1244 = vmatpush1.bf16.msra.mxu0 0
    %1245 = vmatprep.subr.bf16.mxu0 0
    %1246 = vmatpush1.bf16.msra.mxu0 0
    %1247 = vmatprep.subr.bf16.mxu0 0
    %1248 = vmatpush1.bf16.msra.mxu0 0
    %1249 = vmatprep.subr.bf16.mxu0 0
    %1250 = vmatpush1.bf16.msra.mxu0 0
    %1251 = vmatprep.subr.bf16.mxu0 0
    %1252 = vmatpush1.bf16.msra.mxu0 0
    %1253 = vmatprep.subr.bf16.mxu0 0
    %1254 = vmatpush1.bf16.msra.mxu0 0
    %1255 = vmatprep.subr.bf16.mxu0 0
    %1256 = vmatpush1.bf16.msra.mxu0 0
    %1257 = vmatprep.subr.bf16.mxu0 0
    %1258 = vmatpush1.bf16.msra.mxu0 0
    %1259 = vmatprep.mubr.bf16.mxu0 0
    %1260 = vmatmul.mubr.bf16.gmra.mrb[0].mxu0 %v1034
    %v1261 = vpop.f32.mrb[0].mxu0
    %v1262 = vadd.f32 0.0, %v1261
    %v1263 = vpop.f32.mrb[0].mxu0
    %v1264 = vadd.f32 0.0, %v1263
    %v1265 = vpop.f32.mrb[0].mxu0
    %v1266 = vpop.f32.mrb[0].mxu0
    %1267 = vdwg.mxu0
    %1268 = vmatprep.subr.bf16.mxu0 %v1166
    %1269 = vmatpush1.bf16.msra.mxu0 %v1165
    %1270 = vmatprep.subr.bf16.mxu0 %v1170
    %1271 = vmatpush1.bf16.msra.mxu0 %v1169
    %1272 = vmatprep.subr.bf16.mxu0 %v1174
    %1273 = vmatpush1.bf16.msra.mxu0 %v1173
    %1274 = vmatprep.subr.bf16.mxu0 %v1178
    %1275 = vmatpush1.bf16.msra.mxu0 %v1177
    %1276 = vmatprep.subr.bf16.mxu0 %v1182
    %1277 = vmatpush1.bf16.msra.mxu0 %v1181
    %1278 = vmatprep.subr.bf16.mxu0 %v1186
    %1279 = vmatpush1.bf16.msra.mxu0 %v1185
    %1280 = vmatprep.subr.bf16.mxu0 %v1190
    %1281 = vmatpush1.bf16.msra.mxu0 %v1189
    %1282 = vmatprep.subr.bf16.mxu0 %v1194
    %1283 = vmatpush1.bf16.msra.mxu0 %v1193
    %1284 = vmatprep.subr.bf16.mxu0 0
    %1285 = vmatpush1.bf16.msra.mxu0 0
    %1286 = vmatprep.subr.bf16.mxu0 0
    %1287 = vmatpush1.bf16.msra.mxu0 0
    %1288 = vmatprep.subr.bf16.mxu0 0
    %1289 = vmatpush1.bf16.msra.mxu0 0
    %1290 = vmatprep.subr.bf16.mxu0 0
    %1291 = vmatpush1.bf16.msra.mxu0 0
    %1292 = vmatprep.subr.bf16.mxu0 0
    %1293 = vmatpush1.bf16.msra.mxu0 0
    %1294 = vmatprep.subr.bf16.mxu0 0
    %1295 = vmatpush1.bf16.msra.mxu0 0
    %1296 = vmatprep.subr.bf16.mxu0 0
    %1297 = vmatpush1.bf16.msra.mxu0 0
    %1298 = vmatprep.subr.bf16.mxu0 0
    %1299 = vmatpush1.bf16.msra.mxu0 0
    %1300 = vmatprep.mubr.bf16.mxu0 0
    %1301 = vmatmul.mubr.bf16.gmra.mrb[0].mxu0 %v1034
    %v1302 = vpop.f32.mrb[0].mxu0
    %v1303 = vadd.f32 0.0, %v1302
    %v1304 = vpop.f32.mrb[0].mxu0
    %v1305 = vadd.f32 0.0, %v1304
    %v1306 = vpop.f32.mrb[0].mxu0
    %v1307 = vpop.f32.mrb[0].mxu0
    %1308 = vdwg.mxu0
    %v1309 = vadd.f32 %v751, %v1262
    %v1310 = vadd.f32 %v752, %v1264
    %v1311 = vadd.f32 %v753, %v1303
    %v1312 = vadd.f32 %v754, %v1305
    %v1313 = vxor.u32 %v1030, 2147483648
    %v1314 = vmul.f32 %v1313, 1.442695
    %v1315 = vpow.pop %v1314
    %v1316 = vadd.f32 %v1315, 1.0
    %v1317 = vrcp.pop %v1316
    %v1318 = vmul.f32 1.0, %v1317
    %v1319 = vtanh.pop %v1032
    %v1320 = vxor.u32 %v1033, 2147483648
    %v1321 = vmul.f32 %v1320, 1.442695
    %v1322 = vpow.pop %v1321
    %v1323 = vadd.f32 %v1322, 1.0
    %v1324 = vrcp.pop %v1323
    %v1325 = vmul.f32 1.0, %v1324
    %v1326 = vxor.u32 %v1031, 2147483648
    %v1327 = vmul.f32 %v1326, 1.442695
    %v1328 = vpow.pop %v1327
    %v1329 = vadd.f32 %v1328, 1.0
    %v1330 = vrcp.pop %v1329
    %v1331 = vmul.f32 1.0, %v1330
    %v1332 = vmul.f32 %v1331, %v725
    %v1333 = vmul.f32 %v1318, %v1319
    %v1334 = vadd.f32 %v1332, %v1333
    %v1335 = vtanh.pop %v1334
    %v1336 = vmul.f32 %v1325, %v1335
    %v1337 = vxor.u32 %v1309, 2147483648
    %v1338 = vmul.f32 %v1337, 1.442695
    %v1339 = vpow.pop %v1338
    %v1340 = vadd.f32 %v1339, 1.0
    %v1341 = vrcp.pop %v1340
    %v1342 = vmul.f32 1.0, %v1341
    %v1343 = vtanh.pop %v1311
    %v1344 = vxor.u32 %v1312, 2147483648
    %v1345 = vmul.f32 %v1344, 1.442695
    %v1346 = vpow.pop %v1345
    %v1347 = vadd.f32 %v1346, 1.0
    %v1348 = vrcp.pop %v1347
    %v1349 = vmul.f32 1.0, %v1348
    %v1350 = vxor.u32 %v1310, 2147483648
    %v1351 = vmul.f32 %v1350, 1.442695
    %v1352 = vpow.pop %v1351
    %v1353 = vadd.f32 %v1352, 1.0
    %v1354 = vrcp.pop %v1353
    %v1355 = vmul.f32 1.0, %v1354
    %v1356 = vmul.f32 %v1355, %v741
    %v1357 = vmul.f32 %v1342, %v1343
    %v1358 = vadd.f32 %v1356, %v1357
    %v1359 = vtanh.pop %v1358
    %v1360 = vmul.f32 %v1349, %v1359
    %s1361 = scalar_lea.vmem [#allocation2], 8
    %1362 = vst [vmem:[%s1361] sm:$0xff] %v1336
    %s1363 = scalar_lea.vmem [#allocation3], 48
    %1364 = vst [vmem:[%s1363] sm:$0xff] %v1360
    %v1365 = vld [vmem:[#allocation4 + $0x80] sm:$0xff]
    %v1366 = vld [vmem:[#allocation4 + $0x88] sm:$0xff]
    %v1367 = vld [vmem:[#allocation4 + $0x90] sm:$0xff]
    %v1368 = vld [vmem:[#allocation4 + $0x98] sm:$0xff]
    %v1369 = vld [vmem:[#allocation4 + $0x160] sm:$0xff]
    %v1370 = vld [vmem:[#allocation4 + $0x168] sm:$0xff]
    %v1371 = vld [vmem:[#allocation4 + $0x170] sm:$0xff]
    %v1372 = vld [vmem:[#allocation4 + $0x178] sm:$0xff]
    %v1373 = vpack.c.bf16 %v1336, %v1336
    %v1374 = vld [vmem:[#allocation5] sm:$0xff]
    %v1375 = vld [vmem:[#allocation5 + $0x8] sm:$0xff]
    %v1376 = vld [vmem:[#allocation5 + $0x10] sm:$0xff]
    %v1377 = vld [vmem:[#allocation5 + $0x18] sm:$0xff]
    %v1378 = vld [vmem:[#allocation5 + $0x20] sm:$0xff]
    %v1379 = vld [vmem:[#allocation5 + $0x28] sm:$0xff]
    %v1380 = vld [vmem:[#allocation5 + $0x30] sm:$0xff]
    %v1381 = vld [vmem:[#allocation5 + $0x38] sm:$0xff]
    %v1382 = vld [vmem:[#allocation5 + $0x40] sm:$0xff]
    %v1383 = vld [vmem:[#allocation5 + $0x48] sm:$0xff]
    %v1384 = vld [vmem:[#allocation5 + $0x50] sm:$0xff]
    %v1385 = vld [vmem:[#allocation5 + $0x58] sm:$0xff]
    %v1386 = vld [vmem:[#allocation5 + $0x60] sm:$0xff]
    %v1387 = vld [vmem:[#allocation5 + $0x68] sm:$0xff]
    %v1388 = vld [vmem:[#allocation5 + $0x70] sm:$0xff]
    %v1389 = vld [vmem:[#allocation5 + $0x78] sm:$0xff]
    %v1390 = vld [vmem:[#allocation5 + $0x80] sm:$0xff]
    %v1391 = vld [vmem:[#allocation5 + $0x88] sm:$0xff]
    %v1392 = vld [vmem:[#allocation5 + $0x90] sm:$0xff]
    %v1393 = vld [vmem:[#allocation5 + $0x98] sm:$0xff]
    %v1394 = vld [vmem:[#allocation5 + $0xa0] sm:$0xff]
    %v1395 = vld [vmem:[#allocation5 + $0xa8] sm:$0xff]
    %v1396 = vld [vmem:[#allocation5 + $0xb0] sm:$0xff]
    %v1397 = vld [vmem:[#allocation5 + $0xb8] sm:$0xff]
    %v1398 = vld [vmem:[#allocation5 + $0xc0] sm:$0xff]
    %v1399 = vld [vmem:[#allocation5 + $0xc8] sm:$0xff]
    %v1400 = vld [vmem:[#allocation5 + $0xd0] sm:$0xff]
    %v1401 = vld [vmem:[#allocation5 + $0xd8] sm:$0xff]
    %v1402 = vld [vmem:[#allocation5 + $0xe0] sm:$0xff]
    %v1403 = vld [vmem:[#allocation5 + $0xe8] sm:$0xff]
    %v1404 = vld [vmem:[#allocation5 + $0xf0] sm:$0xff]
    %v1405 = vld [vmem:[#allocation5 + $0xf8] sm:$0xff]
    %v1438 = vunpack.c.l.b16 %v1374
    %v1439 = vunpack.c.h.b16 %v1374
    %v1440 = vunpack.c.l.b16 %v1375
    %v1441 = vunpack.c.h.b16 %v1375
    %v1442 = vunpack.c.l.b16 %v1376
    %v1443 = vunpack.c.h.b16 %v1376
    %v1444 = vunpack.c.l.b16 %v1377
    %v1445 = vunpack.c.h.b16 %v1377
    %v1446 = vunpack.c.l.b16 %v1378
    %v1447 = vunpack.c.h.b16 %v1378
    %v1448 = vunpack.c.l.b16 %v1379
    %v1449 = vunpack.c.h.b16 %v1379
    %v1450 = vunpack.c.l.b16 %v1380
    %v1451 = vunpack.c.h.b16 %v1380
    %v1452 = vunpack.c.l.b16 %v1381
    %v1453 = vunpack.c.h.b16 %v1381
    %v1454 = vunpack.c.l.b16 %v1382
    %v1455 = vunpack.c.h.b16 %v1382
    %v1456 = vunpack.c.l.b16 %v1383
    %v1457 = vunpack.c.h.b16 %v1383
    %v1458 = vunpack.c.l.b16 %v1384
    %v1459 = vunpack.c.h.b16 %v1384
    %v1460 = vunpack.c.l.b16 %v1385
    %v1461 = vunpack.c.h.b16 %v1385
    %v1462 = vunpack.c.l.b16 %v1386
    %v1463 = vunpack.c.h.b16 %v1386
    %v1464 = vunpack.c.l.b16 %v1387
    %v1465 = vunpack.c.h.b16 %v1387
    %v1466 = vunpack.c.l.b16 %v1388
    %v1467 = vunpack.c.h.b16 %v1388
    %v1468 = vunpack.c.l.b16 %v1389
    %v1469 = vunpack.c.h.b16 %v1389
    %v1470 = vunpack.c.l.b16 %v1390
    %v1471 = vunpack.c.h.b16 %v1390
    %v1472 = vunpack.c.l.b16 %v1391
    %v1473 = vunpack.c.h.b16 %v1391
    %v1474 = vunpack.c.l.b16 %v1392
    %v1475 = vunpack.c.h.b16 %v1392
    %v1476 = vunpack.c.l.b16 %v1393
    %v1477 = vunpack.c.h.b16 %v1393
    %v1478 = vunpack.c.l.b16 %v1394
    %v1479 = vunpack.c.h.b16 %v1394
    %v1480 = vunpack.c.l.b16 %v1395
    %v1481 = vunpack.c.h.b16 %v1395
    %v1482 = vunpack.c.l.b16 %v1396
    %v1483 = vunpack.c.h.b16 %v1396
    %v1484 = vunpack.c.l.b16 %v1397
    %v1485 = vunpack.c.h.b16 %v1397
    %v1486 = vunpack.c.l.b16 %v1398
    %v1487 = vunpack.c.h.b16 %v1398
    %v1488 = vunpack.c.l.b16 %v1399
    %v1489 = vunpack.c.h.b16 %v1399
    %v1490 = vunpack.c.l.b16 %v1400
    %v1491 = vunpack.c.h.b16 %v1400
    %v1492 = vunpack.c.l.b16 %v1401
    %v1493 = vunpack.c.h.b16 %v1401
    %v1494 = vunpack.c.l.b16 %v1402
    %v1495 = vunpack.c.h.b16 %v1402
    %v1496 = vunpack.c.l.b16 %v1403
    %v1497 = vunpack.c.h.b16 %v1403
    %v1498 = vunpack.c.l.b16 %v1404
    %v1499 = vunpack.c.h.b16 %v1404
    %v1500 = vunpack.c.l.b16 %v1405
    %v1501 = vunpack.c.h.b16 %v1405
    %v1502 = vpack.c.b16 %v1442, %v1438
    %v1503 = vpack.c.b16 %v1443, %v1439
    %v1504 = vpack.c.b16 %v1444, %v1440
    %v1505 = vpack.c.b16 %v1445, %v1441
    %v1506 = vpack.c.b16 %v1450, %v1446
    %v1507 = vpack.c.b16 %v1451, %v1447
    %v1508 = vpack.c.b16 %v1452, %v1448
    %v1509 = vpack.c.b16 %v1453, %v1449
    %v1510 = vpack.c.b16 %v1458, %v1454
    %v1511 = vpack.c.b16 %v1459, %v1455
    %v1512 = vpack.c.b16 %v1460, %v1456
    %v1513 = vpack.c.b16 %v1461, %v1457
    %v1514 = vpack.c.b16 %v1466, %v1462
    %v1515 = vpack.c.b16 %v1467, %v1463
    %v1516 = vpack.c.b16 %v1468, %v1464
    %v1517 = vpack.c.b16 %v1469, %v1465
    %v1518 = vpack.c.b16 %v1474, %v1470
    %v1519 = vpack.c.b16 %v1475, %v1471
    %v1520 = vpack.c.b16 %v1476, %v1472
    %v1521 = vpack.c.b16 %v1477, %v1473
    %v1522 = vpack.c.b16 %v1482, %v1478
    %v1523 = vpack.c.b16 %v1483, %v1479
    %v1524 = vpack.c.b16 %v1484, %v1480
    %v1525 = vpack.c.b16 %v1485, %v1481
    %v1526 = vpack.c.b16 %v1490, %v1486
    %v1527 = vpack.c.b16 %v1491, %v1487
    %v1528 = vpack.c.b16 %v1492, %v1488
    %v1529 = vpack.c.b16 %v1493, %v1489
    %v1530 = vpack.c.b16 %v1498, %v1494
    %v1531 = vpack.c.b16 %v1499, %v1495
    %v1532 = vpack.c.b16 %v1500, %v1496
    %v1533 = vpack.c.b16 %v1501, %v1497
    %1566 = vmatprep.subr.bf16.mxu0 %v1503
    %1567 = vmatpush1.bf16.msra.mxu0 %v1502
    %1568 = vmatprep.subr.bf16.mxu0 %v1507
    %1569 = vmatpush1.bf16.msra.mxu0 %v1506
    %1570 = vmatprep.subr.bf16.mxu0 %v1511
    %1571 = vmatpush1.bf16.msra.mxu0 %v1510
    %1572 = vmatprep.subr.bf16.mxu0 %v1515
    %1573 = vmatpush1.bf16.msra.mxu0 %v1514
    %1574 = vmatprep.subr.bf16.mxu0 %v1519
    %1575 = vmatpush1.bf16.msra.mxu0 %v1518
    %1576 = vmatprep.subr.bf16.mxu0 %v1523
    %1577 = vmatpush1.bf16.msra.mxu0 %v1522
    %1578 = vmatprep.subr.bf16.mxu0 %v1527
    %1579 = vmatpush1.bf16.msra.mxu0 %v1526
    %1580 = vmatprep.subr.bf16.mxu0 %v1531
    %1581 = vmatpush1.bf16.msra.mxu0 %v1530
    %1582 = vmatprep.subr.bf16.mxu0 0
    %1583 = vmatpush1.bf16.msra.mxu0 0
    %1584 = vmatprep.subr.bf16.mxu0 0
    %1585 = vmatpush1.bf16.msra.mxu0 0
    %1586 = vmatprep.subr.bf16.mxu0 0
    %1587 = vmatpush1.bf16.msra.mxu0 0
    %1588 = vmatprep.subr.bf16.mxu0 0
    %1589 = vmatpush1.bf16.msra.mxu0 0
    %1590 = vmatprep.subr.bf16.mxu0 0
    %1591 = vmatpush1.bf16.msra.mxu0 0
    %1592 = vmatprep.subr.bf16.mxu0 0
    %1593 = vmatpush1.bf16.msra.mxu0 0
    %1594 = vmatprep.subr.bf16.mxu0 0
    %1595 = vmatpush1.bf16.msra.mxu0 0
    %1596 = vmatprep.subr.bf16.mxu0 0
    %1597 = vmatpush1.bf16.msra.mxu0 0
    %1598 = vmatprep.mubr.bf16.mxu0 0
    %1599 = vmatmul.mubr.bf16.gmra.mrb[0].mxu0 %v1373
    %v1600 = vpop.f32.mrb[0].mxu0
    %v1601 = vadd.f32 0.0, %v1600
    %v1602 = vpop.f32.mrb[0].mxu0
    %v1603 = vadd.f32 0.0, %v1602
    %v1604 = vpop.f32.mrb[0].mxu0
    %v1605 = vpop.f32.mrb[0].mxu0
    %1606 = vdwg.mxu0
    %1607 = vmatprep.subr.bf16.mxu0 %v1505
    %1608 = vmatpush1.bf16.msra.mxu0 %v1504
    %1609 = vmatprep.subr.bf16.mxu0 %v1509
    %1610 = vmatpush1.bf16.msra.mxu0 %v1508
    %1611 = vmatprep.subr.bf16.mxu0 %v1513
    %1612 = vmatpush1.bf16.msra.mxu0 %v1512
    %1613 = vmatprep.subr.bf16.mxu0 %v1517
    %1614 = vmatpush1.bf16.msra.mxu0 %v1516
    %1615 = vmatprep.subr.bf16.mxu0 %v1521
    %1616 = vmatpush1.bf16.msra.mxu0 %v1520
    %1617 = vmatprep.subr.bf16.mxu0 %v1525
    %1618 = vmatpush1.bf16.msra.mxu0 %v1524
    %1619 = vmatprep.subr.bf16.mxu0 %v1529
    %1620 = vmatpush1.bf16.msra.mxu0 %v1528
    %1621 = vmatprep.subr.bf16.mxu0 %v1533
    %1622 = vmatpush1.bf16.msra.mxu0 %v1532
    %1623 = vmatprep.subr.bf16.mxu0 0
    %1624 = vmatpush1.bf16.msra.mxu0 0
    %1625 = vmatprep.subr.bf16.mxu0 0
    %1626 = vmatpush1.bf16.msra.mxu0 0
    %1627 = vmatprep.subr.bf16.mxu0 0
    %1628 = vmatpush1.bf16.msra.mxu0 0
    %1629 = vmatprep.subr.bf16.mxu0 0
    %1630 = vmatpush1.bf16.msra.mxu0 0
    %1631 = vmatprep.subr.bf16.mxu0 0
    %1632 = vmatpush1.bf16.msra.mxu0 0
    %1633 = vmatprep.subr.bf16.mxu0 0
    %1634 = vmatpush1.bf16.msra.mxu0 0
    %1635 = vmatprep.subr.bf16.mxu0 0
    %1636 = vmatpush1.bf16.msra.mxu0 0
    %1637 = vmatprep.subr.bf16.mxu0 0
    %1638 = vmatpush1.bf16.msra.mxu0 0
    %1639 = vmatprep.mubr.bf16.mxu0 0
    %1640 = vmatmul.mubr.bf16.gmra.mrb[0].mxu0 %v1373
    %v1641 = vpop.f32.mrb[0].mxu0
    %v1642 = vadd.f32 0.0, %v1641
    %v1643 = vpop.f32.mrb[0].mxu0
    %v1644 = vadd.f32 0.0, %v1643
    %v1645 = vpop.f32.mrb[0].mxu0
    %v1646 = vpop.f32.mrb[0].mxu0
    %1647 = vdwg.mxu0
    %v1648 = vadd.f32 %v1365, %v1601
    %v1649 = vadd.f32 %v1366, %v1603
    %v1650 = vadd.f32 %v1367, %v1642
    %v1651 = vadd.f32 %v1368, %v1644
    %v1652 = vpack.c.bf16 %v1360, %v1360
    %v1653 = vld [vmem:[#allocation7] sm:$0xff]
    %v1654 = vld [vmem:[#allocation7 + $0x8] sm:$0xff]
    %v1655 = vld [vmem:[#allocation7 + $0x10] sm:$0xff]
    %v1656 = vld [vmem:[#allocation7 + $0x18] sm:$0xff]
    %v1657 = vld [vmem:[#allocation7 + $0x20] sm:$0xff]
    %v1658 = vld [vmem:[#allocation7 + $0x28] sm:$0xff]
    %v1659 = vld [vmem:[#allocation7 + $0x30] sm:$0xff]
    %v1660 = vld [vmem:[#allocation7 + $0x38] sm:$0xff]
    %v1661 = vld [vmem:[#allocation7 + $0x40] sm:$0xff]
    %v1662 = vld [vmem:[#allocation7 + $0x48] sm:$0xff]
    %v1663 = vld [vmem:[#allocation7 + $0x50] sm:$0xff]
    %v1664 = vld [vmem:[#allocation7 + $0x58] sm:$0xff]
    %v1665 = vld [vmem:[#allocation7 + $0x60] sm:$0xff]
    %v1666 = vld [vmem:[#allocation7 + $0x68] sm:$0xff]
    %v1667 = vld [vmem:[#allocation7 + $0x70] sm:$0xff]
    %v1668 = vld [vmem:[#allocation7 + $0x78] sm:$0xff]
    %v1669 = vld [vmem:[#allocation7 + $0x80] sm:$0xff]
    %v1670 = vld [vmem:[#allocation7 + $0x88] sm:$0xff]
    %v1671 = vld [vmem:[#allocation7 + $0x90] sm:$0xff]
    %v1672 = vld [vmem:[#allocation7 + $0x98] sm:$0xff]
    %v1673 = vld [vmem:[#allocation7 + $0xa0] sm:$0xff]
    %v1674 = vld [vmem:[#allocation7 + $0xa8] sm:$0xff]
    %v1675 = vld [vmem:[#allocation7 + $0xb0] sm:$0xff]
    %v1676 = vld [vmem:[#allocation7 + $0xb8] sm:$0xff]
    %v1677 = vld [vmem:[#allocation7 + $0xc0] sm:$0xff]
    %v1678 = vld [vmem:[#allocation7 + $0xc8] sm:$0xff]
    %v1679 = vld [vmem:[#allocation7 + $0xd0] sm:$0xff]
    %v1680 = vld [vmem:[#allocation7 + $0xd8] sm:$0xff]
    %v1681 = vld [vmem:[#allocation7 + $0xe0] sm:$0xff]
    %v1682 = vld [vmem:[#allocation7 + $0xe8] sm:$0xff]
    %v1683 = vld [vmem:[#allocation7 + $0xf0] sm:$0xff]
    %v1684 = vld [vmem:[#allocation7 + $0xf8] sm:$0xff]
    %v1717 = vunpack.c.l.b16 %v1653
    %v1718 = vunpack.c.h.b16 %v1653
    %v1719 = vunpack.c.l.b16 %v1654
    %v1720 = vunpack.c.h.b16 %v1654
    %v1721 = vunpack.c.l.b16 %v1655
    %v1722 = vunpack.c.h.b16 %v1655
    %v1723 = vunpack.c.l.b16 %v1656
    %v1724 = vunpack.c.h.b16 %v1656
    %v1725 = vunpack.c.l.b16 %v1657
    %v1726 = vunpack.c.h.b16 %v1657
    %v1727 = vunpack.c.l.b16 %v1658
    %v1728 = vunpack.c.h.b16 %v1658
    %v1729 = vunpack.c.l.b16 %v1659
    %v1730 = vunpack.c.h.b16 %v1659
    %v1731 = vunpack.c.l.b16 %v1660
    %v1732 = vunpack.c.h.b16 %v1660
    %v1733 = vunpack.c.l.b16 %v1661
    %v1734 = vunpack.c.h.b16 %v1661
    %v1735 = vunpack.c.l.b16 %v1662
    %v1736 = vunpack.c.h.b16 %v1662
    %v1737 = vunpack.c.l.b16 %v1663
    %v1738 = vunpack.c.h.b16 %v1663
    %v1739 = vunpack.c.l.b16 %v1664
    %v1740 = vunpack.c.h.b16 %v1664
    %v1741 = vunpack.c.l.b16 %v1665
    %v1742 = vunpack.c.h.b16 %v1665
    %v1743 = vunpack.c.l.b16 %v1666
    %v1744 = vunpack.c.h.b16 %v1666
    %v1745 = vunpack.c.l.b16 %v1667
    %v1746 = vunpack.c.h.b16 %v1667
    %v1747 = vunpack.c.l.b16 %v1668
    %v1748 = vunpack.c.h.b16 %v1668
    %v1749 = vunpack.c.l.b16 %v1669
    %v1750 = vunpack.c.h.b16 %v1669
    %v1751 = vunpack.c.l.b16 %v1670
    %v1752 = vunpack.c.h.b16 %v1670
    %v1753 = vunpack.c.l.b16 %v1671
    %v1754 = vunpack.c.h.b16 %v1671
    %v1755 = vunpack.c.l.b16 %v1672
    %v1756 = vunpack.c.h.b16 %v1672
    %v1757 = vunpack.c.l.b16 %v1673
    %v1758 = vunpack.c.h.b16 %v1673
    %v1759 = vunpack.c.l.b16 %v1674
    %v1760 = vunpack.c.h.b16 %v1674
    %v1761 = vunpack.c.l.b16 %v1675
    %v1762 = vunpack.c.h.b16 %v1675
    %v1763 = vunpack.c.l.b16 %v1676
    %v1764 = vunpack.c.h.b16 %v1676
    %v1765 = vunpack.c.l.b16 %v1677
    %v1766 = vunpack.c.h.b16 %v1677
    %v1767 = vunpack.c.l.b16 %v1678
    %v1768 = vunpack.c.h.b16 %v1678
    %v1769 = vunpack.c.l.b16 %v1679
    %v1770 = vunpack.c.h.b16 %v1679
    %v1771 = vunpack.c.l.b16 %v1680
    %v1772 = vunpack.c.h.b16 %v1680
    %v1773 = vunpack.c.l.b16 %v1681
    %v1774 = vunpack.c.h.b16 %v1681
    %v1775 = vunpack.c.l.b16 %v1682
    %v1776 = vunpack.c.h.b16 %v1682
    %v1777 = vunpack.c.l.b16 %v1683
    %v1778 = vunpack.c.h.b16 %v1683
    %v1779 = vunpack.c.l.b16 %v1684
    %v1780 = vunpack.c.h.b16 %v1684
    %v1781 = vpack.c.b16 %v1721, %v1717
    %v1782 = vpack.c.b16 %v1722, %v1718
    %v1783 = vpack.c.b16 %v1723, %v1719
    %v1784 = vpack.c.b16 %v1724, %v1720
    %v1785 = vpack.c.b16 %v1729, %v1725
    %v1786 = vpack.c.b16 %v1730, %v1726
    %v1787 = vpack.c.b16 %v1731, %v1727
    %v1788 = vpack.c.b16 %v1732, %v1728
    %v1789 = vpack.c.b16 %v1737, %v1733
    %v1790 = vpack.c.b16 %v1738, %v1734
    %v1791 = vpack.c.b16 %v1739, %v1735
    %v1792 = vpack.c.b16 %v1740, %v1736
    %v1793 = vpack.c.b16 %v1745, %v1741
    %v1794 = vpack.c.b16 %v1746, %v1742
    %v1795 = vpack.c.b16 %v1747, %v1743
    %v1796 = vpack.c.b16 %v1748, %v1744
    %v1797 = vpack.c.b16 %v1753, %v1749
    %v1798 = vpack.c.b16 %v1754, %v1750
    %v1799 = vpack.c.b16 %v1755, %v1751
    %v1800 = vpack.c.b16 %v1756, %v1752
    %v1801 = vpack.c.b16 %v1761, %v1757
    %v1802 = vpack.c.b16 %v1762, %v1758
    %v1803 = vpack.c.b16 %v1763, %v1759
    %v1804 = vpack.c.b16 %v1764, %v1760
    %v1805 = vpack.c.b16 %v1769, %v1765
    %v1806 = vpack.c.b16 %v1770, %v1766
    %v1807 = vpack.c.b16 %v1771, %v1767
    %v1808 = vpack.c.b16 %v1772, %v1768
    %v1809 = vpack.c.b16 %v1777, %v1773
    %v1810 = vpack.c.b16 %v1778, %v1774
    %v1811 = vpack.c.b16 %v1779, %v1775
    %v1812 = vpack.c.b16 %v1780, %v1776
    %1845 = vmatprep.subr.bf16.mxu0 %v1782
    %1846 = vmatpush1.bf16.msra.mxu0 %v1781
    %1847 = vmatprep.subr.bf16.mxu0 %v1786
    %1848 = vmatpush1.bf16.msra.mxu0 %v1785
    %1849 = vmatprep.subr.bf16.mxu0 %v1790
    %1850 = vmatpush1.bf16.msra.mxu0 %v1789
    %1851 = vmatprep.subr.bf16.mxu0 %v1794
    %1852 = vmatpush1.bf16.msra.mxu0 %v1793
    %1853 = vmatprep.subr.bf16.mxu0 %v1798
    %1854 = vmatpush1.bf16.msra.mxu0 %v1797
    %1855 = vmatprep.subr.bf16.mxu0 %v1802
    %1856 = vmatpush1.bf16.msra.mxu0 %v1801
    %1857 = vmatprep.subr.bf16.mxu0 %v1806
    %1858 = vmatpush1.bf16.msra.mxu0 %v1805
    %1859 = vmatprep.subr.bf16.mxu0 %v1810
    %1860 = vmatpush1.bf16.msra.mxu0 %v1809
    %1861 = vmatprep.subr.bf16.mxu0 0
    %1862 = vmatpush1.bf16.msra.mxu0 0
    %1863 = vmatprep.subr.bf16.mxu0 0
    %1864 = vmatpush1.bf16.msra.mxu0 0
    %1865 = vmatprep.subr.bf16.mxu0 0
    %1866 = vmatpush1.bf16.msra.mxu0 0
    %1867 = vmatprep.subr.bf16.mxu0 0
    %1868 = vmatpush1.bf16.msra.mxu0 0
    %1869 = vmatprep.subr.bf16.mxu0 0
    %1870 = vmatpush1.bf16.msra.mxu0 0
    %1871 = vmatprep.subr.bf16.mxu0 0
    %1872 = vmatpush1.bf16.msra.mxu0 0
    %1873 = vmatprep.subr.bf16.mxu0 0
    %1874 = vmatpush1.bf16.msra.mxu0 0
    %1875 = vmatprep.subr.bf16.mxu0 0
    %1876 = vmatpush1.bf16.msra.mxu0 0
    %1877 = vmatprep.mubr.bf16.mxu0 0
    %1878 = vmatmul.mubr.bf16.gmra.mrb[0].mxu0 %v1652
    %v1879 = vpop.f32.mrb[0].mxu0
    %v1880 = vadd.f32 0.0, %v1879
    %v1881 = vpop.f32.mrb[0].mxu0
    %v1882 = vadd.f32 0.0, %v1881
    %v1883 = vpop.f32.mrb[0].mxu0
    %v1884 = vpop.f32.mrb[0].mxu0
    %1885 = vdwg.mxu0
    %1886 = vmatprep.subr.bf16.mxu0 %v1784
    %1887 = vmatpush1.bf16.msra.mxu0 %v1783
    %1888 = vmatprep.subr.bf16.mxu0 %v1788
    %1889 = vmatpush1.bf16.msra.mxu0 %v1787
    %1890 = vmatprep.subr.bf16.mxu0 %v1792
    %1891 = vmatpush1.bf16.msra.mxu0 %v1791
    %1892 = vmatprep.subr.bf16.mxu0 %v1796
    %1893 = vmatpush1.bf16.msra.mxu0 %v1795
    %1894 = vmatprep.subr.bf16.mxu0 %v1800
    %1895 = vmatpush1.bf16.msra.mxu0 %v1799
    %1896 = vmatprep.subr.bf16.mxu0 %v1804
    %1897 = vmatpush1.bf16.msra.mxu0 %v1803
    %1898 = vmatprep.subr.bf16.mxu0 %v1808
    %1899 = vmatpush1.bf16.msra.mxu0 %v1807
    %1900 = vmatprep.subr.bf16.mxu0 %v1812
    %1901 = vmatpush1.bf16.msra.mxu0 %v1811
    %1902 = vmatprep.subr.bf16.mxu0 0
    %1903 = vmatpush1.bf16.msra.mxu0 0
    %1904 = vmatprep.subr.bf16.mxu0 0
    %1905 = vmatpush1.bf16.msra.mxu0 0
    %1906 = vmatprep.subr.bf16.mxu0 0
    %1907 = vmatpush1.bf16.msra.mxu0 0
    %1908 = vmatprep.subr.bf16.mxu0 0
    %1909 = vmatpush1.bf16.msra.mxu0 0
    %1910 = vmatprep.subr.bf16.mxu0 0
    %1911 = vmatpush1.bf16.msra.mxu0 0
    %1912 = vmatprep.subr.bf16.mxu0 0
    %1913 = vmatpush1.bf16.msra.mxu0 0
    %1914 = vmatprep.subr.bf16.mxu0 0
    %1915 = vmatpush1.bf16.msra.mxu0 0
    %1916 = vmatprep.subr.bf16.mxu0 0
    %1917 = vmatpush1.bf16.msra.mxu0 0
    %1918 = vmatprep.mubr.bf16.mxu0 0
    %1919 = vmatmul.mubr.bf16.gmra.mrb[0].mxu0 %v1652
    %v1920 = vpop.f32.mrb[0].mxu0
    %v1921 = vadd.f32 0.0, %v1920
    %v1922 = vpop.f32.mrb[0].mxu0
    %v1923 = vadd.f32 0.0, %v1922
    %v1924 = vpop.f32.mrb[0].mxu0
    %v1925 = vpop.f32.mrb[0].mxu0
    %1926 = vdwg.mxu0
    %v1927 = vadd.f32 %v1369, %v1880
    %v1928 = vadd.f32 %v1370, %v1882
    %v1929 = vadd.f32 %v1371, %v1921
    %v1930 = vadd.f32 %v1372, %v1923
    %v1931 = vxor.u32 %v1648, 2147483648
    %v1932 = vmul.f32 %v1931, 1.442695
    %v1933 = vpow.pop %v1932
    %v1934 = vadd.f32 %v1933, 1.0
    %v1935 = vrcp.pop %v1934
    %v1936 = vmul.f32 1.0, %v1935
    %v1937 = vtanh.pop %v1650
    %v1938 = vxor.u32 %v1651, 2147483648
    %v1939 = vmul.f32 %v1938, 1.442695
    %v1940 = vpow.pop %v1939
    %v1941 = vadd.f32 %v1940, 1.0
    %v1942 = vrcp.pop %v1941
    %v1943 = vmul.f32 1.0, %v1942
    %v1944 = vxor.u32 %v1649, 2147483648
    %v1945 = vmul.f32 %v1944, 1.442695
    %v1946 = vpow.pop %v1945
    %v1947 = vadd.f32 %v1946, 1.0
    %v1948 = vrcp.pop %v1947
    %v1949 = vmul.f32 1.0, %v1948
    %v1950 = vmul.f32 %v1949, %v1334
    %v1951 = vmul.f32 %v1936, %v1937
    %v1952 = vadd.f32 %v1950, %v1951
    %v1953 = vtanh.pop %v1952
    %v1954 = vmul.f32 %v1943, %v1953
    %v1955 = vxor.u32 %v1927, 2147483648
    %v1956 = vmul.f32 %v1955, 1.442695
    %v1957 = vpow.pop %v1956
    %v1958 = vadd.f32 %v1957, 1.0
    %v1959 = vrcp.pop %v1958
    %v1960 = vmul.f32 1.0, %v1959
    %v1961 = vtanh.pop %v1929
    %v1962 = vxor.u32 %v1930, 2147483648
    %v1963 = vmul.f32 %v1962, 1.442695
    %v1964 = vpow.pop %v1963
    %v1965 = vadd.f32 %v1964, 1.0
    %v1966 = vrcp.pop %v1965
    %v1967 = vmul.f32 1.0, %v1966
    %v1968 = vxor.u32 %v1928, 2147483648
    %v1969 = vmul.f32 %v1968, 1.442695
    %v1970 = vpow.pop %v1969
    %v1971 = vadd.f32 %v1970, 1.0
    %v1972 = vrcp.pop %v1971
    %v1973 = vmul.f32 1.0, %v1972
    %v1974 = vmul.f32 %v1973, %v1358
    %v1975 = vmul.f32 %v1960, %v1961
    %v1976 = vadd.f32 %v1974, %v1975
    %v1977 = vtanh.pop %v1976
    %v1978 = vmul.f32 %v1967, %v1977
    %s1979 = scalar_lea.vmem [#allocation2], 16
    %1980 = vst [vmem:[%s1979] sm:$0xff] %v1954
    %s1981 = scalar_lea.vmem [#allocation3], 40
    %1982 = vst [vmem:[%s1981] sm:$0xff] %v1978
    %v1983 = vld [vmem:[#allocation4 + $0xc0] sm:$0xff]
    %v1984 = vld [vmem:[#allocation4 + $0xc8] sm:$0xff]
    %v1985 = vld [vmem:[#allocation4 + $0xd0] sm:$0xff]
    %v1986 = vld [vmem:[#allocation4 + $0xd8] sm:$0xff]
    %v1987 = vld [vmem:[#allocation4 + $0x120] sm:$0xff]
    %v1988 = vld [vmem:[#allocation4 + $0x128] sm:$0xff]
    %v1989 = vld [vmem:[#allocation4 + $0x130] sm:$0xff]
    %v1990 = vld [vmem:[#allocation4 + $0x138] sm:$0xff]
    %v1991 = vpack.c.bf16 %v1954, %v1954
    %v1992 = vld [vmem:[#allocation5] sm:$0xff]
    %v1993 = vld [vmem:[#allocation5 + $0x8] sm:$0xff]
    %v1994 = vld [vmem:[#allocation5 + $0x10] sm:$0xff]
    %v1995 = vld [vmem:[#allocation5 + $0x18] sm:$0xff]
    %v1996 = vld [vmem:[#allocation5 + $0x20] sm:$0xff]
    %v1997 = vld [vmem:[#allocation5 + $0x28] sm:$0xff]
    %v1998 = vld [vmem:[#allocation5 + $0x30] sm:$0xff]
    %v1999 = vld [vmem:[#allocation5 + $0x38] sm:$0xff]
    %v2000 = vld [vmem:[#allocation5 + $0x40] sm:$0xff]
    %v2001 = vld [vmem:[#allocation5 + $0x48] sm:$0xff]
    %v2002 = vld [vmem:[#allocation5 + $0x50] sm:$0xff]
    %v2003 = vld [vmem:[#allocation5 + $0x58] sm:$0xff]
    %v2004 = vld [vmem:[#allocation5 + $0x60] sm:$0xff]
    %v2005 = vld [vmem:[#allocation5 + $0x68] sm:$0xff]
    %v2006 = vld [vmem:[#allocation5 + $0x70] sm:$0xff]
    %v2007 = vld [vmem:[#allocation5 + $0x78] sm:$0xff]
    %v2008 = vld [vmem:[#allocation5 + $0x80] sm:$0xff]
    %v2009 = vld [vmem:[#allocation5 + $0x88] sm:$0xff]
    %v2010 = vld [vmem:[#allocation5 + $0x90] sm:$0xff]
    %v2011 = vld [vmem:[#allocation5 + $0x98] sm:$0xff]
    %v2012 = vld [vmem:[#allocation5 + $0xa0] sm:$0xff]
    %v2013 = vld [vmem:[#allocation5 + $0xa8] sm:$0xff]
    %v2014 = vld [vmem:[#allocation5 + $0xb0] sm:$0xff]
    %v2015 = vld [vmem:[#allocation5 + $0xb8] sm:$0xff]
    %v2016 = vld [vmem:[#allocation5 + $0xc0] sm:$0xff]
    %v2017 = vld [vmem:[#allocation5 + $0xc8] sm:$0xff]
    %v2018 = vld [vmem:[#allocation5 + $0xd0] sm:$0xff]
    %v2019 = vld [vmem:[#allocation5 + $0xd8] sm:$0xff]
    %v2020 = vld [vmem:[#allocation5 + $0xe0] sm:$0xff]
    %v2021 = vld [vmem:[#allocation5 + $0xe8] sm:$0xff]
    %v2022 = vld [vmem:[#allocation5 + $0xf0] sm:$0xff]
    %v2023 = vld [vmem:[#allocation5 + $0xf8] sm:$0xff]
    %v2056 = vunpack.c.l.b16 %v1992
    %v2057 = vunpack.c.h.b16 %v1992
    %v2058 = vunpack.c.l.b16 %v1993
    %v2059 = vunpack.c.h.b16 %v1993
    %v2060 = vunpack.c.l.b16 %v1994
    %v2061 = vunpack.c.h.b16 %v1994
    %v2062 = vunpack.c.l.b16 %v1995
    %v2063 = vunpack.c.h.b16 %v1995
    %v2064 = vunpack.c.l.b16 %v1996
    %v2065 = vunpack.c.h.b16 %v1996
    %v2066 = vunpack.c.l.b16 %v1997
    %v2067 = vunpack.c.h.b16 %v1997
    %v2068 = vunpack.c.l.b16 %v1998
    %v2069 = vunpack.c.h.b16 %v1998
    %v2070 = vunpack.c.l.b16 %v1999
    %v2071 = vunpack.c.h.b16 %v1999
    %v2072 = vunpack.c.l.b16 %v2000
    %v2073 = vunpack.c.h.b16 %v2000
    %v2074 = vunpack.c.l.b16 %v2001
    %v2075 = vunpack.c.h.b16 %v2001
    %v2076 = vunpack.c.l.b16 %v2002
    %v2077 = vunpack.c.h.b16 %v2002
    %v2078 = vunpack.c.l.b16 %v2003
    %v2079 = vunpack.c.h.b16 %v2003
    %v2080 = vunpack.c.l.b16 %v2004
    %v2081 = vunpack.c.h.b16 %v2004
    %v2082 = vunpack.c.l.b16 %v2005
    %v2083 = vunpack.c.h.b16 %v2005
    %v2084 = vunpack.c.l.b16 %v2006
    %v2085 = vunpack.c.h.b16 %v2006
    %v2086 = vunpack.c.l.b16 %v2007
    %v2087 = vunpack.c.h.b16 %v2007
    %v2088 = vunpack.c.l.b16 %v2008
    %v2089 = vunpack.c.h.b16 %v2008
    %v2090 = vunpack.c.l.b16 %v2009
    %v2091 = vunpack.c.h.b16 %v2009
    %v2092 = vunpack.c.l.b16 %v2010
    %v2093 = vunpack.c.h.b16 %v2010
    %v2094 = vunpack.c.l.b16 %v2011
    %v2095 = vunpack.c.h.b16 %v2011
    %v2096 = vunpack.c.l.b16 %v2012
    %v2097 = vunpack.c.h.b16 %v2012
    %v2098 = vunpack.c.l.b16 %v2013
    %v2099 = vunpack.c.h.b16 %v2013
    %v2100 = vunpack.c.l.b16 %v2014
    %v2101 = vunpack.c.h.b16 %v2014
    %v2102 = vunpack.c.l.b16 %v2015
    %v2103 = vunpack.c.h.b16 %v2015
    %v2104 = vunpack.c.l.b16 %v2016
    %v2105 = vunpack.c.h.b16 %v2016
    %v2106 = vunpack.c.l.b16 %v2017
    %v2107 = vunpack.c.h.b16 %v2017
    %v2108 = vunpack.c.l.b16 %v2018
    %v2109 = vunpack.c.h.b16 %v2018
    %v2110 = vunpack.c.l.b16 %v2019
    %v2111 = vunpack.c.h.b16 %v2019
    %v2112 = vunpack.c.l.b16 %v2020
    %v2113 = vunpack.c.h.b16 %v2020
    %v2114 = vunpack.c.l.b16 %v2021
    %v2115 = vunpack.c.h.b16 %v2021
    %v2116 = vunpack.c.l.b16 %v2022
    %v2117 = vunpack.c.h.b16 %v2022
    %v2118 = vunpack.c.l.b16 %v2023
    %v2119 = vunpack.c.h.b16 %v2023
    %v2120 = vpack.c.b16 %v2060, %v2056
    %v2121 = vpack.c.b16 %v2061, %v2057
    %v2122 = vpack.c.b16 %v2062, %v2058
    %v2123 = vpack.c.b16 %v2063, %v2059
    %v2124 = vpack.c.b16 %v2068, %v2064
    %v2125 = vpack.c.b16 %v2069, %v2065
    %v2126 = vpack.c.b16 %v2070, %v2066
    %v2127 = vpack.c.b16 %v2071, %v2067
    %v2128 = vpack.c.b16 %v2076, %v2072
    %v2129 = vpack.c.b16 %v2077, %v2073
    %v2130 = vpack.c.b16 %v2078, %v2074
    %v2131 = vpack.c.b16 %v2079, %v2075
    %v2132 = vpack.c.b16 %v2084, %v2080
    %v2133 = vpack.c.b16 %v2085, %v2081
    %v2134 = vpack.c.b16 %v2086, %v2082
    %v2135 = vpack.c.b16 %v2087, %v2083
    %v2136 = vpack.c.b16 %v2092, %v2088
    %v2137 = vpack.c.b16 %v2093, %v2089
    %v2138 = vpack.c.b16 %v2094, %v2090
    %v2139 = vpack.c.b16 %v2095, %v2091
    %v2140 = vpack.c.b16 %v2100, %v2096
    %v2141 = vpack.c.b16 %v2101, %v2097
    %v2142 = vpack.c.b16 %v2102, %v2098
    %v2143 = vpack.c.b16 %v2103, %v2099
    %v2144 = vpack.c.b16 %v2108, %v2104
    %v2145 = vpack.c.b16 %v2109, %v2105
    %v2146 = vpack.c.b16 %v2110, %v2106
    %v2147 = vpack.c.b16 %v2111, %v2107
    %v2148 = vpack.c.b16 %v2116, %v2112
    %v2149 = vpack.c.b16 %v2117, %v2113
    %v2150 = vpack.c.b16 %v2118, %v2114
    %v2151 = vpack.c.b16 %v2119, %v2115
    %2184 = vmatprep.subr.bf16.mxu0 %v2121
    %2185 = vmatpush1.bf16.msra.mxu0 %v2120
    %2186 = vmatprep.subr.bf16.mxu0 %v2125
    %2187 = vmatpush1.bf16.msra.mxu0 %v2124
    %2188 = vmatprep.subr.bf16.mxu0 %v2129
    %2189 = vmatpush1.bf16.msra.mxu0 %v2128
    %2190 = vmatprep.subr.bf16.mxu0 %v2133
    %2191 = vmatpush1.bf16.msra.mxu0 %v2132
    %2192 = vmatprep.subr.bf16.mxu0 %v2137
    %2193 = vmatpush1.bf16.msra.mxu0 %v2136
    %2194 = vmatprep.subr.bf16.mxu0 %v2141
    %2195 = vmatpush1.bf16.msra.mxu0 %v2140
    %2196 = vmatprep.subr.bf16.mxu0 %v2145
    %2197 = vmatpush1.bf16.msra.mxu0 %v2144
    %2198 = vmatprep.subr.bf16.mxu0 %v2149
    %2199 = vmatpush1.bf16.msra.mxu0 %v2148
    %2200 = vmatprep.subr.bf16.mxu0 0
    %2201 = vmatpush1.bf16.msra.mxu0 0
    %2202 = vmatprep.subr.bf16.mxu0 0
    %2203 = vmatpush1.bf16.msra.mxu0 0
    %2204 = vmatprep.subr.bf16.mxu0 0
    %2205 = vmatpush1.bf16.msra.mxu0 0
    %2206 = vmatprep.subr.bf16.mxu0 0
    %2207 = vmatpush1.bf16.msra.mxu0 0
    %2208 = vmatprep.subr.bf16.mxu0 0
    %2209 = vmatpush1.bf16.msra.mxu0 0
    %2210 = vmatprep.subr.bf16.mxu0 0
    %2211 = vmatpush1.bf16.msra.mxu0 0
    %2212 = vmatprep.subr.bf16.mxu0 0
    %2213 = vmatpush1.bf16.msra.mxu0 0
    %2214 = vmatprep.subr.bf16.mxu0 0
    %2215 = vmatpush1.bf16.msra.mxu0 0
    %2216 = vmatprep.mubr.bf16.mxu0 0
    %2217 = vmatmul.mubr.bf16.gmra.mrb[0].mxu0 %v1991
    %v2218 = vpop.f32.mrb[0].mxu0
    %v2219 = vadd.f32 0.0, %v2218
    %v2220 = vpop.f32.mrb[0].mxu0
    %v2221 = vadd.f32 0.0, %v2220
    %v2222 = vpop.f32.mrb[0].mxu0
    %v2223 = vpop.f32.mrb[0].mxu0
    %2224 = vdwg.mxu0
    %2225 = vmatprep.subr.bf16.mxu0 %v2123
    %2226 = vmatpush1.bf16.msra.mxu0 %v2122
    %2227 = vmatprep.subr.bf16.mxu0 %v2127
    %2228 = vmatpush1.bf16.msra.mxu0 %v2126
    %2229 = vmatprep.subr.bf16.mxu0 %v2131
    %2230 = vmatpush1.bf16.msra.mxu0 %v2130
    %2231 = vmatprep.subr.bf16.mxu0 %v2135
    %2232 = vmatpush1.bf16.msra.mxu0 %v2134
    %2233 = vmatprep.subr.bf16.mxu0 %v2139
    %2234 = vmatpush1.bf16.msra.mxu0 %v2138
    %2235 = vmatprep.subr.bf16.mxu0 %v2143
    %2236 = vmatpush1.bf16.msra.mxu0 %v2142
    %2237 = vmatprep.subr.bf16.mxu0 %v2147
    %2238 = vmatpush1.bf16.msra.mxu0 %v2146
    %2239 = vmatprep.subr.bf16.mxu0 %v2151
    %2240 = vmatpush1.bf16.msra.mxu0 %v2150
    %2241 = vmatprep.subr.bf16.mxu0 0
    %2242 = vmatpush1.bf16.msra.mxu0 0
    %2243 = vmatprep.subr.bf16.mxu0 0
    %2244 = vmatpush1.bf16.msra.mxu0 0
    %2245 = vmatprep.subr.bf16.mxu0 0
    %2246 = vmatpush1.bf16.msra.mxu0 0
    %2247 = vmatprep.subr.bf16.mxu0 0
    %2248 = vmatpush1.bf16.msra.mxu0 0
    %2249 = vmatprep.subr.bf16.mxu0 0
    %2250 = vmatpush1.bf16.msra.mxu0 0
    %2251 = vmatprep.subr.bf16.mxu0 0
    %2252 = vmatpush1.bf16.msra.mxu0 0
    %2253 = vmatprep.subr.bf16.mxu0 0
    %2254 = vmatpush1.bf16.msra.mxu0 0
    %2255 = vmatprep.subr.bf16.mxu0 0
    %2256 = vmatpush1.bf16.msra.mxu0 0
    %2257 = vmatprep.mubr.bf16.mxu0 0
    %2258 = vmatmul.mubr.bf16.gmra.mrb[0].mxu0 %v1991
    %v2259 = vpop.f32.mrb[0].mxu0
    %v2260 = vadd.f32 0.0, %v2259
    %v2261 = vpop.f32.mrb[0].mxu0
    %v2262 = vadd.f32 0.0, %v2261
    %v2263 = vpop.f32.mrb[0].mxu0
    %v2264 = vpop.f32.mrb[0].mxu0
    %2265 = vdwg.mxu0
    %v2266 = vadd.f32 %v1983, %v2219
    %v2267 = vadd.f32 %v1984, %v2221
    %v2268 = vadd.f32 %v1985, %v2260
    %v2269 = vadd.f32 %v1986, %v2262
    %v2270 = vpack.c.bf16 %v1978, %v1978
    %v2271 = vld [vmem:[#allocation7] sm:$0xff]
    %v2272 = vld [vmem:[#allocation7 + $0x8] sm:$0xff]
    %v2273 = vld [vmem:[#allocation7 + $0x10] sm:$0xff]
    %v2274 = vld [vmem:[#allocation7 + $0x18] sm:$0xff]
    %v2275 = vld [vmem:[#allocation7 + $0x20] sm:$0xff]
    %v2276 = vld [vmem:[#allocation7 + $0x28] sm:$0xff]
    %v2277 = vld [vmem:[#allocation7 + $0x30] sm:$0xff]
    %v2278 = vld [vmem:[#allocation7 + $0x38] sm:$0xff]
    %v2279 = vld [vmem:[#allocation7 + $0x40] sm:$0xff]
    %v2280 = vld [vmem:[#allocation7 + $0x48] sm:$0xff]
    %v2281 = vld [vmem:[#allocation7 + $0x50] sm:$0xff]
    %v2282 = vld [vmem:[#allocation7 + $0x58] sm:$0xff]
    %v2283 = vld [vmem:[#allocation7 + $0x60] sm:$0xff]
    %v2284 = vld [vmem:[#allocation7 + $0x68] sm:$0xff]
    %v2285 = vld [vmem:[#allocation7 + $0x70] sm:$0xff]
    %v2286 = vld [vmem:[#allocation7 + $0x78] sm:$0xff]
    %v2287 = vld [vmem:[#allocation7 + $0x80] sm:$0xff]
    %v2288 = vld [vmem:[#allocation7 + $0x88] sm:$0xff]
    %v2289 = vld [vmem:[#allocation7 + $0x90] sm:$0xff]
    %v2290 = vld [vmem:[#allocation7 + $0x98] sm:$0xff]
    %v2291 = vld [vmem:[#allocation7 + $0xa0] sm:$0xff]
    %v2292 = vld [vmem:[#allocation7 + $0xa8] sm:$0xff]
    %v2293 = vld [vmem:[#allocation7 + $0xb0] sm:$0xff]
    %v2294 = vld [vmem:[#allocation7 + $0xb8] sm:$0xff]
    %v2295 = vld [vmem:[#allocation7 + $0xc0] sm:$0xff]
    %v2296 = vld [vmem:[#allocation7 + $0xc8] sm:$0xff]
    %v2297 = vld [vmem:[#allocation7 + $0xd0] sm:$0xff]
    %v2298 = vld [vmem:[#allocation7 + $0xd8] sm:$0xff]
    %v2299 = vld [vmem:[#allocation7 + $0xe0] sm:$0xff]
    %v2300 = vld [vmem:[#allocation7 + $0xe8] sm:$0xff]
    %v2301 = vld [vmem:[#allocation7 + $0xf0] sm:$0xff]
    %v2302 = vld [vmem:[#allocation7 + $0xf8] sm:$0xff]
    %v2335 = vunpack.c.l.b16 %v2271
    %v2336 = vunpack.c.h.b16 %v2271
    %v2337 = vunpack.c.l.b16 %v2272
    %v2338 = vunpack.c.h.b16 %v2272
    %v2339 = vunpack.c.l.b16 %v2273
    %v2340 = vunpack.c.h.b16 %v2273
    %v2341 = vunpack.c.l.b16 %v2274
    %v2342 = vunpack.c.h.b16 %v2274
    %v2343 = vunpack.c.l.b16 %v2275
    %v2344 = vunpack.c.h.b16 %v2275
    %v2345 = vunpack.c.l.b16 %v2276
    %v2346 = vunpack.c.h.b16 %v2276
    %v2347 = vunpack.c.l.b16 %v2277
    %v2348 = vunpack.c.h.b16 %v2277
    %v2349 = vunpack.c.l.b16 %v2278
    %v2350 = vunpack.c.h.b16 %v2278
    %v2351 = vunpack.c.l.b16 %v2279
    %v2352 = vunpack.c.h.b16 %v2279
    %v2353 = vunpack.c.l.b16 %v2280
    %v2354 = vunpack.c.h.b16 %v2280
    %v2355 = vunpack.c.l.b16 %v2281
    %v2356 = vunpack.c.h.b16 %v2281
    %v2357 = vunpack.c.l.b16 %v2282
    %v2358 = vunpack.c.h.b16 %v2282
    %v2359 = vunpack.c.l.b16 %v2283
    %v2360 = vunpack.c.h.b16 %v2283
    %v2361 = vunpack.c.l.b16 %v2284
    %v2362 = vunpack.c.h.b16 %v2284
    %v2363 = vunpack.c.l.b16 %v2285
    %v2364 = vunpack.c.h.b16 %v2285
    %v2365 = vunpack.c.l.b16 %v2286
    %v2366 = vunpack.c.h.b16 %v2286
    %v2367 = vunpack.c.l.b16 %v2287
    %v2368 = vunpack.c.h.b16 %v2287
    %v2369 = vunpack.c.l.b16 %v2288
    %v2370 = vunpack.c.h.b16 %v2288
    %v2371 = vunpack.c.l.b16 %v2289
    %v2372 = vunpack.c.h.b16 %v2289
    %v2373 = vunpack.c.l.b16 %v2290
    %v2374 = vunpack.c.h.b16 %v2290
    %v2375 = vunpack.c.l.b16 %v2291
    %v2376 = vunpack.c.h.b16 %v2291
    %v2377 = vunpack.c.l.b16 %v2292
    %v2378 = vunpack.c.h.b16 %v2292
    %v2379 = vunpack.c.l.b16 %v2293
    %v2380 = vunpack.c.h.b16 %v2293
    %v2381 = vunpack.c.l.b16 %v2294
    %v2382 = vunpack.c.h.b16 %v2294
    %v2383 = vunpack.c.l.b16 %v2295
    %v2384 = vunpack.c.h.b16 %v2295
    %v2385 = vunpack.c.l.b16 %v2296
    %v2386 = vunpack.c.h.b16 %v2296
    %v2387 = vunpack.c.l.b16 %v2297
    %v2388 = vunpack.c.h.b16 %v2297
    %v2389 = vunpack.c.l.b16 %v2298
    %v2390 = vunpack.c.h.b16 %v2298
    %v2391 = vunpack.c.l.b16 %v2299
    %v2392 = vunpack.c.h.b16 %v2299
    %v2393 = vunpack.c.l.b16 %v2300
    %v2394 = vunpack.c.h.b16 %v2300
    %v2395 = vunpack.c.l.b16 %v2301
    %v2396 = vunpack.c.h.b16 %v2301
    %v2397 = vunpack.c.l.b16 %v2302
    %v2398 = vunpack.c.h.b16 %v2302
    %v2399 = vpack.c.b16 %v2339, %v2335
    %v2400 = vpack.c.b16 %v2340, %v2336
    %v2401 = vpack.c.b16 %v2341, %v2337
    %v2402 = vpack.c.b16 %v2342, %v2338
    %v2403 = vpack.c.b16 %v2347, %v2343
    %v2404 = vpack.c.b16 %v2348, %v2344
    %v2405 = vpack.c.b16 %v2349, %v2345
    %v2406 = vpack.c.b16 %v2350, %v2346
    %v2407 = vpack.c.b16 %v2355, %v2351
    %v2408 = vpack.c.b16 %v2356, %v2352
    %v2409 = vpack.c.b16 %v2357, %v2353
    %v2410 = vpack.c.b16 %v2358, %v2354
    %v2411 = vpack.c.b16 %v2363, %v2359
    %v2412 = vpack.c.b16 %v2364, %v2360
    %v2413 = vpack.c.b16 %v2365, %v2361
    %v2414 = vpack.c.b16 %v2366, %v2362
    %v2415 = vpack.c.b16 %v2371, %v2367
    %v2416 = vpack.c.b16 %v2372, %v2368
    %v2417 = vpack.c.b16 %v2373, %v2369
    %v2418 = vpack.c.b16 %v2374, %v2370
    %v2419 = vpack.c.b16 %v2379, %v2375
    %v2420 = vpack.c.b16 %v2380, %v2376
    %v2421 = vpack.c.b16 %v2381, %v2377
    %v2422 = vpack.c.b16 %v2382, %v2378
    %v2423 = vpack.c.b16 %v2387, %v2383
    %v2424 = vpack.c.b16 %v2388, %v2384
    %v2425 = vpack.c.b16 %v2389, %v2385
    %v2426 = vpack.c.b16 %v2390, %v2386
    %v2427 = vpack.c.b16 %v2395, %v2391
    %v2428 = vpack.c.b16 %v2396, %v2392
    %v2429 = vpack.c.b16 %v2397, %v2393
    %v2430 = vpack.c.b16 %v2398, %v2394
    %2463 = vmatprep.subr.bf16.mxu0 %v2400
    %2464 = vmatpush1.bf16.msra.mxu0 %v2399
    %2465 = vmatprep.subr.bf16.mxu0 %v2404
    %2466 = vmatpush1.bf16.msra.mxu0 %v2403
    %2467 = vmatprep.subr.bf16.mxu0 %v2408
    %2468 = vmatpush1.bf16.msra.mxu0 %v2407
    %2469 = vmatprep.subr.bf16.mxu0 %v2412
    %2470 = vmatpush1.bf16.msra.mxu0 %v2411
    %2471 = vmatprep.subr.bf16.mxu0 %v2416
    %2472 = vmatpush1.bf16.msra.mxu0 %v2415
    %2473 = vmatprep.subr.bf16.mxu0 %v2420
    %2474 = vmatpush1.bf16.msra.mxu0 %v2419
    %2475 = vmatprep.subr.bf16.mxu0 %v2424
    %2476 = vmatpush1.bf16.msra.mxu0 %v2423
    %2477 = vmatprep.subr.bf16.mxu0 %v2428
    %2478 = vmatpush1.bf16.msra.mxu0 %v2427
    %2479 = vmatprep.subr.bf16.mxu0 0
    %2480 = vmatpush1.bf16.msra.mxu0 0
    %2481 = vmatprep.subr.bf16.mxu0 0
    %2482 = vmatpush1.bf16.msra.mxu0 0
    %2483 = vmatprep.subr.bf16.mxu0 0
    %2484 = vmatpush1.bf16.msra.mxu0 0
    %2485 = vmatprep.subr.bf16.mxu0 0
    %2486 = vmatpush1.bf16.msra.mxu0 0
    %2487 = vmatprep.subr.bf16.mxu0 0
    %2488 = vmatpush1.bf16.msra.mxu0 0
    %2489 = vmatprep.subr.bf16.mxu0 0
    %2490 = vmatpush1.bf16.msra.mxu0 0
    %2491 = vmatprep.subr.bf16.mxu0 0
    %2492 = vmatpush1.bf16.msra.mxu0 0
    %2493 = vmatprep.subr.bf16.mxu0 0
    %2494 = vmatpush1.bf16.msra.mxu0 0
    %2495 = vmatprep.mubr.bf16.mxu0 0
    %2496 = vmatmul.mubr.bf16.gmra.mrb[0].mxu0 %v2270
    %v2497 = vpop.f32.mrb[0].mxu0
    %v2498 = vadd.f32 0.0, %v2497
    %v2499 = vpop.f32.mrb[0].mxu0
    %v2500 = vadd.f32 0.0, %v2499
    %v2501 = vpop.f32.mrb[0].mxu0
    %v2502 = vpop.f32.mrb[0].mxu0
    %2503 = vdwg.mxu0
    %2504 = vmatprep.subr.bf16.mxu0 %v2402
    %2505 = vmatpush1.bf16.msra.mxu0 %v2401
    %2506 = vmatprep.subr.bf16.mxu0 %v2406
    %2507 = vmatpush1.bf16.msra.mxu0 %v2405
    %2508 = vmatprep.subr.bf16.mxu0 %v2410
    %2509 = vmatpush1.bf16.msra.mxu0 %v2409
    %2510 = vmatprep.subr.bf16.mxu0 %v2414
    %2511 = vmatpush1.bf16.msra.mxu0 %v2413
    %2512 = vmatprep.subr.bf16.mxu0 %v2418
    %2513 = vmatpush1.bf16.msra.mxu0 %v2417
    %2514 = vmatprep.subr.bf16.mxu0 %v2422
    %2515 = vmatpush1.bf16.msra.mxu0 %v2421
    %2516 = vmatprep.subr.bf16.mxu0 %v2426
    %2517 = vmatpush1.bf16.msra.mxu0 %v2425
    %2518 = vmatprep.subr.bf16.mxu0 %v2430
    %2519 = vmatpush1.bf16.msra.mxu0 %v2429
    %2520 = vmatprep.subr.bf16.mxu0 0
    %2521 = vmatpush1.bf16.msra.mxu0 0
    %2522 = vmatprep.subr.bf16.mxu0 0
    %2523 = vmatpush1.bf16.msra.mxu0 0
    %2524 = vmatprep.subr.bf16.mxu0 0
    %2525 = vmatpush1.bf16.msra.mxu0 0
    %2526 = vmatprep.subr.bf16.mxu0 0
    %2527 = vmatpush1.bf16.msra.mxu0 0
    %2528 = vmatprep.subr.bf16.mxu0 0
    %2529 = vmatpush1.bf16.msra.mxu0 0
    %2530 = vmatprep.subr.bf16.mxu0 0
    %2531 = vmatpush1.bf16.msra.mxu0 0
    %2532 = vmatprep.subr.bf16.mxu0 0
    %2533 = vmatpush1.bf16.msra.mxu0 0
    %2534 = vmatprep.subr.bf16.mxu0 0
    %2535 = vmatpush1.bf16.msra.mxu0 0
    %2536 = vmatprep.mubr.bf16.mxu0 0
    %2537 = vmatmul.mubr.bf16.gmra.mrb[0].mxu0 %v2270
    %v2538 = vpop.f32.mrb[0].mxu0
    %v2539 = vadd.f32 0.0, %v2538
    %v2540 = vpop.f32.mrb[0].mxu0
    %v2541 = vadd.f32 0.0, %v2540
    %v2542 = vpop.f32.mrb[0].mxu0
    %v2543 = vpop.f32.mrb[0].mxu0
    %2544 = vdwg.mxu0
    %v2545 = vadd.f32 %v1987, %v2498
    %v2546 = vadd.f32 %v1988, %v2500
    %v2547 = vadd.f32 %v1989, %v2539
    %v2548 = vadd.f32 %v1990, %v2541
    %v2549 = vxor.u32 %v2266, 2147483648
    %v2550 = vmul.f32 %v2549, 1.442695
    %v2551 = vpow.pop %v2550
    %v2552 = vadd.f32 %v2551, 1.0
    %v2553 = vrcp.pop %v2552
    %v2554 = vmul.f32 1.0, %v2553
    %v2555 = vtanh.pop %v2268
    %v2556 = vxor.u32 %v2269, 2147483648
    %v2557 = vmul.f32 %v2556, 1.442695
    %v2558 = vpow.pop %v2557
    %v2559 = vadd.f32 %v2558, 1.0
    %v2560 = vrcp.pop %v2559
    %v2561 = vmul.f32 1.0, %v2560
    %v2562 = vxor.u32 %v2267, 2147483648
    %v2563 = vmul.f32 %v2562, 1.442695
    %v2564 = vpow.pop %v2563
    %v2565 = vadd.f32 %v2564, 1.0
    %v2566 = vrcp.pop %v2565
    %v2567 = vmul.f32 1.0, %v2566
    %v2568 = vmul.f32 %v2567, %v1952
    %v2569 = vmul.f32 %v2554, %v2555
    %v2570 = vadd.f32 %v2568, %v2569
    %v2571 = vtanh.pop %v2570
    %v2572 = vmul.f32 %v2561, %v2571
    %v2573 = vxor.u32 %v2545, 2147483648
    %v2574 = vmul.f32 %v2573, 1.442695
    %v2575 = vpow.pop %v2574
    %v2576 = vadd.f32 %v2575, 1.0
    %v2577 = vrcp.pop %v2576
    %v2578 = vmul.f32 1.0, %v2577
    %v2579 = vtanh.pop %v2547
    %v2580 = vxor.u32 %v2548, 2147483648
    %v2581 = vmul.f32 %v2580, 1.442695
    %v2582 = vpow.pop %v2581
    %v2583 = vadd.f32 %v2582, 1.0
    %v2584 = vrcp.pop %v2583
    %v2585 = vmul.f32 1.0, %v2584
    %v2586 = vxor.u32 %v2546, 2147483648
    %v2587 = vmul.f32 %v2586, 1.442695
    %v2588 = vpow.pop %v2587
    %v2589 = vadd.f32 %v2588, 1.0
    %v2590 = vrcp.pop %v2589
    %v2591 = vmul.f32 1.0, %v2590
    %v2592 = vmul.f32 %v2591, %v1976
    %v2593 = vmul.f32 %v2578, %v2579
    %v2594 = vadd.f32 %v2592, %v2593
    %v2595 = vtanh.pop %v2594
    %v2596 = vmul.f32 %v2585, %v2595
    %s2597 = scalar_lea.vmem [#allocation2], 24
    %2598 = vst [vmem:[%s2597] sm:$0xff] %v2572
    %s2599 = scalar_lea.vmem [#allocation3], 32
    %2600 = vst [vmem:[%s2599] sm:$0xff] %v2596
    %v2601 = vld [vmem:[#allocation4 + $0x100] sm:$0xff]
    %v2602 = vld [vmem:[#allocation4 + $0x108] sm:$0xff]
    %v2603 = vld [vmem:[#allocation4 + $0x110] sm:$0xff]
    %v2604 = vld [vmem:[#allocation4 + $0x118] sm:$0xff]
    %v2605 = vld [vmem:[#allocation4 + $0xe0] sm:$0xff]
    %v2606 = vld [vmem:[#allocation4 + $0xe8] sm:$0xff]
    %v2607 = vld [vmem:[#allocation4 + $0xf0] sm:$0xff]
    %v2608 = vld [vmem:[#allocation4 + $0xf8] sm:$0xff]
    %v2609 = vpack.c.bf16 %v2572, %v2572
    %v2610 = vld [vmem:[#allocation5] sm:$0xff]
    %v2611 = vld [vmem:[#allocation5 + $0x8] sm:$0xff]
    %v2612 = vld [vmem:[#allocation5 + $0x10] sm:$0xff]
    %v2613 = vld [vmem:[#allocation5 + $0x18] sm:$0xff]
    %v2614 = vld [vmem:[#allocation5 + $0x20] sm:$0xff]
    %v2615 = vld [vmem:[#allocation5 + $0x28] sm:$0xff]
    %v2616 = vld [vmem:[#allocation5 + $0x30] sm:$0xff]
    %v2617 = vld [vmem:[#allocation5 + $0x38] sm:$0xff]
    %v2618 = vld [vmem:[#allocation5 + $0x40] sm:$0xff]
    %v2619 = vld [vmem:[#allocation5 + $0x48] sm:$0xff]
    %v2620 = vld [vmem:[#allocation5 + $0x50] sm:$0xff]
    %v2621 = vld [vmem:[#allocation5 + $0x58] sm:$0xff]
    %v2622 = vld [vmem:[#allocation5 + $0x60] sm:$0xff]
    %v2623 = vld [vmem:[#allocation5 + $0x68] sm:$0xff]
    %v2624 = vld [vmem:[#allocation5 + $0x70] sm:$0xff]
    %v2625 = vld [vmem:[#allocation5 + $0x78] sm:$0xff]
    %v2626 = vld [vmem:[#allocation5 + $0x80] sm:$0xff]
    %v2627 = vld [vmem:[#allocation5 + $0x88] sm:$0xff]
    %v2628 = vld [vmem:[#allocation5 + $0x90] sm:$0xff]
    %v2629 = vld [vmem:[#allocation5 + $0x98] sm:$0xff]
    %v2630 = vld [vmem:[#allocation5 + $0xa0] sm:$0xff]
    %v2631 = vld [vmem:[#allocation5 + $0xa8] sm:$0xff]
    %v2632 = vld [vmem:[#allocation5 + $0xb0] sm:$0xff]
    %v2633 = vld [vmem:[#allocation5 + $0xb8] sm:$0xff]
    %v2634 = vld [vmem:[#allocation5 + $0xc0] sm:$0xff]
    %v2635 = vld [vmem:[#allocation5 + $0xc8] sm:$0xff]
    %v2636 = vld [vmem:[#allocation5 + $0xd0] sm:$0xff]
    %v2637 = vld [vmem:[#allocation5 + $0xd8] sm:$0xff]
    %v2638 = vld [vmem:[#allocation5 + $0xe0] sm:$0xff]
    %v2639 = vld [vmem:[#allocation5 + $0xe8] sm:$0xff]
    %v2640 = vld [vmem:[#allocation5 + $0xf0] sm:$0xff]
    %v2641 = vld [vmem:[#allocation5 + $0xf8] sm:$0xff]
    %v2674 = vunpack.c.l.b16 %v2610
    %v2675 = vunpack.c.h.b16 %v2610
    %v2676 = vunpack.c.l.b16 %v2611
    %v2677 = vunpack.c.h.b16 %v2611
    %v2678 = vunpack.c.l.b16 %v2612
    %v2679 = vunpack.c.h.b16 %v2612
    %v2680 = vunpack.c.l.b16 %v2613
    %v2681 = vunpack.c.h.b16 %v2613
    %v2682 = vunpack.c.l.b16 %v2614
    %v2683 = vunpack.c.h.b16 %v2614
    %v2684 = vunpack.c.l.b16 %v2615
    %v2685 = vunpack.c.h.b16 %v2615
    %v2686 = vunpack.c.l.b16 %v2616
    %v2687 = vunpack.c.h.b16 %v2616
    %v2688 = vunpack.c.l.b16 %v2617
    %v2689 = vunpack.c.h.b16 %v2617
    %v2690 = vunpack.c.l.b16 %v2618
    %v2691 = vunpack.c.h.b16 %v2618
    %v2692 = vunpack.c.l.b16 %v2619
    %v2693 = vunpack.c.h.b16 %v2619
    %v2694 = vunpack.c.l.b16 %v2620
    %v2695 = vunpack.c.h.b16 %v2620
    %v2696 = vunpack.c.l.b16 %v2621
    %v2697 = vunpack.c.h.b16 %v2621
    %v2698 = vunpack.c.l.b16 %v2622
    %v2699 = vunpack.c.h.b16 %v2622
    %v2700 = vunpack.c.l.b16 %v2623
    %v2701 = vunpack.c.h.b16 %v2623
    %v2702 = vunpack.c.l.b16 %v2624
    %v2703 = vunpack.c.h.b16 %v2624
    %v2704 = vunpack.c.l.b16 %v2625
    %v2705 = vunpack.c.h.b16 %v2625
    %v2706 = vunpack.c.l.b16 %v2626
    %v2707 = vunpack.c.h.b16 %v2626
    %v2708 = vunpack.c.l.b16 %v2627
    %v2709 = vunpack.c.h.b16 %v2627
    %v2710 = vunpack.c.l.b16 %v2628
    %v2711 = vunpack.c.h.b16 %v2628
    %v2712 = vunpack.c.l.b16 %v2629
    %v2713 = vunpack.c.h.b16 %v2629
    %v2714 = vunpack.c.l.b16 %v2630
    %v2715 = vunpack.c.h.b16 %v2630
    %v2716 = vunpack.c.l.b16 %v2631
    %v2717 = vunpack.c.h.b16 %v2631
    %v2718 = vunpack.c.l.b16 %v2632
    %v2719 = vunpack.c.h.b16 %v2632
    %v2720 = vunpack.c.l.b16 %v2633
    %v2721 = vunpack.c.h.b16 %v2633
    %v2722 = vunpack.c.l.b16 %v2634
    %v2723 = vunpack.c.h.b16 %v2634
    %v2724 = vunpack.c.l.b16 %v2635
    %v2725 = vunpack.c.h.b16 %v2635
    %v2726 = vunpack.c.l.b16 %v2636
    %v2727 = vunpack.c.h.b16 %v2636
    %v2728 = vunpack.c.l.b16 %v2637
    %v2729 = vunpack.c.h.b16 %v2637
    %v2730 = vunpack.c.l.b16 %v2638
    %v2731 = vunpack.c.h.b16 %v2638
    %v2732 = vunpack.c.l.b16 %v2639
    %v2733 = vunpack.c.h.b16 %v2639
    %v2734 = vunpack.c.l.b16 %v2640
    %v2735 = vunpack.c.h.b16 %v2640
    %v2736 = vunpack.c.l.b16 %v2641
    %v2737 = vunpack.c.h.b16 %v2641
    %v2738 = vpack.c.b16 %v2678, %v2674
    %v2739 = vpack.c.b16 %v2679, %v2675
    %v2740 = vpack.c.b16 %v2680, %v2676
    %v2741 = vpack.c.b16 %v2681, %v2677
    %v2742 = vpack.c.b16 %v2686, %v2682
    %v2743 = vpack.c.b16 %v2687, %v2683
    %v2744 = vpack.c.b16 %v2688, %v2684
    %v2745 = vpack.c.b16 %v2689, %v2685
    %v2746 = vpack.c.b16 %v2694, %v2690
    %v2747 = vpack.c.b16 %v2695, %v2691
    %v2748 = vpack.c.b16 %v2696, %v2692
    %v2749 = vpack.c.b16 %v2697, %v2693
    %v2750 = vpack.c.b16 %v2702, %v2698
    %v2751 = vpack.c.b16 %v2703, %v2699
    %v2752 = vpack.c.b16 %v2704, %v2700
    %v2753 = vpack.c.b16 %v2705, %v2701
    %v2754 = vpack.c.b16 %v2710, %v2706
    %v2755 = vpack.c.b16 %v2711, %v2707
    %v2756 = vpack.c.b16 %v2712, %v2708
    %v2757 = vpack.c.b16 %v2713, %v2709
    %v2758 = vpack.c.b16 %v2718, %v2714
    %v2759 = vpack.c.b16 %v2719, %v2715
    %v2760 = vpack.c.b16 %v2720, %v2716
    %v2761 = vpack.c.b16 %v2721, %v2717
    %v2762 = vpack.c.b16 %v2726, %v2722
    %v2763 = vpack.c.b16 %v2727, %v2723
    %v2764 = vpack.c.b16 %v2728, %v2724
    %v2765 = vpack.c.b16 %v2729, %v2725
    %v2766 = vpack.c.b16 %v2734, %v2730
    %v2767 = vpack.c.b16 %v2735, %v2731
    %v2768 = vpack.c.b16 %v2736, %v2732
    %v2769 = vpack.c.b16 %v2737, %v2733
    %2802 = vmatprep.subr.bf16.mxu0 %v2739
    %2803 = vmatpush1.bf16.msra.mxu0 %v2738
    %2804 = vmatprep.subr.bf16.mxu0 %v2743
    %2805 = vmatpush1.bf16.msra.mxu0 %v2742
    %2806 = vmatprep.subr.bf16.mxu0 %v2747
    %2807 = vmatpush1.bf16.msra.mxu0 %v2746
    %2808 = vmatprep.subr.bf16.mxu0 %v2751
    %2809 = vmatpush1.bf16.msra.mxu0 %v2750
    %2810 = vmatprep.subr.bf16.mxu0 %v2755
    %2811 = vmatpush1.bf16.msra.mxu0 %v2754
    %2812 = vmatprep.subr.bf16.mxu0 %v2759
    %2813 = vmatpush1.bf16.msra.mxu0 %v2758
    %2814 = vmatprep.subr.bf16.mxu0 %v2763
    %2815 = vmatpush1.bf16.msra.mxu0 %v2762
    %2816 = vmatprep.subr.bf16.mxu0 %v2767
    %2817 = vmatpush1.bf16.msra.mxu0 %v2766
    %2818 = vmatprep.subr.bf16.mxu0 0
    %2819 = vmatpush1.bf16.msra.mxu0 0
    %2820 = vmatprep.subr.bf16.mxu0 0
    %2821 = vmatpush1.bf16.msra.mxu0 0
    %2822 = vmatprep.subr.bf16.mxu0 0
    %2823 = vmatpush1.bf16.msra.mxu0 0
    %2824 = vmatprep.subr.bf16.mxu0 0
    %2825 = vmatpush1.bf16.msra.mxu0 0
    %2826 = vmatprep.subr.bf16.mxu0 0
    %2827 = vmatpush1.bf16.msra.mxu0 0
    %2828 = vmatprep.subr.bf16.mxu0 0
    %2829 = vmatpush1.bf16.msra.mxu0 0
    %2830 = vmatprep.subr.bf16.mxu0 0
    %2831 = vmatpush1.bf16.msra.mxu0 0
    %2832 = vmatprep.subr.bf16.mxu0 0
    %2833 = vmatpush1.bf16.msra.mxu0 0
    %2834 = vmatprep.mubr.bf16.mxu0 0
    %2835 = vmatmul.mubr.bf16.gmra.mrb[0].mxu0 %v2609
    %v2836 = vpop.f32.mrb[0].mxu0
    %v2837 = vadd.f32 0.0, %v2836
    %v2838 = vpop.f32.mrb[0].mxu0
    %v2839 = vadd.f32 0.0, %v2838
    %v2840 = vpop.f32.mrb[0].mxu0
    %v2841 = vpop.f32.mrb[0].mxu0
    %2842 = vdwg.mxu0
    %2843 = vmatprep.subr.bf16.mxu0 %v2741
    %2844 = vmatpush1.bf16.msra.mxu0 %v2740
    %2845 = vmatprep.subr.bf16.mxu0 %v2745
    %2846 = vmatpush1.bf16.msra.mxu0 %v2744
    %2847 = vmatprep.subr.bf16.mxu0 %v2749
    %2848 = vmatpush1.bf16.msra.mxu0 %v2748
    %2849 = vmatprep.subr.bf16.mxu0 %v2753
    %2850 = vmatpush1.bf16.msra.mxu0 %v2752
    %2851 = vmatprep.subr.bf16.mxu0 %v2757
    %2852 = vmatpush1.bf16.msra.mxu0 %v2756
    %2853 = vmatprep.subr.bf16.mxu0 %v2761
    %2854 = vmatpush1.bf16.msra.mxu0 %v2760
    %2855 = vmatprep.subr.bf16.mxu0 %v2765
    %2856 = vmatpush1.bf16.msra.mxu0 %v2764
    %2857 = vmatprep.subr.bf16.mxu0 %v2769
    %2858 = vmatpush1.bf16.msra.mxu0 %v2768
    %2859 = vmatprep.subr.bf16.mxu0 0
    %2860 = vmatpush1.bf16.msra.mxu0 0
    %2861 = vmatprep.subr.bf16.mxu0 0
    %2862 = vmatpush1.bf16.msra.mxu0 0
    %2863 = vmatprep.subr.bf16.mxu0 0
    %2864 = vmatpush1.bf16.msra.mxu0 0
    %2865 = vmatprep.subr.bf16.mxu0 0
    %2866 = vmatpush1.bf16.msra.mxu0 0
    %2867 = vmatprep.subr.bf16.mxu0 0
    %2868 = vmatpush1.bf16.msra.mxu0 0
    %2869 = vmatprep.subr.bf16.mxu0 0
    %2870 = vmatpush1.bf16.msra.mxu0 0
    %2871 = vmatprep.subr.bf16.mxu0 0
    %2872 = vmatpush1.bf16.msra.mxu0 0
    %2873 = vmatprep.subr.bf16.mxu0 0
    %2874 = vmatpush1.bf16.msra.mxu0 0
    %2875 = vmatprep.mubr.bf16.mxu0 0
    %2876 = vmatmul.mubr.bf16.gmra.mrb[0].mxu0 %v2609
    %v2877 = vpop.f32.mrb[0].mxu0
    %v2878 = vadd.f32 0.0, %v2877
    %v2879 = vpop.f32.mrb[0].mxu0
    %v2880 = vadd.f32 0.0, %v2879
    %v2881 = vpop.f32.mrb[0].mxu0
    %v2882 = vpop.f32.mrb[0].mxu0
    %2883 = vdwg.mxu0
    %v2884 = vadd.f32 %v2601, %v2837
    %v2885 = vadd.f32 %v2602, %v2839
    %v2886 = vadd.f32 %v2603, %v2878
    %v2887 = vadd.f32 %v2604, %v2880
    %v2888 = vpack.c.bf16 %v2596, %v2596
    %v2889 = vld [vmem:[#allocation7] sm:$0xff]
    %v2890 = vld [vmem:[#allocation7 + $0x8] sm:$0xff]
    %v2891 = vld [vmem:[#allocation7 + $0x10] sm:$0xff]
    %v2892 = vld [vmem:[#allocation7 + $0x18] sm:$0xff]
    %v2893 = vld [vmem:[#allocation7 + $0x20] sm:$0xff]
    %v2894 = vld [vmem:[#allocation7 + $0x28] sm:$0xff]
    %v2895 = vld [vmem:[#allocation7 + $0x30] sm:$0xff]
    %v2896 = vld [vmem:[#allocation7 + $0x38] sm:$0xff]
    %v2897 = vld [vmem:[#allocation7 + $0x40] sm:$0xff]
    %v2898 = vld [vmem:[#allocation7 + $0x48] sm:$0xff]
    %v2899 = vld [vmem:[#allocation7 + $0x50] sm:$0xff]
    %v2900 = vld [vmem:[#allocation7 + $0x58] sm:$0xff]
    %v2901 = vld [vmem:[#allocation7 + $0x60] sm:$0xff]
    %v2902 = vld [vmem:[#allocation7 + $0x68] sm:$0xff]
    %v2903 = vld [vmem:[#allocation7 + $0x70] sm:$0xff]
    %v2904 = vld [vmem:[#allocation7 + $0x78] sm:$0xff]
    %v2905 = vld [vmem:[#allocation7 + $0x80] sm:$0xff]
    %v2906 = vld [vmem:[#allocation7 + $0x88] sm:$0xff]
    %v2907 = vld [vmem:[#allocation7 + $0x90] sm:$0xff]
    %v2908 = vld [vmem:[#allocation7 + $0x98] sm:$0xff]
    %v2909 = vld [vmem:[#allocation7 + $0xa0] sm:$0xff]
    %v2910 = vld [vmem:[#allocation7 + $0xa8] sm:$0xff]
    %v2911 = vld [vmem:[#allocation7 + $0xb0] sm:$0xff]
    %v2912 = vld [vmem:[#allocation7 + $0xb8] sm:$0xff]
    %v2913 = vld [vmem:[#allocation7 + $0xc0] sm:$0xff]
    %v2914 = vld [vmem:[#allocation7 + $0xc8] sm:$0xff]
    %v2915 = vld [vmem:[#allocation7 + $0xd0] sm:$0xff]
    %v2916 = vld [vmem:[#allocation7 + $0xd8] sm:$0xff]
    %v2917 = vld [vmem:[#allocation7 + $0xe0] sm:$0xff]
    %v2918 = vld [vmem:[#allocation7 + $0xe8] sm:$0xff]
    %v2919 = vld [vmem:[#allocation7 + $0xf0] sm:$0xff]
    %v2920 = vld [vmem:[#allocation7 + $0xf8] sm:$0xff]
    %v2953 = vunpack.c.l.b16 %v2889
    %v2954 = vunpack.c.h.b16 %v2889
    %v2955 = vunpack.c.l.b16 %v2890
    %v2956 = vunpack.c.h.b16 %v2890
    %v2957 = vunpack.c.l.b16 %v2891
    %v2958 = vunpack.c.h.b16 %v2891
    %v2959 = vunpack.c.l.b16 %v2892
    %v2960 = vunpack.c.h.b16 %v2892
    %v2961 = vunpack.c.l.b16 %v2893
    %v2962 = vunpack.c.h.b16 %v2893
    %v2963 = vunpack.c.l.b16 %v2894
    %v2964 = vunpack.c.h.b16 %v2894
    %v2965 = vunpack.c.l.b16 %v2895
    %v2966 = vunpack.c.h.b16 %v2895
    %v2967 = vunpack.c.l.b16 %v2896
    %v2968 = vunpack.c.h.b16 %v2896
    %v2969 = vunpack.c.l.b16 %v2897
    %v2970 = vunpack.c.h.b16 %v2897
    %v2971 = vunpack.c.l.b16 %v2898
    %v2972 = vunpack.c.h.b16 %v2898
    %v2973 = vunpack.c.l.b16 %v2899
    %v2974 = vunpack.c.h.b16 %v2899
    %v2975 = vunpack.c.l.b16 %v2900
    %v2976 = vunpack.c.h.b16 %v2900
    %v2977 = vunpack.c.l.b16 %v2901
    %v2978 = vunpack.c.h.b16 %v2901
    %v2979 = vunpack.c.l.b16 %v2902
    %v2980 = vunpack.c.h.b16 %v2902
    %v2981 = vunpack.c.l.b16 %v2903
    %v2982 = vunpack.c.h.b16 %v2903
    %v2983 = vunpack.c.l.b16 %v2904
    %v2984 = vunpack.c.h.b16 %v2904
    %v2985 = vunpack.c.l.b16 %v2905
    %v2986 = vunpack.c.h.b16 %v2905
    %v2987 = vunpack.c.l.b16 %v2906
    %v2988 = vunpack.c.h.b16 %v2906
    %v2989 = vunpack.c.l.b16 %v2907
    %v2990 = vunpack.c.h.b16 %v2907
    %v2991 = vunpack.c.l.b16 %v2908
    %v2992 = vunpack.c.h.b16 %v2908
    %v2993 = vunpack.c.l.b16 %v2909
    %v2994 = vunpack.c.h.b16 %v2909
    %v2995 = vunpack.c.l.b16 %v2910
    %v2996 = vunpack.c.h.b16 %v2910
    %v2997 = vunpack.c.l.b16 %v2911
    %v2998 = vunpack.c.h.b16 %v2911
    %v2999 = vunpack.c.l.b16 %v2912
    %v3000 = vunpack.c.h.b16 %v2912
    %v3001 = vunpack.c.l.b16 %v2913
    %v3002 = vunpack.c.h.b16 %v2913
    %v3003 = vunpack.c.l.b16 %v2914
    %v3004 = vunpack.c.h.b16 %v2914
    %v3005 = vunpack.c.l.b16 %v2915
    %v3006 = vunpack.c.h.b16 %v2915
    %v3007 = vunpack.c.l.b16 %v2916
    %v3008 = vunpack.c.h.b16 %v2916
    %v3009 = vunpack.c.l.b16 %v2917
    %v3010 = vunpack.c.h.b16 %v2917
    %v3011 = vunpack.c.l.b16 %v2918
    %v3012 = vunpack.c.h.b16 %v2918
    %v3013 = vunpack.c.l.b16 %v2919
    %v3014 = vunpack.c.h.b16 %v2919
    %v3015 = vunpack.c.l.b16 %v2920
    %v3016 = vunpack.c.h.b16 %v2920
    %v3017 = vpack.c.b16 %v2957, %v2953
    %v3018 = vpack.c.b16 %v2958, %v2954
    %v3019 = vpack.c.b16 %v2959, %v2955
    %v3020 = vpack.c.b16 %v2960, %v2956
    %v3021 = vpack.c.b16 %v2965, %v2961
    %v3022 = vpack.c.b16 %v2966, %v2962
    %v3023 = vpack.c.b16 %v2967, %v2963
    %v3024 = vpack.c.b16 %v2968, %v2964
    %v3025 = vpack.c.b16 %v2973, %v2969
    %v3026 = vpack.c.b16 %v2974, %v2970
    %v3027 = vpack.c.b16 %v2975, %v2971
    %v3028 = vpack.c.b16 %v2976, %v2972
    %v3029 = vpack.c.b16 %v2981, %v2977
    %v3030 = vpack.c.b16 %v2982, %v2978
    %v3031 = vpack.c.b16 %v2983, %v2979
    %v3032 = vpack.c.b16 %v2984, %v2980
    %v3033 = vpack.c.b16 %v2989, %v2985
    %v3034 = vpack.c.b16 %v2990, %v2986
    %v3035 = vpack.c.b16 %v2991, %v2987
    %v3036 = vpack.c.b16 %v2992, %v2988
    %v3037 = vpack.c.b16 %v2997, %v2993
    %v3038 = vpack.c.b16 %v2998, %v2994
    %v3039 = vpack.c.b16 %v2999, %v2995
    %v3040 = vpack.c.b16 %v3000, %v2996
    %v3041 = vpack.c.b16 %v3005, %v3001
    %v3042 = vpack.c.b16 %v3006, %v3002
    %v3043 = vpack.c.b16 %v3007, %v3003
    %v3044 = vpack.c.b16 %v3008, %v3004
    %v3045 = vpack.c.b16 %v3013, %v3009
    %v3046 = vpack.c.b16 %v3014, %v3010
    %v3047 = vpack.c.b16 %v3015, %v3011
    %v3048 = vpack.c.b16 %v3016, %v3012
    %3081 = vmatprep.subr.bf16.mxu0 %v3018
    %3082 = vmatpush1.bf16.msra.mxu0 %v3017
    %3083 = vmatprep.subr.bf16.mxu0 %v3022
    %3084 = vmatpush1.bf16.msra.mxu0 %v3021
    %3085 = vmatprep.subr.bf16.mxu0 %v3026
    %3086 = vmatpush1.bf16.msra.mxu0 %v3025
    %3087 = vmatprep.subr.bf16.mxu0 %v3030
    %3088 = vmatpush1.bf16.msra.mxu0 %v3029
    %3089 = vmatprep.subr.bf16.mxu0 %v3034
    %3090 = vmatpush1.bf16.msra.mxu0 %v3033
    %3091 = vmatprep.subr.bf16.mxu0 %v3038
    %3092 = vmatpush1.bf16.msra.mxu0 %v3037
    %3093 = vmatprep.subr.bf16.mxu0 %v3042
    %3094 = vmatpush1.bf16.msra.mxu0 %v3041
    %3095 = vmatprep.subr.bf16.mxu0 %v3046
    %3096 = vmatpush1.bf16.msra.mxu0 %v3045
    %3097 = vmatprep.subr.bf16.mxu0 0
    %3098 = vmatpush1.bf16.msra.mxu0 0
    %3099 = vmatprep.subr.bf16.mxu0 0
    %3100 = vmatpush1.bf16.msra.mxu0 0
    %3101 = vmatprep.subr.bf16.mxu0 0
    %3102 = vmatpush1.bf16.msra.mxu0 0
    %3103 = vmatprep.subr.bf16.mxu0 0
    %3104 = vmatpush1.bf16.msra.mxu0 0
    %3105 = vmatprep.subr.bf16.mxu0 0
    %3106 = vmatpush1.bf16.msra.mxu0 0
    %3107 = vmatprep.subr.bf16.mxu0 0
    %3108 = vmatpush1.bf16.msra.mxu0 0
    %3109 = vmatprep.subr.bf16.mxu0 0
    %3110 = vmatpush1.bf16.msra.mxu0 0
    %3111 = vmatprep.subr.bf16.mxu0 0
    %3112 = vmatpush1.bf16.msra.mxu0 0
    %3113 = vmatprep.mubr.bf16.mxu0 0
    %3114 = vmatmul.mubr.bf16.gmra.mrb[0].mxu0 %v2888
    %v3115 = vpop.f32.mrb[0].mxu0
    %v3116 = vadd.f32 0.0, %v3115
    %v3117 = vpop.f32.mrb[0].mxu0
    %v3118 = vadd.f32 0.0, %v3117
    %v3119 = vpop.f32.mrb[0].mxu0
    %v3120 = vpop.f32.mrb[0].mxu0
    %3121 = vdwg.mxu0
    %3122 = vmatprep.subr.bf16.mxu0 %v3020
    %3123 = vmatpush1.bf16.msra.mxu0 %v3019
    %3124 = vmatprep.subr.bf16.mxu0 %v3024
    %3125 = vmatpush1.bf16.msra.mxu0 %v3023
    %3126 = vmatprep.subr.bf16.mxu0 %v3028
    %3127 = vmatpush1.bf16.msra.mxu0 %v3027
    %3128 = vmatprep.subr.bf16.mxu0 %v3032
    %3129 = vmatpush1.bf16.msra.mxu0 %v3031
    %3130 = vmatprep.subr.bf16.mxu0 %v3036
    %3131 = vmatpush1.bf16.msra.mxu0 %v3035
    %3132 = vmatprep.subr.bf16.mxu0 %v3040
    %3133 = vmatpush1.bf16.msra.mxu0 %v3039
    %3134 = vmatprep.subr.bf16.mxu0 %v3044
    %3135 = vmatpush1.bf16.msra.mxu0 %v3043
    %3136 = vmatprep.subr.bf16.mxu0 %v3048
    %3137 = vmatpush1.bf16.msra.mxu0 %v3047
    %3138 = vmatprep.subr.bf16.mxu0 0
    %3139 = vmatpush1.bf16.msra.mxu0 0
    %3140 = vmatprep.subr.bf16.mxu0 0
    %3141 = vmatpush1.bf16.msra.mxu0 0
    %3142 = vmatprep.subr.bf16.mxu0 0
    %3143 = vmatpush1.bf16.msra.mxu0 0
    %3144 = vmatprep.subr.bf16.mxu0 0
    %3145 = vmatpush1.bf16.msra.mxu0 0
    %3146 = vmatprep.subr.bf16.mxu0 0
    %3147 = vmatpush1.bf16.msra.mxu0 0
    %3148 = vmatprep.subr.bf16.mxu0 0
    %3149 = vmatpush1.bf16.msra.mxu0 0
    %3150 = vmatprep.subr.bf16.mxu0 0
    %3151 = vmatpush1.bf16.msra.mxu0 0
    %3152 = vmatprep.subr.bf16.mxu0 0
    %3153 = vmatpush1.bf16.msra.mxu0 0
    %3154 = vmatprep.mubr.bf16.mxu0 0
    %3155 = vmatmul.mubr.bf16.gmra.mrb[0].mxu0 %v2888
    %v3156 = vpop.f32.mrb[0].mxu0
    %v3157 = vadd.f32 0.0, %v3156
    %v3158 = vpop.f32.mrb[0].mxu0
    %v3159 = vadd.f32 0.0, %v3158
    %v3160 = vpop.f32.mrb[0].mxu0
    %v3161 = vpop.f32.mrb[0].mxu0
    %3162 = vdwg.mxu0
    %v3163 = vadd.f32 %v2605, %v3116
    %v3164 = vadd.f32 %v2606, %v3118
    %v3165 = vadd.f32 %v2607, %v3157
    %v3166 = vadd.f32 %v2608, %v3159
    %v3167 = vxor.u32 %v2884, 2147483648
    %v3168 = vmul.f32 %v3167, 1.442695
    %v3169 = vpow.pop %v3168
    %v3170 = vadd.f32 %v3169, 1.0
    %v3171 = vrcp.pop %v3170
    %v3172 = vmul.f32 1.0, %v3171
    %v3173 = vtanh.pop %v2886
    %v3174 = vxor.u32 %v2887, 2147483648
    %v3175 = vmul.f32 %v3174, 1.442695
    %v3176 = vpow.pop %v3175
    %v3177 = vadd.f32 %v3176, 1.0
    %v3178 = vrcp.pop %v3177
    %v3179 = vmul.f32 1.0, %v3178
    %v3180 = vxor.u32 %v2885, 2147483648
    %v3181 = vmul.f32 %v3180, 1.442695
    %v3182 = vpow.pop %v3181
    %v3183 = vadd.f32 %v3182, 1.0
    %v3184 = vrcp.pop %v3183
    %v3185 = vmul.f32 1.0, %v3184
    %v3186 = vmul.f32 %v3185, %v2570
    %v3187 = vmul.f32 %v3172, %v3173
    %v3188 = vadd.f32 %v3186, %v3187
    %v3189 = vtanh.pop %v3188
    %v3190 = vmul.f32 %v3179, %v3189
    %v3191 = vxor.u32 %v3163, 2147483648
    %v3192 = vmul.f32 %v3191, 1.442695
    %v3193 = vpow.pop %v3192
    %v3194 = vadd.f32 %v3193, 1.0
    %v3195 = vrcp.pop %v3194
    %v3196 = vmul.f32 1.0, %v3195
    %v3197 = vtanh.pop %v3165
    %v3198 = vxor.u32 %v3166, 2147483648
    %v3199 = vmul.f32 %v3198, 1.442695
    %v3200 = vpow.pop %v3199
    %v3201 = vadd.f32 %v3200, 1.0
    %v3202 = vrcp.pop %v3201
    %v3203 = vmul.f32 1.0, %v3202
    %v3204 = vxor.u32 %v3164, 2147483648
    %v3205 = vmul.f32 %v3204, 1.442695
    %v3206 = vpow.pop %v3205
    %v3207 = vadd.f32 %v3206, 1.0
    %v3208 = vrcp.pop %v3207
    %v3209 = vmul.f32 1.0, %v3208
    %v3210 = vmul.f32 %v3209, %v2594
    %v3211 = vmul.f32 %v3196, %v3197
    %v3212 = vadd.f32 %v3210, %v3211
    %v3213 = vtanh.pop %v3212
    %v3214 = vmul.f32 %v3203, %v3213
    %s3215 = scalar_lea.vmem [#allocation2], 32
    %3216 = vst [vmem:[%s3215] sm:$0xff] %v3190
    %s3217 = scalar_lea.vmem [#allocation3], 24
    %3218 = vst [vmem:[%s3217] sm:$0xff] %v3214
    %v3219 = vld [vmem:[#allocation4 + $0x140] sm:$0xff]
    %v3220 = vld [vmem:[#allocation4 + $0x148] sm:$0xff]
    %v3221 = vld [vmem:[#allocation4 + $0x150] sm:$0xff]
    %v3222 = vld [vmem:[#allocation4 + $0x158] sm:$0xff]
    %v3223 = vld [vmem:[#allocation4 + $0xa0] sm:$0xff]
    %v3224 = vld [vmem:[#allocation4 + $0xa8] sm:$0xff]
    %v3225 = vld [vmem:[#allocation4 + $0xb0] sm:$0xff]
    %v3226 = vld [vmem:[#allocation4 + $0xb8] sm:$0xff]
    %v3227 = vpack.c.bf16 %v3190, %v3190
    %v3228 = vld [vmem:[#allocation5] sm:$0xff]
    %v3229 = vld [vmem:[#allocation5 + $0x8] sm:$0xff]
    %v3230 = vld [vmem:[#allocation5 + $0x10] sm:$0xff]
    %v3231 = vld [vmem:[#allocation5 + $0x18] sm:$0xff]
    %v3232 = vld [vmem:[#allocation5 + $0x20] sm:$0xff]
    %v3233 = vld [vmem:[#allocation5 + $0x28] sm:$0xff]
    %v3234 = vld [vmem:[#allocation5 + $0x30] sm:$0xff]
    %v3235 = vld [vmem:[#allocation5 + $0x38] sm:$0xff]
    %v3236 = vld [vmem:[#allocation5 + $0x40] sm:$0xff]
    %v3237 = vld [vmem:[#allocation5 + $0x48] sm:$0xff]
    %v3238 = vld [vmem:[#allocation5 + $0x50] sm:$0xff]
    %v3239 = vld [vmem:[#allocation5 + $0x58] sm:$0xff]
    %v3240 = vld [vmem:[#allocation5 + $0x60] sm:$0xff]
    %v3241 = vld [vmem:[#allocation5 + $0x68] sm:$0xff]
    %v3242 = vld [vmem:[#allocation5 + $0x70] sm:$0xff]
    %v3243 = vld [vmem:[#allocation5 + $0x78] sm:$0xff]
    %v3244 = vld [vmem:[#allocation5 + $0x80] sm:$0xff]
    %v3245 = vld [vmem:[#allocation5 + $0x88] sm:$0xff]
    %v3246 = vld [vmem:[#allocation5 + $0x90] sm:$0xff]
    %v3247 = vld [vmem:[#allocation5 + $0x98] sm:$0xff]
    %v3248 = vld [vmem:[#allocation5 + $0xa0] sm:$0xff]
    %v3249 = vld [vmem:[#allocation5 + $0xa8] sm:$0xff]
    %v3250 = vld [vmem:[#allocation5 + $0xb0] sm:$0xff]
    %v3251 = vld [vmem:[#allocation5 + $0xb8] sm:$0xff]
    %v3252 = vld [vmem:[#allocation5 + $0xc0] sm:$0xff]
    %v3253 = vld [vmem:[#allocation5 + $0xc8] sm:$0xff]
    %v3254 = vld [vmem:[#allocation5 + $0xd0] sm:$0xff]
    %v3255 = vld [vmem:[#allocation5 + $0xd8] sm:$0xff]
    %v3256 = vld [vmem:[#allocation5 + $0xe0] sm:$0xff]
    %v3257 = vld [vmem:[#allocation5 + $0xe8] sm:$0xff]
    %v3258 = vld [vmem:[#allocation5 + $0xf0] sm:$0xff]
    %v3259 = vld [vmem:[#allocation5 + $0xf8] sm:$0xff]
    %v3292 = vunpack.c.l.b16 %v3228
    %v3293 = vunpack.c.h.b16 %v3228
    %v3294 = vunpack.c.l.b16 %v3229
    %v3295 = vunpack.c.h.b16 %v3229
    %v3296 = vunpack.c.l.b16 %v3230
    %v3297 = vunpack.c.h.b16 %v3230
    %v3298 = vunpack.c.l.b16 %v3231
    %v3299 = vunpack.c.h.b16 %v3231
    %v3300 = vunpack.c.l.b16 %v3232
    %v3301 = vunpack.c.h.b16 %v3232
    %v3302 = vunpack.c.l.b16 %v3233
    %v3303 = vunpack.c.h.b16 %v3233
    %v3304 = vunpack.c.l.b16 %v3234
    %v3305 = vunpack.c.h.b16 %v3234
    %v3306 = vunpack.c.l.b16 %v3235
    %v3307 = vunpack.c.h.b16 %v3235
    %v3308 = vunpack.c.l.b16 %v3236
    %v3309 = vunpack.c.h.b16 %v3236
    %v3310 = vunpack.c.l.b16 %v3237
    %v3311 = vunpack.c.h.b16 %v3237
    %v3312 = vunpack.c.l.b16 %v3238
    %v3313 = vunpack.c.h.b16 %v3238
    %v3314 = vunpack.c.l.b16 %v3239
    %v3315 = vunpack.c.h.b16 %v3239
    %v3316 = vunpack.c.l.b16 %v3240
    %v3317 = vunpack.c.h.b16 %v3240
    %v3318 = vunpack.c.l.b16 %v3241
    %v3319 = vunpack.c.h.b16 %v3241
    %v3320 = vunpack.c.l.b16 %v3242
    %v3321 = vunpack.c.h.b16 %v3242
    %v3322 = vunpack.c.l.b16 %v3243
    %v3323 = vunpack.c.h.b16 %v3243
    %v3324 = vunpack.c.l.b16 %v3244
    %v3325 = vunpack.c.h.b16 %v3244
    %v3326 = vunpack.c.l.b16 %v3245
    %v3327 = vunpack.c.h.b16 %v3245
    %v3328 = vunpack.c.l.b16 %v3246
    %v3329 = vunpack.c.h.b16 %v3246
    %v3330 = vunpack.c.l.b16 %v3247
    %v3331 = vunpack.c.h.b16 %v3247
    %v3332 = vunpack.c.l.b16 %v3248
    %v3333 = vunpack.c.h.b16 %v3248
    %v3334 = vunpack.c.l.b16 %v3249
    %v3335 = vunpack.c.h.b16 %v3249
    %v3336 = vunpack.c.l.b16 %v3250
    %v3337 = vunpack.c.h.b16 %v3250
    %v3338 = vunpack.c.l.b16 %v3251
    %v3339 = vunpack.c.h.b16 %v3251
    %v3340 = vunpack.c.l.b16 %v3252
    %v3341 = vunpack.c.h.b16 %v3252
    %v3342 = vunpack.c.l.b16 %v3253
    %v3343 = vunpack.c.h.b16 %v3253
    %v3344 = vunpack.c.l.b16 %v3254
    %v3345 = vunpack.c.h.b16 %v3254
    %v3346 = vunpack.c.l.b16 %v3255
    %v3347 = vunpack.c.h.b16 %v3255
    %v3348 = vunpack.c.l.b16 %v3256
    %v3349 = vunpack.c.h.b16 %v3256
    %v3350 = vunpack.c.l.b16 %v3257
    %v3351 = vunpack.c.h.b16 %v3257
    %v3352 = vunpack.c.l.b16 %v3258
    %v3353 = vunpack.c.h.b16 %v3258
    %v3354 = vunpack.c.l.b16 %v3259
    %v3355 = vunpack.c.h.b16 %v3259
    %v3356 = vpack.c.b16 %v3296, %v3292
    %v3357 = vpack.c.b16 %v3297, %v3293
    %v3358 = vpack.c.b16 %v3298, %v3294
    %v3359 = vpack.c.b16 %v3299, %v3295
    %v3360 = vpack.c.b16 %v3304, %v3300
    %v3361 = vpack.c.b16 %v3305, %v3301
    %v3362 = vpack.c.b16 %v3306, %v3302
    %v3363 = vpack.c.b16 %v3307, %v3303
    %v3364 = vpack.c.b16 %v3312, %v3308
    %v3365 = vpack.c.b16 %v3313, %v3309
    %v3366 = vpack.c.b16 %v3314, %v3310
    %v3367 = vpack.c.b16 %v3315, %v3311
    %v3368 = vpack.c.b16 %v3320, %v3316
    %v3369 = vpack.c.b16 %v3321, %v3317
    %v3370 = vpack.c.b16 %v3322, %v3318
    %v3371 = vpack.c.b16 %v3323, %v3319
    %v3372 = vpack.c.b16 %v3328, %v3324
    %v3373 = vpack.c.b16 %v3329, %v3325
    %v3374 = vpack.c.b16 %v3330, %v3326
    %v3375 = vpack.c.b16 %v3331, %v3327
    %v3376 = vpack.c.b16 %v3336, %v3332
    %v3377 = vpack.c.b16 %v3337, %v3333
    %v3378 = vpack.c.b16 %v3338, %v3334
    %v3379 = vpack.c.b16 %v3339, %v3335
    %v3380 = vpack.c.b16 %v3344, %v3340
    %v3381 = vpack.c.b16 %v3345, %v3341
    %v3382 = vpack.c.b16 %v3346, %v3342
    %v3383 = vpack.c.b16 %v3347, %v3343
    %v3384 = vpack.c.b16 %v3352, %v3348
    %v3385 = vpack.c.b16 %v3353, %v3349
    %v3386 = vpack.c.b16 %v3354, %v3350
    %v3387 = vpack.c.b16 %v3355, %v3351
    %3420 = vmatprep.subr.bf16.mxu0 %v3357
    %3421 = vmatpush1.bf16.msra.mxu0 %v3356
    %3422 = vmatprep.subr.bf16.mxu0 %v3361
    %3423 = vmatpush1.bf16.msra.mxu0 %v3360
    %3424 = vmatprep.subr.bf16.mxu0 %v3365
    %3425 = vmatpush1.bf16.msra.mxu0 %v3364
    %3426 = vmatprep.subr.bf16.mxu0 %v3369
    %3427 = vmatpush1.bf16.msra.mxu0 %v3368
    %3428 = vmatprep.subr.bf16.mxu0 %v3373
    %3429 = vmatpush1.bf16.msra.mxu0 %v3372
    %3430 = vmatprep.subr.bf16.mxu0 %v3377
    %3431 = vmatpush1.bf16.msra.mxu0 %v3376
    %3432 = vmatprep.subr.bf16.mxu0 %v3381
    %3433 = vmatpush1.bf16.msra.mxu0 %v3380
    %3434 = vmatprep.subr.bf16.mxu0 %v3385
    %3435 = vmatpush1.bf16.msra.mxu0 %v3384
    %3436 = vmatprep.subr.bf16.mxu0 0
    %3437 = vmatpush1.bf16.msra.mxu0 0
    %3438 = vmatprep.subr.bf16.mxu0 0
    %3439 = vmatpush1.bf16.msra.mxu0 0
    %3440 = vmatprep.subr.bf16.mxu0 0
    %3441 = vmatpush1.bf16.msra.mxu0 0
    %3442 = vmatprep.subr.bf16.mxu0 0
    %3443 = vmatpush1.bf16.msra.mxu0 0
    %3444 = vmatprep.subr.bf16.mxu0 0
    %3445 = vmatpush1.bf16.msra.mxu0 0
    %3446 = vmatprep.subr.bf16.mxu0 0
    %3447 = vmatpush1.bf16.msra.mxu0 0
    %3448 = vmatprep.subr.bf16.mxu0 0
    %3449 = vmatpush1.bf16.msra.mxu0 0
    %3450 = vmatprep.subr.bf16.mxu0 0
    %3451 = vmatpush1.bf16.msra.mxu0 0
    %3452 = vmatprep.mubr.bf16.mxu0 0
    %3453 = vmatmul.mubr.bf16.gmra.mrb[0].mxu0 %v3227
    %v3454 = vpop.f32.mrb[0].mxu0
    %v3455 = vadd.f32 0.0, %v3454
    %v3456 = vpop.f32.mrb[0].mxu0
    %v3457 = vadd.f32 0.0, %v3456
    %v3458 = vpop.f32.mrb[0].mxu0
    %v3459 = vpop.f32.mrb[0].mxu0
    %3460 = vdwg.mxu0
    %3461 = vmatprep.subr.bf16.mxu0 %v3359
    %3462 = vmatpush1.bf16.msra.mxu0 %v3358
    %3463 = vmatprep.subr.bf16.mxu0 %v3363
    %3464 = vmatpush1.bf16.msra.mxu0 %v3362
    %3465 = vmatprep.subr.bf16.mxu0 %v3367
    %3466 = vmatpush1.bf16.msra.mxu0 %v3366
    %3467 = vmatprep.subr.bf16.mxu0 %v3371
    %3468 = vmatpush1.bf16.msra.mxu0 %v3370
    %3469 = vmatprep.subr.bf16.mxu0 %v3375
    %3470 = vmatpush1.bf16.msra.mxu0 %v3374
    %3471 = vmatprep.subr.bf16.mxu0 %v3379
    %3472 = vmatpush1.bf16.msra.mxu0 %v3378
    %3473 = vmatprep.subr.bf16.mxu0 %v3383
    %3474 = vmatpush1.bf16.msra.mxu0 %v3382
    %3475 = vmatprep.subr.bf16.mxu0 %v3387
    %3476 = vmatpush1.bf16.msra.mxu0 %v3386
    %3477 = vmatprep.subr.bf16.mxu0 0
    %3478 = vmatpush1.bf16.msra.mxu0 0
    %3479 = vmatprep.subr.bf16.mxu0 0
    %3480 = vmatpush1.bf16.msra.mxu0 0
    %3481 = vmatprep.subr.bf16.mxu0 0
    %3482 = vmatpush1.bf16.msra.mxu0 0
    %3483 = vmatprep.subr.bf16.mxu0 0
    %3484 = vmatpush1.bf16.msra.mxu0 0
    %3485 = vmatprep.subr.bf16.mxu0 0
    %3486 = vmatpush1.bf16.msra.mxu0 0
    %3487 = vmatprep.subr.bf16.mxu0 0
    %3488 = vmatpush1.bf16.msra.mxu0 0
    %3489 = vmatprep.subr.bf16.mxu0 0
    %3490 = vmatpush1.bf16.msra.mxu0 0
    %3491 = vmatprep.subr.bf16.mxu0 0
    %3492 = vmatpush1.bf16.msra.mxu0 0
    %3493 = vmatprep.mubr.bf16.mxu0 0
    %3494 = vmatmul.mubr.bf16.gmra.mrb[0].mxu0 %v3227
    %v3495 = vpop.f32.mrb[0].mxu0
    %v3496 = vadd.f32 0.0, %v3495
    %v3497 = vpop.f32.mrb[0].mxu0
    %v3498 = vadd.f32 0.0, %v3497
    %v3499 = vpop.f32.mrb[0].mxu0
    %v3500 = vpop.f32.mrb[0].mxu0
    %3501 = vdwg.mxu0
    %v3502 = vadd.f32 %v3219, %v3455
    %v3503 = vadd.f32 %v3220, %v3457
    %v3504 = vadd.f32 %v3221, %v3496
    %v3505 = vadd.f32 %v3222, %v3498
    %v3506 = vpack.c.bf16 %v3214, %v3214
    %v3507 = vld [vmem:[#allocation7] sm:$0xff]
    %v3508 = vld [vmem:[#allocation7 + $0x8] sm:$0xff]
    %v3509 = vld [vmem:[#allocation7 + $0x10] sm:$0xff]
    %v3510 = vld [vmem:[#allocation7 + $0x18] sm:$0xff]
    %v3511 = vld [vmem:[#allocation7 + $0x20] sm:$0xff]
    %v3512 = vld [vmem:[#allocation7 + $0x28] sm:$0xff]
    %v3513 = vld [vmem:[#allocation7 + $0x30] sm:$0xff]
    %v3514 = vld [vmem:[#allocation7 + $0x38] sm:$0xff]
    %v3515 = vld [vmem:[#allocation7 + $0x40] sm:$0xff]
    %v3516 = vld [vmem:[#allocation7 + $0x48] sm:$0xff]
    %v3517 = vld [vmem:[#allocation7 + $0x50] sm:$0xff]
    %v3518 = vld [vmem:[#allocation7 + $0x58] sm:$0xff]
    %v3519 = vld [vmem:[#allocation7 + $0x60] sm:$0xff]
    %v3520 = vld [vmem:[#allocation7 + $0x68] sm:$0xff]
    %v3521 = vld [vmem:[#allocation7 + $0x70] sm:$0xff]
    %v3522 = vld [vmem:[#allocation7 + $0x78] sm:$0xff]
    %v3523 = vld [vmem:[#allocation7 + $0x80] sm:$0xff]
    %v3524 = vld [vmem:[#allocation7 + $0x88] sm:$0xff]
    %v3525 = vld [vmem:[#allocation7 + $0x90] sm:$0xff]
    %v3526 = vld [vmem:[#allocation7 + $0x98] sm:$0xff]
    %v3527 = vld [vmem:[#allocation7 + $0xa0] sm:$0xff]
    %v3528 = vld [vmem:[#allocation7 + $0xa8] sm:$0xff]
    %v3529 = vld [vmem:[#allocation7 + $0xb0] sm:$0xff]
    %v3530 = vld [vmem:[#allocation7 + $0xb8] sm:$0xff]
    %v3531 = vld [vmem:[#allocation7 + $0xc0] sm:$0xff]
    %v3532 = vld [vmem:[#allocation7 + $0xc8] sm:$0xff]
    %v3533 = vld [vmem:[#allocation7 + $0xd0] sm:$0xff]
    %v3534 = vld [vmem:[#allocation7 + $0xd8] sm:$0xff]
    %v3535 = vld [vmem:[#allocation7 + $0xe0] sm:$0xff]
    %v3536 = vld [vmem:[#allocation7 + $0xe8] sm:$0xff]
    %v3537 = vld [vmem:[#allocation7 + $0xf0] sm:$0xff]
    %v3538 = vld [vmem:[#allocation7 + $0xf8] sm:$0xff]
    %v3571 = vunpack.c.l.b16 %v3507
    %v3572 = vunpack.c.h.b16 %v3507
    %v3573 = vunpack.c.l.b16 %v3508
    %v3574 = vunpack.c.h.b16 %v3508
    %v3575 = vunpack.c.l.b16 %v3509
    %v3576 = vunpack.c.h.b16 %v3509
    %v3577 = vunpack.c.l.b16 %v3510
    %v3578 = vunpack.c.h.b16 %v3510
    %v3579 = vunpack.c.l.b16 %v3511
    %v3580 = vunpack.c.h.b16 %v3511
    %v3581 = vunpack.c.l.b16 %v3512
    %v3582 = vunpack.c.h.b16 %v3512
    %v3583 = vunpack.c.l.b16 %v3513
    %v3584 = vunpack.c.h.b16 %v3513
    %v3585 = vunpack.c.l.b16 %v3514
    %v3586 = vunpack.c.h.b16 %v3514
    %v3587 = vunpack.c.l.b16 %v3515
    %v3588 = vunpack.c.h.b16 %v3515
    %v3589 = vunpack.c.l.b16 %v3516
    %v3590 = vunpack.c.h.b16 %v3516
    %v3591 = vunpack.c.l.b16 %v3517
    %v3592 = vunpack.c.h.b16 %v3517
    %v3593 = vunpack.c.l.b16 %v3518
    %v3594 = vunpack.c.h.b16 %v3518
    %v3595 = vunpack.c.l.b16 %v3519
    %v3596 = vunpack.c.h.b16 %v3519
    %v3597 = vunpack.c.l.b16 %v3520
    %v3598 = vunpack.c.h.b16 %v3520
    %v3599 = vunpack.c.l.b16 %v3521
    %v3600 = vunpack.c.h.b16 %v3521
    %v3601 = vunpack.c.l.b16 %v3522
    %v3602 = vunpack.c.h.b16 %v3522
    %v3603 = vunpack.c.l.b16 %v3523
    %v3604 = vunpack.c.h.b16 %v3523
    %v3605 = vunpack.c.l.b16 %v3524
    %v3606 = vunpack.c.h.b16 %v3524
    %v3607 = vunpack.c.l.b16 %v3525
    %v3608 = vunpack.c.h.b16 %v3525
    %v3609 = vunpack.c.l.b16 %v3526
    %v3610 = vunpack.c.h.b16 %v3526
    %v3611 = vunpack.c.l.b16 %v3527
    %v3612 = vunpack.c.h.b16 %v3527
    %v3613 = vunpack.c.l.b16 %v3528
    %v3614 = vunpack.c.h.b16 %v3528
    %v3615 = vunpack.c.l.b16 %v3529
    %v3616 = vunpack.c.h.b16 %v3529
    %v3617 = vunpack.c.l.b16 %v3530
    %v3618 = vunpack.c.h.b16 %v3530
    %v3619 = vunpack.c.l.b16 %v3531
    %v3620 = vunpack.c.h.b16 %v3531
    %v3621 = vunpack.c.l.b16 %v3532
    %v3622 = vunpack.c.h.b16 %v3532
    %v3623 = vunpack.c.l.b16 %v3533
    %v3624 = vunpack.c.h.b16 %v3533
    %v3625 = vunpack.c.l.b16 %v3534
    %v3626 = vunpack.c.h.b16 %v3534
    %v3627 = vunpack.c.l.b16 %v3535
    %v3628 = vunpack.c.h.b16 %v3535
    %v3629 = vunpack.c.l.b16 %v3536
    %v3630 = vunpack.c.h.b16 %v3536
    %v3631 = vunpack.c.l.b16 %v3537
    %v3632 = vunpack.c.h.b16 %v3537
    %v3633 = vunpack.c.l.b16 %v3538
    %v3634 = vunpack.c.h.b16 %v3538
    %v3635 = vpack.c.b16 %v3575, %v3571
    %v3636 = vpack.c.b16 %v3576, %v3572
    %v3637 = vpack.c.b16 %v3577, %v3573
    %v3638 = vpack.c.b16 %v3578, %v3574
    %v3639 = vpack.c.b16 %v3583, %v3579
    %v3640 = vpack.c.b16 %v3584, %v3580
    %v3641 = vpack.c.b16 %v3585, %v3581
    %v3642 = vpack.c.b16 %v3586, %v3582
    %v3643 = vpack.c.b16 %v3591, %v3587
    %v3644 = vpack.c.b16 %v3592, %v3588
    %v3645 = vpack.c.b16 %v3593, %v3589
    %v3646 = vpack.c.b16 %v3594, %v3590
    %v3647 = vpack.c.b16 %v3599, %v3595
    %v3648 = vpack.c.b16 %v3600, %v3596
    %v3649 = vpack.c.b16 %v3601, %v3597
    %v3650 = vpack.c.b16 %v3602, %v3598
    %v3651 = vpack.c.b16 %v3607, %v3603
    %v3652 = vpack.c.b16 %v3608, %v3604
    %v3653 = vpack.c.b16 %v3609, %v3605
    %v3654 = vpack.c.b16 %v3610, %v3606
    %v3655 = vpack.c.b16 %v3615, %v3611
    %v3656 = vpack.c.b16 %v3616, %v3612
    %v3657 = vpack.c.b16 %v3617, %v3613
    %v3658 = vpack.c.b16 %v3618, %v3614
    %v3659 = vpack.c.b16 %v3623, %v3619
    %v3660 = vpack.c.b16 %v3624, %v3620
    %v3661 = vpack.c.b16 %v3625, %v3621
    %v3662 = vpack.c.b16 %v3626, %v3622
    %v3663 = vpack.c.b16 %v3631, %v3627
    %v3664 = vpack.c.b16 %v3632, %v3628
    %v3665 = vpack.c.b16 %v3633, %v3629
    %v3666 = vpack.c.b16 %v3634, %v3630
    %3699 = vmatprep.subr.bf16.mxu0 %v3636
    %3700 = vmatpush1.bf16.msra.mxu0 %v3635
    %3701 = vmatprep.subr.bf16.mxu0 %v3640
    %3702 = vmatpush1.bf16.msra.mxu0 %v3639
    %3703 = vmatprep.subr.bf16.mxu0 %v3644
    %3704 = vmatpush1.bf16.msra.mxu0 %v3643
    %3705 = vmatprep.subr.bf16.mxu0 %v3648
    %3706 = vmatpush1.bf16.msra.mxu0 %v3647
    %3707 = vmatprep.subr.bf16.mxu0 %v3652
    %3708 = vmatpush1.bf16.msra.mxu0 %v3651
    %3709 = vmatprep.subr.bf16.mxu0 %v3656
    %3710 = vmatpush1.bf16.msra.mxu0 %v3655
    %3711 = vmatprep.subr.bf16.mxu0 %v3660
    %3712 = vmatpush1.bf16.msra.mxu0 %v3659
    %3713 = vmatprep.subr.bf16.mxu0 %v3664
    %3714 = vmatpush1.bf16.msra.mxu0 %v3663
    %3715 = vmatprep.subr.bf16.mxu0 0
    %3716 = vmatpush1.bf16.msra.mxu0 0
    %3717 = vmatprep.subr.bf16.mxu0 0
    %3718 = vmatpush1.bf16.msra.mxu0 0
    %3719 = vmatprep.subr.bf16.mxu0 0
    %3720 = vmatpush1.bf16.msra.mxu0 0
    %3721 = vmatprep.subr.bf16.mxu0 0
    %3722 = vmatpush1.bf16.msra.mxu0 0
    %3723 = vmatprep.subr.bf16.mxu0 0
    %3724 = vmatpush1.bf16.msra.mxu0 0
    %3725 = vmatprep.subr.bf16.mxu0 0
    %3726 = vmatpush1.bf16.msra.mxu0 0
    %3727 = vmatprep.subr.bf16.mxu0 0
    %3728 = vmatpush1.bf16.msra.mxu0 0
    %3729 = vmatprep.subr.bf16.mxu0 0
    %3730 = vmatpush1.bf16.msra.mxu0 0
    %3731 = vmatprep.mubr.bf16.mxu0 0
    %3732 = vmatmul.mubr.bf16.gmra.mrb[0].mxu0 %v3506
    %v3733 = vpop.f32.mrb[0].mxu0
    %v3734 = vadd.f32 0.0, %v3733
    %v3735 = vpop.f32.mrb[0].mxu0
    %v3736 = vadd.f32 0.0, %v3735
    %v3737 = vpop.f32.mrb[0].mxu0
    %v3738 = vpop.f32.mrb[0].mxu0
    %3739 = vdwg.mxu0
    %3740 = vmatprep.subr.bf16.mxu0 %v3638
    %3741 = vmatpush1.bf16.msra.mxu0 %v3637
    %3742 = vmatprep.subr.bf16.mxu0 %v3642
    %3743 = vmatpush1.bf16.msra.mxu0 %v3641
    %3744 = vmatprep.subr.bf16.mxu0 %v3646
    %3745 = vmatpush1.bf16.msra.mxu0 %v3645
    %3746 = vmatprep.subr.bf16.mxu0 %v3650
    %3747 = vmatpush1.bf16.msra.mxu0 %v3649
    %3748 = vmatprep.subr.bf16.mxu0 %v3654
    %3749 = vmatpush1.bf16.msra.mxu0 %v3653
    %3750 = vmatprep.subr.bf16.mxu0 %v3658
    %3751 = vmatpush1.bf16.msra.mxu0 %v3657
    %3752 = vmatprep.subr.bf16.mxu0 %v3662
    %3753 = vmatpush1.bf16.msra.mxu0 %v3661
    %3754 = vmatprep.subr.bf16.mxu0 %v3666
    %3755 = vmatpush1.bf16.msra.mxu0 %v3665
    %3756 = vmatprep.subr.bf16.mxu0 0
    %3757 = vmatpush1.bf16.msra.mxu0 0
    %3758 = vmatprep.subr.bf16.mxu0 0
    %3759 = vmatpush1.bf16.msra.mxu0 0
    %3760 = vmatprep.subr.bf16.mxu0 0
    %3761 = vmatpush1.bf16.msra.mxu0 0
    %3762 = vmatprep.subr.bf16.mxu0 0
    %3763 = vmatpush1.bf16.msra.mxu0 0
    %3764 = vmatprep.subr.bf16.mxu0 0
    %3765 = vmatpush1.bf16.msra.mxu0 0
    %3766 = vmatprep.subr.bf16.mxu0 0
    %3767 = vmatpush1.bf16.msra.mxu0 0
    %3768 = vmatprep.subr.bf16.mxu0 0
    %3769 = vmatpush1.bf16.msra.mxu0 0
    %3770 = vmatprep.subr.bf16.mxu0 0
    %3771 = vmatpush1.bf16.msra.mxu0 0
    %3772 = vmatprep.mubr.bf16.mxu0 0
    %3773 = vmatmul.mubr.bf16.gmra.mrb[0].mxu0 %v3506
    %v3774 = vpop.f32.mrb[0].mxu0
    %v3775 = vadd.f32 0.0, %v3774
    %v3776 = vpop.f32.mrb[0].mxu0
    %v3777 = vadd.f32 0.0, %v3776
    %v3778 = vpop.f32.mrb[0].mxu0
    %v3779 = vpop.f32.mrb[0].mxu0
    %3780 = vdwg.mxu0
    %v3781 = vadd.f32 %v3223, %v3734
    %v3782 = vadd.f32 %v3224, %v3736
    %v3783 = vadd.f32 %v3225, %v3775
    %v3784 = vadd.f32 %v3226, %v3777
    %v3785 = vxor.u32 %v3502, 2147483648
    %v3786 = vmul.f32 %v3785, 1.442695
    %v3787 = vpow.pop %v3786
    %v3788 = vadd.f32 %v3787, 1.0
    %v3789 = vrcp.pop %v3788
    %v3790 = vmul.f32 1.0, %v3789
    %v3791 = vtanh.pop %v3504
    %v3792 = vxor.u32 %v3505, 2147483648
    %v3793 = vmul.f32 %v3792, 1.442695
    %v3794 = vpow.pop %v3793
    %v3795 = vadd.f32 %v3794, 1.0
    %v3796 = vrcp.pop %v3795
    %v3797 = vmul.f32 1.0, %v3796
    %v3798 = vxor.u32 %v3503, 2147483648
    %v3799 = vmul.f32 %v3798, 1.442695
    %v3800 = vpow.pop %v3799
    %v3801 = vadd.f32 %v3800, 1.0
    %v3802 = vrcp.pop %v3801
    %v3803 = vmul.f32 1.0, %v3802
    %v3804 = vmul.f32 %v3803, %v3188
    %v3805 = vmul.f32 %v3790, %v3791
    %v3806 = vadd.f32 %v3804, %v3805
    %v3807 = vtanh.pop %v3806
    %v3808 = vmul.f32 %v3797, %v3807
    %v3809 = vxor.u32 %v3781, 2147483648
    %v3810 = vmul.f32 %v3809, 1.442695
    %v3811 = vpow.pop %v3810
    %v3812 = vadd.f32 %v3811, 1.0
    %v3813 = vrcp.pop %v3812
    %v3814 = vmul.f32 1.0, %v3813
    %v3815 = vtanh.pop %v3783
    %v3816 = vxor.u32 %v3784, 2147483648
    %v3817 = vmul.f32 %v3816, 1.442695
    %v3818 = vpow.pop %v3817
    %v3819 = vadd.f32 %v3818, 1.0
    %v3820 = vrcp.pop %v3819
    %v3821 = vmul.f32 1.0, %v3820
    %v3822 = vxor.u32 %v3782, 2147483648
    %v3823 = vmul.f32 %v3822, 1.442695
    %v3824 = vpow.pop %v3823
    %v3825 = vadd.f32 %v3824, 1.0
    %v3826 = vrcp.pop %v3825
    %v3827 = vmul.f32 1.0, %v3826
    %v3828 = vmul.f32 %v3827, %v3212
    %v3829 = vmul.f32 %v3814, %v3815
    %v3830 = vadd.f32 %v3828, %v3829
    %v3831 = vtanh.pop %v3830
    %v3832 = vmul.f32 %v3821, %v3831
    %s3833 = scalar_lea.vmem [#allocation2], 40
    %3834 = vst [vmem:[%s3833] sm:$0xff] %v3808
    %s3835 = scalar_lea.vmem [#allocation3], 16
    %3836 = vst [vmem:[%s3835] sm:$0xff] %v3832
    %v3837 = vld [vmem:[#allocation4 + $0x180] sm:$0xff]
    %v3838 = vld [vmem:[#allocation4 + $0x188] sm:$0xff]
    %v3839 = vld [vmem:[#allocation4 + $0x190] sm:$0xff]
    %v3840 = vld [vmem:[#allocation4 + $0x198] sm:$0xff]
    %v3841 = vld [vmem:[#allocation4 + $0x60] sm:$0xff]
    %v3842 = vld [vmem:[#allocation4 + $0x68] sm:$0xff]
    %v3843 = vld [vmem:[#allocation4 + $0x70] sm:$0xff]
    %v3844 = vld [vmem:[#allocation4 + $0x78] sm:$0xff]
    %v3845 = vpack.c.bf16 %v3808, %v3808
    %v3846 = vld [vmem:[#allocation5] sm:$0xff]
    %v3847 = vld [vmem:[#allocation5 + $0x8] sm:$0xff]
    %v3848 = vld [vmem:[#allocation5 + $0x10] sm:$0xff]
    %v3849 = vld [vmem:[#allocation5 + $0x18] sm:$0xff]
    %v3850 = vld [vmem:[#allocation5 + $0x20] sm:$0xff]
    %v3851 = vld [vmem:[#allocation5 + $0x28] sm:$0xff]
    %v3852 = vld [vmem:[#allocation5 + $0x30] sm:$0xff]
    %v3853 = vld [vmem:[#allocation5 + $0x38] sm:$0xff]
    %v3854 = vld [vmem:[#allocation5 + $0x40] sm:$0xff]
    %v3855 = vld [vmem:[#allocation5 + $0x48] sm:$0xff]
    %v3856 = vld [vmem:[#allocation5 + $0x50] sm:$0xff]
    %v3857 = vld [vmem:[#allocation5 + $0x58] sm:$0xff]
    %v3858 = vld [vmem:[#allocation5 + $0x60] sm:$0xff]
    %v3859 = vld [vmem:[#allocation5 + $0x68] sm:$0xff]
    %v3860 = vld [vmem:[#allocation5 + $0x70] sm:$0xff]
    %v3861 = vld [vmem:[#allocation5 + $0x78] sm:$0xff]
    %v3862 = vld [vmem:[#allocation5 + $0x80] sm:$0xff]
    %v3863 = vld [vmem:[#allocation5 + $0x88] sm:$0xff]
    %v3864 = vld [vmem:[#allocation5 + $0x90] sm:$0xff]
    %v3865 = vld [vmem:[#allocation5 + $0x98] sm:$0xff]
    %v3866 = vld [vmem:[#allocation5 + $0xa0] sm:$0xff]
    %v3867 = vld [vmem:[#allocation5 + $0xa8] sm:$0xff]
    %v3868 = vld [vmem:[#allocation5 + $0xb0] sm:$0xff]
    %v3869 = vld [vmem:[#allocation5 + $0xb8] sm:$0xff]
    %v3870 = vld [vmem:[#allocation5 + $0xc0] sm:$0xff]
    %v3871 = vld [vmem:[#allocation5 + $0xc8] sm:$0xff]
    %v3872 = vld [vmem:[#allocation5 + $0xd0] sm:$0xff]
    %v3873 = vld [vmem:[#allocation5 + $0xd8] sm:$0xff]
    %v3874 = vld [vmem:[#allocation5 + $0xe0] sm:$0xff]
    %v3875 = vld [vmem:[#allocation5 + $0xe8] sm:$0xff]
    %v3876 = vld [vmem:[#allocation5 + $0xf0] sm:$0xff]
    %v3877 = vld [vmem:[#allocation5 + $0xf8] sm:$0xff]
    %v3910 = vunpack.c.l.b16 %v3846
    %v3911 = vunpack.c.h.b16 %v3846
    %v3912 = vunpack.c.l.b16 %v3847
    %v3913 = vunpack.c.h.b16 %v3847
    %v3914 = vunpack.c.l.b16 %v3848
    %v3915 = vunpack.c.h.b16 %v3848
    %v3916 = vunpack.c.l.b16 %v3849
    %v3917 = vunpack.c.h.b16 %v3849
    %v3918 = vunpack.c.l.b16 %v3850
    %v3919 = vunpack.c.h.b16 %v3850
    %v3920 = vunpack.c.l.b16 %v3851
    %v3921 = vunpack.c.h.b16 %v3851
    %v3922 = vunpack.c.l.b16 %v3852
    %v3923 = vunpack.c.h.b16 %v3852
    %v3924 = vunpack.c.l.b16 %v3853
    %v3925 = vunpack.c.h.b16 %v3853
    %v3926 = vunpack.c.l.b16 %v3854
    %v3927 = vunpack.c.h.b16 %v3854
    %v3928 = vunpack.c.l.b16 %v3855
    %v3929 = vunpack.c.h.b16 %v3855
    %v3930 = vunpack.c.l.b16 %v3856
    %v3931 = vunpack.c.h.b16 %v3856
    %v3932 = vunpack.c.l.b16 %v3857
    %v3933 = vunpack.c.h.b16 %v3857
    %v3934 = vunpack.c.l.b16 %v3858
    %v3935 = vunpack.c.h.b16 %v3858
    %v3936 = vunpack.c.l.b16 %v3859
    %v3937 = vunpack.c.h.b16 %v3859
    %v3938 = vunpack.c.l.b16 %v3860
    %v3939 = vunpack.c.h.b16 %v3860
    %v3940 = vunpack.c.l.b16 %v3861
    %v3941 = vunpack.c.h.b16 %v3861
    %v3942 = vunpack.c.l.b16 %v3862
    %v3943 = vunpack.c.h.b16 %v3862
    %v3944 = vunpack.c.l.b16 %v3863
    %v3945 = vunpack.c.h.b16 %v3863
    %v3946 = vunpack.c.l.b16 %v3864
    %v3947 = vunpack.c.h.b16 %v3864
    %v3948 = vunpack.c.l.b16 %v3865
    %v3949 = vunpack.c.h.b16 %v3865
    %v3950 = vunpack.c.l.b16 %v3866
    %v3951 = vunpack.c.h.b16 %v3866
    %v3952 = vunpack.c.l.b16 %v3867
    %v3953 = vunpack.c.h.b16 %v3867
    %v3954 = vunpack.c.l.b16 %v3868
    %v3955 = vunpack.c.h.b16 %v3868
    %v3956 = vunpack.c.l.b16 %v3869
    %v3957 = vunpack.c.h.b16 %v3869
    %v3958 = vunpack.c.l.b16 %v3870
    %v3959 = vunpack.c.h.b16 %v3870
    %v3960 = vunpack.c.l.b16 %v3871
    %v3961 = vunpack.c.h.b16 %v3871
    %v3962 = vunpack.c.l.b16 %v3872
    %v3963 = vunpack.c.h.b16 %v3872
    %v3964 = vunpack.c.l.b16 %v3873
    %v3965 = vunpack.c.h.b16 %v3873
    %v3966 = vunpack.c.l.b16 %v3874
    %v3967 = vunpack.c.h.b16 %v3874
    %v3968 = vunpack.c.l.b16 %v3875
    %v3969 = vunpack.c.h.b16 %v3875
    %v3970 = vunpack.c.l.b16 %v3876
    %v3971 = vunpack.c.h.b16 %v3876
    %v3972 = vunpack.c.l.b16 %v3877
    %v3973 = vunpack.c.h.b16 %v3877
    %v3974 = vpack.c.b16 %v3914, %v3910
    %v3975 = vpack.c.b16 %v3915, %v3911
    %v3976 = vpack.c.b16 %v3916, %v3912
    %v3977 = vpack.c.b16 %v3917, %v3913
    %v3978 = vpack.c.b16 %v3922, %v3918
    %v3979 = vpack.c.b16 %v3923, %v3919
    %v3980 = vpack.c.b16 %v3924, %v3920
    %v3981 = vpack.c.b16 %v3925, %v3921
    %v3982 = vpack.c.b16 %v3930, %v3926
    %v3983 = vpack.c.b16 %v3931, %v3927
    %v3984 = vpack.c.b16 %v3932, %v3928
    %v3985 = vpack.c.b16 %v3933, %v3929
    %v3986 = vpack.c.b16 %v3938, %v3934
    %v3987 = vpack.c.b16 %v3939, %v3935
    %v3988 = vpack.c.b16 %v3940, %v3936
    %v3989 = vpack.c.b16 %v3941, %v3937
    %v3990 = vpack.c.b16 %v3946, %v3942
    %v3991 = vpack.c.b16 %v3947, %v3943
    %v3992 = vpack.c.b16 %v3948, %v3944
    %v3993 = vpack.c.b16 %v3949, %v3945
    %v3994 = vpack.c.b16 %v3954, %v3950
    %v3995 = vpack.c.b16 %v3955, %v3951
    %v3996 = vpack.c.b16 %v3956, %v3952
    %v3997 = vpack.c.b16 %v3957, %v3953
    %v3998 = vpack.c.b16 %v3962, %v3958
    %v3999 = vpack.c.b16 %v3963, %v3959
    %v4000 = vpack.c.b16 %v3964, %v3960
    %v4001 = vpack.c.b16 %v3965, %v3961
    %v4002 = vpack.c.b16 %v3970, %v3966
    %v4003 = vpack.c.b16 %v3971, %v3967
    %v4004 = vpack.c.b16 %v3972, %v3968
    %v4005 = vpack.c.b16 %v3973, %v3969
    %4038 = vmatprep.subr.bf16.mxu0 %v3975
    %4039 = vmatpush1.bf16.msra.mxu0 %v3974
    %4040 = vmatprep.subr.bf16.mxu0 %v3979
    %4041 = vmatpush1.bf16.msra.mxu0 %v3978
    %4042 = vmatprep.subr.bf16.mxu0 %v3983
    %4043 = vmatpush1.bf16.msra.mxu0 %v3982
    %4044 = vmatprep.subr.bf16.mxu0 %v3987
    %4045 = vmatpush1.bf16.msra.mxu0 %v3986
    %4046 = vmatprep.subr.bf16.mxu0 %v3991
    %4047 = vmatpush1.bf16.msra.mxu0 %v3990
    %4048 = vmatprep.subr.bf16.mxu0 %v3995
    %4049 = vmatpush1.bf16.msra.mxu0 %v3994
    %4050 = vmatprep.subr.bf16.mxu0 %v3999
    %4051 = vmatpush1.bf16.msra.mxu0 %v3998
    %4052 = vmatprep.subr.bf16.mxu0 %v4003
    %4053 = vmatpush1.bf16.msra.mxu0 %v4002
    %4054 = vmatprep.subr.bf16.mxu0 0
    %4055 = vmatpush1.bf16.msra.mxu0 0
    %4056 = vmatprep.subr.bf16.mxu0 0
    %4057 = vmatpush1.bf16.msra.mxu0 0
    %4058 = vmatprep.subr.bf16.mxu0 0
    %4059 = vmatpush1.bf16.msra.mxu0 0
    %4060 = vmatprep.subr.bf16.mxu0 0
    %4061 = vmatpush1.bf16.msra.mxu0 0
    %4062 = vmatprep.subr.bf16.mxu0 0
    %4063 = vmatpush1.bf16.msra.mxu0 0
    %4064 = vmatprep.subr.bf16.mxu0 0
    %4065 = vmatpush1.bf16.msra.mxu0 0
    %4066 = vmatprep.subr.bf16.mxu0 0
    %4067 = vmatpush1.bf16.msra.mxu0 0
    %4068 = vmatprep.subr.bf16.mxu0 0
    %4069 = vmatpush1.bf16.msra.mxu0 0
    %4070 = vmatprep.mubr.bf16.mxu0 0
    %4071 = vmatmul.mubr.bf16.gmra.mrb[0].mxu0 %v3845
    %v4072 = vpop.f32.mrb[0].mxu0
    %v4073 = vadd.f32 0.0, %v4072
    %v4074 = vpop.f32.mrb[0].mxu0
    %v4075 = vadd.f32 0.0, %v4074
    %v4076 = vpop.f32.mrb[0].mxu0
    %v4077 = vpop.f32.mrb[0].mxu0
    %4078 = vdwg.mxu0
    %4079 = vmatprep.subr.bf16.mxu0 %v3977
    %4080 = vmatpush1.bf16.msra.mxu0 %v3976
    %4081 = vmatprep.subr.bf16.mxu0 %v3981
    %4082 = vmatpush1.bf16.msra.mxu0 %v3980
    %4083 = vmatprep.subr.bf16.mxu0 %v3985
    %4084 = vmatpush1.bf16.msra.mxu0 %v3984
    %4085 = vmatprep.subr.bf16.mxu0 %v3989
    %4086 = vmatpush1.bf16.msra.mxu0 %v3988
    %4087 = vmatprep.subr.bf16.mxu0 %v3993
    %4088 = vmatpush1.bf16.msra.mxu0 %v3992
    %4089 = vmatprep.subr.bf16.mxu0 %v3997
    %4090 = vmatpush1.bf16.msra.mxu0 %v3996
    %4091 = vmatprep.subr.bf16.mxu0 %v4001
    %4092 = vmatpush1.bf16.msra.mxu0 %v4000
    %4093 = vmatprep.subr.bf16.mxu0 %v4005
    %4094 = vmatpush1.bf16.msra.mxu0 %v4004
    %4095 = vmatprep.subr.bf16.mxu0 0
    %4096 = vmatpush1.bf16.msra.mxu0 0
    %4097 = vmatprep.subr.bf16.mxu0 0
    %4098 = vmatpush1.bf16.msra.mxu0 0
    %4099 = vmatprep.subr.bf16.mxu0 0
    %4100 = vmatpush1.bf16.msra.mxu0 0
    %4101 = vmatprep.subr.bf16.mxu0 0
    %4102 = vmatpush1.bf16.msra.mxu0 0
    %4103 = vmatprep.subr.bf16.mxu0 0
    %4104 = vmatpush1.bf16.msra.mxu0 0
    %4105 = vmatprep.subr.bf16.mxu0 0
    %4106 = vmatpush1.bf16.msra.mxu0 0
    %4107 = vmatprep.subr.bf16.mxu0 0
    %4108 = vmatpush1.bf16.msra.mxu0 0
    %4109 = vmatprep.subr.bf16.mxu0 0
    %4110 = vmatpush1.bf16.msra.mxu0 0
    %4111 = vmatprep.mubr.bf16.mxu0 0
    %4112 = vmatmul.mubr.bf16.gmra.mrb[0].mxu0 %v3845
    %v4113 = vpop.f32.mrb[0].mxu0
    %v4114 = vadd.f32 0.0, %v4113
    %v4115 = vpop.f32.mrb[0].mxu0
    %v4116 = vadd.f32 0.0, %v4115
    %v4117 = vpop.f32.mrb[0].mxu0
    %v4118 = vpop.f32.mrb[0].mxu0
    %4119 = vdwg.mxu0
    %v4120 = vadd.f32 %v3837, %v4073
    %v4121 = vadd.f32 %v3838, %v4075
    %v4122 = vadd.f32 %v3839, %v4114
    %v4123 = vadd.f32 %v3840, %v4116
    %v4124 = vpack.c.bf16 %v3832, %v3832
    %v4125 = vld [vmem:[#allocation7] sm:$0xff]
    %v4126 = vld [vmem:[#allocation7 + $0x8] sm:$0xff]
    %v4127 = vld [vmem:[#allocation7 + $0x10] sm:$0xff]
    %v4128 = vld [vmem:[#allocation7 + $0x18] sm:$0xff]
    %v4129 = vld [vmem:[#allocation7 + $0x20] sm:$0xff]
    %v4130 = vld [vmem:[#allocation7 + $0x28] sm:$0xff]
    %v4131 = vld [vmem:[#allocation7 + $0x30] sm:$0xff]
    %v4132 = vld [vmem:[#allocation7 + $0x38] sm:$0xff]
    %v4133 = vld [vmem:[#allocation7 + $0x40] sm:$0xff]
    %v4134 = vld [vmem:[#allocation7 + $0x48] sm:$0xff]
    %v4135 = vld [vmem:[#allocation7 + $0x50] sm:$0xff]
    %v4136 = vld [vmem:[#allocation7 + $0x58] sm:$0xff]
    %v4137 = vld [vmem:[#allocation7 + $0x60] sm:$0xff]
    %v4138 = vld [vmem:[#allocation7 + $0x68] sm:$0xff]
    %v4139 = vld [vmem:[#allocation7 + $0x70] sm:$0xff]
    %v4140 = vld [vmem:[#allocation7 + $0x78] sm:$0xff]
    %v4141 = vld [vmem:[#allocation7 + $0x80] sm:$0xff]
    %v4142 = vld [vmem:[#allocation7 + $0x88] sm:$0xff]
    %v4143 = vld [vmem:[#allocation7 + $0x90] sm:$0xff]
    %v4144 = vld [vmem:[#allocation7 + $0x98] sm:$0xff]
    %v4145 = vld [vmem:[#allocation7 + $0xa0] sm:$0xff]
    %v4146 = vld [vmem:[#allocation7 + $0xa8] sm:$0xff]
    %v4147 = vld [vmem:[#allocation7 + $0xb0] sm:$0xff]
    %v4148 = vld [vmem:[#allocation7 + $0xb8] sm:$0xff]
    %v4149 = vld [vmem:[#allocation7 + $0xc0] sm:$0xff]
    %v4150 = vld [vmem:[#allocation7 + $0xc8] sm:$0xff]
    %v4151 = vld [vmem:[#allocation7 + $0xd0] sm:$0xff]
    %v4152 = vld [vmem:[#allocation7 + $0xd8] sm:$0xff]
    %v4153 = vld [vmem:[#allocation7 + $0xe0] sm:$0xff]
    %v4154 = vld [vmem:[#allocation7 + $0xe8] sm:$0xff]
    %v4155 = vld [vmem:[#allocation7 + $0xf0] sm:$0xff]
    %v4156 = vld [vmem:[#allocation7 + $0xf8] sm:$0xff]
    %v4189 = vunpack.c.l.b16 %v4125
    %v4190 = vunpack.c.h.b16 %v4125
    %v4191 = vunpack.c.l.b16 %v4126
    %v4192 = vunpack.c.h.b16 %v4126
    %v4193 = vunpack.c.l.b16 %v4127
    %v4194 = vunpack.c.h.b16 %v4127
    %v4195 = vunpack.c.l.b16 %v4128
    %v4196 = vunpack.c.h.b16 %v4128
    %v4197 = vunpack.c.l.b16 %v4129
    %v4198 = vunpack.c.h.b16 %v4129
    %v4199 = vunpack.c.l.b16 %v4130
    %v4200 = vunpack.c.h.b16 %v4130
    %v4201 = vunpack.c.l.b16 %v4131
    %v4202 = vunpack.c.h.b16 %v4131
    %v4203 = vunpack.c.l.b16 %v4132
    %v4204 = vunpack.c.h.b16 %v4132
    %v4205 = vunpack.c.l.b16 %v4133
    %v4206 = vunpack.c.h.b16 %v4133
    %v4207 = vunpack.c.l.b16 %v4134
    %v4208 = vunpack.c.h.b16 %v4134
    %v4209 = vunpack.c.l.b16 %v4135
    %v4210 = vunpack.c.h.b16 %v4135
    %v4211 = vunpack.c.l.b16 %v4136
    %v4212 = vunpack.c.h.b16 %v4136
    %v4213 = vunpack.c.l.b16 %v4137
    %v4214 = vunpack.c.h.b16 %v4137
    %v4215 = vunpack.c.l.b16 %v4138
    %v4216 = vunpack.c.h.b16 %v4138
    %v4217 = vunpack.c.l.b16 %v4139
    %v4218 = vunpack.c.h.b16 %v4139
    %v4219 = vunpack.c.l.b16 %v4140
    %v4220 = vunpack.c.h.b16 %v4140
    %v4221 = vunpack.c.l.b16 %v4141
    %v4222 = vunpack.c.h.b16 %v4141
    %v4223 = vunpack.c.l.b16 %v4142
    %v4224 = vunpack.c.h.b16 %v4142
    %v4225 = vunpack.c.l.b16 %v4143
    %v4226 = vunpack.c.h.b16 %v4143
    %v4227 = vunpack.c.l.b16 %v4144
    %v4228 = vunpack.c.h.b16 %v4144
    %v4229 = vunpack.c.l.b16 %v4145
    %v4230 = vunpack.c.h.b16 %v4145
    %v4231 = vunpack.c.l.b16 %v4146
    %v4232 = vunpack.c.h.b16 %v4146
    %v4233 = vunpack.c.l.b16 %v4147
    %v4234 = vunpack.c.h.b16 %v4147
    %v4235 = vunpack.c.l.b16 %v4148
    %v4236 = vunpack.c.h.b16 %v4148
    %v4237 = vunpack.c.l.b16 %v4149
    %v4238 = vunpack.c.h.b16 %v4149
    %v4239 = vunpack.c.l.b16 %v4150
    %v4240 = vunpack.c.h.b16 %v4150
    %v4241 = vunpack.c.l.b16 %v4151
    %v4242 = vunpack.c.h.b16 %v4151
    %v4243 = vunpack.c.l.b16 %v4152
    %v4244 = vunpack.c.h.b16 %v4152
    %v4245 = vunpack.c.l.b16 %v4153
    %v4246 = vunpack.c.h.b16 %v4153
    %v4247 = vunpack.c.l.b16 %v4154
    %v4248 = vunpack.c.h.b16 %v4154
    %v4249 = vunpack.c.l.b16 %v4155
    %v4250 = vunpack.c.h.b16 %v4155
    %v4251 = vunpack.c.l.b16 %v4156
    %v4252 = vunpack.c.h.b16 %v4156
    %v4253 = vpack.c.b16 %v4193, %v4189
    %v4254 = vpack.c.b16 %v4194, %v4190
    %v4255 = vpack.c.b16 %v4195, %v4191
    %v4256 = vpack.c.b16 %v4196, %v4192
    %v4257 = vpack.c.b16 %v4201, %v4197
    %v4258 = vpack.c.b16 %v4202, %v4198
    %v4259 = vpack.c.b16 %v4203, %v4199
    %v4260 = vpack.c.b16 %v4204, %v4200
    %v4261 = vpack.c.b16 %v4209, %v4205
    %v4262 = vpack.c.b16 %v4210, %v4206
    %v4263 = vpack.c.b16 %v4211, %v4207
    %v4264 = vpack.c.b16 %v4212, %v4208
    %v4265 = vpack.c.b16 %v4217, %v4213
    %v4266 = vpack.c.b16 %v4218, %v4214
    %v4267 = vpack.c.b16 %v4219, %v4215
    %v4268 = vpack.c.b16 %v4220, %v4216
    %v4269 = vpack.c.b16 %v4225, %v4221
    %v4270 = vpack.c.b16 %v4226, %v4222
    %v4271 = vpack.c.b16 %v4227, %v4223
    %v4272 = vpack.c.b16 %v4228, %v4224
    %v4273 = vpack.c.b16 %v4233, %v4229
    %v4274 = vpack.c.b16 %v4234, %v4230
    %v4275 = vpack.c.b16 %v4235, %v4231
    %v4276 = vpack.c.b16 %v4236, %v4232
    %v4277 = vpack.c.b16 %v4241, %v4237
    %v4278 = vpack.c.b16 %v4242, %v4238
    %v4279 = vpack.c.b16 %v4243, %v4239
    %v4280 = vpack.c.b16 %v4244, %v4240
    %v4281 = vpack.c.b16 %v4249, %v4245
    %v4282 = vpack.c.b16 %v4250, %v4246
    %v4283 = vpack.c.b16 %v4251, %v4247
    %v4284 = vpack.c.b16 %v4252, %v4248
    %4317 = vmatprep.subr.bf16.mxu0 %v4254
    %4318 = vmatpush1.bf16.msra.mxu0 %v4253
    %4319 = vmatprep.subr.bf16.mxu0 %v4258
    %4320 = vmatpush1.bf16.msra.mxu0 %v4257
    %4321 = vmatprep.subr.bf16.mxu0 %v4262
    %4322 = vmatpush1.bf16.msra.mxu0 %v4261
    %4323 = vmatprep.subr.bf16.mxu0 %v4266
    %4324 = vmatpush1.bf16.msra.mxu0 %v4265
    %4325 = vmatprep.subr.bf16.mxu0 %v4270
    %4326 = vmatpush1.bf16.msra.mxu0 %v4269
    %4327 = vmatprep.subr.bf16.mxu0 %v4274
    %4328 = vmatpush1.bf16.msra.mxu0 %v4273
    %4329 = vmatprep.subr.bf16.mxu0 %v4278
    %4330 = vmatpush1.bf16.msra.mxu0 %v4277
    %4331 = vmatprep.subr.bf16.mxu0 %v4282
    %4332 = vmatpush1.bf16.msra.mxu0 %v4281
    %4333 = vmatprep.subr.bf16.mxu0 0
    %4334 = vmatpush1.bf16.msra.mxu0 0
    %4335 = vmatprep.subr.bf16.mxu0 0
    %4336 = vmatpush1.bf16.msra.mxu0 0
    %4337 = vmatprep.subr.bf16.mxu0 0
    %4338 = vmatpush1.bf16.msra.mxu0 0
    %4339 = vmatprep.subr.bf16.mxu0 0
    %4340 = vmatpush1.bf16.msra.mxu0 0
    %4341 = vmatprep.subr.bf16.mxu0 0
    %4342 = vmatpush1.bf16.msra.mxu0 0
    %4343 = vmatprep.subr.bf16.mxu0 0
    %4344 = vmatpush1.bf16.msra.mxu0 0
    %4345 = vmatprep.subr.bf16.mxu0 0
    %4346 = vmatpush1.bf16.msra.mxu0 0
    %4347 = vmatprep.subr.bf16.mxu0 0
    %4348 = vmatpush1.bf16.msra.mxu0 0
    %4349 = vmatprep.mubr.bf16.mxu0 0
    %4350 = vmatmul.mubr.bf16.gmra.mrb[0].mxu0 %v4124
    %v4351 = vpop.f32.mrb[0].mxu0
    %v4352 = vadd.f32 0.0, %v4351
    %v4353 = vpop.f32.mrb[0].mxu0
    %v4354 = vadd.f32 0.0, %v4353
    %v4355 = vpop.f32.mrb[0].mxu0
    %v4356 = vpop.f32.mrb[0].mxu0
    %4357 = vdwg.mxu0
    %4358 = vmatprep.subr.bf16.mxu0 %v4256
    %4359 = vmatpush1.bf16.msra.mxu0 %v4255
    %4360 = vmatprep.subr.bf16.mxu0 %v4260
    %4361 = vmatpush1.bf16.msra.mxu0 %v4259
    %4362 = vmatprep.subr.bf16.mxu0 %v4264
    %4363 = vmatpush1.bf16.msra.mxu0 %v4263
    %4364 = vmatprep.subr.bf16.mxu0 %v4268
    %4365 = vmatpush1.bf16.msra.mxu0 %v4267
    %4366 = vmatprep.subr.bf16.mxu0 %v4272
    %4367 = vmatpush1.bf16.msra.mxu0 %v4271
    %4368 = vmatprep.subr.bf16.mxu0 %v4276
    %4369 = vmatpush1.bf16.msra.mxu0 %v4275
    %4370 = vmatprep.subr.bf16.mxu0 %v4280
    %4371 = vmatpush1.bf16.msra.mxu0 %v4279
    %4372 = vmatprep.subr.bf16.mxu0 %v4284
    %4373 = vmatpush1.bf16.msra.mxu0 %v4283
    %4374 = vmatprep.subr.bf16.mxu0 0
    %4375 = vmatpush1.bf16.msra.mxu0 0
    %4376 = vmatprep.subr.bf16.mxu0 0
    %4377 = vmatpush1.bf16.msra.mxu0 0
    %4378 = vmatprep.subr.bf16.mxu0 0
    %4379 = vmatpush1.bf16.msra.mxu0 0
    %4380 = vmatprep.subr.bf16.mxu0 0
    %4381 = vmatpush1.bf16.msra.mxu0 0
    %4382 = vmatprep.subr.bf16.mxu0 0
    %4383 = vmatpush1.bf16.msra.mxu0 0
    %4384 = vmatprep.subr.bf16.mxu0 0
    %4385 = vmatpush1.bf16.msra.mxu0 0
    %4386 = vmatprep.subr.bf16.mxu0 0
    %4387 = vmatpush1.bf16.msra.mxu0 0
    %4388 = vmatprep.subr.bf16.mxu0 0
    %4389 = vmatpush1.bf16.msra.mxu0 0
    %4390 = vmatprep.mubr.bf16.mxu0 0
    %4391 = vmatmul.mubr.bf16.gmra.mrb[0].mxu0 %v4124
    %v4392 = vpop.f32.mrb[0].mxu0
    %v4393 = vadd.f32 0.0, %v4392
    %v4394 = vpop.f32.mrb[0].mxu0
    %v4395 = vadd.f32 0.0, %v4394
    %v4396 = vpop.f32.mrb[0].mxu0
    %v4397 = vpop.f32.mrb[0].mxu0
    %4398 = vdwg.mxu0
    %v4399 = vadd.f32 %v3841, %v4352
    %v4400 = vadd.f32 %v3842, %v4354
    %v4401 = vadd.f32 %v3843, %v4393
    %v4402 = vadd.f32 %v3844, %v4395
    %v4403 = vxor.u32 %v4120, 2147483648
    %v4404 = vmul.f32 %v4403, 1.442695
    %v4405 = vpow.pop %v4404
    %v4406 = vadd.f32 %v4405, 1.0
    %v4407 = vrcp.pop %v4406
    %v4408 = vmul.f32 1.0, %v4407
    %v4409 = vtanh.pop %v4122
    %v4410 = vxor.u32 %v4123, 2147483648
    %v4411 = vmul.f32 %v4410, 1.442695
    %v4412 = vpow.pop %v4411
    %v4413 = vadd.f32 %v4412, 1.0
    %v4414 = vrcp.pop %v4413
    %v4415 = vmul.f32 1.0, %v4414
    %v4416 = vxor.u32 %v4121, 2147483648
    %v4417 = vmul.f32 %v4416, 1.442695
    %v4418 = vpow.pop %v4417
    %v4419 = vadd.f32 %v4418, 1.0
    %v4420 = vrcp.pop %v4419
    %v4421 = vmul.f32 1.0, %v4420
    %v4422 = vmul.f32 %v4421, %v3806
    %v4423 = vmul.f32 %v4408, %v4409
    %v4424 = vadd.f32 %v4422, %v4423
    %v4425 = vtanh.pop %v4424
    %v4426 = vmul.f32 %v4415, %v4425
    %v4427 = vxor.u32 %v4399, 2147483648
    %v4428 = vmul.f32 %v4427, 1.442695
    %v4429 = vpow.pop %v4428
    %v4430 = vadd.f32 %v4429, 1.0
    %v4431 = vrcp.pop %v4430
    %v4432 = vmul.f32 1.0, %v4431
    %v4433 = vtanh.pop %v4401
    %v4434 = vxor.u32 %v4402, 2147483648
    %v4435 = vmul.f32 %v4434, 1.442695
    %v4436 = vpow.pop %v4435
    %v4437 = vadd.f32 %v4436, 1.0
    %v4438 = vrcp.pop %v4437
    %v4439 = vmul.f32 1.0, %v4438
    %v4440 = vxor.u32 %v4400, 2147483648
    %v4441 = vmul.f32 %v4440, 1.442695
    %v4442 = vpow.pop %v4441
    %v4443 = vadd.f32 %v4442, 1.0
    %v4444 = vrcp.pop %v4443
    %v4445 = vmul.f32 1.0, %v4444
    %v4446 = vmul.f32 %v4445, %v3830
    %v4447 = vmul.f32 %v4432, %v4433
    %v4448 = vadd.f32 %v4446, %v4447
    %v4449 = vtanh.pop %v4448
    %v4450 = vmul.f32 %v4439, %v4449
    %s4451 = scalar_lea.vmem [#allocation2], 48
    %4452 = vst [vmem:[%s4451] sm:$0xff] %v4426
    %s4453 = scalar_lea.vmem [#allocation3], 8
    %4454 = vst [vmem:[%s4453] sm:$0xff] %v4450
    %v4455 = vld [vmem:[#allocation4 + $0x1c0] sm:$0xff]
    %v4456 = vld [vmem:[#allocation4 + $0x1c8] sm:$0xff]
    %v4457 = vld [vmem:[#allocation4 + $0x1d0] sm:$0xff]
    %v4458 = vld [vmem:[#allocation4 + $0x1d8] sm:$0xff]
    %v4459 = vld [vmem:[#allocation4 + $0x20] sm:$0xff]
    %v4460 = vld [vmem:[#allocation4 + $0x28] sm:$0xff]
    %v4461 = vld [vmem:[#allocation4 + $0x30] sm:$0xff]
    %v4462 = vld [vmem:[#allocation4 + $0x38] sm:$0xff]
    %v4463 = vpack.c.bf16 %v4426, %v4426
    %v4464 = vld [vmem:[#allocation5] sm:$0xff]
    %v4465 = vld [vmem:[#allocation5 + $0x8] sm:$0xff]
    %v4466 = vld [vmem:[#allocation5 + $0x10] sm:$0xff]
    %v4467 = vld [vmem:[#allocation5 + $0x18] sm:$0xff]
    %v4468 = vld [vmem:[#allocation5 + $0x20] sm:$0xff]
    %v4469 = vld [vmem:[#allocation5 + $0x28] sm:$0xff]
    %v4470 = vld [vmem:[#allocation5 + $0x30] sm:$0xff]
    %v4471 = vld [vmem:[#allocation5 + $0x38] sm:$0xff]
    %v4472 = vld [vmem:[#allocation5 + $0x40] sm:$0xff]
    %v4473 = vld [vmem:[#allocation5 + $0x48] sm:$0xff]
    %v4474 = vld [vmem:[#allocation5 + $0x50] sm:$0xff]
    %v4475 = vld [vmem:[#allocation5 + $0x58] sm:$0xff]
    %v4476 = vld [vmem:[#allocation5 + $0x60] sm:$0xff]
    %v4477 = vld [vmem:[#allocation5 + $0x68] sm:$0xff]
    %v4478 = vld [vmem:[#allocation5 + $0x70] sm:$0xff]
    %v4479 = vld [vmem:[#allocation5 + $0x78] sm:$0xff]
    %v4480 = vld [vmem:[#allocation5 + $0x80] sm:$0xff]
    %v4481 = vld [vmem:[#allocation5 + $0x88] sm:$0xff]
    %v4482 = vld [vmem:[#allocation5 + $0x90] sm:$0xff]
    %v4483 = vld [vmem:[#allocation5 + $0x98] sm:$0xff]
    %v4484 = vld [vmem:[#allocation5 + $0xa0] sm:$0xff]
    %v4485 = vld [vmem:[#allocation5 + $0xa8] sm:$0xff]
    %v4486 = vld [vmem:[#allocation5 + $0xb0] sm:$0xff]
    %v4487 = vld [vmem:[#allocation5 + $0xb8] sm:$0xff]
    %v4488 = vld [vmem:[#allocation5 + $0xc0] sm:$0xff]
    %v4489 = vld [vmem:[#allocation5 + $0xc8] sm:$0xff]
    %v4490 = vld [vmem:[#allocation5 + $0xd0] sm:$0xff]
    %v4491 = vld [vmem:[#allocation5 + $0xd8] sm:$0xff]
    %v4492 = vld [vmem:[#allocation5 + $0xe0] sm:$0xff]
    %v4493 = vld [vmem:[#allocation5 + $0xe8] sm:$0xff]
    %v4494 = vld [vmem:[#allocation5 + $0xf0] sm:$0xff]
    %v4495 = vld [vmem:[#allocation5 + $0xf8] sm:$0xff]
    %v4528 = vunpack.c.l.b16 %v4464
    %v4529 = vunpack.c.h.b16 %v4464
    %v4530 = vunpack.c.l.b16 %v4465
    %v4531 = vunpack.c.h.b16 %v4465
    %v4532 = vunpack.c.l.b16 %v4466
    %v4533 = vunpack.c.h.b16 %v4466
    %v4534 = vunpack.c.l.b16 %v4467
    %v4535 = vunpack.c.h.b16 %v4467
    %v4536 = vunpack.c.l.b16 %v4468
    %v4537 = vunpack.c.h.b16 %v4468
    %v4538 = vunpack.c.l.b16 %v4469
    %v4539 = vunpack.c.h.b16 %v4469
    %v4540 = vunpack.c.l.b16 %v4470
    %v4541 = vunpack.c.h.b16 %v4470
    %v4542 = vunpack.c.l.b16 %v4471
    %v4543 = vunpack.c.h.b16 %v4471
    %v4544 = vunpack.c.l.b16 %v4472
    %v4545 = vunpack.c.h.b16 %v4472
    %v4546 = vunpack.c.l.b16 %v4473
    %v4547 = vunpack.c.h.b16 %v4473
    %v4548 = vunpack.c.l.b16 %v4474
    %v4549 = vunpack.c.h.b16 %v4474
    %v4550 = vunpack.c.l.b16 %v4475
    %v4551 = vunpack.c.h.b16 %v4475
    %v4552 = vunpack.c.l.b16 %v4476
    %v4553 = vunpack.c.h.b16 %v4476
    %v4554 = vunpack.c.l.b16 %v4477
    %v4555 = vunpack.c.h.b16 %v4477
    %v4556 = vunpack.c.l.b16 %v4478
    %v4557 = vunpack.c.h.b16 %v4478
    %v4558 = vunpack.c.l.b16 %v4479
    %v4559 = vunpack.c.h.b16 %v4479
    %v4560 = vunpack.c.l.b16 %v4480
    %v4561 = vunpack.c.h.b16 %v4480
    %v4562 = vunpack.c.l.b16 %v4481
    %v4563 = vunpack.c.h.b16 %v4481
    %v4564 = vunpack.c.l.b16 %v4482
    %v4565 = vunpack.c.h.b16 %v4482
    %v4566 = vunpack.c.l.b16 %v4483
    %v4567 = vunpack.c.h.b16 %v4483
    %v4568 = vunpack.c.l.b16 %v4484
    %v4569 = vunpack.c.h.b16 %v4484
    %v4570 = vunpack.c.l.b16 %v4485
    %v4571 = vunpack.c.h.b16 %v4485
    %v4572 = vunpack.c.l.b16 %v4486
    %v4573 = vunpack.c.h.b16 %v4486
    %v4574 = vunpack.c.l.b16 %v4487
    %v4575 = vunpack.c.h.b16 %v4487
    %v4576 = vunpack.c.l.b16 %v4488
    %v4577 = vunpack.c.h.b16 %v4488
    %v4578 = vunpack.c.l.b16 %v4489
    %v4579 = vunpack.c.h.b16 %v4489
    %v4580 = vunpack.c.l.b16 %v4490
    %v4581 = vunpack.c.h.b16 %v4490
    %v4582 = vunpack.c.l.b16 %v4491
    %v4583 = vunpack.c.h.b16 %v4491
    %v4584 = vunpack.c.l.b16 %v4492
    %v4585 = vunpack.c.h.b16 %v4492
    %v4586 = vunpack.c.l.b16 %v4493
    %v4587 = vunpack.c.h.b16 %v4493
    %v4588 = vunpack.c.l.b16 %v4494
    %v4589 = vunpack.c.h.b16 %v4494
    %v4590 = vunpack.c.l.b16 %v4495
    %v4591 = vunpack.c.h.b16 %v4495
    %v4592 = vpack.c.b16 %v4532, %v4528
    %v4593 = vpack.c.b16 %v4533, %v4529
    %v4594 = vpack.c.b16 %v4534, %v4530
    %v4595 = vpack.c.b16 %v4535, %v4531
    %v4596 = vpack.c.b16 %v4540, %v4536
    %v4597 = vpack.c.b16 %v4541, %v4537
    %v4598 = vpack.c.b16 %v4542, %v4538
    %v4599 = vpack.c.b16 %v4543, %v4539
    %v4600 = vpack.c.b16 %v4548, %v4544
    %v4601 = vpack.c.b16 %v4549, %v4545
    %v4602 = vpack.c.b16 %v4550, %v4546
    %v4603 = vpack.c.b16 %v4551, %v4547
    %v4604 = vpack.c.b16 %v4556, %v4552
    %v4605 = vpack.c.b16 %v4557, %v4553
    %v4606 = vpack.c.b16 %v4558, %v4554
    %v4607 = vpack.c.b16 %v4559, %v4555
    %v4608 = vpack.c.b16 %v4564, %v4560
    %v4609 = vpack.c.b16 %v4565, %v4561
    %v4610 = vpack.c.b16 %v4566, %v4562
    %v4611 = vpack.c.b16 %v4567, %v4563
    %v4612 = vpack.c.b16 %v4572, %v4568
    %v4613 = vpack.c.b16 %v4573, %v4569
    %v4614 = vpack.c.b16 %v4574, %v4570
    %v4615 = vpack.c.b16 %v4575, %v4571
    %v4616 = vpack.c.b16 %v4580, %v4576
    %v4617 = vpack.c.b16 %v4581, %v4577
    %v4618 = vpack.c.b16 %v4582, %v4578
    %v4619 = vpack.c.b16 %v4583, %v4579
    %v4620 = vpack.c.b16 %v4588, %v4584
    %v4621 = vpack.c.b16 %v4589, %v4585
    %v4622 = vpack.c.b16 %v4590, %v4586
    %v4623 = vpack.c.b16 %v4591, %v4587
    %4656 = vmatprep.subr.bf16.mxu0 %v4593
    %4657 = vmatpush1.bf16.msra.mxu0 %v4592
    %4658 = vmatprep.subr.bf16.mxu0 %v4597
    %4659 = vmatpush1.bf16.msra.mxu0 %v4596
    %4660 = vmatprep.subr.bf16.mxu0 %v4601
    %4661 = vmatpush1.bf16.msra.mxu0 %v4600
    %4662 = vmatprep.subr.bf16.mxu0 %v4605
    %4663 = vmatpush1.bf16.msra.mxu0 %v4604
    %4664 = vmatprep.subr.bf16.mxu0 %v4609
    %4665 = vmatpush1.bf16.msra.mxu0 %v4608
    %4666 = vmatprep.subr.bf16.mxu0 %v4613
    %4667 = vmatpush1.bf16.msra.mxu0 %v4612
    %4668 = vmatprep.subr.bf16.mxu0 %v4617
    %4669 = vmatpush1.bf16.msra.mxu0 %v4616
    %4670 = vmatprep.subr.bf16.mxu0 %v4621
    %4671 = vmatpush1.bf16.msra.mxu0 %v4620
    %4672 = vmatprep.subr.bf16.mxu0 0
    %4673 = vmatpush1.bf16.msra.mxu0 0
    %4674 = vmatprep.subr.bf16.mxu0 0
    %4675 = vmatpush1.bf16.msra.mxu0 0
    %4676 = vmatprep.subr.bf16.mxu0 0
    %4677 = vmatpush1.bf16.msra.mxu0 0
    %4678 = vmatprep.subr.bf16.mxu0 0
    %4679 = vmatpush1.bf16.msra.mxu0 0
    %4680 = vmatprep.subr.bf16.mxu0 0
    %4681 = vmatpush1.bf16.msra.mxu0 0
    %4682 = vmatprep.subr.bf16.mxu0 0
    %4683 = vmatpush1.bf16.msra.mxu0 0
    %4684 = vmatprep.subr.bf16.mxu0 0
    %4685 = vmatpush1.bf16.msra.mxu0 0
    %4686 = vmatprep.subr.bf16.mxu0 0
    %4687 = vmatpush1.bf16.msra.mxu0 0
    %4688 = vmatprep.mubr.bf16.mxu0 0
    %4689 = vmatmul.mubr.bf16.gmra.mrb[0].mxu0 %v4463
    %v4690 = vpop.f32.mrb[0].mxu0
    %v4691 = vadd.f32 0.0, %v4690
    %v4692 = vpop.f32.mrb[0].mxu0
    %v4693 = vadd.f32 0.0, %v4692
    %v4694 = vpop.f32.mrb[0].mxu0
    %v4695 = vpop.f32.mrb[0].mxu0
    %4696 = vdwg.mxu0
    %4697 = vmatprep.subr.bf16.mxu0 %v4595
    %4698 = vmatpush1.bf16.msra.mxu0 %v4594
    %4699 = vmatprep.subr.bf16.mxu0 %v4599
    %4700 = vmatpush1.bf16.msra.mxu0 %v4598
    %4701 = vmatprep.subr.bf16.mxu0 %v4603
    %4702 = vmatpush1.bf16.msra.mxu0 %v4602
    %4703 = vmatprep.subr.bf16.mxu0 %v4607
    %4704 = vmatpush1.bf16.msra.mxu0 %v4606
    %4705 = vmatprep.subr.bf16.mxu0 %v4611
    %4706 = vmatpush1.bf16.msra.mxu0 %v4610
    %4707 = vmatprep.subr.bf16.mxu0 %v4615
    %4708 = vmatpush1.bf16.msra.mxu0 %v4614
    %4709 = vmatprep.subr.bf16.mxu0 %v4619
    %4710 = vmatpush1.bf16.msra.mxu0 %v4618
    %4711 = vmatprep.subr.bf16.mxu0 %v4623
    %4712 = vmatpush1.bf16.msra.mxu0 %v4622
    %4713 = vmatprep.subr.bf16.mxu0 0
    %4714 = vmatpush1.bf16.msra.mxu0 0
    %4715 = vmatprep.subr.bf16.mxu0 0
    %4716 = vmatpush1.bf16.msra.mxu0 0
    %4717 = vmatprep.subr.bf16.mxu0 0
    %4718 = vmatpush1.bf16.msra.mxu0 0
    %4719 = vmatprep.subr.bf16.mxu0 0
    %4720 = vmatpush1.bf16.msra.mxu0 0
    %4721 = vmatprep.subr.bf16.mxu0 0
    %4722 = vmatpush1.bf16.msra.mxu0 0
    %4723 = vmatprep.subr.bf16.mxu0 0
    %4724 = vmatpush1.bf16.msra.mxu0 0
    %4725 = vmatprep.subr.bf16.mxu0 0
    %4726 = vmatpush1.bf16.msra.mxu0 0
    %4727 = vmatprep.subr.bf16.mxu0 0
    %4728 = vmatpush1.bf16.msra.mxu0 0
    %4729 = vmatprep.mubr.bf16.mxu0 0
    %4730 = vmatmul.mubr.bf16.gmra.mrb[0].mxu0 %v4463
    %v4731 = vpop.f32.mrb[0].mxu0
    %v4732 = vadd.f32 0.0, %v4731
    %v4733 = vpop.f32.mrb[0].mxu0
    %v4734 = vadd.f32 0.0, %v4733
    %v4735 = vpop.f32.mrb[0].mxu0
    %v4736 = vpop.f32.mrb[0].mxu0
    %4737 = vdwg.mxu0
    %v4738 = vadd.f32 %v4455, %v4691
    %v4739 = vadd.f32 %v4456, %v4693
    %v4740 = vadd.f32 %v4457, %v4732
    %v4741 = vadd.f32 %v4458, %v4734
    %v4742 = vpack.c.bf16 %v4450, %v4450
    %v4743 = vld [vmem:[#allocation7] sm:$0xff]
    %v4744 = vld [vmem:[#allocation7 + $0x8] sm:$0xff]
    %v4745 = vld [vmem:[#allocation7 + $0x10] sm:$0xff]
    %v4746 = vld [vmem:[#allocation7 + $0x18] sm:$0xff]
    %v4747 = vld [vmem:[#allocation7 + $0x20] sm:$0xff]
    %v4748 = vld [vmem:[#allocation7 + $0x28] sm:$0xff]
    %v4749 = vld [vmem:[#allocation7 + $0x30] sm:$0xff]
    %v4750 = vld [vmem:[#allocation7 + $0x38] sm:$0xff]
    %v4751 = vld [vmem:[#allocation7 + $0x40] sm:$0xff]
    %v4752 = vld [vmem:[#allocation7 + $0x48] sm:$0xff]
    %v4753 = vld [vmem:[#allocation7 + $0x50] sm:$0xff]
    %v4754 = vld [vmem:[#allocation7 + $0x58] sm:$0xff]
    %v4755 = vld [vmem:[#allocation7 + $0x60] sm:$0xff]
    %v4756 = vld [vmem:[#allocation7 + $0x68] sm:$0xff]
    %v4757 = vld [vmem:[#allocation7 + $0x70] sm:$0xff]
    %v4758 = vld [vmem:[#allocation7 + $0x78] sm:$0xff]
    %v4759 = vld [vmem:[#allocation7 + $0x80] sm:$0xff]
    %v4760 = vld [vmem:[#allocation7 + $0x88] sm:$0xff]
    %v4761 = vld [vmem:[#allocation7 + $0x90] sm:$0xff]
    %v4762 = vld [vmem:[#allocation7 + $0x98] sm:$0xff]
    %v4763 = vld [vmem:[#allocation7 + $0xa0] sm:$0xff]
    %v4764 = vld [vmem:[#allocation7 + $0xa8] sm:$0xff]
    %v4765 = vld [vmem:[#allocation7 + $0xb0] sm:$0xff]
    %v4766 = vld [vmem:[#allocation7 + $0xb8] sm:$0xff]
    %v4767 = vld [vmem:[#allocation7 + $0xc0] sm:$0xff]
    %v4768 = vld [vmem:[#allocation7 + $0xc8] sm:$0xff]
    %v4769 = vld [vmem:[#allocation7 + $0xd0] sm:$0xff]
    %v4770 = vld [vmem:[#allocation7 + $0xd8] sm:$0xff]
    %v4771 = vld [vmem:[#allocation7 + $0xe0] sm:$0xff]
    %v4772 = vld [vmem:[#allocation7 + $0xe8] sm:$0xff]
    %v4773 = vld [vmem:[#allocation7 + $0xf0] sm:$0xff]
    %v4774 = vld [vmem:[#allocation7 + $0xf8] sm:$0xff]
    %v4807 = vunpack.c.l.b16 %v4743
    %v4808 = vunpack.c.h.b16 %v4743
    %v4809 = vunpack.c.l.b16 %v4744
    %v4810 = vunpack.c.h.b16 %v4744
    %v4811 = vunpack.c.l.b16 %v4745
    %v4812 = vunpack.c.h.b16 %v4745
    %v4813 = vunpack.c.l.b16 %v4746
    %v4814 = vunpack.c.h.b16 %v4746
    %v4815 = vunpack.c.l.b16 %v4747
    %v4816 = vunpack.c.h.b16 %v4747
    %v4817 = vunpack.c.l.b16 %v4748
    %v4818 = vunpack.c.h.b16 %v4748
    %v4819 = vunpack.c.l.b16 %v4749
    %v4820 = vunpack.c.h.b16 %v4749
    %v4821 = vunpack.c.l.b16 %v4750
    %v4822 = vunpack.c.h.b16 %v4750
    %v4823 = vunpack.c.l.b16 %v4751
    %v4824 = vunpack.c.h.b16 %v4751
    %v4825 = vunpack.c.l.b16 %v4752
    %v4826 = vunpack.c.h.b16 %v4752
    %v4827 = vunpack.c.l.b16 %v4753
    %v4828 = vunpack.c.h.b16 %v4753
    %v4829 = vunpack.c.l.b16 %v4754
    %v4830 = vunpack.c.h.b16 %v4754
    %v4831 = vunpack.c.l.b16 %v4755
    %v4832 = vunpack.c.h.b16 %v4755
    %v4833 = vunpack.c.l.b16 %v4756
    %v4834 = vunpack.c.h.b16 %v4756
    %v4835 = vunpack.c.l.b16 %v4757
    %v4836 = vunpack.c.h.b16 %v4757
    %v4837 = vunpack.c.l.b16 %v4758
    %v4838 = vunpack.c.h.b16 %v4758
    %v4839 = vunpack.c.l.b16 %v4759
    %v4840 = vunpack.c.h.b16 %v4759
    %v4841 = vunpack.c.l.b16 %v4760
    %v4842 = vunpack.c.h.b16 %v4760
    %v4843 = vunpack.c.l.b16 %v4761
    %v4844 = vunpack.c.h.b16 %v4761
    %v4845 = vunpack.c.l.b16 %v4762
    %v4846 = vunpack.c.h.b16 %v4762
    %v4847 = vunpack.c.l.b16 %v4763
    %v4848 = vunpack.c.h.b16 %v4763
    %v4849 = vunpack.c.l.b16 %v4764
    %v4850 = vunpack.c.h.b16 %v4764
    %v4851 = vunpack.c.l.b16 %v4765
    %v4852 = vunpack.c.h.b16 %v4765
    %v4853 = vunpack.c.l.b16 %v4766
    %v4854 = vunpack.c.h.b16 %v4766
    %v4855 = vunpack.c.l.b16 %v4767
    %v4856 = vunpack.c.h.b16 %v4767
    %v4857 = vunpack.c.l.b16 %v4768
    %v4858 = vunpack.c.h.b16 %v4768
    %v4859 = vunpack.c.l.b16 %v4769
    %v4860 = vunpack.c.h.b16 %v4769
    %v4861 = vunpack.c.l.b16 %v4770
    %v4862 = vunpack.c.h.b16 %v4770
    %v4863 = vunpack.c.l.b16 %v4771
    %v4864 = vunpack.c.h.b16 %v4771
    %v4865 = vunpack.c.l.b16 %v4772
    %v4866 = vunpack.c.h.b16 %v4772
    %v4867 = vunpack.c.l.b16 %v4773
    %v4868 = vunpack.c.h.b16 %v4773
    %v4869 = vunpack.c.l.b16 %v4774
    %v4870 = vunpack.c.h.b16 %v4774
    %v4871 = vpack.c.b16 %v4811, %v4807
    %v4872 = vpack.c.b16 %v4812, %v4808
    %v4873 = vpack.c.b16 %v4813, %v4809
    %v4874 = vpack.c.b16 %v4814, %v4810
    %v4875 = vpack.c.b16 %v4819, %v4815
    %v4876 = vpack.c.b16 %v4820, %v4816
    %v4877 = vpack.c.b16 %v4821, %v4817
    %v4878 = vpack.c.b16 %v4822, %v4818
    %v4879 = vpack.c.b16 %v4827, %v4823
    %v4880 = vpack.c.b16 %v4828, %v4824
    %v4881 = vpack.c.b16 %v4829, %v4825
    %v4882 = vpack.c.b16 %v4830, %v4826
    %v4883 = vpack.c.b16 %v4835, %v4831
    %v4884 = vpack.c.b16 %v4836, %v4832
    %v4885 = vpack.c.b16 %v4837, %v4833
    %v4886 = vpack.c.b16 %v4838, %v4834
    %v4887 = vpack.c.b16 %v4843, %v4839
    %v4888 = vpack.c.b16 %v4844, %v4840
    %v4889 = vpack.c.b16 %v4845, %v4841
    %v4890 = vpack.c.b16 %v4846, %v4842
    %v4891 = vpack.c.b16 %v4851, %v4847
    %v4892 = vpack.c.b16 %v4852, %v4848
    %v4893 = vpack.c.b16 %v4853, %v4849
    %v4894 = vpack.c.b16 %v4854, %v4850
    %v4895 = vpack.c.b16 %v4859, %v4855
    %v4896 = vpack.c.b16 %v4860, %v4856
    %v4897 = vpack.c.b16 %v4861, %v4857
    %v4898 = vpack.c.b16 %v4862, %v4858
    %v4899 = vpack.c.b16 %v4867, %v4863
    %v4900 = vpack.c.b16 %v4868, %v4864
    %v4901 = vpack.c.b16 %v4869, %v4865
    %v4902 = vpack.c.b16 %v4870, %v4866
    %4935 = vmatprep.subr.bf16.mxu0 %v4872
    %4936 = vmatpush1.bf16.msra.mxu0 %v4871
    %4937 = vmatprep.subr.bf16.mxu0 %v4876
    %4938 = vmatpush1.bf16.msra.mxu0 %v4875
    %4939 = vmatprep.subr.bf16.mxu0 %v4880
    %4940 = vmatpush1.bf16.msra.mxu0 %v4879
    %4941 = vmatprep.subr.bf16.mxu0 %v4884
    %4942 = vmatpush1.bf16.msra.mxu0 %v4883
    %4943 = vmatprep.subr.bf16.mxu0 %v4888
    %4944 = vmatpush1.bf16.msra.mxu0 %v4887
    %4945 = vmatprep.subr.bf16.mxu0 %v4892
    %4946 = vmatpush1.bf16.msra.mxu0 %v4891
    %4947 = vmatprep.subr.bf16.mxu0 %v4896
    %4948 = vmatpush1.bf16.msra.mxu0 %v4895
    %4949 = vmatprep.subr.bf16.mxu0 %v4900
    %4950 = vmatpush1.bf16.msra.mxu0 %v4899
    %4951 = vmatprep.subr.bf16.mxu0 0
    %4952 = vmatpush1.bf16.msra.mxu0 0
    %4953 = vmatprep.subr.bf16.mxu0 0
    %4954 = vmatpush1.bf16.msra.mxu0 0
    %4955 = vmatprep.subr.bf16.mxu0 0
    %4956 = vmatpush1.bf16.msra.mxu0 0
    %4957 = vmatprep.subr.bf16.mxu0 0
    %4958 = vmatpush1.bf16.msra.mxu0 0
    %4959 = vmatprep.subr.bf16.mxu0 0
    %4960 = vmatpush1.bf16.msra.mxu0 0
    %4961 = vmatprep.subr.bf16.mxu0 0
    %4962 = vmatpush1.bf16.msra.mxu0 0
    %4963 = vmatprep.subr.bf16.mxu0 0
    %4964 = vmatpush1.bf16.msra.mxu0 0
    %4965 = vmatprep.subr.bf16.mxu0 0
    %4966 = vmatpush1.bf16.msra.mxu0 0
    %4967 = vmatprep.mubr.bf16.mxu0 0
    %4968 = vmatmul.mubr.bf16.gmra.mrb[0].mxu0 %v4742
    %v4969 = vpop.f32.mrb[0].mxu0
    %v4970 = vadd.f32 0.0, %v4969
    %v4971 = vpop.f32.mrb[0].mxu0
    %v4972 = vadd.f32 0.0, %v4971
    %v4973 = vpop.f32.mrb[0].mxu0
    %v4974 = vpop.f32.mrb[0].mxu0
    %4975 = vdwg.mxu0
    %4976 = vmatprep.subr.bf16.mxu0 %v4874
    %4977 = vmatpush1.bf16.msra.mxu0 %v4873
    %4978 = vmatprep.subr.bf16.mxu0 %v4878
    %4979 = vmatpush1.bf16.msra.mxu0 %v4877
    %4980 = vmatprep.subr.bf16.mxu0 %v4882
    %4981 = vmatpush1.bf16.msra.mxu0 %v4881
    %4982 = vmatprep.subr.bf16.mxu0 %v4886
    %4983 = vmatpush1.bf16.msra.mxu0 %v4885
    %4984 = vmatprep.subr.bf16.mxu0 %v4890
    %4985 = vmatpush1.bf16.msra.mxu0 %v4889
    %4986 = vmatprep.subr.bf16.mxu0 %v4894
    %4987 = vmatpush1.bf16.msra.mxu0 %v4893
    %4988 = vmatprep.subr.bf16.mxu0 %v4898
    %4989 = vmatpush1.bf16.msra.mxu0 %v4897
    %4990 = vmatprep.subr.bf16.mxu0 %v4902
    %4991 = vmatpush1.bf16.msra.mxu0 %v4901
    %4992 = vmatprep.subr.bf16.mxu0 0
    %4993 = vmatpush1.bf16.msra.mxu0 0
    %4994 = vmatprep.subr.bf16.mxu0 0
    %4995 = vmatpush1.bf16.msra.mxu0 0
    %4996 = vmatprep.subr.bf16.mxu0 0
    %4997 = vmatpush1.bf16.msra.mxu0 0
    %4998 = vmatprep.subr.bf16.mxu0 0
    %4999 = vmatpush1.bf16.msra.mxu0 0
    %5000 = vmatprep.subr.bf16.mxu0 0
    %5001 = vmatpush1.bf16.msra.mxu0 0
    %5002 = vmatprep.subr.bf16.mxu0 0
    %5003 = vmatpush1.bf16.msra.mxu0 0
    %5004 = vmatprep.subr.bf16.mxu0 0
    %5005 = vmatpush1.bf16.msra.mxu0 0
    %5006 = vmatprep.subr.bf16.mxu0 0
    %5007 = vmatpush1.bf16.msra.mxu0 0
    %5008 = vmatprep.mubr.bf16.mxu0 0
    %5009 = vmatmul.mubr.bf16.gmra.mrb[0].mxu0 %v4742
    %v5010 = vpop.f32.mrb[0].mxu0
    %v5011 = vadd.f32 0.0, %v5010
    %v5012 = vpop.f32.mrb[0].mxu0
    %v5013 = vadd.f32 0.0, %v5012
    %v5014 = vpop.f32.mrb[0].mxu0
    %v5015 = vpop.f32.mrb[0].mxu0
    %5016 = vdwg.mxu0
    %v5017 = vadd.f32 %v4459, %v4970
    %v5018 = vadd.f32 %v4460, %v4972
    %v5019 = vadd.f32 %v4461, %v5011
    %v5020 = vadd.f32 %v4462, %v5013
    %v5021 = vxor.u32 %v4738, 2147483648
    %v5022 = vmul.f32 %v5021, 1.442695
    %v5023 = vpow.pop %v5022
    %v5024 = vadd.f32 %v5023, 1.0
    %v5025 = vrcp.pop %v5024
    %v5026 = vmul.f32 1.0, %v5025
    %v5027 = vtanh.pop %v4740
    %v5028 = vxor.u32 %v4741, 2147483648
    %v5029 = vmul.f32 %v5028, 1.442695
    %v5030 = vpow.pop %v5029
    %v5031 = vadd.f32 %v5030, 1.0
    %v5032 = vrcp.pop %v5031
    %v5033 = vmul.f32 1.0, %v5032
    %v5034 = vxor.u32 %v4739, 2147483648
    %v5035 = vmul.f32 %v5034, 1.442695
    %v5036 = vpow.pop %v5035
    %v5037 = vadd.f32 %v5036, 1.0
    %v5038 = vrcp.pop %v5037
    %v5039 = vmul.f32 1.0, %v5038
    %v5040 = vmul.f32 %v5039, %v4424
    %v5041 = vmul.f32 %v5026, %v5027
    %v5042 = vadd.f32 %v5040, %v5041
    %v5043 = vtanh.pop %v5042
    %v5044 = vmul.f32 %v5033, %v5043
    %v5045 = vxor.u32 %v5017, 2147483648
    %v5046 = vmul.f32 %v5045, 1.442695
    %v5047 = vpow.pop %v5046
    %v5048 = vadd.f32 %v5047, 1.0
    %v5049 = vrcp.pop %v5048
    %v5050 = vmul.f32 1.0, %v5049
    %v5051 = vtanh.pop %v5019
    %v5052 = vxor.u32 %v5020, 2147483648
    %v5053 = vmul.f32 %v5052, 1.442695
    %v5054 = vpow.pop %v5053
    %v5055 = vadd.f32 %v5054, 1.0
    %v5056 = vrcp.pop %v5055
    %v5057 = vmul.f32 1.0, %v5056
    %v5058 = vxor.u32 %v5018, 2147483648
    %v5059 = vmul.f32 %v5058, 1.442695
    %v5060 = vpow.pop %v5059
    %v5061 = vadd.f32 %v5060, 1.0
    %v5062 = vrcp.pop %v5061
    %v5063 = vmul.f32 1.0, %v5062
    %v5064 = vmul.f32 %v5063, %v4448
    %v5065 = vmul.f32 %v5050, %v5051
    %v5066 = vadd.f32 %v5064, %v5065
    %v5067 = vtanh.pop %v5066
    %v5068 = vmul.f32 %v5057, %v5067
    %s5069 = scalar_lea.vmem [#allocation2], 56
    %5070 = vst [vmem:[%s5069] sm:$0xff] %v5044
    %5071 = vst [vmem:[#allocation3] sm:$0xff] %v5068
    %v5072 = vld [vmem:[#allocation2] sm:$0xff]
    %v5073 = vpack.c.bf16 %v5072, %v5072
    %v5074 = vld [vmem:[#allocation9] sm:$0xff]
    %v5075 = vld [vmem:[#allocation9 + $0x8] sm:$0xff]
    %v5076 = vld [vmem:[#allocation9 + $0x10] sm:$0xff]
    %v5077 = vld [vmem:[#allocation9 + $0x18] sm:$0xff]
    %v5078 = vld [vmem:[#allocation9 + $0x20] sm:$0xff]
    %v5079 = vld [vmem:[#allocation9 + $0x28] sm:$0xff]
    %v5080 = vld [vmem:[#allocation9 + $0x30] sm:$0xff]
    %v5081 = vld [vmem:[#allocation9 + $0x38] sm:$0xff]
    %v5082 = vld [vmem:[#allocation9 + $0x40] sm:$0xff]
    %v5083 = vld [vmem:[#allocation9 + $0x48] sm:$0xff]
    %v5084 = vld [vmem:[#allocation9 + $0x50] sm:$0xff]
    %v5085 = vld [vmem:[#allocation9 + $0x58] sm:$0xff]
    %v5086 = vld [vmem:[#allocation9 + $0x60] sm:$0xff]
    %v5087 = vld [vmem:[#allocation9 + $0x68] sm:$0xff]
    %v5088 = vld [vmem:[#allocation9 + $0x70] sm:$0xff]
    %v5089 = vld [vmem:[#allocation9 + $0x78] sm:$0xff]
    %v5090 = vld [vmem:[#allocation9 + $0x80] sm:$0xff]
    %v5091 = vld [vmem:[#allocation9 + $0x88] sm:$0xff]
    %v5092 = vld [vmem:[#allocation9 + $0x90] sm:$0xff]
    %v5093 = vld [vmem:[#allocation9 + $0x98] sm:$0xff]
    %v5094 = vld [vmem:[#allocation9 + $0xa0] sm:$0xff]
    %v5095 = vld [vmem:[#allocation9 + $0xa8] sm:$0xff]
    %v5096 = vld [vmem:[#allocation9 + $0xb0] sm:$0xff]
    %v5097 = vld [vmem:[#allocation9 + $0xb8] sm:$0xff]
    %v5098 = vld [vmem:[#allocation9 + $0xc0] sm:$0xff]
    %v5099 = vld [vmem:[#allocation9 + $0xc8] sm:$0xff]
    %v5100 = vld [vmem:[#allocation9 + $0xd0] sm:$0xff]
    %v5101 = vld [vmem:[#allocation9 + $0xd8] sm:$0xff]
    %v5102 = vld [vmem:[#allocation9 + $0xe0] sm:$0xff]
    %v5103 = vld [vmem:[#allocation9 + $0xe8] sm:$0xff]
    %v5104 = vld [vmem:[#allocation9 + $0xf0] sm:$0xff]
    %v5105 = vld [vmem:[#allocation9 + $0xf8] sm:$0xff]
    %v5106 = vld [vmem:[#allocation3] sm:$0xff]
    %v5107 = vpack.c.bf16 %v5106, %v5106
    %v5108 = vld [vmem:[#allocation10] sm:$0xff]
    %v5109 = vld [vmem:[#allocation10 + $0x8] sm:$0xff]
    %v5110 = vld [vmem:[#allocation10 + $0x10] sm:$0xff]
    %v5111 = vld [vmem:[#allocation10 + $0x18] sm:$0xff]
    %v5112 = vld [vmem:[#allocation10 + $0x20] sm:$0xff]
    %v5113 = vld [vmem:[#allocation10 + $0x28] sm:$0xff]
    %v5114 = vld [vmem:[#allocation10 + $0x30] sm:$0xff]
    %v5115 = vld [vmem:[#allocation10 + $0x38] sm:$0xff]
    %v5116 = vld [vmem:[#allocation10 + $0x40] sm:$0xff]
    %v5117 = vld [vmem:[#allocation10 + $0x48] sm:$0xff]
    %v5118 = vld [vmem:[#allocation10 + $0x50] sm:$0xff]
    %v5119 = vld [vmem:[#allocation10 + $0x58] sm:$0xff]
    %v5120 = vld [vmem:[#allocation10 + $0x60] sm:$0xff]
    %v5121 = vld [vmem:[#allocation10 + $0x68] sm:$0xff]
    %v5122 = vld [vmem:[#allocation10 + $0x70] sm:$0xff]
    %v5123 = vld [vmem:[#allocation10 + $0x78] sm:$0xff]
    %v5124 = vld [vmem:[#allocation10 + $0x80] sm:$0xff]
    %v5125 = vld [vmem:[#allocation10 + $0x88] sm:$0xff]
    %v5126 = vld [vmem:[#allocation10 + $0x90] sm:$0xff]
    %v5127 = vld [vmem:[#allocation10 + $0x98] sm:$0xff]
    %v5128 = vld [vmem:[#allocation10 + $0xa0] sm:$0xff]
    %v5129 = vld [vmem:[#allocation10 + $0xa8] sm:$0xff]
    %v5130 = vld [vmem:[#allocation10 + $0xb0] sm:$0xff]
    %v5131 = vld [vmem:[#allocation10 + $0xb8] sm:$0xff]
    %v5132 = vld [vmem:[#allocation10 + $0xc0] sm:$0xff]
    %v5133 = vld [vmem:[#allocation10 + $0xc8] sm:$0xff]
    %v5134 = vld [vmem:[#allocation10 + $0xd0] sm:$0xff]
    %v5135 = vld [vmem:[#allocation10 + $0xd8] sm:$0xff]
    %v5136 = vld [vmem:[#allocation10 + $0xe0] sm:$0xff]
    %v5137 = vld [vmem:[#allocation10 + $0xe8] sm:$0xff]
    %v5138 = vld [vmem:[#allocation10 + $0xf0] sm:$0xff]
    %v5139 = vld [vmem:[#allocation10 + $0xf8] sm:$0xff]
    %v5172 = vunpack.c.l.b16 %v5108
    %v5173 = vunpack.c.h.b16 %v5108
    %v5174 = vunpack.c.l.b16 %v5109
    %v5175 = vunpack.c.h.b16 %v5109
    %v5176 = vunpack.c.l.b16 %v5110
    %v5177 = vunpack.c.h.b16 %v5110
    %v5178 = vunpack.c.l.b16 %v5111
    %v5179 = vunpack.c.h.b16 %v5111
    %v5180 = vunpack.c.l.b16 %v5112
    %v5181 = vunpack.c.h.b16 %v5112
    %v5182 = vunpack.c.l.b16 %v5113
    %v5183 = vunpack.c.h.b16 %v5113
    %v5184 = vunpack.c.l.b16 %v5114
    %v5185 = vunpack.c.h.b16 %v5114
    %v5186 = vunpack.c.l.b16 %v5115
    %v5187 = vunpack.c.h.b16 %v5115
    %v5188 = vunpack.c.l.b16 %v5116
    %v5189 = vunpack.c.h.b16 %v5116
    %v5190 = vunpack.c.l.b16 %v5117
    %v5191 = vunpack.c.h.b16 %v5117
    %v5192 = vunpack.c.l.b16 %v5118
    %v5193 = vunpack.c.h.b16 %v5118
    %v5194 = vunpack.c.l.b16 %v5119
    %v5195 = vunpack.c.h.b16 %v5119
    %v5196 = vunpack.c.l.b16 %v5120
    %v5197 = vunpack.c.h.b16 %v5120
    %v5198 = vunpack.c.l.b16 %v5121
    %v5199 = vunpack.c.h.b16 %v5121
    %v5200 = vunpack.c.l.b16 %v5122
    %v5201 = vunpack.c.h.b16 %v5122
    %v5202 = vunpack.c.l.b16 %v5123
    %v5203 = vunpack.c.h.b16 %v5123
    %v5204 = vunpack.c.l.b16 %v5124
    %v5205 = vunpack.c.h.b16 %v5124
    %v5206 = vunpack.c.l.b16 %v5125
    %v5207 = vunpack.c.h.b16 %v5125
    %v5208 = vunpack.c.l.b16 %v5126
    %v5209 = vunpack.c.h.b16 %v5126
    %v5210 = vunpack.c.l.b16 %v5127
    %v5211 = vunpack.c.h.b16 %v5127
    %v5212 = vunpack.c.l.b16 %v5128
    %v5213 = vunpack.c.h.b16 %v5128
    %v5214 = vunpack.c.l.b16 %v5129
    %v5215 = vunpack.c.h.b16 %v5129
    %v5216 = vunpack.c.l.b16 %v5130
    %v5217 = vunpack.c.h.b16 %v5130
    %v5218 = vunpack.c.l.b16 %v5131
    %v5219 = vunpack.c.h.b16 %v5131
    %v5220 = vunpack.c.l.b16 %v5132
    %v5221 = vunpack.c.h.b16 %v5132
    %v5222 = vunpack.c.l.b16 %v5133
    %v5223 = vunpack.c.h.b16 %v5133
    %v5224 = vunpack.c.l.b16 %v5134
    %v5225 = vunpack.c.h.b16 %v5134
    %v5226 = vunpack.c.l.b16 %v5135
    %v5227 = vunpack.c.h.b16 %v5135
    %v5228 = vunpack.c.l.b16 %v5136
    %v5229 = vunpack.c.h.b16 %v5136
    %v5230 = vunpack.c.l.b16 %v5137
    %v5231 = vunpack.c.h.b16 %v5137
    %v5232 = vunpack.c.l.b16 %v5138
    %v5233 = vunpack.c.h.b16 %v5138
    %v5234 = vunpack.c.l.b16 %v5139
    %v5235 = vunpack.c.h.b16 %v5139
    %v5236 = vpack.c.b16 %v5176, %v5172
    %v5237 = vpack.c.b16 %v5177, %v5173
    %v5238 = vpack.c.b16 %v5178, %v5174
    %v5239 = vpack.c.b16 %v5179, %v5175
    %v5240 = vpack.c.b16 %v5184, %v5180
    %v5241 = vpack.c.b16 %v5185, %v5181
    %v5242 = vpack.c.b16 %v5186, %v5182
    %v5243 = vpack.c.b16 %v5187, %v5183
    %v5244 = vpack.c.b16 %v5192, %v5188
    %v5245 = vpack.c.b16 %v5193, %v5189
    %v5246 = vpack.c.b16 %v5194, %v5190
    %v5247 = vpack.c.b16 %v5195, %v5191
    %v5248 = vpack.c.b16 %v5200, %v5196
    %v5249 = vpack.c.b16 %v5201, %v5197
    %v5250 = vpack.c.b16 %v5202, %v5198
    %v5251 = vpack.c.b16 %v5203, %v5199
    %v5252 = vpack.c.b16 %v5208, %v5204
    %v5253 = vpack.c.b16 %v5209, %v5205
    %v5254 = vpack.c.b16 %v5210, %v5206
    %v5255 = vpack.c.b16 %v5211, %v5207
    %v5256 = vpack.c.b16 %v5216, %v5212
    %v5257 = vpack.c.b16 %v5217, %v5213
    %v5258 = vpack.c.b16 %v5218, %v5214
    %v5259 = vpack.c.b16 %v5219, %v5215
    %v5260 = vpack.c.b16 %v5224, %v5220
    %v5261 = vpack.c.b16 %v5225, %v5221
    %v5262 = vpack.c.b16 %v5226, %v5222
    %v5263 = vpack.c.b16 %v5227, %v5223
    %v5264 = vpack.c.b16 %v5232, %v5228
    %v5265 = vpack.c.b16 %v5233, %v5229
    %v5266 = vpack.c.b16 %v5234, %v5230
    %v5267 = vpack.c.b16 %v5235, %v5231
    %5300 = vmatprep.subr.bf16.mxu0 %v5237
    %5301 = vmatpush1.bf16.msra.mxu0 %v5236
    %5302 = vmatprep.subr.bf16.mxu0 %v5241
    %5303 = vmatpush1.bf16.msra.mxu0 %v5240
    %5304 = vmatprep.subr.bf16.mxu0 %v5245
    %5305 = vmatpush1.bf16.msra.mxu0 %v5244
    %5306 = vmatprep.subr.bf16.mxu0 %v5249
    %5307 = vmatpush1.bf16.msra.mxu0 %v5248
    %5308 = vmatprep.subr.bf16.mxu0 %v5253
    %5309 = vmatpush1.bf16.msra.mxu0 %v5252
    %5310 = vmatprep.subr.bf16.mxu0 %v5257
    %5311 = vmatpush1.bf16.msra.mxu0 %v5256
    %5312 = vmatprep.subr.bf16.mxu0 %v5261
    %5313 = vmatpush1.bf16.msra.mxu0 %v5260
    %5314 = vmatprep.subr.bf16.mxu0 %v5265
    %5315 = vmatpush1.bf16.msra.mxu0 %v5264
    %5316 = vmatprep.subr.bf16.mxu0 0
    %5317 = vmatpush1.bf16.msra.mxu0 0
    %5318 = vmatprep.subr.bf16.mxu0 0
    %5319 = vmatpush1.bf16.msra.mxu0 0
    %5320 = vmatprep.subr.bf16.mxu0 0
    %5321 = vmatpush1.bf16.msra.mxu0 0
    %5322 = vmatprep.subr.bf16.mxu0 0
    %5323 = vmatpush1.bf16.msra.mxu0 0
    %5324 = vmatprep.subr.bf16.mxu0 0
    %5325 = vmatpush1.bf16.msra.mxu0 0
    %5326 = vmatprep.subr.bf16.mxu0 0
    %5327 = vmatpush1.bf16.msra.mxu0 0
    %5328 = vmatprep.subr.bf16.mxu0 0
    %5329 = vmatpush1.bf16.msra.mxu0 0
    %5330 = vmatprep.subr.bf16.mxu0 0
    %5331 = vmatpush1.bf16.msra.mxu0 0
    %5332 = vmatprep.mubr.bf16.mxu0 0
    %5333 = vmatmul.mubr.bf16.gmra.mrb[0].mxu0 %v5107
    %v5334 = vpop.f32.mrb[0].mxu0
    %v5335 = vadd.f32 0.0, %v5334
    %v5336 = vpop.f32.mrb[0].mxu0
    %v5337 = vpop.f32.mrb[0].mxu0
    %v5338 = vpop.f32.mrb[0].mxu0
    %5339 = vdwg.mxu0
    %5340 = vmatprep.subr.bf16.mxu0 %v5239
    %5341 = vmatpush1.bf16.msra.mxu0 %v5238
    %5342 = vmatprep.subr.bf16.mxu0 %v5243
    %5343 = vmatpush1.bf16.msra.mxu0 %v5242
    %5344 = vmatprep.subr.bf16.mxu0 %v5247
    %5345 = vmatpush1.bf16.msra.mxu0 %v5246
    %5346 = vmatprep.subr.bf16.mxu0 %v5251
    %5347 = vmatpush1.bf16.msra.mxu0 %v5250
    %5348 = vmatprep.subr.bf16.mxu0 %v5255
    %5349 = vmatpush1.bf16.msra.mxu0 %v5254
    %5350 = vmatprep.subr.bf16.mxu0 %v5259
    %5351 = vmatpush1.bf16.msra.mxu0 %v5258
    %5352 = vmatprep.subr.bf16.mxu0 %v5263
    %5353 = vmatpush1.bf16.msra.mxu0 %v5262
    %5354 = vmatprep.subr.bf16.mxu0 %v5267
    %5355 = vmatpush1.bf16.msra.mxu0 %v5266
    %5356 = vmatprep.subr.bf16.mxu0 0
    %5357 = vmatpush1.bf16.msra.mxu0 0
    %5358 = vmatprep.subr.bf16.mxu0 0
    %5359 = vmatpush1.bf16.msra.mxu0 0
    %5360 = vmatprep.subr.bf16.mxu0 0
    %5361 = vmatpush1.bf16.msra.mxu0 0
    %5362 = vmatprep.subr.bf16.mxu0 0
    %5363 = vmatpush1.bf16.msra.mxu0 0
    %5364 = vmatprep.subr.bf16.mxu0 0
    %5365 = vmatpush1.bf16.msra.mxu0 0
    %5366 = vmatprep.subr.bf16.mxu0 0
    %5367 = vmatpush1.bf16.msra.mxu0 0
    %5368 = vmatprep.subr.bf16.mxu0 0
    %5369 = vmatpush1.bf16.msra.mxu0 0
    %5370 = vmatprep.subr.bf16.mxu0 0
    %5371 = vmatpush1.bf16.msra.mxu0 0
    %5372 = vmatprep.mubr.bf16.mxu0 0
    %5373 = vmatmul.mubr.bf16.gmra.mrb[0].mxu0 %v5107
    %v5374 = vpop.f32.mrb[0].mxu0
    %v5375 = vadd.f32 0.0, %v5374
    %v5376 = vpop.f32.mrb[0].mxu0
    %v5377 = vadd.f32 0.0, %v5376
    %v5378 = vpop.f32.mrb[0].mxu0
    %v5379 = vpop.f32.mrb[0].mxu0
    %5380 = vdwg.mxu0
    %v5413 = vunpack.c.l.b16 %v5074
    %v5414 = vunpack.c.h.b16 %v5074
    %v5415 = vunpack.c.l.b16 %v5075
    %v5416 = vunpack.c.h.b16 %v5075
    %v5417 = vunpack.c.l.b16 %v5076
    %v5418 = vunpack.c.h.b16 %v5076
    %v5419 = vunpack.c.l.b16 %v5077
    %v5420 = vunpack.c.h.b16 %v5077
    %v5421 = vunpack.c.l.b16 %v5078
    %v5422 = vunpack.c.h.b16 %v5078
    %v5423 = vunpack.c.l.b16 %v5079
    %v5424 = vunpack.c.h.b16 %v5079
    %v5425 = vunpack.c.l.b16 %v5080
    %v5426 = vunpack.c.h.b16 %v5080
    %v5427 = vunpack.c.l.b16 %v5081
    %v5428 = vunpack.c.h.b16 %v5081
    %v5429 = vunpack.c.l.b16 %v5082
    %v5430 = vunpack.c.h.b16 %v5082
    %v5431 = vunpack.c.l.b16 %v5083
    %v5432 = vunpack.c.h.b16 %v5083
    %v5433 = vunpack.c.l.b16 %v5084
    %v5434 = vunpack.c.h.b16 %v5084
    %v5435 = vunpack.c.l.b16 %v5085
    %v5436 = vunpack.c.h.b16 %v5085
    %v5437 = vunpack.c.l.b16 %v5086
    %v5438 = vunpack.c.h.b16 %v5086
    %v5439 = vunpack.c.l.b16 %v5087
    %v5440 = vunpack.c.h.b16 %v5087
    %v5441 = vunpack.c.l.b16 %v5088
    %v5442 = vunpack.c.h.b16 %v5088
    %v5443 = vunpack.c.l.b16 %v5089
    %v5444 = vunpack.c.h.b16 %v5089
    %v5445 = vunpack.c.l.b16 %v5090
    %v5446 = vunpack.c.h.b16 %v5090
    %v5447 = vunpack.c.l.b16 %v5091
    %v5448 = vunpack.c.h.b16 %v5091
    %v5449 = vunpack.c.l.b16 %v5092
    %v5450 = vunpack.c.h.b16 %v5092
    %v5451 = vunpack.c.l.b16 %v5093
    %v5452 = vunpack.c.h.b16 %v5093
    %v5453 = vunpack.c.l.b16 %v5094
    %v5454 = vunpack.c.h.b16 %v5094
    %v5455 = vunpack.c.l.b16 %v5095
    %v5456 = vunpack.c.h.b16 %v5095
    %v5457 = vunpack.c.l.b16 %v5096
    %v5458 = vunpack.c.h.b16 %v5096
    %v5459 = vunpack.c.l.b16 %v5097
    %v5460 = vunpack.c.h.b16 %v5097
    %v5461 = vunpack.c.l.b16 %v5098
    %v5462 = vunpack.c.h.b16 %v5098
    %v5463 = vunpack.c.l.b16 %v5099
    %v5464 = vunpack.c.h.b16 %v5099
    %v5465 = vunpack.c.l.b16 %v5100
    %v5466 = vunpack.c.h.b16 %v5100
    %v5467 = vunpack.c.l.b16 %v5101
    %v5468 = vunpack.c.h.b16 %v5101
    %v5469 = vunpack.c.l.b16 %v5102
    %v5470 = vunpack.c.h.b16 %v5102
    %v5471 = vunpack.c.l.b16 %v5103
    %v5472 = vunpack.c.h.b16 %v5103
    %v5473 = vunpack.c.l.b16 %v5104
    %v5474 = vunpack.c.h.b16 %v5104
    %v5475 = vunpack.c.l.b16 %v5105
    %v5476 = vunpack.c.h.b16 %v5105
    %v5477 = vpack.c.b16 %v5417, %v5413
    %v5478 = vpack.c.b16 %v5418, %v5414
    %v5479 = vpack.c.b16 %v5419, %v5415
    %v5480 = vpack.c.b16 %v5420, %v5416
    %v5481 = vpack.c.b16 %v5425, %v5421
    %v5482 = vpack.c.b16 %v5426, %v5422
    %v5483 = vpack.c.b16 %v5427, %v5423
    %v5484 = vpack.c.b16 %v5428, %v5424
    %v5485 = vpack.c.b16 %v5433, %v5429
    %v5486 = vpack.c.b16 %v5434, %v5430
    %v5487 = vpack.c.b16 %v5435, %v5431
    %v5488 = vpack.c.b16 %v5436, %v5432
    %v5489 = vpack.c.b16 %v5441, %v5437
    %v5490 = vpack.c.b16 %v5442, %v5438
    %v5491 = vpack.c.b16 %v5443, %v5439
    %v5492 = vpack.c.b16 %v5444, %v5440
    %v5493 = vpack.c.b16 %v5449, %v5445
    %v5494 = vpack.c.b16 %v5450, %v5446
    %v5495 = vpack.c.b16 %v5451, %v5447
    %v5496 = vpack.c.b16 %v5452, %v5448
    %v5497 = vpack.c.b16 %v5457, %v5453
    %v5498 = vpack.c.b16 %v5458, %v5454
    %v5499 = vpack.c.b16 %v5459, %v5455
    %v5500 = vpack.c.b16 %v5460, %v5456
    %v5501 = vpack.c.b16 %v5465, %v5461
    %v5502 = vpack.c.b16 %v5466, %v5462
    %v5503 = vpack.c.b16 %v5467, %v5463
    %v5504 = vpack.c.b16 %v5468, %v5464
    %v5505 = vpack.c.b16 %v5473, %v5469
    %v5506 = vpack.c.b16 %v5474, %v5470
    %v5507 = vpack.c.b16 %v5475, %v5471
    %v5508 = vpack.c.b16 %v5476, %v5472
    %5541 = vmatprep.subr.bf16.mxu0 %v5478
    %5542 = vmatpush1.bf16.msra.mxu0 %v5477
    %5543 = vmatprep.subr.bf16.mxu0 %v5482
    %5544 = vmatpush1.bf16.msra.mxu0 %v5481
    %5545 = vmatprep.subr.bf16.mxu0 %v5486
    %5546 = vmatpush1.bf16.msra.mxu0 %v5485
    %5547 = vmatprep.subr.bf16.mxu0 %v5490
    %5548 = vmatpush1.bf16.msra.mxu0 %v5489
    %5549 = vmatprep.subr.bf16.mxu0 %v5494
    %5550 = vmatpush1.bf16.msra.mxu0 %v5493
    %5551 = vmatprep.subr.bf16.mxu0 %v5498
    %5552 = vmatpush1.bf16.msra.mxu0 %v5497
    %5553 = vmatprep.subr.bf16.mxu0 %v5502
    %5554 = vmatpush1.bf16.msra.mxu0 %v5501
    %5555 = vmatprep.subr.bf16.mxu0 %v5506
    %5556 = vmatpush1.bf16.msra.mxu0 %v5505
    %5557 = vmatprep.subr.bf16.mxu0 0
    %5558 = vmatpush1.bf16.msra.mxu0 0
    %5559 = vmatprep.subr.bf16.mxu0 0
    %5560 = vmatpush1.bf16.msra.mxu0 0
    %5561 = vmatprep.subr.bf16.mxu0 0
    %5562 = vmatpush1.bf16.msra.mxu0 0
    %5563 = vmatprep.subr.bf16.mxu0 0
    %5564 = vmatpush1.bf16.msra.mxu0 0
    %5565 = vmatprep.subr.bf16.mxu0 0
    %5566 = vmatpush1.bf16.msra.mxu0 0
    %5567 = vmatprep.subr.bf16.mxu0 0
    %5568 = vmatpush1.bf16.msra.mxu0 0
    %5569 = vmatprep.subr.bf16.mxu0 0
    %5570 = vmatpush1.bf16.msra.mxu0 0
    %5571 = vmatprep.subr.bf16.mxu0 0
    %5572 = vmatpush1.bf16.msra.mxu0 0
    %5573 = vmatprep.mubr.bf16.mxu0 0
    %5574 = vmatmul.mubr.bf16.gmra.mrb[0].mxu0 %v5073
    %v5575 = vpop.f32.mrb[0].mxu0
    %v5576 = vadd.f32 %v5335, %v5575
    %v5577 = vpop.f32.mrb[0].mxu0
    %v5578 = vpop.f32.mrb[0].mxu0
    %v5579 = vpop.f32.mrb[0].mxu0
    %5580 = vdwg.mxu0
    %5581 = vmatprep.subr.bf16.mxu0 %v5480
    %5582 = vmatpush1.bf16.msra.mxu0 %v5479
    %5583 = vmatprep.subr.bf16.mxu0 %v5484
    %5584 = vmatpush1.bf16.msra.mxu0 %v5483
    %5585 = vmatprep.subr.bf16.mxu0 %v5488
    %5586 = vmatpush1.bf16.msra.mxu0 %v5487
    %5587 = vmatprep.subr.bf16.mxu0 %v5492
    %5588 = vmatpush1.bf16.msra.mxu0 %v5491
    %5589 = vmatprep.subr.bf16.mxu0 %v5496
    %5590 = vmatpush1.bf16.msra.mxu0 %v5495
    %5591 = vmatprep.subr.bf16.mxu0 %v5500
    %5592 = vmatpush1.bf16.msra.mxu0 %v5499
    %5593 = vmatprep.subr.bf16.mxu0 %v5504
    %5594 = vmatpush1.bf16.msra.mxu0 %v5503
    %5595 = vmatprep.subr.bf16.mxu0 %v5508
    %5596 = vmatpush1.bf16.msra.mxu0 %v5507
    %5597 = vmatprep.subr.bf16.mxu0 0
    %5598 = vmatpush1.bf16.msra.mxu0 0
    %5599 = vmatprep.subr.bf16.mxu0 0
    %5600 = vmatpush1.bf16.msra.mxu0 0
    %5601 = vmatprep.subr.bf16.mxu0 0
    %5602 = vmatpush1.bf16.msra.mxu0 0
    %5603 = vmatprep.subr.bf16.mxu0 0
    %5604 = vmatpush1.bf16.msra.mxu0 0
    %5605 = vmatprep.subr.bf16.mxu0 0
    %5606 = vmatpush1.bf16.msra.mxu0 0
    %5607 = vmatprep.subr.bf16.mxu0 0
    %5608 = vmatpush1.bf16.msra.mxu0 0
    %5609 = vmatprep.subr.bf16.mxu0 0
    %5610 = vmatpush1.bf16.msra.mxu0 0
    %5611 = vmatprep.subr.bf16.mxu0 0
    %5612 = vmatpush1.bf16.msra.mxu0 0
    %5613 = vmatprep.mubr.bf16.mxu0 0
    %5614 = vmatmul.mubr.bf16.gmra.mrb[0].mxu0 %v5073
    %v5615 = vpop.f32.mrb[0].mxu0
    %v5616 = vadd.f32 %v5375, %v5615
    %v5617 = vpop.f32.mrb[0].mxu0
    %v5618 = vadd.f32 %v5377, %v5617
    %v5619 = vpop.f32.mrb[0].mxu0
    %v5620 = vpop.f32.mrb[0].mxu0
    %5621 = vdwg.mxu0
    %v5622 = vld [vmem:[%s9] sm:$0xf]
    %v5624 = vlaneseq
    %v5625 = vshrl.u32 %v5624, 7
    %v5626 = vsub.s32 0, %v5625
    %v5627 = vrot.slane %v5622, %v5626
    %v5628 = vlaneseq
    %v5629 = vshrl.u32 %v5628, 7
    %v5630 = vsub.s32 1, %v5629
    %v5631 = vrot.slane %v5622, %v5630
    %v5632 = vlaneseq
    %v5633 = vshrl.u32 %v5632, 7
    %v5634 = vsub.s32 2, %v5633
    %v5635 = vrot.slane %v5622, %v5634
    %v5636 = vlaneseq
    %v5637 = vshrl.u32 %v5636, 7
    %v5638 = vsub.s32 3, %v5637
    %v5639 = vrot.slane %v5622, %v5638
    %v5644 = vadd.f32 %v5576, %v5627
    %v5645 = vadd.f32 %v5616, %v5635
    %v5646 = vadd.f32 %v5618, %v5639
    %v5647 = vxor.u32 %v5644, 2147483648
    %v5648 = vmul.f32 %v5647, 1.442695
    %v5649 = vpow.pop %v5648
    %v5650 = vadd.f32 %v5649, 1.0
    %v5651 = vrcp.pop %v5650
    %v5652 = vmul.f32 1.0, %v5651
    %v5653 = vtanh.pop %v5645
    %v5654 = vxor.u32 %v5646, 2147483648
    %v5655 = vmul.f32 %v5654, 1.442695
    %v5656 = vpow.pop %v5655
    %v5657 = vadd.f32 %v5656, 1.0
    %v5658 = vrcp.pop %v5657
    %v5659 = vmul.f32 1.0, %v5658
    %v5660 = vmul.f32 %v5652, %v5653
    %v5661 = vtanh.pop %v5660
    %v5662 = vmul.f32 %v5659, %v5661
    %v5663 = vld [vmem:[%s1361] sm:$0xff]
    %v5664 = vpack.c.bf16 %v5663, %v5663
    %v5665 = vld [vmem:[%s4453] sm:$0xff]
    %v5666 = vpack.c.bf16 %v5665, %v5665
    %5667 = vmatprep.subr.bf16.mxu0 %v5237
    %5668 = vmatpush1.bf16.msra.mxu0 %v5236
    %5669 = vmatprep.subr.bf16.mxu0 %v5241
    %5670 = vmatpush1.bf16.msra.mxu0 %v5240
    %5671 = vmatprep.subr.bf16.mxu0 %v5245
    %5672 = vmatpush1.bf16.msra.mxu0 %v5244
    %5673 = vmatprep.subr.bf16.mxu0 %v5249
    %5674 = vmatpush1.bf16.msra.mxu0 %v5248
    %5675 = vmatprep.subr.bf16.mxu0 %v5253
    %5676 = vmatpush1.bf16.msra.mxu0 %v5252
    %5677 = vmatprep.subr.bf16.mxu0 %v5257
    %5678 = vmatpush1.bf16.msra.mxu0 %v5256
    %5679 = vmatprep.subr.bf16.mxu0 %v5261
    %5680 = vmatpush1.bf16.msra.mxu0 %v5260
    %5681 = vmatprep.subr.bf16.mxu0 %v5265
    %5682 = vmatpush1.bf16.msra.mxu0 %v5264
    %5683 = vmatprep.subr.bf16.mxu0 0
    %5684 = vmatpush1.bf16.msra.mxu0 0
    %5685 = vmatprep.subr.bf16.mxu0 0
    %5686 = vmatpush1.bf16.msra.mxu0 0
    %5687 = vmatprep.subr.bf16.mxu0 0
    %5688 = vmatpush1.bf16.msra.mxu0 0
    %5689 = vmatprep.subr.bf16.mxu0 0
    %5690 = vmatpush1.bf16.msra.mxu0 0
    %5691 = vmatprep.subr.bf16.mxu0 0
    %5692 = vmatpush1.bf16.msra.mxu0 0
    %5693 = vmatprep.subr.bf16.mxu0 0
    %5694 = vmatpush1.bf16.msra.mxu0 0
    %5695 = vmatprep.subr.bf16.mxu0 0
    %5696 = vmatpush1.bf16.msra.mxu0 0
    %5697 = vmatprep.subr.bf16.mxu0 0
    %5698 = vmatpush1.bf16.msra.mxu0 0
    %5699 = vmatprep.mubr.bf16.mxu0 0
    %5700 = vmatmul.mubr.bf16.gmra.mrb[0].mxu0 %v5666
    %v5701 = vpop.f32.mrb[0].mxu0
    %v5702 = vadd.f32 0.0, %v5701
    %v5703 = vpop.f32.mrb[0].mxu0
    %v5704 = vadd.f32 0.0, %v5703
    %v5705 = vpop.f32.mrb[0].mxu0
    %v5706 = vpop.f32.mrb[0].mxu0
    %5707 = vdwg.mxu0
    %5708 = vmatprep.subr.bf16.mxu0 %v5239
    %5709 = vmatpush1.bf16.msra.mxu0 %v5238
    %5710 = vmatprep.subr.bf16.mxu0 %v5243
    %5711 = vmatpush1.bf16.msra.mxu0 %v5242
    %5712 = vmatprep.subr.bf16.mxu0 %v5247
    %5713 = vmatpush1.bf16.msra.mxu0 %v5246
    %5714 = vmatprep.subr.bf16.mxu0 %v5251
    %5715 = vmatpush1.bf16.msra.mxu0 %v5250
    %5716 = vmatprep.subr.bf16.mxu0 %v5255
    %5717 = vmatpush1.bf16.msra.mxu0 %v5254
    %5718 = vmatprep.subr.bf16.mxu0 %v5259
    %5719 = vmatpush1.bf16.msra.mxu0 %v5258
    %5720 = vmatprep.subr.bf16.mxu0 %v5263
    %5721 = vmatpush1.bf16.msra.mxu0 %v5262
    %5722 = vmatprep.subr.bf16.mxu0 %v5267
    %5723 = vmatpush1.bf16.msra.mxu0 %v5266
    %5724 = vmatprep.subr.bf16.mxu0 0
    %5725 = vmatpush1.bf16.msra.mxu0 0
    %5726 = vmatprep.subr.bf16.mxu0 0
    %5727 = vmatpush1.bf16.msra.mxu0 0
    %5728 = vmatprep.subr.bf16.mxu0 0
    %5729 = vmatpush1.bf16.msra.mxu0 0
    %5730 = vmatprep.subr.bf16.mxu0 0
    %5731 = vmatpush1.bf16.msra.mxu0 0
    %5732 = vmatprep.subr.bf16.mxu0 0
    %5733 = vmatpush1.bf16.msra.mxu0 0
    %5734 = vmatprep.subr.bf16.mxu0 0
    %5735 = vmatpush1.bf16.msra.mxu0 0
    %5736 = vmatprep.subr.bf16.mxu0 0
    %5737 = vmatpush1.bf16.msra.mxu0 0
    %5738 = vmatprep.subr.bf16.mxu0 0
    %5739 = vmatpush1.bf16.msra.mxu0 0
    %5740 = vmatprep.mubr.bf16.mxu0 0
    %5741 = vmatmul.mubr.bf16.gmra.mrb[0].mxu0 %v5666
    %v5742 = vpop.f32.mrb[0].mxu0
    %v5743 = vadd.f32 0.0, %v5742
    %v5744 = vpop.f32.mrb[0].mxu0
    %v5745 = vadd.f32 0.0, %v5744
    %v5746 = vpop.f32.mrb[0].mxu0
    %v5747 = vpop.f32.mrb[0].mxu0
    %5748 = vdwg.mxu0
    %5749 = vmatprep.subr.bf16.mxu0 %v5478
    %5750 = vmatpush1.bf16.msra.mxu0 %v5477
    %5751 = vmatprep.subr.bf16.mxu0 %v5482
    %5752 = vmatpush1.bf16.msra.mxu0 %v5481
    %5753 = vmatprep.subr.bf16.mxu0 %v5486
    %5754 = vmatpush1.bf16.msra.mxu0 %v5485
    %5755 = vmatprep.subr.bf16.mxu0 %v5490
    %5756 = vmatpush1.bf16.msra.mxu0 %v5489
    %5757 = vmatprep.subr.bf16.mxu0 %v5494
    %5758 = vmatpush1.bf16.msra.mxu0 %v5493
    %5759 = vmatprep.subr.bf16.mxu0 %v5498
    %5760 = vmatpush1.bf16.msra.mxu0 %v5497
    %5761 = vmatprep.subr.bf16.mxu0 %v5502
    %5762 = vmatpush1.bf16.msra.mxu0 %v5501
    %5763 = vmatprep.subr.bf16.mxu0 %v5506
    %5764 = vmatpush1.bf16.msra.mxu0 %v5505
    %5765 = vmatprep.subr.bf16.mxu0 0
    %5766 = vmatpush1.bf16.msra.mxu0 0
    %5767 = vmatprep.subr.bf16.mxu0 0
    %5768 = vmatpush1.bf16.msra.mxu0 0
    %5769 = vmatprep.subr.bf16.mxu0 0
    %5770 = vmatpush1.bf16.msra.mxu0 0
    %5771 = vmatprep.subr.bf16.mxu0 0
    %5772 = vmatpush1.bf16.msra.mxu0 0
    %5773 = vmatprep.subr.bf16.mxu0 0
    %5774 = vmatpush1.bf16.msra.mxu0 0
    %5775 = vmatprep.subr.bf16.mxu0 0
    %5776 = vmatpush1.bf16.msra.mxu0 0
    %5777 = vmatprep.subr.bf16.mxu0 0
    %5778 = vmatpush1.bf16.msra.mxu0 0
    %5779 = vmatprep.subr.bf16.mxu0 0
    %5780 = vmatpush1.bf16.msra.mxu0 0
    %5781 = vmatprep.mubr.bf16.mxu0 0
    %5782 = vmatmul.mubr.bf16.gmra.mrb[0].mxu0 %v5664
    %v5783 = vpop.f32.mrb[0].mxu0
    %v5784 = vadd.f32 %v5702, %v5783
    %v5785 = vpop.f32.mrb[0].mxu0
    %v5786 = vadd.f32 %v5704, %v5785
    %v5787 = vpop.f32.mrb[0].mxu0
    %v5788 = vpop.f32.mrb[0].mxu0
    %5789 = vdwg.mxu0
    %5790 = vmatprep.subr.bf16.mxu0 %v5480
    %5791 = vmatpush1.bf16.msra.mxu0 %v5479
    %5792 = vmatprep.subr.bf16.mxu0 %v5484
    %5793 = vmatpush1.bf16.msra.mxu0 %v5483
    %5794 = vmatprep.subr.bf16.mxu0 %v5488
    %5795 = vmatpush1.bf16.msra.mxu0 %v5487
    %5796 = vmatprep.subr.bf16.mxu0 %v5492
    %5797 = vmatpush1.bf16.msra.mxu0 %v5491
    %5798 = vmatprep.subr.bf16.mxu0 %v5496
    %5799 = vmatpush1.bf16.msra.mxu0 %v5495
    %5800 = vmatprep.subr.bf16.mxu0 %v5500
    %5801 = vmatpush1.bf16.msra.mxu0 %v5499
    %5802 = vmatprep.subr.bf16.mxu0 %v5504
    %5803 = vmatpush1.bf16.msra.mxu0 %v5503
    %5804 = vmatprep.subr.bf16.mxu0 %v5508
    %5805 = vmatpush1.bf16.msra.mxu0 %v5507
    %5806 = vmatprep.subr.bf16.mxu0 0
    %5807 = vmatpush1.bf16.msra.mxu0 0
    %5808 = vmatprep.subr.bf16.mxu0 0
    %5809 = vmatpush1.bf16.msra.mxu0 0
    %5810 = vmatprep.subr.bf16.mxu0 0
    %5811 = vmatpush1.bf16.msra.mxu0 0
    %5812 = vmatprep.subr.bf16.mxu0 0
    %5813 = vmatpush1.bf16.msra.mxu0 0
    %5814 = vmatprep.subr.bf16.mxu0 0
    %5815 = vmatpush1.bf16.msra.mxu0 0
    %5816 = vmatprep.subr.bf16.mxu0 0
    %5817 = vmatpush1.bf16.msra.mxu0 0
    %5818 = vmatprep.subr.bf16.mxu0 0
    %5819 = vmatpush1.bf16.msra.mxu0 0
    %5820 = vmatprep.subr.bf16.mxu0 0
    %5821 = vmatpush1.bf16.msra.mxu0 0
    %5822 = vmatprep.mubr.bf16.mxu0 0
    %5823 = vmatmul.mubr.bf16.gmra.mrb[0].mxu0 %v5664
    %v5824 = vpop.f32.mrb[0].mxu0
    %v5825 = vadd.f32 %v5743, %v5824
    %v5826 = vpop.f32.mrb[0].mxu0
    %v5827 = vadd.f32 %v5745, %v5826
    %v5828 = vpop.f32.mrb[0].mxu0
    %v5829 = vpop.f32.mrb[0].mxu0
    %5830 = vdwg.mxu0
    %v5831 = vadd.f32 %v5784, %v5627
    %v5832 = vadd.f32 %v5786, %v5631
    %v5833 = vadd.f32 %v5825, %v5635
    %v5834 = vadd.f32 %v5827, %v5639
    %v5835 = vpack.c.bf16 %v5662, %v5662
    %v5836 = vld [vmem:[#allocation16] sm:$0xff]
    %v5837 = vld [vmem:[#allocation16 + $0x8] sm:$0xff]
    %v5838 = vld [vmem:[#allocation16 + $0x10] sm:$0xff]
    %v5839 = vld [vmem:[#allocation16 + $0x18] sm:$0xff]
    %v5840 = vld [vmem:[#allocation16 + $0x20] sm:$0xff]
    %v5841 = vld [vmem:[#allocation16 + $0x28] sm:$0xff]
    %v5842 = vld [vmem:[#allocation16 + $0x30] sm:$0xff]
    %v5843 = vld [vmem:[#allocation16 + $0x38] sm:$0xff]
    %v5844 = vld [vmem:[#allocation16 + $0x40] sm:$0xff]
    %v5845 = vld [vmem:[#allocation16 + $0x48] sm:$0xff]
    %v5846 = vld [vmem:[#allocation16 + $0x50] sm:$0xff]
    %v5847 = vld [vmem:[#allocation16 + $0x58] sm:$0xff]
    %v5848 = vld [vmem:[#allocation16 + $0x60] sm:$0xff]
    %v5849 = vld [vmem:[#allocation16 + $0x68] sm:$0xff]
    %v5850 = vld [vmem:[#allocation16 + $0x70] sm:$0xff]
    %v5851 = vld [vmem:[#allocation16 + $0x78] sm:$0xff]
    %v5852 = vld [vmem:[#allocation16 + $0x80] sm:$0xff]
    %v5853 = vld [vmem:[#allocation16 + $0x88] sm:$0xff]
    %v5854 = vld [vmem:[#allocation16 + $0x90] sm:$0xff]
    %v5855 = vld [vmem:[#allocation16 + $0x98] sm:$0xff]
    %v5856 = vld [vmem:[#allocation16 + $0xa0] sm:$0xff]
    %v5857 = vld [vmem:[#allocation16 + $0xa8] sm:$0xff]
    %v5858 = vld [vmem:[#allocation16 + $0xb0] sm:$0xff]
    %v5859 = vld [vmem:[#allocation16 + $0xb8] sm:$0xff]
    %v5860 = vld [vmem:[#allocation16 + $0xc0] sm:$0xff]
    %v5861 = vld [vmem:[#allocation16 + $0xc8] sm:$0xff]
    %v5862 = vld [vmem:[#allocation16 + $0xd0] sm:$0xff]
    %v5863 = vld [vmem:[#allocation16 + $0xd8] sm:$0xff]
    %v5864 = vld [vmem:[#allocation16 + $0xe0] sm:$0xff]
    %v5865 = vld [vmem:[#allocation16 + $0xe8] sm:$0xff]
    %v5866 = vld [vmem:[#allocation16 + $0xf0] sm:$0xff]
    %v5867 = vld [vmem:[#allocation16 + $0xf8] sm:$0xff]
    %v5900 = vunpack.c.l.b16 %v5836
    %v5901 = vunpack.c.h.b16 %v5836
    %v5902 = vunpack.c.l.b16 %v5837
    %v5903 = vunpack.c.h.b16 %v5837
    %v5904 = vunpack.c.l.b16 %v5838
    %v5905 = vunpack.c.h.b16 %v5838
    %v5906 = vunpack.c.l.b16 %v5839
    %v5907 = vunpack.c.h.b16 %v5839
    %v5908 = vunpack.c.l.b16 %v5840
    %v5909 = vunpack.c.h.b16 %v5840
    %v5910 = vunpack.c.l.b16 %v5841
    %v5911 = vunpack.c.h.b16 %v5841
    %v5912 = vunpack.c.l.b16 %v5842
    %v5913 = vunpack.c.h.b16 %v5842
    %v5914 = vunpack.c.l.b16 %v5843
    %v5915 = vunpack.c.h.b16 %v5843
    %v5916 = vunpack.c.l.b16 %v5844
    %v5917 = vunpack.c.h.b16 %v5844
    %v5918 = vunpack.c.l.b16 %v5845
    %v5919 = vunpack.c.h.b16 %v5845
    %v5920 = vunpack.c.l.b16 %v5846
    %v5921 = vunpack.c.h.b16 %v5846
    %v5922 = vunpack.c.l.b16 %v5847
    %v5923 = vunpack.c.h.b16 %v5847
    %v5924 = vunpack.c.l.b16 %v5848
    %v5925 = vunpack.c.h.b16 %v5848
    %v5926 = vunpack.c.l.b16 %v5849
    %v5927 = vunpack.c.h.b16 %v5849
    %v5928 = vunpack.c.l.b16 %v5850
    %v5929 = vunpack.c.h.b16 %v5850
    %v5930 = vunpack.c.l.b16 %v5851
    %v5931 = vunpack.c.h.b16 %v5851
    %v5932 = vunpack.c.l.b16 %v5852
    %v5933 = vunpack.c.h.b16 %v5852
    %v5934 = vunpack.c.l.b16 %v5853
    %v5935 = vunpack.c.h.b16 %v5853
    %v5936 = vunpack.c.l.b16 %v5854
    %v5937 = vunpack.c.h.b16 %v5854
    %v5938 = vunpack.c.l.b16 %v5855
    %v5939 = vunpack.c.h.b16 %v5855
    %v5940 = vunpack.c.l.b16 %v5856
    %v5941 = vunpack.c.h.b16 %v5856
    %v5942 = vunpack.c.l.b16 %v5857
    %v5943 = vunpack.c.h.b16 %v5857
    %v5944 = vunpack.c.l.b16 %v5858
    %v5945 = vunpack.c.h.b16 %v5858
    %v5946 = vunpack.c.l.b16 %v5859
    %v5947 = vunpack.c.h.b16 %v5859
    %v5948 = vunpack.c.l.b16 %v5860
    %v5949 = vunpack.c.h.b16 %v5860
    %v5950 = vunpack.c.l.b16 %v5861
    %v5951 = vunpack.c.h.b16 %v5861
    %v5952 = vunpack.c.l.b16 %v5862
    %v5953 = vunpack.c.h.b16 %v5862
    %v5954 = vunpack.c.l.b16 %v5863
    %v5955 = vunpack.c.h.b16 %v5863
    %v5956 = vunpack.c.l.b16 %v5864
    %v5957 = vunpack.c.h.b16 %v5864
    %v5958 = vunpack.c.l.b16 %v5865
    %v5959 = vunpack.c.h.b16 %v5865
    %v5960 = vunpack.c.l.b16 %v5866
    %v5961 = vunpack.c.h.b16 %v5866
    %v5962 = vunpack.c.l.b16 %v5867
    %v5963 = vunpack.c.h.b16 %v5867
    %v5964 = vpack.c.b16 %v5904, %v5900
    %v5965 = vpack.c.b16 %v5905, %v5901
    %v5966 = vpack.c.b16 %v5906, %v5902
    %v5967 = vpack.c.b16 %v5907, %v5903
    %v5968 = vpack.c.b16 %v5912, %v5908
    %v5969 = vpack.c.b16 %v5913, %v5909
    %v5970 = vpack.c.b16 %v5914, %v5910
    %v5971 = vpack.c.b16 %v5915, %v5911
    %v5972 = vpack.c.b16 %v5920, %v5916
    %v5973 = vpack.c.b16 %v5921, %v5917
    %v5974 = vpack.c.b16 %v5922, %v5918
    %v5975 = vpack.c.b16 %v5923, %v5919
    %v5976 = vpack.c.b16 %v5928, %v5924
    %v5977 = vpack.c.b16 %v5929, %v5925
    %v5978 = vpack.c.b16 %v5930, %v5926
    %v5979 = vpack.c.b16 %v5931, %v5927
    %v5980 = vpack.c.b16 %v5936, %v5932
    %v5981 = vpack.c.b16 %v5937, %v5933
    %v5982 = vpack.c.b16 %v5938, %v5934
    %v5983 = vpack.c.b16 %v5939, %v5935
    %v5984 = vpack.c.b16 %v5944, %v5940
    %v5985 = vpack.c.b16 %v5945, %v5941
    %v5986 = vpack.c.b16 %v5946, %v5942
    %v5987 = vpack.c.b16 %v5947, %v5943
    %v5988 = vpack.c.b16 %v5952, %v5948
    %v5989 = vpack.c.b16 %v5953, %v5949
    %v5990 = vpack.c.b16 %v5954, %v5950
    %v5991 = vpack.c.b16 %v5955, %v5951
    %v5992 = vpack.c.b16 %v5960, %v5956
    %v5993 = vpack.c.b16 %v5961, %v5957
    %v5994 = vpack.c.b16 %v5962, %v5958
    %v5995 = vpack.c.b16 %v5963, %v5959
    %6028 = vmatprep.subr.bf16.mxu0 %v5965
    %6029 = vmatpush1.bf16.msra.mxu0 %v5964
    %6030 = vmatprep.subr.bf16.mxu0 %v5969
    %6031 = vmatpush1.bf16.msra.mxu0 %v5968
    %6032 = vmatprep.subr.bf16.mxu0 %v5973
    %6033 = vmatpush1.bf16.msra.mxu0 %v5972
    %6034 = vmatprep.subr.bf16.mxu0 %v5977
    %6035 = vmatpush1.bf16.msra.mxu0 %v5976
    %6036 = vmatprep.subr.bf16.mxu0 %v5981
    %6037 = vmatpush1.bf16.msra.mxu0 %v5980
    %6038 = vmatprep.subr.bf16.mxu0 %v5985
    %6039 = vmatpush1.bf16.msra.mxu0 %v5984
    %6040 = vmatprep.subr.bf16.mxu0 %v5989
    %6041 = vmatpush1.bf16.msra.mxu0 %v5988
    %6042 = vmatprep.subr.bf16.mxu0 %v5993
    %6043 = vmatpush1.bf16.msra.mxu0 %v5992
    %6044 = vmatprep.subr.bf16.mxu0 0
    %6045 = vmatpush1.bf16.msra.mxu0 0
    %6046 = vmatprep.subr.bf16.mxu0 0
    %6047 = vmatpush1.bf16.msra.mxu0 0
    %6048 = vmatprep.subr.bf16.mxu0 0
    %6049 = vmatpush1.bf16.msra.mxu0 0
    %6050 = vmatprep.subr.bf16.mxu0 0
    %6051 = vmatpush1.bf16.msra.mxu0 0
    %6052 = vmatprep.subr.bf16.mxu0 0
    %6053 = vmatpush1.bf16.msra.mxu0 0
    %6054 = vmatprep.subr.bf16.mxu0 0
    %6055 = vmatpush1.bf16.msra.mxu0 0
    %6056 = vmatprep.subr.bf16.mxu0 0
    %6057 = vmatpush1.bf16.msra.mxu0 0
    %6058 = vmatprep.subr.bf16.mxu0 0
    %6059 = vmatpush1.bf16.msra.mxu0 0
    %6060 = vmatprep.mubr.bf16.mxu0 0
    %6061 = vmatmul.mubr.bf16.gmra.mrb[0].mxu0 %v5835
    %v6062 = vpop.f32.mrb[0].mxu0
    %v6063 = vadd.f32 0.0, %v6062
    %v6064 = vpop.f32.mrb[0].mxu0
    %v6065 = vadd.f32 0.0, %v6064
    %v6066 = vpop.f32.mrb[0].mxu0
    %v6067 = vpop.f32.mrb[0].mxu0
    %6068 = vdwg.mxu0
    %6069 = vmatprep.subr.bf16.mxu0 %v5967
    %6070 = vmatpush1.bf16.msra.mxu0 %v5966
    %6071 = vmatprep.subr.bf16.mxu0 %v5971
    %6072 = vmatpush1.bf16.msra.mxu0 %v5970
    %6073 = vmatprep.subr.bf16.mxu0 %v5975
    %6074 = vmatpush1.bf16.msra.mxu0 %v5974
    %6075 = vmatprep.subr.bf16.mxu0 %v5979
    %6076 = vmatpush1.bf16.msra.mxu0 %v5978
    %6077 = vmatprep.subr.bf16.mxu0 %v5983
    %6078 = vmatpush1.bf16.msra.mxu0 %v5982
    %6079 = vmatprep.subr.bf16.mxu0 %v5987
    %6080 = vmatpush1.bf16.msra.mxu0 %v5986
    %6081 = vmatprep.subr.bf16.mxu0 %v5991
    %6082 = vmatpush1.bf16.msra.mxu0 %v5990
    %6083 = vmatprep.subr.bf16.mxu0 %v5995
    %6084 = vmatpush1.bf16.msra.mxu0 %v5994
    %6085 = vmatprep.subr.bf16.mxu0 0
    %6086 = vmatpush1.bf16.msra.mxu0 0
    %6087 = vmatprep.subr.bf16.mxu0 0
    %6088 = vmatpush1.bf16.msra.mxu0 0
    %6089 = vmatprep.subr.bf16.mxu0 0
    %6090 = vmatpush1.bf16.msra.mxu0 0
    %6091 = vmatprep.subr.bf16.mxu0 0
    %6092 = vmatpush1.bf16.msra.mxu0 0
    %6093 = vmatprep.subr.bf16.mxu0 0
    %6094 = vmatpush1.bf16.msra.mxu0 0
    %6095 = vmatprep.subr.bf16.mxu0 0
    %6096 = vmatpush1.bf16.msra.mxu0 0
    %6097 = vmatprep.subr.bf16.mxu0 0
    %6098 = vmatpush1.bf16.msra.mxu0 0
    %6099 = vmatprep.subr.bf16.mxu0 0
    %6100 = vmatpush1.bf16.msra.mxu0 0
    %6101 = vmatprep.mubr.bf16.mxu0 0
    %6102 = vmatmul.mubr.bf16.gmra.mrb[0].mxu0 %v5835
    %v6103 = vpop.f32.mrb[0].mxu0
    %v6104 = vadd.f32 0.0, %v6103
    %v6105 = vpop.f32.mrb[0].mxu0
    %v6106 = vadd.f32 0.0, %v6105
    %v6107 = vpop.f32.mrb[0].mxu0
    %v6108 = vpop.f32.mrb[0].mxu0
    %6109 = vdwg.mxu0
    %v6110 = vadd.f32 %v5831, %v6063
    %v6111 = vadd.f32 %v5832, %v6065
    %v6112 = vadd.f32 %v5833, %v6104
    %v6113 = vadd.f32 %v5834, %v6106
    %v6114 = vxor.u32 %v6110, 2147483648
    %v6115 = vmul.f32 %v6114, 1.442695
    %v6116 = vpow.pop %v6115
    %v6117 = vadd.f32 %v6116, 1.0
    %v6118 = vrcp.pop %v6117
    %v6119 = vmul.f32 1.0, %v6118
    %v6120 = vtanh.pop %v6112
    %v6121 = vxor.u32 %v6113, 2147483648
    %v6122 = vmul.f32 %v6121, 1.442695
    %v6123 = vpow.pop %v6122
    %v6124 = vadd.f32 %v6123, 1.0
    %v6125 = vrcp.pop %v6124
    %v6126 = vmul.f32 1.0, %v6125
    %v6127 = vxor.u32 %v6111, 2147483648
    %v6128 = vmul.f32 %v6127, 1.442695
    %v6129 = vpow.pop %v6128
    %v6130 = vadd.f32 %v6129, 1.0
    %v6131 = vrcp.pop %v6130
    %v6132 = vmul.f32 1.0, %v6131
    %v6133 = vmul.f32 %v6132, %v5660
    %v6134 = vmul.f32 %v6119, %v6120
    %v6135 = vadd.f32 %v6133, %v6134
    %v6136 = vtanh.pop %v6135
    %v6137 = vmul.f32 %v6126, %v6136
    %v6138 = vld [vmem:[%s1979] sm:$0xff]
    %v6139 = vpack.c.bf16 %v6138, %v6138
    %v6140 = vld [vmem:[%s3835] sm:$0xff]
    %v6141 = vpack.c.bf16 %v6140, %v6140
    %6142 = vmatprep.subr.bf16.mxu0 %v5237
    %6143 = vmatpush1.bf16.msra.mxu0 %v5236
    %6144 = vmatprep.subr.bf16.mxu0 %v5241
    %6145 = vmatpush1.bf16.msra.mxu0 %v5240
    %6146 = vmatprep.subr.bf16.mxu0 %v5245
    %6147 = vmatpush1.bf16.msra.mxu0 %v5244
    %6148 = vmatprep.subr.bf16.mxu0 %v5249
    %6149 = vmatpush1.bf16.msra.mxu0 %v5248
    %6150 = vmatprep.subr.bf16.mxu0 %v5253
    %6151 = vmatpush1.bf16.msra.mxu0 %v5252
    %6152 = vmatprep.subr.bf16.mxu0 %v5257
    %6153 = vmatpush1.bf16.msra.mxu0 %v5256
    %6154 = vmatprep.subr.bf16.mxu0 %v5261
    %6155 = vmatpush1.bf16.msra.mxu0 %v5260
    %6156 = vmatprep.subr.bf16.mxu0 %v5265
    %6157 = vmatpush1.bf16.msra.mxu0 %v5264
    %6158 = vmatprep.subr.bf16.mxu0 0
    %6159 = vmatpush1.bf16.msra.mxu0 0
    %6160 = vmatprep.subr.bf16.mxu0 0
    %6161 = vmatpush1.bf16.msra.mxu0 0
    %6162 = vmatprep.subr.bf16.mxu0 0
    %6163 = vmatpush1.bf16.msra.mxu0 0
    %6164 = vmatprep.subr.bf16.mxu0 0
    %6165 = vmatpush1.bf16.msra.mxu0 0
    %6166 = vmatprep.subr.bf16.mxu0 0
    %6167 = vmatpush1.bf16.msra.mxu0 0
    %6168 = vmatprep.subr.bf16.mxu0 0
    %6169 = vmatpush1.bf16.msra.mxu0 0
    %6170 = vmatprep.subr.bf16.mxu0 0
    %6171 = vmatpush1.bf16.msra.mxu0 0
    %6172 = vmatprep.subr.bf16.mxu0 0
    %6173 = vmatpush1.bf16.msra.mxu0 0
    %6174 = vmatprep.mubr.bf16.mxu0 0
    %6175 = vmatmul.mubr.bf16.gmra.mrb[0].mxu0 %v6141
    %v6176 = vpop.f32.mrb[0].mxu0
    %v6177 = vadd.f32 0.0, %v6176
    %v6178 = vpop.f32.mrb[0].mxu0
    %v6179 = vadd.f32 0.0, %v6178
    %v6180 = vpop.f32.mrb[0].mxu0
    %v6181 = vpop.f32.mrb[0].mxu0
    %6182 = vdwg.mxu0
    %6183 = vmatprep.subr.bf16.mxu0 %v5239
    %6184 = vmatpush1.bf16.msra.mxu0 %v5238
    %6185 = vmatprep.subr.bf16.mxu0 %v5243
    %6186 = vmatpush1.bf16.msra.mxu0 %v5242
    %6187 = vmatprep.subr.bf16.mxu0 %v5247
    %6188 = vmatpush1.bf16.msra.mxu0 %v5246
    %6189 = vmatprep.subr.bf16.mxu0 %v5251
    %6190 = vmatpush1.bf16.msra.mxu0 %v5250
    %6191 = vmatprep.subr.bf16.mxu0 %v5255
    %6192 = vmatpush1.bf16.msra.mxu0 %v5254
    %6193 = vmatprep.subr.bf16.mxu0 %v5259
    %6194 = vmatpush1.bf16.msra.mxu0 %v5258
    %6195 = vmatprep.subr.bf16.mxu0 %v5263
    %6196 = vmatpush1.bf16.msra.mxu0 %v5262
    %6197 = vmatprep.subr.bf16.mxu0 %v5267
    %6198 = vmatpush1.bf16.msra.mxu0 %v5266
    %6199 = vmatprep.subr.bf16.mxu0 0
    %6200 = vmatpush1.bf16.msra.mxu0 0
    %6201 = vmatprep.subr.bf16.mxu0 0
    %6202 = vmatpush1.bf16.msra.mxu0 0
    %6203 = vmatprep.subr.bf16.mxu0 0
    %6204 = vmatpush1.bf16.msra.mxu0 0
    %6205 = vmatprep.subr.bf16.mxu0 0
    %6206 = vmatpush1.bf16.msra.mxu0 0
    %6207 = vmatprep.subr.bf16.mxu0 0
    %6208 = vmatpush1.bf16.msra.mxu0 0
    %6209 = vmatprep.subr.bf16.mxu0 0
    %6210 = vmatpush1.bf16.msra.mxu0 0
    %6211 = vmatprep.subr.bf16.mxu0 0
    %6212 = vmatpush1.bf16.msra.mxu0 0
    %6213 = vmatprep.subr.bf16.mxu0 0
    %6214 = vmatpush1.bf16.msra.mxu0 0
    %6215 = vmatprep.mubr.bf16.mxu0 0
    %6216 = vmatmul.mubr.bf16.gmra.mrb[0].mxu0 %v6141
    %v6217 = vpop.f32.mrb[0].mxu0
    %v6218 = vadd.f32 0.0, %v6217
    %v6219 = vpop.f32.mrb[0].mxu0
    %v6220 = vadd.f32 0.0, %v6219
    %v6221 = vpop.f32.mrb[0].mxu0
    %v6222 = vpop.f32.mrb[0].mxu0
    %6223 = vdwg.mxu0
    %6224 = vmatprep.subr.bf16.mxu0 %v5478
    %6225 = vmatpush1.bf16.msra.mxu0 %v5477
    %6226 = vmatprep.subr.bf16.mxu0 %v5482
    %6227 = vmatpush1.bf16.msra.mxu0 %v5481
    %6228 = vmatprep.subr.bf16.mxu0 %v5486
    %6229 = vmatpush1.bf16.msra.mxu0 %v5485
    %6230 = vmatprep.subr.bf16.mxu0 %v5490
    %6231 = vmatpush1.bf16.msra.mxu0 %v5489
    %6232 = vmatprep.subr.bf16.mxu0 %v5494
    %6233 = vmatpush1.bf16.msra.mxu0 %v5493
    %6234 = vmatprep.subr.bf16.mxu0 %v5498
    %6235 = vmatpush1.bf16.msra.mxu0 %v5497
    %6236 = vmatprep.subr.bf16.mxu0 %v5502
    %6237 = vmatpush1.bf16.msra.mxu0 %v5501
    %6238 = vmatprep.subr.bf16.mxu0 %v5506
    %6239 = vmatpush1.bf16.msra.mxu0 %v5505
    %6240 = vmatprep.subr.bf16.mxu0 0
    %6241 = vmatpush1.bf16.msra.mxu0 0
    %6242 = vmatprep.subr.bf16.mxu0 0
    %6243 = vmatpush1.bf16.msra.mxu0 0
    %6244 = vmatprep.subr.bf16.mxu0 0
    %6245 = vmatpush1.bf16.msra.mxu0 0
    %6246 = vmatprep.subr.bf16.mxu0 0
    %6247 = vmatpush1.bf16.msra.mxu0 0
    %6248 = vmatprep.subr.bf16.mxu0 0
    %6249 = vmatpush1.bf16.msra.mxu0 0
    %6250 = vmatprep.subr.bf16.mxu0 0
    %6251 = vmatpush1.bf16.msra.mxu0 0
    %6252 = vmatprep.subr.bf16.mxu0 0
    %6253 = vmatpush1.bf16.msra.mxu0 0
    %6254 = vmatprep.subr.bf16.mxu0 0
    %6255 = vmatpush1.bf16.msra.mxu0 0
    %6256 = vmatprep.mubr.bf16.mxu0 0
    %6257 = vmatmul.mubr.bf16.gmra.mrb[0].mxu0 %v6139
    %v6258 = vpop.f32.mrb[0].mxu0
    %v6259 = vadd.f32 %v6177, %v6258
    %v6260 = vpop.f32.mrb[0].mxu0
    %v6261 = vadd.f32 %v6179, %v6260
    %v6262 = vpop.f32.mrb[0].mxu0
    %v6263 = vpop.f32.mrb[0].mxu0
    %6264 = vdwg.mxu0
    %6265 = vmatprep.subr.bf16.mxu0 %v5480
    %6266 = vmatpush1.bf16.msra.mxu0 %v5479
    %6267 = vmatprep.subr.bf16.mxu0 %v5484
    %6268 = vmatpush1.bf16.msra.mxu0 %v5483
    %6269 = vmatprep.subr.bf16.mxu0 %v5488
    %6270 = vmatpush1.bf16.msra.mxu0 %v5487
    %6271 = vmatprep.subr.bf16.mxu0 %v5492
    %6272 = vmatpush1.bf16.msra.mxu0 %v5491
    %6273 = vmatprep.subr.bf16.mxu0 %v5496
    %6274 = vmatpush1.bf16.msra.mxu0 %v5495
    %6275 = vmatprep.subr.bf16.mxu0 %v5500
    %6276 = vmatpush1.bf16.msra.mxu0 %v5499
    %6277 = vmatprep.subr.bf16.mxu0 %v5504
    %6278 = vmatpush1.bf16.msra.mxu0 %v5503
    %6279 = vmatprep.subr.bf16.mxu0 %v5508
    %6280 = vmatpush1.bf16.msra.mxu0 %v5507
    %6281 = vmatprep.subr.bf16.mxu0 0
    %6282 = vmatpush1.bf16.msra.mxu0 0
    %6283 = vmatprep.subr.bf16.mxu0 0
    %6284 = vmatpush1.bf16.msra.mxu0 0
    %6285 = vmatprep.subr.bf16.mxu0 0
    %6286 = vmatpush1.bf16.msra.mxu0 0
    %6287 = vmatprep.subr.bf16.mxu0 0
    %6288 = vmatpush1.bf16.msra.mxu0 0
    %6289 = vmatprep.subr.bf16.mxu0 0
    %6290 = vmatpush1.bf16.msra.mxu0 0
    %6291 = vmatprep.subr.bf16.mxu0 0
    %6292 = vmatpush1.bf16.msra.mxu0 0
    %6293 = vmatprep.subr.bf16.mxu0 0
    %6294 = vmatpush1.bf16.msra.mxu0 0
    %6295 = vmatprep.subr.bf16.mxu0 0
    %6296 = vmatpush1.bf16.msra.mxu0 0
    %6297 = vmatprep.mubr.bf16.mxu0 0
    %6298 = vmatmul.mubr.bf16.gmra.mrb[0].mxu0 %v6139
    %v6299 = vpop.f32.mrb[0].mxu0
    %v6300 = vadd.f32 %v6218, %v6299
    %v6301 = vpop.f32.mrb[0].mxu0
    %v6302 = vadd.f32 %v6220, %v6301
    %v6303 = vpop.f32.mrb[0].mxu0
    %v6304 = vpop.f32.mrb[0].mxu0
    %6305 = vdwg.mxu0
    %v6306 = vadd.f32 %v6259, %v5627
    %v6307 = vadd.f32 %v6261, %v5631
    %v6308 = vadd.f32 %v6300, %v5635
    %v6309 = vadd.f32 %v6302, %v5639
    %v6310 = vpack.c.bf16 %v6137, %v6137
    %6311 = vmatprep.subr.bf16.mxu0 %v5965
    %6312 = vmatpush1.bf16.msra.mxu0 %v5964
    %6313 = vmatprep.subr.bf16.mxu0 %v5969
    %6314 = vmatpush1.bf16.msra.mxu0 %v5968
    %6315 = vmatprep.subr.bf16.mxu0 %v5973
    %6316 = vmatpush1.bf16.msra.mxu0 %v5972
    %6317 = vmatprep.subr.bf16.mxu0 %v5977
    %6318 = vmatpush1.bf16.msra.mxu0 %v5976
    %6319 = vmatprep.subr.bf16.mxu0 %v5981
    %6320 = vmatpush1.bf16.msra.mxu0 %v5980
    %6321 = vmatprep.subr.bf16.mxu0 %v5985
    %6322 = vmatpush1.bf16.msra.mxu0 %v5984
    %6323 = vmatprep.subr.bf16.mxu0 %v5989
    %6324 = vmatpush1.bf16.msra.mxu0 %v5988
    %6325 = vmatprep.subr.bf16.mxu0 %v5993
    %6326 = vmatpush1.bf16.msra.mxu0 %v5992
    %6327 = vmatprep.subr.bf16.mxu0 0
    %6328 = vmatpush1.bf16.msra.mxu0 0
    %6329 = vmatprep.subr.bf16.mxu0 0
    %6330 = vmatpush1.bf16.msra.mxu0 0
    %6331 = vmatprep.subr.bf16.mxu0 0
    %6332 = vmatpush1.bf16.msra.mxu0 0
    %6333 = vmatprep.subr.bf16.mxu0 0
    %6334 = vmatpush1.bf16.msra.mxu0 0
    %6335 = vmatprep.subr.bf16.mxu0 0
    %6336 = vmatpush1.bf16.msra.mxu0 0
    %6337 = vmatprep.subr.bf16.mxu0 0
    %6338 = vmatpush1.bf16.msra.mxu0 0
    %6339 = vmatprep.subr.bf16.mxu0 0
    %6340 = vmatpush1.bf16.msra.mxu0 0
    %6341 = vmatprep.subr.bf16.mxu0 0
    %6342 = vmatpush1.bf16.msra.mxu0 0
    %6343 = vmatprep.mubr.bf16.mxu0 0
    %6344 = vmatmul.mubr.bf16.gmra.mrb[0].mxu0 %v6310
    %v6345 = vpop.f32.mrb[0].mxu0
    %v6346 = vadd.f32 0.0, %v6345
    %v6347 = vpop.f32.mrb[0].mxu0
    %v6348 = vadd.f32 0.0, %v6347
    %v6349 = vpop.f32.mrb[0].mxu0
    %v6350 = vpop.f32.mrb[0].mxu0
    %6351 = vdwg.mxu0
    %6352 = vmatprep.subr.bf16.mxu0 %v5967
    %6353 = vmatpush1.bf16.msra.mxu0 %v5966
    %6354 = vmatprep.subr.bf16.mxu0 %v5971
    %6355 = vmatpush1.bf16.msra.mxu0 %v5970
    %6356 = vmatprep.subr.bf16.mxu0 %v5975
    %6357 = vmatpush1.bf16.msra.mxu0 %v5974
    %6358 = vmatprep.subr.bf16.mxu0 %v5979
    %6359 = vmatpush1.bf16.msra.mxu0 %v5978
    %6360 = vmatprep.subr.bf16.mxu0 %v5983
    %6361 = vmatpush1.bf16.msra.mxu0 %v5982
    %6362 = vmatprep.subr.bf16.mxu0 %v5987
    %6363 = vmatpush1.bf16.msra.mxu0 %v5986
    %6364 = vmatprep.subr.bf16.mxu0 %v5991
    %6365 = vmatpush1.bf16.msra.mxu0 %v5990
    %6366 = vmatprep.subr.bf16.mxu0 %v5995
    %6367 = vmatpush1.bf16.msra.mxu0 %v5994
    %6368 = vmatprep.subr.bf16.mxu0 0
    %6369 = vmatpush1.bf16.msra.mxu0 0
    %6370 = vmatprep.subr.bf16.mxu0 0
    %6371 = vmatpush1.bf16.msra.mxu0 0
    %6372 = vmatprep.subr.bf16.mxu0 0
    %6373 = vmatpush1.bf16.msra.mxu0 0
    %6374 = vmatprep.subr.bf16.mxu0 0
    %6375 = vmatpush1.bf16.msra.mxu0 0
    %6376 = vmatprep.subr.bf16.mxu0 0
    %6377 = vmatpush1.bf16.msra.mxu0 0
    %6378 = vmatprep.subr.bf16.mxu0 0
    %6379 = vmatpush1.bf16.msra.mxu0 0
    %6380 = vmatprep.subr.bf16.mxu0 0
    %6381 = vmatpush1.bf16.msra.mxu0 0
    %6382 = vmatprep.subr.bf16.mxu0 0
    %6383 = vmatpush1.bf16.msra.mxu0 0
    %6384 = vmatprep.mubr.bf16.mxu0 0
    %6385 = vmatmul.mubr.bf16.gmra.mrb[0].mxu0 %v6310
    %v6386 = vpop.f32.mrb[0].mxu0
    %v6387 = vadd.f32 0.0, %v6386
    %v6388 = vpop.f32.mrb[0].mxu0
    %v6389 = vadd.f32 0.0, %v6388
    %v6390 = vpop.f32.mrb[0].mxu0
    %v6391 = vpop.f32.mrb[0].mxu0
    %6392 = vdwg.mxu0
    %v6393 = vadd.f32 %v6306, %v6346
    %v6394 = vadd.f32 %v6307, %v6348
    %v6395 = vadd.f32 %v6308, %v6387
    %v6396 = vadd.f32 %v6309, %v6389
    %v6397 = vxor.u32 %v6393, 2147483648
    %v6398 = vmul.f32 %v6397, 1.442695
    %v6399 = vpow.pop %v6398
    %v6400 = vadd.f32 %v6399, 1.0
    %v6401 = vrcp.pop %v6400
    %v6402 = vmul.f32 1.0, %v6401
    %v6403 = vtanh.pop %v6395
    %v6404 = vxor.u32 %v6396, 2147483648
    %v6405 = vmul.f32 %v6404, 1.442695
    %v6406 = vpow.pop %v6405
    %v6407 = vadd.f32 %v6406, 1.0
    %v6408 = vrcp.pop %v6407
    %v6409 = vmul.f32 1.0, %v6408
    %v6410 = vxor.u32 %v6394, 2147483648
    %v6411 = vmul.f32 %v6410, 1.442695
    %v6412 = vpow.pop %v6411
    %v6413 = vadd.f32 %v6412, 1.0
    %v6414 = vrcp.pop %v6413
    %v6415 = vmul.f32 1.0, %v6414
    %v6416 = vmul.f32 %v6415, %v6135
    %v6417 = vmul.f32 %v6402, %v6403
    %v6418 = vadd.f32 %v6416, %v6417
    %v6419 = vtanh.pop %v6418
    %v6420 = vmul.f32 %v6409, %v6419
    %v6421 = vld [vmem:[%s2597] sm:$0xff]
    %v6422 = vpack.c.bf16 %v6421, %v6421
    %v6423 = vld [vmem:[%s3217] sm:$0xff]
    %v6424 = vpack.c.bf16 %v6423, %v6423
    %6425 = vmatprep.subr.bf16.mxu0 %v5237
    %6426 = vmatpush1.bf16.msra.mxu0 %v5236
    %6427 = vmatprep.subr.bf16.mxu0 %v5241
    %6428 = vmatpush1.bf16.msra.mxu0 %v5240
    %6429 = vmatprep.subr.bf16.mxu0 %v5245
    %6430 = vmatpush1.bf16.msra.mxu0 %v5244
    %6431 = vmatprep.subr.bf16.mxu0 %v5249
    %6432 = vmatpush1.bf16.msra.mxu0 %v5248
    %6433 = vmatprep.subr.bf16.mxu0 %v5253
    %6434 = vmatpush1.bf16.msra.mxu0 %v5252
    %6435 = vmatprep.subr.bf16.mxu0 %v5257
    %6436 = vmatpush1.bf16.msra.mxu0 %v5256
    %6437 = vmatprep.subr.bf16.mxu0 %v5261
    %6438 = vmatpush1.bf16.msra.mxu0 %v5260
    %6439 = vmatprep.subr.bf16.mxu0 %v5265
    %6440 = vmatpush1.bf16.msra.mxu0 %v5264
    %6441 = vmatprep.subr.bf16.mxu0 0
    %6442 = vmatpush1.bf16.msra.mxu0 0
    %6443 = vmatprep.subr.bf16.mxu0 0
    %6444 = vmatpush1.bf16.msra.mxu0 0
    %6445 = vmatprep.subr.bf16.mxu0 0
    %6446 = vmatpush1.bf16.msra.mxu0 0
    %6447 = vmatprep.subr.bf16.mxu0 0
    %6448 = vmatpush1.bf16.msra.mxu0 0
    %6449 = vmatprep.subr.bf16.mxu0 0
    %6450 = vmatpush1.bf16.msra.mxu0 0
    %6451 = vmatprep.subr.bf16.mxu0 0
    %6452 = vmatpush1.bf16.msra.mxu0 0
    %6453 = vmatprep.subr.bf16.mxu0 0
    %6454 = vmatpush1.bf16.msra.mxu0 0
    %6455 = vmatprep.subr.bf16.mxu0 0
    %6456 = vmatpush1.bf16.msra.mxu0 0
    %6457 = vmatprep.mubr.bf16.mxu0 0
    %6458 = vmatmul.mubr.bf16.gmra.mrb[0].mxu0 %v6424
    %v6459 = vpop.f32.mrb[0].mxu0
    %v6460 = vadd.f32 0.0, %v6459
    %v6461 = vpop.f32.mrb[0].mxu0
    %v6462 = vadd.f32 0.0, %v6461
    %v6463 = vpop.f32.mrb[0].mxu0
    %v6464 = vpop.f32.mrb[0].mxu0
    %6465 = vdwg.mxu0
    %6466 = vmatprep.subr.bf16.mxu0 %v5239
    %6467 = vmatpush1.bf16.msra.mxu0 %v5238
    %6468 = vmatprep.subr.bf16.mxu0 %v5243
    %6469 = vmatpush1.bf16.msra.mxu0 %v5242
    %6470 = vmatprep.subr.bf16.mxu0 %v5247
    %6471 = vmatpush1.bf16.msra.mxu0 %v5246
    %6472 = vmatprep.subr.bf16.mxu0 %v5251
    %6473 = vmatpush1.bf16.msra.mxu0 %v5250
    %6474 = vmatprep.subr.bf16.mxu0 %v5255
    %6475 = vmatpush1.bf16.msra.mxu0 %v5254
    %6476 = vmatprep.subr.bf16.mxu0 %v5259
    %6477 = vmatpush1.bf16.msra.mxu0 %v5258
    %6478 = vmatprep.subr.bf16.mxu0 %v5263
    %6479 = vmatpush1.bf16.msra.mxu0 %v5262
    %6480 = vmatprep.subr.bf16.mxu0 %v5267
    %6481 = vmatpush1.bf16.msra.mxu0 %v5266
    %6482 = vmatprep.subr.bf16.mxu0 0
    %6483 = vmatpush1.bf16.msra.mxu0 0
    %6484 = vmatprep.subr.bf16.mxu0 0
    %6485 = vmatpush1.bf16.msra.mxu0 0
    %6486 = vmatprep.subr.bf16.mxu0 0
    %6487 = vmatpush1.bf16.msra.mxu0 0
    %6488 = vmatprep.subr.bf16.mxu0 0
    %6489 = vmatpush1.bf16.msra.mxu0 0
    %6490 = vmatprep.subr.bf16.mxu0 0
    %6491 = vmatpush1.bf16.msra.mxu0 0
    %6492 = vmatprep.subr.bf16.mxu0 0
    %6493 = vmatpush1.bf16.msra.mxu0 0
    %6494 = vmatprep.subr.bf16.mxu0 0
    %6495 = vmatpush1.bf16.msra.mxu0 0
    %6496 = vmatprep.subr.bf16.mxu0 0
    %6497 = vmatpush1.bf16.msra.mxu0 0
    %6498 = vmatprep.mubr.bf16.mxu0 0
    %6499 = vmatmul.mubr.bf16.gmra.mrb[0].mxu0 %v6424
    %v6500 = vpop.f32.mrb[0].mxu0
    %v6501 = vadd.f32 0.0, %v6500
    %v6502 = vpop.f32.mrb[0].mxu0
    %v6503 = vadd.f32 0.0, %v6502
    %v6504 = vpop.f32.mrb[0].mxu0
    %v6505 = vpop.f32.mrb[0].mxu0
    %6506 = vdwg.mxu0
    %6507 = vmatprep.subr.bf16.mxu0 %v5478
    %6508 = vmatpush1.bf16.msra.mxu0 %v5477
    %6509 = vmatprep.subr.bf16.mxu0 %v5482
    %6510 = vmatpush1.bf16.msra.mxu0 %v5481
    %6511 = vmatprep.subr.bf16.mxu0 %v5486
    %6512 = vmatpush1.bf16.msra.mxu0 %v5485
    %6513 = vmatprep.subr.bf16.mxu0 %v5490
    %6514 = vmatpush1.bf16.msra.mxu0 %v5489
    %6515 = vmatprep.subr.bf16.mxu0 %v5494
    %6516 = vmatpush1.bf16.msra.mxu0 %v5493
    %6517 = vmatprep.subr.bf16.mxu0 %v5498
    %6518 = vmatpush1.bf16.msra.mxu0 %v5497
    %6519 = vmatprep.subr.bf16.mxu0 %v5502
    %6520 = vmatpush1.bf16.msra.mxu0 %v5501
    %6521 = vmatprep.subr.bf16.mxu0 %v5506
    %6522 = vmatpush1.bf16.msra.mxu0 %v5505
    %6523 = vmatprep.subr.bf16.mxu0 0
    %6524 = vmatpush1.bf16.msra.mxu0 0
    %6525 = vmatprep.subr.bf16.mxu0 0
    %6526 = vmatpush1.bf16.msra.mxu0 0
    %6527 = vmatprep.subr.bf16.mxu0 0
    %6528 = vmatpush1.bf16.msra.mxu0 0
    %6529 = vmatprep.subr.bf16.mxu0 0
    %6530 = vmatpush1.bf16.msra.mxu0 0
    %6531 = vmatprep.subr.bf16.mxu0 0
    %6532 = vmatpush1.bf16.msra.mxu0 0
    %6533 = vmatprep.subr.bf16.mxu0 0
    %6534 = vmatpush1.bf16.msra.mxu0 0
    %6535 = vmatprep.subr.bf16.mxu0 0
    %6536 = vmatpush1.bf16.msra.mxu0 0
    %6537 = vmatprep.subr.bf16.mxu0 0
    %6538 = vmatpush1.bf16.msra.mxu0 0
    %6539 = vmatprep.mubr.bf16.mxu0 0
    %6540 = vmatmul.mubr.bf16.gmra.mrb[0].mxu0 %v6422
    %v6541 = vpop.f32.mrb[0].mxu0
    %v6542 = vadd.f32 %v6460, %v6541
    %v6543 = vpop.f32.mrb[0].mxu0
    %v6544 = vadd.f32 %v6462, %v6543
    %v6545 = vpop.f32.mrb[0].mxu0
    %v6546 = vpop.f32.mrb[0].mxu0
    %6547 = vdwg.mxu0
    %6548 = vmatprep.subr.bf16.mxu0 %v5480
    %6549 = vmatpush1.bf16.msra.mxu0 %v5479
    %6550 = vmatprep.subr.bf16.mxu0 %v5484
    %6551 = vmatpush1.bf16.msra.mxu0 %v5483
    %6552 = vmatprep.subr.bf16.mxu0 %v5488
    %6553 = vmatpush1.bf16.msra.mxu0 %v5487
    %6554 = vmatprep.subr.bf16.mxu0 %v5492
    %6555 = vmatpush1.bf16.msra.mxu0 %v5491
    %6556 = vmatprep.subr.bf16.mxu0 %v5496
    %6557 = vmatpush1.bf16.msra.mxu0 %v5495
    %6558 = vmatprep.subr.bf16.mxu0 %v5500
    %6559 = vmatpush1.bf16.msra.mxu0 %v5499
    %6560 = vmatprep.subr.bf16.mxu0 %v5504
    %6561 = vmatpush1.bf16.msra.mxu0 %v5503
    %6562 = vmatprep.subr.bf16.mxu0 %v5508
    %6563 = vmatpush1.bf16.msra.mxu0 %v5507
    %6564 = vmatprep.subr.bf16.mxu0 0
    %6565 = vmatpush1.bf16.msra.mxu0 0
    %6566 = vmatprep.subr.bf16.mxu0 0
    %6567 = vmatpush1.bf16.msra.mxu0 0
    %6568 = vmatprep.subr.bf16.mxu0 0
    %6569 = vmatpush1.bf16.msra.mxu0 0
    %6570 = vmatprep.subr.bf16.mxu0 0
    %6571 = vmatpush1.bf16.msra.mxu0 0
    %6572 = vmatprep.subr.bf16.mxu0 0
    %6573 = vmatpush1.bf16.msra.mxu0 0
    %6574 = vmatprep.subr.bf16.mxu0 0
    %6575 = vmatpush1.bf16.msra.mxu0 0
    %6576 = vmatprep.subr.bf16.mxu0 0
    %6577 = vmatpush1.bf16.msra.mxu0 0
    %6578 = vmatprep.subr.bf16.mxu0 0
    %6579 = vmatpush1.bf16.msra.mxu0 0
    %6580 = vmatprep.mubr.bf16.mxu0 0
    %6581 = vmatmul.mubr.bf16.gmra.mrb[0].mxu0 %v6422
    %v6582 = vpop.f32.mrb[0].mxu0
    %v6583 = vadd.f32 %v6501, %v6582
    %v6584 = vpop.f32.mrb[0].mxu0
    %v6585 = vadd.f32 %v6503, %v6584
    %v6586 = vpop.f32.mrb[0].mxu0
    %v6587 = vpop.f32.mrb[0].mxu0
    %6588 = vdwg.mxu0
    %v6589 = vadd.f32 %v6542, %v5627
    %v6590 = vadd.f32 %v6544, %v5631
    %v6591 = vadd.f32 %v6583, %v5635
    %v6592 = vadd.f32 %v6585, %v5639
    %v6593 = vpack.c.bf16 %v6420, %v6420
    %6594 = vmatprep.subr.bf16.mxu0 %v5965
    %6595 = vmatpush1.bf16.msra.mxu0 %v5964
    %6596 = vmatprep.subr.bf16.mxu0 %v5969
    %6597 = vmatpush1.bf16.msra.mxu0 %v5968
    %6598 = vmatprep.subr.bf16.mxu0 %v5973
    %6599 = vmatpush1.bf16.msra.mxu0 %v5972
    %6600 = vmatprep.subr.bf16.mxu0 %v5977
    %6601 = vmatpush1.bf16.msra.mxu0 %v5976
    %6602 = vmatprep.subr.bf16.mxu0 %v5981
    %6603 = vmatpush1.bf16.msra.mxu0 %v5980
    %6604 = vmatprep.subr.bf16.mxu0 %v5985
    %6605 = vmatpush1.bf16.msra.mxu0 %v5984
    %6606 = vmatprep.subr.bf16.mxu0 %v5989
    %6607 = vmatpush1.bf16.msra.mxu0 %v5988
    %6608 = vmatprep.subr.bf16.mxu0 %v5993
    %6609 = vmatpush1.bf16.msra.mxu0 %v5992
    %6610 = vmatprep.subr.bf16.mxu0 0
    %6611 = vmatpush1.bf16.msra.mxu0 0
    %6612 = vmatprep.subr.bf16.mxu0 0
    %6613 = vmatpush1.bf16.msra.mxu0 0
    %6614 = vmatprep.subr.bf16.mxu0 0
    %6615 = vmatpush1.bf16.msra.mxu0 0
    %6616 = vmatprep.subr.bf16.mxu0 0
    %6617 = vmatpush1.bf16.msra.mxu0 0
    %6618 = vmatprep.subr.bf16.mxu0 0
    %6619 = vmatpush1.bf16.msra.mxu0 0
    %6620 = vmatprep.subr.bf16.mxu0 0
    %6621 = vmatpush1.bf16.msra.mxu0 0
    %6622 = vmatprep.subr.bf16.mxu0 0
    %6623 = vmatpush1.bf16.msra.mxu0 0
    %6624 = vmatprep.subr.bf16.mxu0 0
    %6625 = vmatpush1.bf16.msra.mxu0 0
    %6626 = vmatprep.mubr.bf16.mxu0 0
    %6627 = vmatmul.mubr.bf16.gmra.mrb[0].mxu0 %v6593
    %v6628 = vpop.f32.mrb[0].mxu0
    %v6629 = vadd.f32 0.0, %v6628
    %v6630 = vpop.f32.mrb[0].mxu0
    %v6631 = vadd.f32 0.0, %v6630
    %v6632 = vpop.f32.mrb[0].mxu0
    %v6633 = vpop.f32.mrb[0].mxu0
    %6634 = vdwg.mxu0
    %6635 = vmatprep.subr.bf16.mxu0 %v5967
    %6636 = vmatpush1.bf16.msra.mxu0 %v5966
    %6637 = vmatprep.subr.bf16.mxu0 %v5971
    %6638 = vmatpush1.bf16.msra.mxu0 %v5970
    %6639 = vmatprep.subr.bf16.mxu0 %v5975
    %6640 = vmatpush1.bf16.msra.mxu0 %v5974
    %6641 = vmatprep.subr.bf16.mxu0 %v5979
    %6642 = vmatpush1.bf16.msra.mxu0 %v5978
    %6643 = vmatprep.subr.bf16.mxu0 %v5983
    %6644 = vmatpush1.bf16.msra.mxu0 %v5982
    %6645 = vmatprep.subr.bf16.mxu0 %v5987
    %6646 = vmatpush1.bf16.msra.mxu0 %v5986
    %6647 = vmatprep.subr.bf16.mxu0 %v5991
    %6648 = vmatpush1.bf16.msra.mxu0 %v5990
    %6649 = vmatprep.subr.bf16.mxu0 %v5995
    %6650 = vmatpush1.bf16.msra.mxu0 %v5994
    %6651 = vmatprep.subr.bf16.mxu0 0
    %6652 = vmatpush1.bf16.msra.mxu0 0
    %6653 = vmatprep.subr.bf16.mxu0 0
    %6654 = vmatpush1.bf16.msra.mxu0 0
    %6655 = vmatprep.subr.bf16.mxu0 0
    %6656 = vmatpush1.bf16.msra.mxu0 0
    %6657 = vmatprep.subr.bf16.mxu0 0
    %6658 = vmatpush1.bf16.msra.mxu0 0
    %6659 = vmatprep.subr.bf16.mxu0 0
    %6660 = vmatpush1.bf16.msra.mxu0 0
    %6661 = vmatprep.subr.bf16.mxu0 0
    %6662 = vmatpush1.bf16.msra.mxu0 0
    %6663 = vmatprep.subr.bf16.mxu0 0
    %6664 = vmatpush1.bf16.msra.mxu0 0
    %6665 = vmatprep.subr.bf16.mxu0 0
    %6666 = vmatpush1.bf16.msra.mxu0 0
    %6667 = vmatprep.mubr.bf16.mxu0 0
    %6668 = vmatmul.mubr.bf16.gmra.mrb[0].mxu0 %v6593
    %v6669 = vpop.f32.mrb[0].mxu0
    %v6670 = vadd.f32 0.0, %v6669
    %v6671 = vpop.f32.mrb[0].mxu0
    %v6672 = vadd.f32 0.0, %v6671
    %v6673 = vpop.f32.mrb[0].mxu0
    %v6674 = vpop.f32.mrb[0].mxu0
    %6675 = vdwg.mxu0
    %v6676 = vadd.f32 %v6589, %v6629
    %v6677 = vadd.f32 %v6590, %v6631
    %v6678 = vadd.f32 %v6591, %v6670
    %v6679 = vadd.f32 %v6592, %v6672
    %v6680 = vxor.u32 %v6676, 2147483648
    %v6681 = vmul.f32 %v6680, 1.442695
    %v6682 = vpow.pop %v6681
    %v6683 = vadd.f32 %v6682, 1.0
    %v6684 = vrcp.pop %v6683
    %v6685 = vmul.f32 1.0, %v6684
    %v6686 = vtanh.pop %v6678
    %v6687 = vxor.u32 %v6679, 2147483648
    %v6688 = vmul.f32 %v6687, 1.442695
    %v6689 = vpow.pop %v6688
    %v6690 = vadd.f32 %v6689, 1.0
    %v6691 = vrcp.pop %v6690
    %v6692 = vmul.f32 1.0, %v6691
    %v6693 = vxor.u32 %v6677, 2147483648
    %v6694 = vmul.f32 %v6693, 1.442695
    %v6695 = vpow.pop %v6694
    %v6696 = vadd.f32 %v6695, 1.0
    %v6697 = vrcp.pop %v6696
    %v6698 = vmul.f32 1.0, %v6697
    %v6699 = vmul.f32 %v6698, %v6418
    %v6700 = vmul.f32 %v6685, %v6686
    %v6701 = vadd.f32 %v6699, %v6700
    %v6702 = vtanh.pop %v6701
    %v6703 = vmul.f32 %v6692, %v6702
    %v6704 = vld [vmem:[%s3215] sm:$0xff]
    %v6705 = vpack.c.bf16 %v6704, %v6704
    %v6706 = vld [vmem:[%s2599] sm:$0xff]
    %v6707 = vpack.c.bf16 %v6706, %v6706
    %6708 = vmatprep.subr.bf16.mxu0 %v5237
    %6709 = vmatpush1.bf16.msra.mxu0 %v5236
    %6710 = vmatprep.subr.bf16.mxu0 %v5241
    %6711 = vmatpush1.bf16.msra.mxu0 %v5240
    %6712 = vmatprep.subr.bf16.mxu0 %v5245
    %6713 = vmatpush1.bf16.msra.mxu0 %v5244
    %6714 = vmatprep.subr.bf16.mxu0 %v5249
    %6715 = vmatpush1.bf16.msra.mxu0 %v5248
    %6716 = vmatprep.subr.bf16.mxu0 %v5253
    %6717 = vmatpush1.bf16.msra.mxu0 %v5252
    %6718 = vmatprep.subr.bf16.mxu0 %v5257
    %6719 = vmatpush1.bf16.msra.mxu0 %v5256
    %6720 = vmatprep.subr.bf16.mxu0 %v5261
    %6721 = vmatpush1.bf16.msra.mxu0 %v5260
    %6722 = vmatprep.subr.bf16.mxu0 %v5265
    %6723 = vmatpush1.bf16.msra.mxu0 %v5264
    %6724 = vmatprep.subr.bf16.mxu0 0
    %6725 = vmatpush1.bf16.msra.mxu0 0
    %6726 = vmatprep.subr.bf16.mxu0 0
    %6727 = vmatpush1.bf16.msra.mxu0 0
    %6728 = vmatprep.subr.bf16.mxu0 0
    %6729 = vmatpush1.bf16.msra.mxu0 0
    %6730 = vmatprep.subr.bf16.mxu0 0
    %6731 = vmatpush1.bf16.msra.mxu0 0
    %6732 = vmatprep.subr.bf16.mxu0 0
    %6733 = vmatpush1.bf16.msra.mxu0 0
    %6734 = vmatprep.subr.bf16.mxu0 0
    %6735 = vmatpush1.bf16.msra.mxu0 0
    %6736 = vmatprep.subr.bf16.mxu0 0
    %6737 = vmatpush1.bf16.msra.mxu0 0
    %6738 = vmatprep.subr.bf16.mxu0 0
    %6739 = vmatpush1.bf16.msra.mxu0 0
    %6740 = vmatprep.mubr.bf16.mxu0 0
    %6741 = vmatmul.mubr.bf16.gmra.mrb[0].mxu0 %v6707
    %v6742 = vpop.f32.mrb[0].mxu0
    %v6743 = vadd.f32 0.0, %v6742
    %v6744 = vpop.f32.mrb[0].mxu0
    %v6745 = vadd.f32 0.0, %v6744
    %v6746 = vpop.f32.mrb[0].mxu0
    %v6747 = vpop.f32.mrb[0].mxu0
    %6748 = vdwg.mxu0
    %6749 = vmatprep.subr.bf16.mxu0 %v5239
    %6750 = vmatpush1.bf16.msra.mxu0 %v5238
    %6751 = vmatprep.subr.bf16.mxu0 %v5243
    %6752 = vmatpush1.bf16.msra.mxu0 %v5242
    %6753 = vmatprep.subr.bf16.mxu0 %v5247
    %6754 = vmatpush1.bf16.msra.mxu0 %v5246
    %6755 = vmatprep.subr.bf16.mxu0 %v5251
    %6756 = vmatpush1.bf16.msra.mxu0 %v5250
    %6757 = vmatprep.subr.bf16.mxu0 %v5255
    %6758 = vmatpush1.bf16.msra.mxu0 %v5254
    %6759 = vmatprep.subr.bf16.mxu0 %v5259
    %6760 = vmatpush1.bf16.msra.mxu0 %v5258
    %6761 = vmatprep.subr.bf16.mxu0 %v5263
    %6762 = vmatpush1.bf16.msra.mxu0 %v5262
    %6763 = vmatprep.subr.bf16.mxu0 %v5267
    %6764 = vmatpush1.bf16.msra.mxu0 %v5266
    %6765 = vmatprep.subr.bf16.mxu0 0
    %6766 = vmatpush1.bf16.msra.mxu0 0
    %6767 = vmatprep.subr.bf16.mxu0 0
    %6768 = vmatpush1.bf16.msra.mxu0 0
    %6769 = vmatprep.subr.bf16.mxu0 0
    %6770 = vmatpush1.bf16.msra.mxu0 0
    %6771 = vmatprep.subr.bf16.mxu0 0
    %6772 = vmatpush1.bf16.msra.mxu0 0
    %6773 = vmatprep.subr.bf16.mxu0 0
    %6774 = vmatpush1.bf16.msra.mxu0 0
    %6775 = vmatprep.subr.bf16.mxu0 0
    %6776 = vmatpush1.bf16.msra.mxu0 0
    %6777 = vmatprep.subr.bf16.mxu0 0
    %6778 = vmatpush1.bf16.msra.mxu0 0
    %6779 = vmatprep.subr.bf16.mxu0 0
    %6780 = vmatpush1.bf16.msra.mxu0 0
    %6781 = vmatprep.mubr.bf16.mxu0 0
    %6782 = vmatmul.mubr.bf16.gmra.mrb[0].mxu0 %v6707
    %v6783 = vpop.f32.mrb[0].mxu0
    %v6784 = vadd.f32 0.0, %v6783
    %v6785 = vpop.f32.mrb[0].mxu0
    %v6786 = vadd.f32 0.0, %v6785
    %v6787 = vpop.f32.mrb[0].mxu0
    %v6788 = vpop.f32.mrb[0].mxu0
    %6789 = vdwg.mxu0
    %6790 = vmatprep.subr.bf16.mxu0 %v5478
    %6791 = vmatpush1.bf16.msra.mxu0 %v5477
    %6792 = vmatprep.subr.bf16.mxu0 %v5482
    %6793 = vmatpush1.bf16.msra.mxu0 %v5481
    %6794 = vmatprep.subr.bf16.mxu0 %v5486
    %6795 = vmatpush1.bf16.msra.mxu0 %v5485
    %6796 = vmatprep.subr.bf16.mxu0 %v5490
    %6797 = vmatpush1.bf16.msra.mxu0 %v5489
    %6798 = vmatprep.subr.bf16.mxu0 %v5494
    %6799 = vmatpush1.bf16.msra.mxu0 %v5493
    %6800 = vmatprep.subr.bf16.mxu0 %v5498
    %6801 = vmatpush1.bf16.msra.mxu0 %v5497
    %6802 = vmatprep.subr.bf16.mxu0 %v5502
    %6803 = vmatpush1.bf16.msra.mxu0 %v5501
    %6804 = vmatprep.subr.bf16.mxu0 %v5506
    %6805 = vmatpush1.bf16.msra.mxu0 %v5505
    %6806 = vmatprep.subr.bf16.mxu0 0
    %6807 = vmatpush1.bf16.msra.mxu0 0
    %6808 = vmatprep.subr.bf16.mxu0 0
    %6809 = vmatpush1.bf16.msra.mxu0 0
    %6810 = vmatprep.subr.bf16.mxu0 0
    %6811 = vmatpush1.bf16.msra.mxu0 0
    %6812 = vmatprep.subr.bf16.mxu0 0
    %6813 = vmatpush1.bf16.msra.mxu0 0
    %6814 = vmatprep.subr.bf16.mxu0 0
    %6815 = vmatpush1.bf16.msra.mxu0 0
    %6816 = vmatprep.subr.bf16.mxu0 0
    %6817 = vmatpush1.bf16.msra.mxu0 0
    %6818 = vmatprep.subr.bf16.mxu0 0
    %6819 = vmatpush1.bf16.msra.mxu0 0
    %6820 = vmatprep.subr.bf16.mxu0 0
    %6821 = vmatpush1.bf16.msra.mxu0 0
    %6822 = vmatprep.mubr.bf16.mxu0 0
    %6823 = vmatmul.mubr.bf16.gmra.mrb[0].mxu0 %v6705
    %v6824 = vpop.f32.mrb[0].mxu0
    %v6825 = vadd.f32 %v6743, %v6824
    %v6826 = vpop.f32.mrb[0].mxu0
    %v6827 = vadd.f32 %v6745, %v6826
    %v6828 = vpop.f32.mrb[0].mxu0
    %v6829 = vpop.f32.mrb[0].mxu0
    %6830 = vdwg.mxu0
    %6831 = vmatprep.subr.bf16.mxu0 %v5480
    %6832 = vmatpush1.bf16.msra.mxu0 %v5479
    %6833 = vmatprep.subr.bf16.mxu0 %v5484
    %6834 = vmatpush1.bf16.msra.mxu0 %v5483
    %6835 = vmatprep.subr.bf16.mxu0 %v5488
    %6836 = vmatpush1.bf16.msra.mxu0 %v5487
    %6837 = vmatprep.subr.bf16.mxu0 %v5492
    %6838 = vmatpush1.bf16.msra.mxu0 %v5491
    %6839 = vmatprep.subr.bf16.mxu0 %v5496
    %6840 = vmatpush1.bf16.msra.mxu0 %v5495
    %6841 = vmatprep.subr.bf16.mxu0 %v5500
    %6842 = vmatpush1.bf16.msra.mxu0 %v5499
    %6843 = vmatprep.subr.bf16.mxu0 %v5504
    %6844 = vmatpush1.bf16.msra.mxu0 %v5503
    %6845 = vmatprep.subr.bf16.mxu0 %v5508
    %6846 = vmatpush1.bf16.msra.mxu0 %v5507
    %6847 = vmatprep.subr.bf16.mxu0 0
    %6848 = vmatpush1.bf16.msra.mxu0 0
    %6849 = vmatprep.subr.bf16.mxu0 0
    %6850 = vmatpush1.bf16.msra.mxu0 0
    %6851 = vmatprep.subr.bf16.mxu0 0
    %6852 = vmatpush1.bf16.msra.mxu0 0
    %6853 = vmatprep.subr.bf16.mxu0 0
    %6854 = vmatpush1.bf16.msra.mxu0 0
    %6855 = vmatprep.subr.bf16.mxu0 0
    %6856 = vmatpush1.bf16.msra.mxu0 0
    %6857 = vmatprep.subr.bf16.mxu0 0
    %6858 = vmatpush1.bf16.msra.mxu0 0
    %6859 = vmatprep.subr.bf16.mxu0 0
    %6860 = vmatpush1.bf16.msra.mxu0 0
    %6861 = vmatprep.subr.bf16.mxu0 0
    %6862 = vmatpush1.bf16.msra.mxu0 0
    %6863 = vmatprep.mubr.bf16.mxu0 0
    %6864 = vmatmul.mubr.bf16.gmra.mrb[0].mxu0 %v6705
    %v6865 = vpop.f32.mrb[0].mxu0
    %v6866 = vadd.f32 %v6784, %v6865
    %v6867 = vpop.f32.mrb[0].mxu0
    %v6868 = vadd.f32 %v6786, %v6867
    %v6869 = vpop.f32.mrb[0].mxu0
    %v6870 = vpop.f32.mrb[0].mxu0
    %6871 = vdwg.mxu0
    %v6872 = vadd.f32 %v6825, %v5627
    %v6873 = vadd.f32 %v6827, %v5631
    %v6874 = vadd.f32 %v6866, %v5635
    %v6875 = vadd.f32 %v6868, %v5639
    %v6876 = vpack.c.bf16 %v6703, %v6703
    %6877 = vmatprep.subr.bf16.mxu0 %v5965
    %6878 = vmatpush1.bf16.msra.mxu0 %v5964
    %6879 = vmatprep.subr.bf16.mxu0 %v5969
    %6880 = vmatpush1.bf16.msra.mxu0 %v5968
    %6881 = vmatprep.subr.bf16.mxu0 %v5973
    %6882 = vmatpush1.bf16.msra.mxu0 %v5972
    %6883 = vmatprep.subr.bf16.mxu0 %v5977
    %6884 = vmatpush1.bf16.msra.mxu0 %v5976
    %6885 = vmatprep.subr.bf16.mxu0 %v5981
    %6886 = vmatpush1.bf16.msra.mxu0 %v5980
    %6887 = vmatprep.subr.bf16.mxu0 %v5985
    %6888 = vmatpush1.bf16.msra.mxu0 %v5984
    %6889 = vmatprep.subr.bf16.mxu0 %v5989
    %6890 = vmatpush1.bf16.msra.mxu0 %v5988
    %6891 = vmatprep.subr.bf16.mxu0 %v5993
    %6892 = vmatpush1.bf16.msra.mxu0 %v5992
    %6893 = vmatprep.subr.bf16.mxu0 0
    %6894 = vmatpush1.bf16.msra.mxu0 0
    %6895 = vmatprep.subr.bf16.mxu0 0
    %6896 = vmatpush1.bf16.msra.mxu0 0
    %6897 = vmatprep.subr.bf16.mxu0 0
    %6898 = vmatpush1.bf16.msra.mxu0 0
    %6899 = vmatprep.subr.bf16.mxu0 0
    %6900 = vmatpush1.bf16.msra.mxu0 0
    %6901 = vmatprep.subr.bf16.mxu0 0
    %6902 = vmatpush1.bf16.msra.mxu0 0
    %6903 = vmatprep.subr.bf16.mxu0 0
    %6904 = vmatpush1.bf16.msra.mxu0 0
    %6905 = vmatprep.subr.bf16.mxu0 0
    %6906 = vmatpush1.bf16.msra.mxu0 0
    %6907 = vmatprep.subr.bf16.mxu0 0
    %6908 = vmatpush1.bf16.msra.mxu0 0
    %6909 = vmatprep.mubr.bf16.mxu0 0
    %6910 = vmatmul.mubr.bf16.gmra.mrb[0].mxu0 %v6876
    %v6911 = vpop.f32.mrb[0].mxu0
    %v6912 = vadd.f32 0.0, %v6911
    %v6913 = vpop.f32.mrb[0].mxu0
    %v6914 = vadd.f32 0.0, %v6913
    %v6915 = vpop.f32.mrb[0].mxu0
    %v6916 = vpop.f32.mrb[0].mxu0
    %6917 = vdwg.mxu0
    %6918 = vmatprep.subr.bf16.mxu0 %v5967
    %6919 = vmatpush1.bf16.msra.mxu0 %v5966
    %6920 = vmatprep.subr.bf16.mxu0 %v5971
    %6921 = vmatpush1.bf16.msra.mxu0 %v5970
    %6922 = vmatprep.subr.bf16.mxu0 %v5975
    %6923 = vmatpush1.bf16.msra.mxu0 %v5974
    %6924 = vmatprep.subr.bf16.mxu0 %v5979
    %6925 = vmatpush1.bf16.msra.mxu0 %v5978
    %6926 = vmatprep.subr.bf16.mxu0 %v5983
    %6927 = vmatpush1.bf16.msra.mxu0 %v5982
    %6928 = vmatprep.subr.bf16.mxu0 %v5987
    %6929 = vmatpush1.bf16.msra.mxu0 %v5986
    %6930 = vmatprep.subr.bf16.mxu0 %v5991
    %6931 = vmatpush1.bf16.msra.mxu0 %v5990
    %6932 = vmatprep.subr.bf16.mxu0 %v5995
    %6933 = vmatpush1.bf16.msra.mxu0 %v5994
    %6934 = vmatprep.subr.bf16.mxu0 0
    %6935 = vmatpush1.bf16.msra.mxu0 0
    %6936 = vmatprep.subr.bf16.mxu0 0
    %6937 = vmatpush1.bf16.msra.mxu0 0
    %6938 = vmatprep.subr.bf16.mxu0 0
    %6939 = vmatpush1.bf16.msra.mxu0 0
    %6940 = vmatprep.subr.bf16.mxu0 0
    %6941 = vmatpush1.bf16.msra.mxu0 0
    %6942 = vmatprep.subr.bf16.mxu0 0
    %6943 = vmatpush1.bf16.msra.mxu0 0
    %6944 = vmatprep.subr.bf16.mxu0 0
    %6945 = vmatpush1.bf16.msra.mxu0 0
    %6946 = vmatprep.subr.bf16.mxu0 0
    %6947 = vmatpush1.bf16.msra.mxu0 0
    %6948 = vmatprep.subr.bf16.mxu0 0
    %6949 = vmatpush1.bf16.msra.mxu0 0
    %6950 = vmatprep.mubr.bf16.mxu0 0
    %6951 = vmatmul.mubr.bf16.gmra.mrb[0].mxu0 %v6876
    %v6952 = vpop.f32.mrb[0].mxu0
    %v6953 = vadd.f32 0.0, %v6952
    %v6954 = vpop.f32.mrb[0].mxu0
    %v6955 = vadd.f32 0.0, %v6954
    %v6956 = vpop.f32.mrb[0].mxu0
    %v6957 = vpop.f32.mrb[0].mxu0
    %6958 = vdwg.mxu0
    %v6959 = vadd.f32 %v6872, %v6912
    %v6960 = vadd.f32 %v6873, %v6914
    %v6961 = vadd.f32 %v6874, %v6953
    %v6962 = vadd.f32 %v6875, %v6955
    %v6963 = vxor.u32 %v6959, 2147483648
    %v6964 = vmul.f32 %v6963, 1.442695
    %v6965 = vpow.pop %v6964
    %v6966 = vadd.f32 %v6965, 1.0
    %v6967 = vrcp.pop %v6966
    %v6968 = vmul.f32 1.0, %v6967
    %v6969 = vtanh.pop %v6961
    %v6970 = vxor.u32 %v6962, 2147483648
    %v6971 = vmul.f32 %v6970, 1.442695
    %v6972 = vpow.pop %v6971
    %v6973 = vadd.f32 %v6972, 1.0
    %v6974 = vrcp.pop %v6973
    %v6975 = vmul.f32 1.0, %v6974
    %v6976 = vxor.u32 %v6960, 2147483648
    %v6977 = vmul.f32 %v6976, 1.442695
    %v6978 = vpow.pop %v6977
    %v6979 = vadd.f32 %v6978, 1.0
    %v6980 = vrcp.pop %v6979
    %v6981 = vmul.f32 1.0, %v6980
    %v6982 = vmul.f32 %v6981, %v6701
    %v6983 = vmul.f32 %v6968, %v6969
    %v6984 = vadd.f32 %v6982, %v6983
    %v6985 = vtanh.pop %v6984
    %v6986 = vmul.f32 %v6975, %v6985
    %v6987 = vld [vmem:[%s3833] sm:$0xff]
    %v6988 = vpack.c.bf16 %v6987, %v6987
    %v6989 = vld [vmem:[%s1981] sm:$0xff]
    %v6990 = vpack.c.bf16 %v6989, %v6989
    %6991 = vmatprep.subr.bf16.mxu0 %v5237
    %6992 = vmatpush1.bf16.msra.mxu0 %v5236
    %6993 = vmatprep.subr.bf16.mxu0 %v5241
    %6994 = vmatpush1.bf16.msra.mxu0 %v5240
    %6995 = vmatprep.subr.bf16.mxu0 %v5245
    %6996 = vmatpush1.bf16.msra.mxu0 %v5244
    %6997 = vmatprep.subr.bf16.mxu0 %v5249
    %6998 = vmatpush1.bf16.msra.mxu0 %v5248
    %6999 = vmatprep.subr.bf16.mxu0 %v5253
    %7000 = vmatpush1.bf16.msra.mxu0 %v5252
    %7001 = vmatprep.subr.bf16.mxu0 %v5257
    %7002 = vmatpush1.bf16.msra.mxu0 %v5256
    %7003 = vmatprep.subr.bf16.mxu0 %v5261
    %7004 = vmatpush1.bf16.msra.mxu0 %v5260
    %7005 = vmatprep.subr.bf16.mxu0 %v5265
    %7006 = vmatpush1.bf16.msra.mxu0 %v5264
    %7007 = vmatprep.subr.bf16.mxu0 0
    %7008 = vmatpush1.bf16.msra.mxu0 0
    %7009 = vmatprep.subr.bf16.mxu0 0
    %7010 = vmatpush1.bf16.msra.mxu0 0
    %7011 = vmatprep.subr.bf16.mxu0 0
    %7012 = vmatpush1.bf16.msra.mxu0 0
    %7013 = vmatprep.subr.bf16.mxu0 0
    %7014 = vmatpush1.bf16.msra.mxu0 0
    %7015 = vmatprep.subr.bf16.mxu0 0
    %7016 = vmatpush1.bf16.msra.mxu0 0
    %7017 = vmatprep.subr.bf16.mxu0 0
    %7018 = vmatpush1.bf16.msra.mxu0 0
    %7019 = vmatprep.subr.bf16.mxu0 0
    %7020 = vmatpush1.bf16.msra.mxu0 0
    %7021 = vmatprep.subr.bf16.mxu0 0
    %7022 = vmatpush1.bf16.msra.mxu0 0
    %7023 = vmatprep.mubr.bf16.mxu0 0
    %7024 = vmatmul.mubr.bf16.gmra.mrb[0].mxu0 %v6990
    %v7025 = vpop.f32.mrb[0].mxu0
    %v7026 = vadd.f32 0.0, %v7025
    %v7027 = vpop.f32.mrb[0].mxu0
    %v7028 = vadd.f32 0.0, %v7027
    %v7029 = vpop.f32.mrb[0].mxu0
    %v7030 = vpop.f32.mrb[0].mxu0
    %7031 = vdwg.mxu0
    %7032 = vmatprep.subr.bf16.mxu0 %v5239
    %7033 = vmatpush1.bf16.msra.mxu0 %v5238
    %7034 = vmatprep.subr.bf16.mxu0 %v5243
    %7035 = vmatpush1.bf16.msra.mxu0 %v5242
    %7036 = vmatprep.subr.bf16.mxu0 %v5247
    %7037 = vmatpush1.bf16.msra.mxu0 %v5246
    %7038 = vmatprep.subr.bf16.mxu0 %v5251
    %7039 = vmatpush1.bf16.msra.mxu0 %v5250
    %7040 = vmatprep.subr.bf16.mxu0 %v5255
    %7041 = vmatpush1.bf16.msra.mxu0 %v5254
    %7042 = vmatprep.subr.bf16.mxu0 %v5259
    %7043 = vmatpush1.bf16.msra.mxu0 %v5258
    %7044 = vmatprep.subr.bf16.mxu0 %v5263
    %7045 = vmatpush1.bf16.msra.mxu0 %v5262
    %7046 = vmatprep.subr.bf16.mxu0 %v5267
    %7047 = vmatpush1.bf16.msra.mxu0 %v5266
    %7048 = vmatprep.subr.bf16.mxu0 0
    %7049 = vmatpush1.bf16.msra.mxu0 0
    %7050 = vmatprep.subr.bf16.mxu0 0
    %7051 = vmatpush1.bf16.msra.mxu0 0
    %7052 = vmatprep.subr.bf16.mxu0 0
    %7053 = vmatpush1.bf16.msra.mxu0 0
    %7054 = vmatprep.subr.bf16.mxu0 0
    %7055 = vmatpush1.bf16.msra.mxu0 0
    %7056 = vmatprep.subr.bf16.mxu0 0
    %7057 = vmatpush1.bf16.msra.mxu0 0
    %7058 = vmatprep.subr.bf16.mxu0 0
    %7059 = vmatpush1.bf16.msra.mxu0 0
    %7060 = vmatprep.subr.bf16.mxu0 0
    %7061 = vmatpush1.bf16.msra.mxu0 0
    %7062 = vmatprep.subr.bf16.mxu0 0
    %7063 = vmatpush1.bf16.msra.mxu0 0
    %7064 = vmatprep.mubr.bf16.mxu0 0
    %7065 = vmatmul.mubr.bf16.gmra.mrb[0].mxu0 %v6990
    %v7066 = vpop.f32.mrb[0].mxu0
    %v7067 = vadd.f32 0.0, %v7066
    %v7068 = vpop.f32.mrb[0].mxu0
    %v7069 = vadd.f32 0.0, %v7068
    %v7070 = vpop.f32.mrb[0].mxu0
    %v7071 = vpop.f32.mrb[0].mxu0
    %7072 = vdwg.mxu0
    %7073 = vmatprep.subr.bf16.mxu0 %v5478
    %7074 = vmatpush1.bf16.msra.mxu0 %v5477
    %7075 = vmatprep.subr.bf16.mxu0 %v5482
    %7076 = vmatpush1.bf16.msra.mxu0 %v5481
    %7077 = vmatprep.subr.bf16.mxu0 %v5486
    %7078 = vmatpush1.bf16.msra.mxu0 %v5485
    %7079 = vmatprep.subr.bf16.mxu0 %v5490
    %7080 = vmatpush1.bf16.msra.mxu0 %v5489
    %7081 = vmatprep.subr.bf16.mxu0 %v5494
    %7082 = vmatpush1.bf16.msra.mxu0 %v5493
    %7083 = vmatprep.subr.bf16.mxu0 %v5498
    %7084 = vmatpush1.bf16.msra.mxu0 %v5497
    %7085 = vmatprep.subr.bf16.mxu0 %v5502
    %7086 = vmatpush1.bf16.msra.mxu0 %v5501
    %7087 = vmatprep.subr.bf16.mxu0 %v5506
    %7088 = vmatpush1.bf16.msra.mxu0 %v5505
    %7089 = vmatprep.subr.bf16.mxu0 0
    %7090 = vmatpush1.bf16.msra.mxu0 0
    %7091 = vmatprep.subr.bf16.mxu0 0
    %7092 = vmatpush1.bf16.msra.mxu0 0
    %7093 = vmatprep.subr.bf16.mxu0 0
    %7094 = vmatpush1.bf16.msra.mxu0 0
    %7095 = vmatprep.subr.bf16.mxu0 0
    %7096 = vmatpush1.bf16.msra.mxu0 0
    %7097 = vmatprep.subr.bf16.mxu0 0
    %7098 = vmatpush1.bf16.msra.mxu0 0
    %7099 = vmatprep.subr.bf16.mxu0 0
    %7100 = vmatpush1.bf16.msra.mxu0 0
    %7101 = vmatprep.subr.bf16.mxu0 0
    %7102 = vmatpush1.bf16.msra.mxu0 0
    %7103 = vmatprep.subr.bf16.mxu0 0
    %7104 = vmatpush1.bf16.msra.mxu0 0
    %7105 = vmatprep.mubr.bf16.mxu0 0
    %7106 = vmatmul.mubr.bf16.gmra.mrb[0].mxu0 %v6988
    %v7107 = vpop.f32.mrb[0].mxu0
    %v7108 = vadd.f32 %v7026, %v7107
    %v7109 = vpop.f32.mrb[0].mxu0
    %v7110 = vadd.f32 %v7028, %v7109
    %v7111 = vpop.f32.mrb[0].mxu0
    %v7112 = vpop.f32.mrb[0].mxu0
    %7113 = vdwg.mxu0
    %7114 = vmatprep.subr.bf16.mxu0 %v5480
    %7115 = vmatpush1.bf16.msra.mxu0 %v5479
    %7116 = vmatprep.subr.bf16.mxu0 %v5484
    %7117 = vmatpush1.bf16.msra.mxu0 %v5483
    %7118 = vmatprep.subr.bf16.mxu0 %v5488
    %7119 = vmatpush1.bf16.msra.mxu0 %v5487
    %7120 = vmatprep.subr.bf16.mxu0 %v5492
    %7121 = vmatpush1.bf16.msra.mxu0 %v5491
    %7122 = vmatprep.subr.bf16.mxu0 %v5496
    %7123 = vmatpush1.bf16.msra.mxu0 %v5495
    %7124 = vmatprep.subr.bf16.mxu0 %v5500
    %7125 = vmatpush1.bf16.msra.mxu0 %v5499
    %7126 = vmatprep.subr.bf16.mxu0 %v5504
    %7127 = vmatpush1.bf16.msra.mxu0 %v5503
    %7128 = vmatprep.subr.bf16.mxu0 %v5508
    %7129 = vmatpush1.bf16.msra.mxu0 %v5507
    %7130 = vmatprep.subr.bf16.mxu0 0
    %7131 = vmatpush1.bf16.msra.mxu0 0
    %7132 = vmatprep.subr.bf16.mxu0 0
    %7133 = vmatpush1.bf16.msra.mxu0 0
    %7134 = vmatprep.subr.bf16.mxu0 0
    %7135 = vmatpush1.bf16.msra.mxu0 0
    %7136 = vmatprep.subr.bf16.mxu0 0
    %7137 = vmatpush1.bf16.msra.mxu0 0
    %7138 = vmatprep.subr.bf16.mxu0 0
    %7139 = vmatpush1.bf16.msra.mxu0 0
    %7140 = vmatprep.subr.bf16.mxu0 0
    %7141 = vmatpush1.bf16.msra.mxu0 0
    %7142 = vmatprep.subr.bf16.mxu0 0
    %7143 = vmatpush1.bf16.msra.mxu0 0
    %7144 = vmatprep.subr.bf16.mxu0 0
    %7145 = vmatpush1.bf16.msra.mxu0 0
    %7146 = vmatprep.mubr.bf16.mxu0 0
    %7147 = vmatmul.mubr.bf16.gmra.mrb[0].mxu0 %v6988
    %v7148 = vpop.f32.mrb[0].mxu0
    %v7149 = vadd.f32 %v7067, %v7148
    %v7150 = vpop.f32.mrb[0].mxu0
    %v7151 = vadd.f32 %v7069, %v7150
    %v7152 = vpop.f32.mrb[0].mxu0
    %v7153 = vpop.f32.mrb[0].mxu0
    %7154 = vdwg.mxu0
    %v7155 = vadd.f32 %v7108, %v5627
    %v7156 = vadd.f32 %v7110, %v5631
    %v7157 = vadd.f32 %v7149, %v5635
    %v7158 = vadd.f32 %v7151, %v5639
    %v7159 = vpack.c.bf16 %v6986, %v6986
    %7160 = vmatprep.subr.bf16.mxu0 %v5965
    %7161 = vmatpush1.bf16.msra.mxu0 %v5964
    %7162 = vmatprep.subr.bf16.mxu0 %v5969
    %7163 = vmatpush1.bf16.msra.mxu0 %v5968
    %7164 = vmatprep.subr.bf16.mxu0 %v5973
    %7165 = vmatpush1.bf16.msra.mxu0 %v5972
    %7166 = vmatprep.subr.bf16.mxu0 %v5977
    %7167 = vmatpush1.bf16.msra.mxu0 %v5976
    %7168 = vmatprep.subr.bf16.mxu0 %v5981
    %7169 = vmatpush1.bf16.msra.mxu0 %v5980
    %7170 = vmatprep.subr.bf16.mxu0 %v5985
    %7171 = vmatpush1.bf16.msra.mxu0 %v5984
    %7172 = vmatprep.subr.bf16.mxu0 %v5989
    %7173 = vmatpush1.bf16.msra.mxu0 %v5988
    %7174 = vmatprep.subr.bf16.mxu0 %v5993
    %7175 = vmatpush1.bf16.msra.mxu0 %v5992
    %7176 = vmatprep.subr.bf16.mxu0 0
    %7177 = vmatpush1.bf16.msra.mxu0 0
    %7178 = vmatprep.subr.bf16.mxu0 0
    %7179 = vmatpush1.bf16.msra.mxu0 0
    %7180 = vmatprep.subr.bf16.mxu0 0
    %7181 = vmatpush1.bf16.msra.mxu0 0
    %7182 = vmatprep.subr.bf16.mxu0 0
    %7183 = vmatpush1.bf16.msra.mxu0 0
    %7184 = vmatprep.subr.bf16.mxu0 0
    %7185 = vmatpush1.bf16.msra.mxu0 0
    %7186 = vmatprep.subr.bf16.mxu0 0
    %7187 = vmatpush1.bf16.msra.mxu0 0
    %7188 = vmatprep.subr.bf16.mxu0 0
    %7189 = vmatpush1.bf16.msra.mxu0 0
    %7190 = vmatprep.subr.bf16.mxu0 0
    %7191 = vmatpush1.bf16.msra.mxu0 0
    %7192 = vmatprep.mubr.bf16.mxu0 0
    %7193 = vmatmul.mubr.bf16.gmra.mrb[0].mxu0 %v7159
    %v7194 = vpop.f32.mrb[0].mxu0
    %v7195 = vadd.f32 0.0, %v7194
    %v7196 = vpop.f32.mrb[0].mxu0
    %v7197 = vadd.f32 0.0, %v7196
    %v7198 = vpop.f32.mrb[0].mxu0
    %v7199 = vpop.f32.mrb[0].mxu0
    %7200 = vdwg.mxu0
    %7201 = vmatprep.subr.bf16.mxu0 %v5967
    %7202 = vmatpush1.bf16.msra.mxu0 %v5966
    %7203 = vmatprep.subr.bf16.mxu0 %v5971
    %7204 = vmatpush1.bf16.msra.mxu0 %v5970
    %7205 = vmatprep.subr.bf16.mxu0 %v5975
    %7206 = vmatpush1.bf16.msra.mxu0 %v5974
    %7207 = vmatprep.subr.bf16.mxu0 %v5979
    %7208 = vmatpush1.bf16.msra.mxu0 %v5978
    %7209 = vmatprep.subr.bf16.mxu0 %v5983
    %7210 = vmatpush1.bf16.msra.mxu0 %v5982
    %7211 = vmatprep.subr.bf16.mxu0 %v5987
    %7212 = vmatpush1.bf16.msra.mxu0 %v5986
    %7213 = vmatprep.subr.bf16.mxu0 %v5991
    %7214 = vmatpush1.bf16.msra.mxu0 %v5990
    %7215 = vmatprep.subr.bf16.mxu0 %v5995
    %7216 = vmatpush1.bf16.msra.mxu0 %v5994
    %7217 = vmatprep.subr.bf16.mxu0 0
    %7218 = vmatpush1.bf16.msra.mxu0 0
    %7219 = vmatprep.subr.bf16.mxu0 0
    %7220 = vmatpush1.bf16.msra.mxu0 0
    %7221 = vmatprep.subr.bf16.mxu0 0
    %7222 = vmatpush1.bf16.msra.mxu0 0
    %7223 = vmatprep.subr.bf16.mxu0 0
    %7224 = vmatpush1.bf16.msra.mxu0 0
    %7225 = vmatprep.subr.bf16.mxu0 0
    %7226 = vmatpush1.bf16.msra.mxu0 0
    %7227 = vmatprep.subr.bf16.mxu0 0
    %7228 = vmatpush1.bf16.msra.mxu0 0
    %7229 = vmatprep.subr.bf16.mxu0 0
    %7230 = vmatpush1.bf16.msra.mxu0 0
    %7231 = vmatprep.subr.bf16.mxu0 0
    %7232 = vmatpush1.bf16.msra.mxu0 0
    %7233 = vmatprep.mubr.bf16.mxu0 0
    %7234 = vmatmul.mubr.bf16.gmra.mrb[0].mxu0 %v7159
    %v7235 = vpop.f32.mrb[0].mxu0
    %v7236 = vadd.f32 0.0, %v7235
    %v7237 = vpop.f32.mrb[0].mxu0
    %v7238 = vadd.f32 0.0, %v7237
    %v7239 = vpop.f32.mrb[0].mxu0
    %v7240 = vpop.f32.mrb[0].mxu0
    %7241 = vdwg.mxu0
    %v7242 = vadd.f32 %v7155, %v7195
    %v7243 = vadd.f32 %v7156, %v7197
    %v7244 = vadd.f32 %v7157, %v7236
    %v7245 = vadd.f32 %v7158, %v7238
    %v7246 = vxor.u32 %v7242, 2147483648
    %v7247 = vmul.f32 %v7246, 1.442695
    %v7248 = vpow.pop %v7247
    %v7249 = vadd.f32 %v7248, 1.0
    %v7250 = vrcp.pop %v7249
    %v7251 = vmul.f32 1.0, %v7250
    %v7252 = vtanh.pop %v7244
    %v7253 = vxor.u32 %v7245, 2147483648
    %v7254 = vmul.f32 %v7253, 1.442695
    %v7255 = vpow.pop %v7254
    %v7256 = vadd.f32 %v7255, 1.0
    %v7257 = vrcp.pop %v7256
    %v7258 = vmul.f32 1.0, %v7257
    %v7259 = vxor.u32 %v7243, 2147483648
    %v7260 = vmul.f32 %v7259, 1.442695
    %v7261 = vpow.pop %v7260
    %v7262 = vadd.f32 %v7261, 1.0
    %v7263 = vrcp.pop %v7262
    %v7264 = vmul.f32 1.0, %v7263
    %v7265 = vmul.f32 %v7264, %v6984
    %v7266 = vmul.f32 %v7251, %v7252
    %v7267 = vadd.f32 %v7265, %v7266
    %v7268 = vtanh.pop %v7267
    %v7269 = vmul.f32 %v7258, %v7268
    %v7270 = vld [vmem:[%s4451] sm:$0xff]
    %v7271 = vpack.c.bf16 %v7270, %v7270
    %v7272 = vld [vmem:[%s1363] sm:$0xff]
    %v7273 = vpack.c.bf16 %v7272, %v7272
    %7274 = vmatprep.subr.bf16.mxu0 %v5237
    %7275 = vmatpush1.bf16.msra.mxu0 %v5236
    %7276 = vmatprep.subr.bf16.mxu0 %v5241
    %7277 = vmatpush1.bf16.msra.mxu0 %v5240
    %7278 = vmatprep.subr.bf16.mxu0 %v5245
    %7279 = vmatpush1.bf16.msra.mxu0 %v5244
    %7280 = vmatprep.subr.bf16.mxu0 %v5249
    %7281 = vmatpush1.bf16.msra.mxu0 %v5248
    %7282 = vmatprep.subr.bf16.mxu0 %v5253
    %7283 = vmatpush1.bf16.msra.mxu0 %v5252
    %7284 = vmatprep.subr.bf16.mxu0 %v5257
    %7285 = vmatpush1.bf16.msra.mxu0 %v5256
    %7286 = vmatprep.subr.bf16.mxu0 %v5261
    %7287 = vmatpush1.bf16.msra.mxu0 %v5260
    %7288 = vmatprep.subr.bf16.mxu0 %v5265
    %7289 = vmatpush1.bf16.msra.mxu0 %v5264
    %7290 = vmatprep.subr.bf16.mxu0 0
    %7291 = vmatpush1.bf16.msra.mxu0 0
    %7292 = vmatprep.subr.bf16.mxu0 0
    %7293 = vmatpush1.bf16.msra.mxu0 0
    %7294 = vmatprep.subr.bf16.mxu0 0
    %7295 = vmatpush1.bf16.msra.mxu0 0
    %7296 = vmatprep.subr.bf16.mxu0 0
    %7297 = vmatpush1.bf16.msra.mxu0 0
    %7298 = vmatprep.subr.bf16.mxu0 0
    %7299 = vmatpush1.bf16.msra.mxu0 0
    %7300 = vmatprep.subr.bf16.mxu0 0
    %7301 = vmatpush1.bf16.msra.mxu0 0
    %7302 = vmatprep.subr.bf16.mxu0 0
    %7303 = vmatpush1.bf16.msra.mxu0 0
    %7304 = vmatprep.subr.bf16.mxu0 0
    %7305 = vmatpush1.bf16.msra.mxu0 0
    %7306 = vmatprep.mubr.bf16.mxu0 0
    %7307 = vmatmul.mubr.bf16.gmra.mrb[0].mxu0 %v7273
    %v7308 = vpop.f32.mrb[0].mxu0
    %v7309 = vadd.f32 0.0, %v7308
    %v7310 = vpop.f32.mrb[0].mxu0
    %v7311 = vadd.f32 0.0, %v7310
    %v7312 = vpop.f32.mrb[0].mxu0
    %v7313 = vpop.f32.mrb[0].mxu0
    %7314 = vdwg.mxu0
    %7315 = vmatprep.subr.bf16.mxu0 %v5239
    %7316 = vmatpush1.bf16.msra.mxu0 %v5238
    %7317 = vmatprep.subr.bf16.mxu0 %v5243
    %7318 = vmatpush1.bf16.msra.mxu0 %v5242
    %7319 = vmatprep.subr.bf16.mxu0 %v5247
    %7320 = vmatpush1.bf16.msra.mxu0 %v5246
    %7321 = vmatprep.subr.bf16.mxu0 %v5251
    %7322 = vmatpush1.bf16.msra.mxu0 %v5250
    %7323 = vmatprep.subr.bf16.mxu0 %v5255
    %7324 = vmatpush1.bf16.msra.mxu0 %v5254
    %7325 = vmatprep.subr.bf16.mxu0 %v5259
    %7326 = vmatpush1.bf16.msra.mxu0 %v5258
    %7327 = vmatprep.subr.bf16.mxu0 %v5263
    %7328 = vmatpush1.bf16.msra.mxu0 %v5262
    %7329 = vmatprep.subr.bf16.mxu0 %v5267
    %7330 = vmatpush1.bf16.msra.mxu0 %v5266
    %7331 = vmatprep.subr.bf16.mxu0 0
    %7332 = vmatpush1.bf16.msra.mxu0 0
    %7333 = vmatprep.subr.bf16.mxu0 0
    %7334 = vmatpush1.bf16.msra.mxu0 0
    %7335 = vmatprep.subr.bf16.mxu0 0
    %7336 = vmatpush1.bf16.msra.mxu0 0
    %7337 = vmatprep.subr.bf16.mxu0 0
    %7338 = vmatpush1.bf16.msra.mxu0 0
    %7339 = vmatprep.subr.bf16.mxu0 0
    %7340 = vmatpush1.bf16.msra.mxu0 0
    %7341 = vmatprep.subr.bf16.mxu0 0
    %7342 = vmatpush1.bf16.msra.mxu0 0
    %7343 = vmatprep.subr.bf16.mxu0 0
    %7344 = vmatpush1.bf16.msra.mxu0 0
    %7345 = vmatprep.subr.bf16.mxu0 0
    %7346 = vmatpush1.bf16.msra.mxu0 0
    %7347 = vmatprep.mubr.bf16.mxu0 0
    %7348 = vmatmul.mubr.bf16.gmra.mrb[0].mxu0 %v7273
    %v7349 = vpop.f32.mrb[0].mxu0
    %v7350 = vadd.f32 0.0, %v7349
    %v7351 = vpop.f32.mrb[0].mxu0
    %v7352 = vadd.f32 0.0, %v7351
    %v7353 = vpop.f32.mrb[0].mxu0
    %v7354 = vpop.f32.mrb[0].mxu0
    %7355 = vdwg.mxu0
    %7356 = vmatprep.subr.bf16.mxu0 %v5478
    %7357 = vmatpush1.bf16.msra.mxu0 %v5477
    %7358 = vmatprep.subr.bf16.mxu0 %v5482
    %7359 = vmatpush1.bf16.msra.mxu0 %v5481
    %7360 = vmatprep.subr.bf16.mxu0 %v5486
    %7361 = vmatpush1.bf16.msra.mxu0 %v5485
    %7362 = vmatprep.subr.bf16.mxu0 %v5490
    %7363 = vmatpush1.bf16.msra.mxu0 %v5489
    %7364 = vmatprep.subr.bf16.mxu0 %v5494
    %7365 = vmatpush1.bf16.msra.mxu0 %v5493
    %7366 = vmatprep.subr.bf16.mxu0 %v5498
    %7367 = vmatpush1.bf16.msra.mxu0 %v5497
    %7368 = vmatprep.subr.bf16.mxu0 %v5502
    %7369 = vmatpush1.bf16.msra.mxu0 %v5501
    %7370 = vmatprep.subr.bf16.mxu0 %v5506
    %7371 = vmatpush1.bf16.msra.mxu0 %v5505
    %7372 = vmatprep.subr.bf16.mxu0 0
    %7373 = vmatpush1.bf16.msra.mxu0 0
    %7374 = vmatprep.subr.bf16.mxu0 0
    %7375 = vmatpush1.bf16.msra.mxu0 0
    %7376 = vmatprep.subr.bf16.mxu0 0
    %7377 = vmatpush1.bf16.msra.mxu0 0
    %7378 = vmatprep.subr.bf16.mxu0 0
    %7379 = vmatpush1.bf16.msra.mxu0 0
    %7380 = vmatprep.subr.bf16.mxu0 0
    %7381 = vmatpush1.bf16.msra.mxu0 0
    %7382 = vmatprep.subr.bf16.mxu0 0
    %7383 = vmatpush1.bf16.msra.mxu0 0
    %7384 = vmatprep.subr.bf16.mxu0 0
    %7385 = vmatpush1.bf16.msra.mxu0 0
    %7386 = vmatprep.subr.bf16.mxu0 0
    %7387 = vmatpush1.bf16.msra.mxu0 0
    %7388 = vmatprep.mubr.bf16.mxu0 0
    %7389 = vmatmul.mubr.bf16.gmra.mrb[0].mxu0 %v7271
    %v7390 = vpop.f32.mrb[0].mxu0
    %v7391 = vadd.f32 %v7309, %v7390
    %v7392 = vpop.f32.mrb[0].mxu0
    %v7393 = vadd.f32 %v7311, %v7392
    %v7394 = vpop.f32.mrb[0].mxu0
    %v7395 = vpop.f32.mrb[0].mxu0
    %7396 = vdwg.mxu0
    %7397 = vmatprep.subr.bf16.mxu0 %v5480
    %7398 = vmatpush1.bf16.msra.mxu0 %v5479
    %7399 = vmatprep.subr.bf16.mxu0 %v5484
    %7400 = vmatpush1.bf16.msra.mxu0 %v5483
    %7401 = vmatprep.subr.bf16.mxu0 %v5488
    %7402 = vmatpush1.bf16.msra.mxu0 %v5487
    %7403 = vmatprep.subr.bf16.mxu0 %v5492
    %7404 = vmatpush1.bf16.msra.mxu0 %v5491
    %7405 = vmatprep.subr.bf16.mxu0 %v5496
    %7406 = vmatpush1.bf16.msra.mxu0 %v5495
    %7407 = vmatprep.subr.bf16.mxu0 %v5500
    %7408 = vmatpush1.bf16.msra.mxu0 %v5499
    %7409 = vmatprep.subr.bf16.mxu0 %v5504
    %7410 = vmatpush1.bf16.msra.mxu0 %v5503
    %7411 = vmatprep.subr.bf16.mxu0 %v5508
    %7412 = vmatpush1.bf16.msra.mxu0 %v5507
    %7413 = vmatprep.subr.bf16.mxu0 0
    %7414 = vmatpush1.bf16.msra.mxu0 0
    %7415 = vmatprep.subr.bf16.mxu0 0
    %7416 = vmatpush1.bf16.msra.mxu0 0
    %7417 = vmatprep.subr.bf16.mxu0 0
    %7418 = vmatpush1.bf16.msra.mxu0 0
    %7419 = vmatprep.subr.bf16.mxu0 0
    %7420 = vmatpush1.bf16.msra.mxu0 0
    %7421 = vmatprep.subr.bf16.mxu0 0
    %7422 = vmatpush1.bf16.msra.mxu0 0
    %7423 = vmatprep.subr.bf16.mxu0 0
    %7424 = vmatpush1.bf16.msra.mxu0 0
    %7425 = vmatprep.subr.bf16.mxu0 0
    %7426 = vmatpush1.bf16.msra.mxu0 0
    %7427 = vmatprep.subr.bf16.mxu0 0
    %7428 = vmatpush1.bf16.msra.mxu0 0
    %7429 = vmatprep.mubr.bf16.mxu0 0
    %7430 = vmatmul.mubr.bf16.gmra.mrb[0].mxu0 %v7271
    %v7431 = vpop.f32.mrb[0].mxu0
    %v7432 = vadd.f32 %v7350, %v7431
    %v7433 = vpop.f32.mrb[0].mxu0
    %v7434 = vadd.f32 %v7352, %v7433
    %v7435 = vpop.f32.mrb[0].mxu0
    %v7436 = vpop.f32.mrb[0].mxu0
    %7437 = vdwg.mxu0
    %v7438 = vadd.f32 %v7391, %v5627
    %v7439 = vadd.f32 %v7393, %v5631
    %v7440 = vadd.f32 %v7432, %v5635
    %v7441 = vadd.f32 %v7434, %v5639
    %v7442 = vpack.c.bf16 %v7269, %v7269
    %7443 = vmatprep.subr.bf16.mxu0 %v5965
    %7444 = vmatpush1.bf16.msra.mxu0 %v5964
    %7445 = vmatprep.subr.bf16.mxu0 %v5969
    %7446 = vmatpush1.bf16.msra.mxu0 %v5968
    %7447 = vmatprep.subr.bf16.mxu0 %v5973
    %7448 = vmatpush1.bf16.msra.mxu0 %v5972
    %7449 = vmatprep.subr.bf16.mxu0 %v5977
    %7450 = vmatpush1.bf16.msra.mxu0 %v5976
    %7451 = vmatprep.subr.bf16.mxu0 %v5981
    %7452 = vmatpush1.bf16.msra.mxu0 %v5980
    %7453 = vmatprep.subr.bf16.mxu0 %v5985
    %7454 = vmatpush1.bf16.msra.mxu0 %v5984
    %7455 = vmatprep.subr.bf16.mxu0 %v5989
    %7456 = vmatpush1.bf16.msra.mxu0 %v5988
    %7457 = vmatprep.subr.bf16.mxu0 %v5993
    %7458 = vmatpush1.bf16.msra.mxu0 %v5992
    %7459 = vmatprep.subr.bf16.mxu0 0
    %7460 = vmatpush1.bf16.msra.mxu0 0
    %7461 = vmatprep.subr.bf16.mxu0 0
    %7462 = vmatpush1.bf16.msra.mxu0 0
    %7463 = vmatprep.subr.bf16.mxu0 0
    %7464 = vmatpush1.bf16.msra.mxu0 0
    %7465 = vmatprep.subr.bf16.mxu0 0
    %7466 = vmatpush1.bf16.msra.mxu0 0
    %7467 = vmatprep.subr.bf16.mxu0 0
    %7468 = vmatpush1.bf16.msra.mxu0 0
    %7469 = vmatprep.subr.bf16.mxu0 0
    %7470 = vmatpush1.bf16.msra.mxu0 0
    %7471 = vmatprep.subr.bf16.mxu0 0
    %7472 = vmatpush1.bf16.msra.mxu0 0
    %7473 = vmatprep.subr.bf16.mxu0 0
    %7474 = vmatpush1.bf16.msra.mxu0 0
    %7475 = vmatprep.mubr.bf16.mxu0 0
    %7476 = vmatmul.mubr.bf16.gmra.mrb[0].mxu0 %v7442
    %v7477 = vpop.f32.mrb[0].mxu0
    %v7478 = vadd.f32 0.0, %v7477
    %v7479 = vpop.f32.mrb[0].mxu0
    %v7480 = vadd.f32 0.0, %v7479
    %v7481 = vpop.f32.mrb[0].mxu0
    %v7482 = vpop.f32.mrb[0].mxu0
    %7483 = vdwg.mxu0
    %7484 = vmatprep.subr.bf16.mxu0 %v5967
    %7485 = vmatpush1.bf16.msra.mxu0 %v5966
    %7486 = vmatprep.subr.bf16.mxu0 %v5971
    %7487 = vmatpush1.bf16.msra.mxu0 %v5970
    %7488 = vmatprep.subr.bf16.mxu0 %v5975
    %7489 = vmatpush1.bf16.msra.mxu0 %v5974
    %7490 = vmatprep.subr.bf16.mxu0 %v5979
    %7491 = vmatpush1.bf16.msra.mxu0 %v5978
    %7492 = vmatprep.subr.bf16.mxu0 %v5983
    %7493 = vmatpush1.bf16.msra.mxu0 %v5982
    %7494 = vmatprep.subr.bf16.mxu0 %v5987
    %7495 = vmatpush1.bf16.msra.mxu0 %v5986
    %7496 = vmatprep.subr.bf16.mxu0 %v5991
    %7497 = vmatpush1.bf16.msra.mxu0 %v5990
    %7498 = vmatprep.subr.bf16.mxu0 %v5995
    %7499 = vmatpush1.bf16.msra.mxu0 %v5994
    %7500 = vmatprep.subr.bf16.mxu0 0
    %7501 = vmatpush1.bf16.msra.mxu0 0
    %7502 = vmatprep.subr.bf16.mxu0 0
    %7503 = vmatpush1.bf16.msra.mxu0 0
    %7504 = vmatprep.subr.bf16.mxu0 0
    %7505 = vmatpush1.bf16.msra.mxu0 0
    %7506 = vmatprep.subr.bf16.mxu0 0
    %7507 = vmatpush1.bf16.msra.mxu0 0
    %7508 = vmatprep.subr.bf16.mxu0 0
    %7509 = vmatpush1.bf16.msra.mxu0 0
    %7510 = vmatprep.subr.bf16.mxu0 0
    %7511 = vmatpush1.bf16.msra.mxu0 0
    %7512 = vmatprep.subr.bf16.mxu0 0
    %7513 = vmatpush1.bf16.msra.mxu0 0
    %7514 = vmatprep.subr.bf16.mxu0 0
    %7515 = vmatpush1.bf16.msra.mxu0 0
    %7516 = vmatprep.mubr.bf16.mxu0 0
    %7517 = vmatmul.mubr.bf16.gmra.mrb[0].mxu0 %v7442
    %v7518 = vpop.f32.mrb[0].mxu0
    %v7519 = vadd.f32 0.0, %v7518
    %v7520 = vpop.f32.mrb[0].mxu0
    %v7521 = vadd.f32 0.0, %v7520
    %v7522 = vpop.f32.mrb[0].mxu0
    %v7523 = vpop.f32.mrb[0].mxu0
    %7524 = vdwg.mxu0
    %v7525 = vadd.f32 %v7438, %v7478
    %v7526 = vadd.f32 %v7439, %v7480
    %v7527 = vadd.f32 %v7440, %v7519
    %v7528 = vadd.f32 %v7441, %v7521
    %v7529 = vxor.u32 %v7525, 2147483648
    %v7530 = vmul.f32 %v7529, 1.442695
    %v7531 = vpow.pop %v7530
    %v7532 = vadd.f32 %v7531, 1.0
    %v7533 = vrcp.pop %v7532
    %v7534 = vmul.f32 1.0, %v7533
    %v7535 = vtanh.pop %v7527
    %v7536 = vxor.u32 %v7528, 2147483648
    %v7537 = vmul.f32 %v7536, 1.442695
    %v7538 = vpow.pop %v7537
    %v7539 = vadd.f32 %v7538, 1.0
    %v7540 = vrcp.pop %v7539
    %v7541 = vmul.f32 1.0, %v7540
    %v7542 = vxor.u32 %v7526, 2147483648
    %v7543 = vmul.f32 %v7542, 1.442695
    %v7544 = vpow.pop %v7543
    %v7545 = vadd.f32 %v7544, 1.0
    %v7546 = vrcp.pop %v7545
    %v7547 = vmul.f32 1.0, %v7546
    %v7548 = vmul.f32 %v7547, %v7267
    %v7549 = vmul.f32 %v7534, %v7535
    %v7550 = vadd.f32 %v7548, %v7549
    %v7551 = vtanh.pop %v7550
    %v7552 = vmul.f32 %v7541, %v7551
    %v7553 = vld [vmem:[%s5069] sm:$0xff]
    %v7554 = vpack.c.bf16 %v7553, %v7553
    %v7555 = vld [vmem:[%s745] sm:$0xff]
    %v7556 = vpack.c.bf16 %v7555, %v7555
    %7557 = vmatprep.subr.bf16.mxu0 %v5237
    %7558 = vmatpush1.bf16.msra.mxu0 %v5236
    %7559 = vmatprep.subr.bf16.mxu0 %v5241
    %7560 = vmatpush1.bf16.msra.mxu0 %v5240
    %7561 = vmatprep.subr.bf16.mxu0 %v5245
    %7562 = vmatpush1.bf16.msra.mxu0 %v5244
    %7563 = vmatprep.subr.bf16.mxu0 %v5249
    %7564 = vmatpush1.bf16.msra.mxu0 %v5248
    %7565 = vmatprep.subr.bf16.mxu0 %v5253
    %7566 = vmatpush1.bf16.msra.mxu0 %v5252
    %7567 = vmatprep.subr.bf16.mxu0 %v5257
    %7568 = vmatpush1.bf16.msra.mxu0 %v5256
    %7569 = vmatprep.subr.bf16.mxu0 %v5261
    %7570 = vmatpush1.bf16.msra.mxu0 %v5260
    %7571 = vmatprep.subr.bf16.mxu0 %v5265
    %7572 = vmatpush1.bf16.msra.mxu0 %v5264
    %7573 = vmatprep.subr.bf16.mxu0 0
    %7574 = vmatpush1.bf16.msra.mxu0 0
    %7575 = vmatprep.subr.bf16.mxu0 0
    %7576 = vmatpush1.bf16.msra.mxu0 0
    %7577 = vmatprep.subr.bf16.mxu0 0
    %7578 = vmatpush1.bf16.msra.mxu0 0
    %7579 = vmatprep.subr.bf16.mxu0 0
    %7580 = vmatpush1.bf16.msra.mxu0 0
    %7581 = vmatprep.subr.bf16.mxu0 0
    %7582 = vmatpush1.bf16.msra.mxu0 0
    %7583 = vmatprep.subr.bf16.mxu0 0
    %7584 = vmatpush1.bf16.msra.mxu0 0
    %7585 = vmatprep.subr.bf16.mxu0 0
    %7586 = vmatpush1.bf16.msra.mxu0 0
    %7587 = vmatprep.subr.bf16.mxu0 0
    %7588 = vmatpush1.bf16.msra.mxu0 0
    %7589 = vmatprep.mubr.bf16.mxu0 0
    %7590 = vmatmul.mubr.bf16.gmra.mrb[0].mxu0 %v7556
    %v7591 = vpop.f32.mrb[0].mxu0
    %v7592 = vadd.f32 0.0, %v7591
    %v7593 = vpop.f32.mrb[0].mxu0
    %v7594 = vadd.f32 0.0, %v7593
    %v7595 = vpop.f32.mrb[0].mxu0
    %v7596 = vpop.f32.mrb[0].mxu0
    %7597 = vdwg.mxu0
    %7598 = vmatprep.subr.bf16.mxu0 %v5239
    %7599 = vmatpush1.bf16.msra.mxu0 %v5238
    %7600 = vmatprep.subr.bf16.mxu0 %v5243
    %7601 = vmatpush1.bf16.msra.mxu0 %v5242
    %7602 = vmatprep.subr.bf16.mxu0 %v5247
    %7603 = vmatpush1.bf16.msra.mxu0 %v5246
    %7604 = vmatprep.subr.bf16.mxu0 %v5251
    %7605 = vmatpush1.bf16.msra.mxu0 %v5250
    %7606 = vmatprep.subr.bf16.mxu0 %v5255
    %7607 = vmatpush1.bf16.msra.mxu0 %v5254
    %7608 = vmatprep.subr.bf16.mxu0 %v5259
    %7609 = vmatpush1.bf16.msra.mxu0 %v5258
    %7610 = vmatprep.subr.bf16.mxu0 %v5263
    %7611 = vmatpush1.bf16.msra.mxu0 %v5262
    %7612 = vmatprep.subr.bf16.mxu0 %v5267
    %7613 = vmatpush1.bf16.msra.mxu0 %v5266
    %7614 = vmatprep.subr.bf16.mxu0 0
    %7615 = vmatpush1.bf16.msra.mxu0 0
    %7616 = vmatprep.subr.bf16.mxu0 0
    %7617 = vmatpush1.bf16.msra.mxu0 0
    %7618 = vmatprep.subr.bf16.mxu0 0
    %7619 = vmatpush1.bf16.msra.mxu0 0
    %7620 = vmatprep.subr.bf16.mxu0 0
    %7621 = vmatpush1.bf16.msra.mxu0 0
    %7622 = vmatprep.subr.bf16.mxu0 0
    %7623 = vmatpush1.bf16.msra.mxu0 0
    %7624 = vmatprep.subr.bf16.mxu0 0
    %7625 = vmatpush1.bf16.msra.mxu0 0
    %7626 = vmatprep.subr.bf16.mxu0 0
    %7627 = vmatpush1.bf16.msra.mxu0 0
    %7628 = vmatprep.subr.bf16.mxu0 0
    %7629 = vmatpush1.bf16.msra.mxu0 0
    %7630 = vmatprep.mubr.bf16.mxu0 0
    %7631 = vmatmul.mubr.bf16.gmra.mrb[0].mxu0 %v7556
    %v7632 = vpop.f32.mrb[0].mxu0
    %v7633 = vadd.f32 0.0, %v7632
    %v7634 = vpop.f32.mrb[0].mxu0
    %v7635 = vadd.f32 0.0, %v7634
    %v7636 = vpop.f32.mrb[0].mxu0
    %v7637 = vpop.f32.mrb[0].mxu0
    %7638 = vdwg.mxu0
    %7639 = vmatprep.subr.bf16.mxu0 %v5478
    %7640 = vmatpush1.bf16.msra.mxu0 %v5477
    %7641 = vmatprep.subr.bf16.mxu0 %v5482
    %7642 = vmatpush1.bf16.msra.mxu0 %v5481
    %7643 = vmatprep.subr.bf16.mxu0 %v5486
    %7644 = vmatpush1.bf16.msra.mxu0 %v5485
    %7645 = vmatprep.subr.bf16.mxu0 %v5490
    %7646 = vmatpush1.bf16.msra.mxu0 %v5489
    %7647 = vmatprep.subr.bf16.mxu0 %v5494
    %7648 = vmatpush1.bf16.msra.mxu0 %v5493
    %7649 = vmatprep.subr.bf16.mxu0 %v5498
    %7650 = vmatpush1.bf16.msra.mxu0 %v5497
    %7651 = vmatprep.subr.bf16.mxu0 %v5502
    %7652 = vmatpush1.bf16.msra.mxu0 %v5501
    %7653 = vmatprep.subr.bf16.mxu0 %v5506
    %7654 = vmatpush1.bf16.msra.mxu0 %v5505
    %7655 = vmatprep.subr.bf16.mxu0 0
    %7656 = vmatpush1.bf16.msra.mxu0 0
    %7657 = vmatprep.subr.bf16.mxu0 0
    %7658 = vmatpush1.bf16.msra.mxu0 0
    %7659 = vmatprep.subr.bf16.mxu0 0
    %7660 = vmatpush1.bf16.msra.mxu0 0
    %7661 = vmatprep.subr.bf16.mxu0 0
    %7662 = vmatpush1.bf16.msra.mxu0 0
    %7663 = vmatprep.subr.bf16.mxu0 0
    %7664 = vmatpush1.bf16.msra.mxu0 0
    %7665 = vmatprep.subr.bf16.mxu0 0
    %7666 = vmatpush1.bf16.msra.mxu0 0
    %7667 = vmatprep.subr.bf16.mxu0 0
    %7668 = vmatpush1.bf16.msra.mxu0 0
    %7669 = vmatprep.subr.bf16.mxu0 0
    %7670 = vmatpush1.bf16.msra.mxu0 0
    %7671 = vmatprep.mubr.bf16.mxu0 0
    %7672 = vmatmul.mubr.bf16.gmra.mrb[0].mxu0 %v7554
    %v7673 = vpop.f32.mrb[0].mxu0
    %v7674 = vadd.f32 %v7592, %v7673
    %v7675 = vpop.f32.mrb[0].mxu0
    %v7676 = vadd.f32 %v7594, %v7675
    %v7677 = vpop.f32.mrb[0].mxu0
    %v7678 = vpop.f32.mrb[0].mxu0
    %7679 = vdwg.mxu0
    %7680 = vmatprep.subr.bf16.mxu0 %v5480
    %7681 = vmatpush1.bf16.msra.mxu0 %v5479
    %7682 = vmatprep.subr.bf16.mxu0 %v5484
    %7683 = vmatpush1.bf16.msra.mxu0 %v5483
    %7684 = vmatprep.subr.bf16.mxu0 %v5488
    %7685 = vmatpush1.bf16.msra.mxu0 %v5487
    %7686 = vmatprep.subr.bf16.mxu0 %v5492
    %7687 = vmatpush1.bf16.msra.mxu0 %v5491
    %7688 = vmatprep.subr.bf16.mxu0 %v5496
    %7689 = vmatpush1.bf16.msra.mxu0 %v5495
    %7690 = vmatprep.subr.bf16.mxu0 %v5500
    %7691 = vmatpush1.bf16.msra.mxu0 %v5499
    %7692 = vmatprep.subr.bf16.mxu0 %v5504
    %7693 = vmatpush1.bf16.msra.mxu0 %v5503
    %7694 = vmatprep.subr.bf16.mxu0 %v5508
    %7695 = vmatpush1.bf16.msra.mxu0 %v5507
    %7696 = vmatprep.subr.bf16.mxu0 0
    %7697 = vmatpush1.bf16.msra.mxu0 0
    %7698 = vmatprep.subr.bf16.mxu0 0
    %7699 = vmatpush1.bf16.msra.mxu0 0
    %7700 = vmatprep.subr.bf16.mxu0 0
    %7701 = vmatpush1.bf16.msra.mxu0 0
    %7702 = vmatprep.subr.bf16.mxu0 0
    %7703 = vmatpush1.bf16.msra.mxu0 0
    %7704 = vmatprep.subr.bf16.mxu0 0
    %7705 = vmatpush1.bf16.msra.mxu0 0
    %7706 = vmatprep.subr.bf16.mxu0 0
    %7707 = vmatpush1.bf16.msra.mxu0 0
    %7708 = vmatprep.subr.bf16.mxu0 0
    %7709 = vmatpush1.bf16.msra.mxu0 0
    %7710 = vmatprep.subr.bf16.mxu0 0
    %7711 = vmatpush1.bf16.msra.mxu0 0
    %7712 = vmatprep.mubr.bf16.mxu0 0
    %7713 = vmatmul.mubr.bf16.gmra.mrb[0].mxu0 %v7554
    %v7714 = vpop.f32.mrb[0].mxu0
    %v7715 = vadd.f32 %v7633, %v7714
    %v7716 = vpop.f32.mrb[0].mxu0
    %v7717 = vadd.f32 %v7635, %v7716
    %v7718 = vpop.f32.mrb[0].mxu0
    %v7719 = vpop.f32.mrb[0].mxu0
    %7720 = vdwg.mxu0
    %v7721 = vadd.f32 %v7674, %v5627
    %v7722 = vadd.f32 %v7676, %v5631
    %v7723 = vadd.f32 %v7715, %v5635
    %v7724 = vadd.f32 %v7717, %v5639
    %v7725 = vpack.c.bf16 %v7552, %v7552
    %7726 = vmatprep.subr.bf16.mxu0 %v5965
    %7727 = vmatpush1.bf16.msra.mxu0 %v5964
    %7728 = vmatprep.subr.bf16.mxu0 %v5969
    %7729 = vmatpush1.bf16.msra.mxu0 %v5968
    %7730 = vmatprep.subr.bf16.mxu0 %v5973
    %7731 = vmatpush1.bf16.msra.mxu0 %v5972
    %7732 = vmatprep.subr.bf16.mxu0 %v5977
    %7733 = vmatpush1.bf16.msra.mxu0 %v5976
    %7734 = vmatprep.subr.bf16.mxu0 %v5981
    %7735 = vmatpush1.bf16.msra.mxu0 %v5980
    %7736 = vmatprep.subr.bf16.mxu0 %v5985
    %7737 = vmatpush1.bf16.msra.mxu0 %v5984
    %7738 = vmatprep.subr.bf16.mxu0 %v5989
    %7739 = vmatpush1.bf16.msra.mxu0 %v5988
    %7740 = vmatprep.subr.bf16.mxu0 %v5993
    %7741 = vmatpush1.bf16.msra.mxu0 %v5992
    %7742 = vmatprep.subr.bf16.mxu0 0
    %7743 = vmatpush1.bf16.msra.mxu0 0
    %7744 = vmatprep.subr.bf16.mxu0 0
    %7745 = vmatpush1.bf16.msra.mxu0 0
    %7746 = vmatprep.subr.bf16.mxu0 0
    %7747 = vmatpush1.bf16.msra.mxu0 0
    %7748 = vmatprep.subr.bf16.mxu0 0
    %7749 = vmatpush1.bf16.msra.mxu0 0
    %7750 = vmatprep.subr.bf16.mxu0 0
    %7751 = vmatpush1.bf16.msra.mxu0 0
    %7752 = vmatprep.subr.bf16.mxu0 0
    %7753 = vmatpush1.bf16.msra.mxu0 0
    %7754 = vmatprep.subr.bf16.mxu0 0
    %7755 = vmatpush1.bf16.msra.mxu0 0
    %7756 = vmatprep.subr.bf16.mxu0 0
    %7757 = vmatpush1.bf16.msra.mxu0 0
    %7758 = vmatprep.mubr.bf16.mxu0 0
    %7759 = vmatmul.mubr.bf16.gmra.mrb[0].mxu0 %v7725
    %v7760 = vpop.f32.mrb[0].mxu0
    %v7761 = vadd.f32 0.0, %v7760
    %v7762 = vpop.f32.mrb[0].mxu0
    %v7763 = vadd.f32 0.0, %v7762
    %v7764 = vpop.f32.mrb[0].mxu0
    %v7765 = vpop.f32.mrb[0].mxu0
    %7766 = vdwg.mxu0
    %7767 = vmatprep.subr.bf16.mxu0 %v5967
    %7768 = vmatpush1.bf16.msra.mxu0 %v5966
    %7769 = vmatprep.subr.bf16.mxu0 %v5971
    %7770 = vmatpush1.bf16.msra.mxu0 %v5970
    %7771 = vmatprep.subr.bf16.mxu0 %v5975
    %7772 = vmatpush1.bf16.msra.mxu0 %v5974
    %7773 = vmatprep.subr.bf16.mxu0 %v5979
    %7774 = vmatpush1.bf16.msra.mxu0 %v5978
    %7775 = vmatprep.subr.bf16.mxu0 %v5983
    %7776 = vmatpush1.bf16.msra.mxu0 %v5982
    %7777 = vmatprep.subr.bf16.mxu0 %v5987
    %7778 = vmatpush1.bf16.msra.mxu0 %v5986
    %7779 = vmatprep.subr.bf16.mxu0 %v5991
    %7780 = vmatpush1.bf16.msra.mxu0 %v5990
    %7781 = vmatprep.subr.bf16.mxu0 %v5995
    %7782 = vmatpush1.bf16.msra.mxu0 %v5994
    %7783 = vmatprep.subr.bf16.mxu0 0
    %7784 = vmatpush1.bf16.msra.mxu0 0
    %7785 = vmatprep.subr.bf16.mxu0 0
    %7786 = vmatpush1.bf16.msra.mxu0 0
    %7787 = vmatprep.subr.bf16.mxu0 0
    %7788 = vmatpush1.bf16.msra.mxu0 0
    %7789 = vmatprep.subr.bf16.mxu0 0
    %7790 = vmatpush1.bf16.msra.mxu0 0
    %7791 = vmatprep.subr.bf16.mxu0 0
    %7792 = vmatpush1.bf16.msra.mxu0 0
    %7793 = vmatprep.subr.bf16.mxu0 0
    %7794 = vmatpush1.bf16.msra.mxu0 0
    %7795 = vmatprep.subr.bf16.mxu0 0
    %7796 = vmatpush1.bf16.msra.mxu0 0
    %7797 = vmatprep.subr.bf16.mxu0 0
    %7798 = vmatpush1.bf16.msra.mxu0 0
    %7799 = vmatprep.mubr.bf16.mxu0 0
    %7800 = vmatmul.mubr.bf16.gmra.mrb[0].mxu0 %v7725
    %v7801 = vpop.f32.mrb[0].mxu0
    %v7802 = vadd.f32 0.0, %v7801
    %v7803 = vpop.f32.mrb[0].mxu0
    %v7804 = vadd.f32 0.0, %v7803
    %v7805 = vpop.f32.mrb[0].mxu0
    %v7806 = vpop.f32.mrb[0].mxu0
    %7807 = vdwg.mxu0
    %v7808 = vadd.f32 %v7721, %v7761
    %v7809 = vadd.f32 %v7722, %v7763
    %v7810 = vadd.f32 %v7723, %v7802
    %v7811 = vadd.f32 %v7724, %v7804
    %v7812 = vxor.u32 %v7808, 2147483648
    %v7813 = vmul.f32 %v7812, 1.442695
    %v7814 = vpow.pop %v7813
    %v7815 = vadd.f32 %v7814, 1.0
    %v7816 = vrcp.pop %v7815
    %v7817 = vmul.f32 1.0, %v7816
    %v7818 = vtanh.pop %v7810
    %v7819 = vxor.u32 %v7811, 2147483648
    %v7820 = vmul.f32 %v7819, 1.442695
    %v7821 = vpow.pop %v7820
    %v7822 = vadd.f32 %v7821, 1.0
    %v7823 = vrcp.pop %v7822
    %v7824 = vmul.f32 1.0, %v7823
    %v7825 = vxor.u32 %v7809, 2147483648
    %v7826 = vmul.f32 %v7825, 1.442695
    %v7827 = vpow.pop %v7826
    %v7828 = vadd.f32 %v7827, 1.0
    %v7829 = vrcp.pop %v7828
    %v7830 = vmul.f32 1.0, %v7829
    %v7831 = vmul.f32 %v7830, %v7550
    %v7832 = vmul.f32 %v7817, %v7818
    %v7833 = vadd.f32 %v7831, %v7832
    %v7834 = vtanh.pop %v7833
    %v7835 = vmul.f32 %v7824, %v7834
    %v7836 = vld [vmem:[#allocation12] sm:$0xff]
    %v7837 = vld [vmem:[#allocation12 + $0x8] sm:$0xff]
    %v7838 = vld [vmem:[#allocation12 + $0x10] sm:$0xff]
    %v7839 = vld [vmem:[#allocation12 + $0x18] sm:$0xff]
    %v7840 = vld [vmem:[#allocation12 + $0x20] sm:$0xff]
    %v7841 = vld [vmem:[#allocation12 + $0x28] sm:$0xff]
    %v7842 = vld [vmem:[#allocation12 + $0x30] sm:$0xff]
    %v7843 = vld [vmem:[#allocation12 + $0x38] sm:$0xff]
    %v7844 = vld [vmem:[#allocation12 + $0x40] sm:$0xff]
    %v7845 = vld [vmem:[#allocation12 + $0x48] sm:$0xff]
    %v7846 = vld [vmem:[#allocation12 + $0x50] sm:$0xff]
    %v7847 = vld [vmem:[#allocation12 + $0x58] sm:$0xff]
    %v7848 = vld [vmem:[#allocation12 + $0x60] sm:$0xff]
    %v7849 = vld [vmem:[#allocation12 + $0x68] sm:$0xff]
    %v7850 = vld [vmem:[#allocation12 + $0x70] sm:$0xff]
    %v7851 = vld [vmem:[#allocation12 + $0x78] sm:$0xff]
    %v7852 = vld [vmem:[#allocation12 + $0x80] sm:$0xff]
    %v7853 = vld [vmem:[#allocation12 + $0x88] sm:$0xff]
    %v7854 = vld [vmem:[#allocation12 + $0x90] sm:$0xff]
    %v7855 = vld [vmem:[#allocation12 + $0x98] sm:$0xff]
    %v7856 = vld [vmem:[#allocation12 + $0xa0] sm:$0xff]
    %v7857 = vld [vmem:[#allocation12 + $0xa8] sm:$0xff]
    %v7858 = vld [vmem:[#allocation12 + $0xb0] sm:$0xff]
    %v7859 = vld [vmem:[#allocation12 + $0xb8] sm:$0xff]
    %v7860 = vld [vmem:[#allocation12 + $0xc0] sm:$0xff]
    %v7861 = vld [vmem:[#allocation12 + $0xc8] sm:$0xff]
    %v7862 = vld [vmem:[#allocation12 + $0xd0] sm:$0xff]
    %v7863 = vld [vmem:[#allocation12 + $0xd8] sm:$0xff]
    %v7864 = vld [vmem:[#allocation12 + $0xe0] sm:$0xff]
    %v7865 = vld [vmem:[#allocation12 + $0xe8] sm:$0xff]
    %v7866 = vld [vmem:[#allocation12 + $0xf0] sm:$0xff]
    %v7867 = vld [vmem:[#allocation12 + $0xf8] sm:$0xff]
    %v7868 = vld [vmem:[#allocation13] sm:$0xff]
    %v7869 = vld [vmem:[#allocation13 + $0x8] sm:$0xff]
    %v7870 = vld [vmem:[#allocation13 + $0x10] sm:$0xff]
    %v7871 = vld [vmem:[#allocation13 + $0x18] sm:$0xff]
    %v7872 = vld [vmem:[#allocation13 + $0x20] sm:$0xff]
    %v7873 = vld [vmem:[#allocation13 + $0x28] sm:$0xff]
    %v7874 = vld [vmem:[#allocation13 + $0x30] sm:$0xff]
    %v7875 = vld [vmem:[#allocation13 + $0x38] sm:$0xff]
    %v7876 = vld [vmem:[#allocation13 + $0x40] sm:$0xff]
    %v7877 = vld [vmem:[#allocation13 + $0x48] sm:$0xff]
    %v7878 = vld [vmem:[#allocation13 + $0x50] sm:$0xff]
    %v7879 = vld [vmem:[#allocation13 + $0x58] sm:$0xff]
    %v7880 = vld [vmem:[#allocation13 + $0x60] sm:$0xff]
    %v7881 = vld [vmem:[#allocation13 + $0x68] sm:$0xff]
    %v7882 = vld [vmem:[#allocation13 + $0x70] sm:$0xff]
    %v7883 = vld [vmem:[#allocation13 + $0x78] sm:$0xff]
    %v7884 = vld [vmem:[#allocation13 + $0x80] sm:$0xff]
    %v7885 = vld [vmem:[#allocation13 + $0x88] sm:$0xff]
    %v7886 = vld [vmem:[#allocation13 + $0x90] sm:$0xff]
    %v7887 = vld [vmem:[#allocation13 + $0x98] sm:$0xff]
    %v7888 = vld [vmem:[#allocation13 + $0xa0] sm:$0xff]
    %v7889 = vld [vmem:[#allocation13 + $0xa8] sm:$0xff]
    %v7890 = vld [vmem:[#allocation13 + $0xb0] sm:$0xff]
    %v7891 = vld [vmem:[#allocation13 + $0xb8] sm:$0xff]
    %v7892 = vld [vmem:[#allocation13 + $0xc0] sm:$0xff]
    %v7893 = vld [vmem:[#allocation13 + $0xc8] sm:$0xff]
    %v7894 = vld [vmem:[#allocation13 + $0xd0] sm:$0xff]
    %v7895 = vld [vmem:[#allocation13 + $0xd8] sm:$0xff]
    %v7896 = vld [vmem:[#allocation13 + $0xe0] sm:$0xff]
    %v7897 = vld [vmem:[#allocation13 + $0xe8] sm:$0xff]
    %v7898 = vld [vmem:[#allocation13 + $0xf0] sm:$0xff]
    %v7899 = vld [vmem:[#allocation13 + $0xf8] sm:$0xff]
    %v7932 = vunpack.c.l.b16 %v7868
    %v7933 = vunpack.c.h.b16 %v7868
    %v7934 = vunpack.c.l.b16 %v7869
    %v7935 = vunpack.c.h.b16 %v7869
    %v7936 = vunpack.c.l.b16 %v7870
    %v7937 = vunpack.c.h.b16 %v7870
    %v7938 = vunpack.c.l.b16 %v7871
    %v7939 = vunpack.c.h.b16 %v7871
    %v7940 = vunpack.c.l.b16 %v7872
    %v7941 = vunpack.c.h.b16 %v7872
    %v7942 = vunpack.c.l.b16 %v7873
    %v7943 = vunpack.c.h.b16 %v7873
    %v7944 = vunpack.c.l.b16 %v7874
    %v7945 = vunpack.c.h.b16 %v7874
    %v7946 = vunpack.c.l.b16 %v7875
    %v7947 = vunpack.c.h.b16 %v7875
    %v7948 = vunpack.c.l.b16 %v7876
    %v7949 = vunpack.c.h.b16 %v7876
    %v7950 = vunpack.c.l.b16 %v7877
    %v7951 = vunpack.c.h.b16 %v7877
    %v7952 = vunpack.c.l.b16 %v7878
    %v7953 = vunpack.c.h.b16 %v7878
    %v7954 = vunpack.c.l.b16 %v7879
    %v7955 = vunpack.c.h.b16 %v7879
    %v7956 = vunpack.c.l.b16 %v7880
    %v7957 = vunpack.c.h.b16 %v7880
    %v7958 = vunpack.c.l.b16 %v7881
    %v7959 = vunpack.c.h.b16 %v7881
    %v7960 = vunpack.c.l.b16 %v7882
    %v7961 = vunpack.c.h.b16 %v7882
    %v7962 = vunpack.c.l.b16 %v7883
    %v7963 = vunpack.c.h.b16 %v7883
    %v7964 = vunpack.c.l.b16 %v7884
    %v7965 = vunpack.c.h.b16 %v7884
    %v7966 = vunpack.c.l.b16 %v7885
    %v7967 = vunpack.c.h.b16 %v7885
    %v7968 = vunpack.c.l.b16 %v7886
    %v7969 = vunpack.c.h.b16 %v7886
    %v7970 = vunpack.c.l.b16 %v7887
    %v7971 = vunpack.c.h.b16 %v7887
    %v7972 = vunpack.c.l.b16 %v7888
    %v7973 = vunpack.c.h.b16 %v7888
    %v7974 = vunpack.c.l.b16 %v7889
    %v7975 = vunpack.c.h.b16 %v7889
    %v7976 = vunpack.c.l.b16 %v7890
    %v7977 = vunpack.c.h.b16 %v7890
    %v7978 = vunpack.c.l.b16 %v7891
    %v7979 = vunpack.c.h.b16 %v7891
    %v7980 = vunpack.c.l.b16 %v7892
    %v7981 = vunpack.c.h.b16 %v7892
    %v7982 = vunpack.c.l.b16 %v7893
    %v7983 = vunpack.c.h.b16 %v7893
    %v7984 = vunpack.c.l.b16 %v7894
    %v7985 = vunpack.c.h.b16 %v7894
    %v7986 = vunpack.c.l.b16 %v7895
    %v7987 = vunpack.c.h.b16 %v7895
    %v7988 = vunpack.c.l.b16 %v7896
    %v7989 = vunpack.c.h.b16 %v7896
    %v7990 = vunpack.c.l.b16 %v7897
    %v7991 = vunpack.c.h.b16 %v7897
    %v7992 = vunpack.c.l.b16 %v7898
    %v7993 = vunpack.c.h.b16 %v7898
    %v7994 = vunpack.c.l.b16 %v7899
    %v7995 = vunpack.c.h.b16 %v7899
    %v7996 = vpack.c.b16 %v7936, %v7932
    %v7997 = vpack.c.b16 %v7937, %v7933
    %v7998 = vpack.c.b16 %v7938, %v7934
    %v7999 = vpack.c.b16 %v7939, %v7935
    %v8000 = vpack.c.b16 %v7944, %v7940
    %v8001 = vpack.c.b16 %v7945, %v7941
    %v8002 = vpack.c.b16 %v7946, %v7942
    %v8003 = vpack.c.b16 %v7947, %v7943
    %v8004 = vpack.c.b16 %v7952, %v7948
    %v8005 = vpack.c.b16 %v7953, %v7949
    %v8006 = vpack.c.b16 %v7954, %v7950
    %v8007 = vpack.c.b16 %v7955, %v7951
    %v8008 = vpack.c.b16 %v7960, %v7956
    %v8009 = vpack.c.b16 %v7961, %v7957
    %v8010 = vpack.c.b16 %v7962, %v7958
    %v8011 = vpack.c.b16 %v7963, %v7959
    %v8012 = vpack.c.b16 %v7968, %v7964
    %v8013 = vpack.c.b16 %v7969, %v7965
    %v8014 = vpack.c.b16 %v7970, %v7966
    %v8015 = vpack.c.b16 %v7971, %v7967
    %v8016 = vpack.c.b16 %v7976, %v7972
    %v8017 = vpack.c.b16 %v7977, %v7973
    %v8018 = vpack.c.b16 %v7978, %v7974
    %v8019 = vpack.c.b16 %v7979, %v7975
    %v8020 = vpack.c.b16 %v7984, %v7980
    %v8021 = vpack.c.b16 %v7985, %v7981
    %v8022 = vpack.c.b16 %v7986, %v7982
    %v8023 = vpack.c.b16 %v7987, %v7983
    %v8024 = vpack.c.b16 %v7992, %v7988
    %v8025 = vpack.c.b16 %v7993, %v7989
    %v8026 = vpack.c.b16 %v7994, %v7990
    %v8027 = vpack.c.b16 %v7995, %v7991
    %8060 = vmatprep.subr.bf16.mxu0 %v7997
    %8061 = vmatpush1.bf16.msra.mxu0 %v7996
    %8062 = vmatprep.subr.bf16.mxu0 %v8001
    %8063 = vmatpush1.bf16.msra.mxu0 %v8000
    %8064 = vmatprep.subr.bf16.mxu0 %v8005
    %8065 = vmatpush1.bf16.msra.mxu0 %v8004
    %8066 = vmatprep.subr.bf16.mxu0 %v8009
    %8067 = vmatpush1.bf16.msra.mxu0 %v8008
    %8068 = vmatprep.subr.bf16.mxu0 %v8013
    %8069 = vmatpush1.bf16.msra.mxu0 %v8012
    %8070 = vmatprep.subr.bf16.mxu0 %v8017
    %8071 = vmatpush1.bf16.msra.mxu0 %v8016
    %8072 = vmatprep.subr.bf16.mxu0 %v8021
    %8073 = vmatpush1.bf16.msra.mxu0 %v8020
    %8074 = vmatprep.subr.bf16.mxu0 %v8025
    %8075 = vmatpush1.bf16.msra.mxu0 %v8024
    %8076 = vmatprep.subr.bf16.mxu0 0
    %8077 = vmatpush1.bf16.msra.mxu0 0
    %8078 = vmatprep.subr.bf16.mxu0 0
    %8079 = vmatpush1.bf16.msra.mxu0 0
    %8080 = vmatprep.subr.bf16.mxu0 0
    %8081 = vmatpush1.bf16.msra.mxu0 0
    %8082 = vmatprep.subr.bf16.mxu0 0
    %8083 = vmatpush1.bf16.msra.mxu0 0
    %8084 = vmatprep.subr.bf16.mxu0 0
    %8085 = vmatpush1.bf16.msra.mxu0 0
    %8086 = vmatprep.subr.bf16.mxu0 0
    %8087 = vmatpush1.bf16.msra.mxu0 0
    %8088 = vmatprep.subr.bf16.mxu0 0
    %8089 = vmatpush1.bf16.msra.mxu0 0
    %8090 = vmatprep.subr.bf16.mxu0 0
    %8091 = vmatpush1.bf16.msra.mxu0 0
    %8092 = vmatprep.mubr.bf16.mxu0 0
    %8093 = vmatmul.mubr.bf16.gmra.mrb[0].mxu0 %v7556
    %v8094 = vpop.f32.mrb[0].mxu0
    %v8095 = vadd.f32 0.0, %v8094
    %v8096 = vpop.f32.mrb[0].mxu0
    %v8097 = vpop.f32.mrb[0].mxu0
    %v8098 = vpop.f32.mrb[0].mxu0
    %8099 = vdwg.mxu0
    %8100 = vmatprep.subr.bf16.mxu0 %v7999
    %8101 = vmatpush1.bf16.msra.mxu0 %v7998
    %8102 = vmatprep.subr.bf16.mxu0 %v8003
    %8103 = vmatpush1.bf16.msra.mxu0 %v8002
    %8104 = vmatprep.subr.bf16.mxu0 %v8007
    %8105 = vmatpush1.bf16.msra.mxu0 %v8006
    %8106 = vmatprep.subr.bf16.mxu0 %v8011
    %8107 = vmatpush1.bf16.msra.mxu0 %v8010
    %8108 = vmatprep.subr.bf16.mxu0 %v8015
    %8109 = vmatpush1.bf16.msra.mxu0 %v8014
    %8110 = vmatprep.subr.bf16.mxu0 %v8019
    %8111 = vmatpush1.bf16.msra.mxu0 %v8018
    %8112 = vmatprep.subr.bf16.mxu0 %v8023
    %8113 = vmatpush1.bf16.msra.mxu0 %v8022
    %8114 = vmatprep.subr.bf16.mxu0 %v8027
    %8115 = vmatpush1.bf16.msra.mxu0 %v8026
    %8116 = vmatprep.subr.bf16.mxu0 0
    %8117 = vmatpush1.bf16.msra.mxu0 0
    %8118 = vmatprep.subr.bf16.mxu0 0
    %8119 = vmatpush1.bf16.msra.mxu0 0
    %8120 = vmatprep.subr.bf16.mxu0 0
    %8121 = vmatpush1.bf16.msra.mxu0 0
    %8122 = vmatprep.subr.bf16.mxu0 0
    %8123 = vmatpush1.bf16.msra.mxu0 0
    %8124 = vmatprep.subr.bf16.mxu0 0
    %8125 = vmatpush1.bf16.msra.mxu0 0
    %8126 = vmatprep.subr.bf16.mxu0 0
    %8127 = vmatpush1.bf16.msra.mxu0 0
    %8128 = vmatprep.subr.bf16.mxu0 0
    %8129 = vmatpush1.bf16.msra.mxu0 0
    %8130 = vmatprep.subr.bf16.mxu0 0
    %8131 = vmatpush1.bf16.msra.mxu0 0
    %8132 = vmatprep.mubr.bf16.mxu0 0
    %8133 = vmatmul.mubr.bf16.gmra.mrb[0].mxu0 %v7556
    %v8134 = vpop.f32.mrb[0].mxu0
    %v8135 = vadd.f32 0.0, %v8134
    %v8136 = vpop.f32.mrb[0].mxu0
    %v8137 = vadd.f32 0.0, %v8136
    %v8138 = vpop.f32.mrb[0].mxu0
    %v8139 = vpop.f32.mrb[0].mxu0
    %8140 = vdwg.mxu0
    %v8173 = vunpack.c.l.b16 %v7836
    %v8174 = vunpack.c.h.b16 %v7836
    %v8175 = vunpack.c.l.b16 %v7837
    %v8176 = vunpack.c.h.b16 %v7837
    %v8177 = vunpack.c.l.b16 %v7838
    %v8178 = vunpack.c.h.b16 %v7838
    %v8179 = vunpack.c.l.b16 %v7839
    %v8180 = vunpack.c.h.b16 %v7839
    %v8181 = vunpack.c.l.b16 %v7840
    %v8182 = vunpack.c.h.b16 %v7840
    %v8183 = vunpack.c.l.b16 %v7841
    %v8184 = vunpack.c.h.b16 %v7841
    %v8185 = vunpack.c.l.b16 %v7842
    %v8186 = vunpack.c.h.b16 %v7842
    %v8187 = vunpack.c.l.b16 %v7843
    %v8188 = vunpack.c.h.b16 %v7843
    %v8189 = vunpack.c.l.b16 %v7844
    %v8190 = vunpack.c.h.b16 %v7844
    %v8191 = vunpack.c.l.b16 %v7845
    %v8192 = vunpack.c.h.b16 %v7845
    %v8193 = vunpack.c.l.b16 %v7846
    %v8194 = vunpack.c.h.b16 %v7846
    %v8195 = vunpack.c.l.b16 %v7847
    %v8196 = vunpack.c.h.b16 %v7847
    %v8197 = vunpack.c.l.b16 %v7848
    %v8198 = vunpack.c.h.b16 %v7848
    %v8199 = vunpack.c.l.b16 %v7849
    %v8200 = vunpack.c.h.b16 %v7849
    %v8201 = vunpack.c.l.b16 %v7850
    %v8202 = vunpack.c.h.b16 %v7850
    %v8203 = vunpack.c.l.b16 %v7851
    %v8204 = vunpack.c.h.b16 %v7851
    %v8205 = vunpack.c.l.b16 %v7852
    %v8206 = vunpack.c.h.b16 %v7852
    %v8207 = vunpack.c.l.b16 %v7853
    %v8208 = vunpack.c.h.b16 %v7853
    %v8209 = vunpack.c.l.b16 %v7854
    %v8210 = vunpack.c.h.b16 %v7854
    %v8211 = vunpack.c.l.b16 %v7855
    %v8212 = vunpack.c.h.b16 %v7855
    %v8213 = vunpack.c.l.b16 %v7856
    %v8214 = vunpack.c.h.b16 %v7856
    %v8215 = vunpack.c.l.b16 %v7857
    %v8216 = vunpack.c.h.b16 %v7857
    %v8217 = vunpack.c.l.b16 %v7858
    %v8218 = vunpack.c.h.b16 %v7858
    %v8219 = vunpack.c.l.b16 %v7859
    %v8220 = vunpack.c.h.b16 %v7859
    %v8221 = vunpack.c.l.b16 %v7860
    %v8222 = vunpack.c.h.b16 %v7860
    %v8223 = vunpack.c.l.b16 %v7861
    %v8224 = vunpack.c.h.b16 %v7861
    %v8225 = vunpack.c.l.b16 %v7862
    %v8226 = vunpack.c.h.b16 %v7862
    %v8227 = vunpack.c.l.b16 %v7863
    %v8228 = vunpack.c.h.b16 %v7863
    %v8229 = vunpack.c.l.b16 %v7864
    %v8230 = vunpack.c.h.b16 %v7864
    %v8231 = vunpack.c.l.b16 %v7865
    %v8232 = vunpack.c.h.b16 %v7865
    %v8233 = vunpack.c.l.b16 %v7866
    %v8234 = vunpack.c.h.b16 %v7866
    %v8235 = vunpack.c.l.b16 %v7867
    %v8236 = vunpack.c.h.b16 %v7867
    %v8237 = vpack.c.b16 %v8177, %v8173
    %v8238 = vpack.c.b16 %v8178, %v8174
    %v8239 = vpack.c.b16 %v8179, %v8175
    %v8240 = vpack.c.b16 %v8180, %v8176
    %v8241 = vpack.c.b16 %v8185, %v8181
    %v8242 = vpack.c.b16 %v8186, %v8182
    %v8243 = vpack.c.b16 %v8187, %v8183
    %v8244 = vpack.c.b16 %v8188, %v8184
    %v8245 = vpack.c.b16 %v8193, %v8189
    %v8246 = vpack.c.b16 %v8194, %v8190
    %v8247 = vpack.c.b16 %v8195, %v8191
    %v8248 = vpack.c.b16 %v8196, %v8192
    %v8249 = vpack.c.b16 %v8201, %v8197
    %v8250 = vpack.c.b16 %v8202, %v8198
    %v8251 = vpack.c.b16 %v8203, %v8199
    %v8252 = vpack.c.b16 %v8204, %v8200
    %v8253 = vpack.c.b16 %v8209, %v8205
    %v8254 = vpack.c.b16 %v8210, %v8206
    %v8255 = vpack.c.b16 %v8211, %v8207
    %v8256 = vpack.c.b16 %v8212, %v8208
    %v8257 = vpack.c.b16 %v8217, %v8213
    %v8258 = vpack.c.b16 %v8218, %v8214
    %v8259 = vpack.c.b16 %v8219, %v8215
    %v8260 = vpack.c.b16 %v8220, %v8216
    %v8261 = vpack.c.b16 %v8225, %v8221
    %v8262 = vpack.c.b16 %v8226, %v8222
    %v8263 = vpack.c.b16 %v8227, %v8223
    %v8264 = vpack.c.b16 %v8228, %v8224
    %v8265 = vpack.c.b16 %v8233, %v8229
    %v8266 = vpack.c.b16 %v8234, %v8230
    %v8267 = vpack.c.b16 %v8235, %v8231
    %v8268 = vpack.c.b16 %v8236, %v8232
    %8301 = vmatprep.subr.bf16.mxu0 %v8238
    %8302 = vmatpush1.bf16.msra.mxu0 %v8237
    %8303 = vmatprep.subr.bf16.mxu0 %v8242
    %8304 = vmatpush1.bf16.msra.mxu0 %v8241
    %8305 = vmatprep.subr.bf16.mxu0 %v8246
    %8306 = vmatpush1.bf16.msra.mxu0 %v8245
    %8307 = vmatprep.subr.bf16.mxu0 %v8250
    %8308 = vmatpush1.bf16.msra.mxu0 %v8249
    %8309 = vmatprep.subr.bf16.mxu0 %v8254
    %8310 = vmatpush1.bf16.msra.mxu0 %v8253
    %8311 = vmatprep.subr.bf16.mxu0 %v8258
    %8312 = vmatpush1.bf16.msra.mxu0 %v8257
    %8313 = vmatprep.subr.bf16.mxu0 %v8262
    %8314 = vmatpush1.bf16.msra.mxu0 %v8261
    %8315 = vmatprep.subr.bf16.mxu0 %v8266
    %8316 = vmatpush1.bf16.msra.mxu0 %v8265
    %8317 = vmatprep.subr.bf16.mxu0 0
    %8318 = vmatpush1.bf16.msra.mxu0 0
    %8319 = vmatprep.subr.bf16.mxu0 0
    %8320 = vmatpush1.bf16.msra.mxu0 0
    %8321 = vmatprep.subr.bf16.mxu0 0
    %8322 = vmatpush1.bf16.msra.mxu0 0
    %8323 = vmatprep.subr.bf16.mxu0 0
    %8324 = vmatpush1.bf16.msra.mxu0 0
    %8325 = vmatprep.subr.bf16.mxu0 0
    %8326 = vmatpush1.bf16.msra.mxu0 0
    %8327 = vmatprep.subr.bf16.mxu0 0
    %8328 = vmatpush1.bf16.msra.mxu0 0
    %8329 = vmatprep.subr.bf16.mxu0 0
    %8330 = vmatpush1.bf16.msra.mxu0 0
    %8331 = vmatprep.subr.bf16.mxu0 0
    %8332 = vmatpush1.bf16.msra.mxu0 0
    %8333 = vmatprep.mubr.bf16.mxu0 0
    %8334 = vmatmul.mubr.bf16.gmra.mrb[0].mxu0 %v7554
    %v8335 = vpop.f32.mrb[0].mxu0
    %v8336 = vadd.f32 %v8095, %v8335
    %v8337 = vpop.f32.mrb[0].mxu0
    %v8338 = vpop.f32.mrb[0].mxu0
    %v8339 = vpop.f32.mrb[0].mxu0
    %8340 = vdwg.mxu0
    %8341 = vmatprep.subr.bf16.mxu0 %v8240
    %8342 = vmatpush1.bf16.msra.mxu0 %v8239
    %8343 = vmatprep.subr.bf16.mxu0 %v8244
    %8344 = vmatpush1.bf16.msra.mxu0 %v8243
    %8345 = vmatprep.subr.bf16.mxu0 %v8248
    %8346 = vmatpush1.bf16.msra.mxu0 %v8247
    %8347 = vmatprep.subr.bf16.mxu0 %v8252
    %8348 = vmatpush1.bf16.msra.mxu0 %v8251
    %8349 = vmatprep.subr.bf16.mxu0 %v8256
    %8350 = vmatpush1.bf16.msra.mxu0 %v8255
    %8351 = vmatprep.subr.bf16.mxu0 %v8260
    %8352 = vmatpush1.bf16.msra.mxu0 %v8259
    %8353 = vmatprep.subr.bf16.mxu0 %v8264
    %8354 = vmatpush1.bf16.msra.mxu0 %v8263
    %8355 = vmatprep.subr.bf16.mxu0 %v8268
    %8356 = vmatpush1.bf16.msra.mxu0 %v8267
    %8357 = vmatprep.subr.bf16.mxu0 0
    %8358 = vmatpush1.bf16.msra.mxu0 0
    %8359 = vmatprep.subr.bf16.mxu0 0
    %8360 = vmatpush1.bf16.msra.mxu0 0
    %8361 = vmatprep.subr.bf16.mxu0 0
    %8362 = vmatpush1.bf16.msra.mxu0 0
    %8363 = vmatprep.subr.bf16.mxu0 0
    %8364 = vmatpush1.bf16.msra.mxu0 0
    %8365 = vmatprep.subr.bf16.mxu0 0
    %8366 = vmatpush1.bf16.msra.mxu0 0
    %8367 = vmatprep.subr.bf16.mxu0 0
    %8368 = vmatpush1.bf16.msra.mxu0 0
    %8369 = vmatprep.subr.bf16.mxu0 0
    %8370 = vmatpush1.bf16.msra.mxu0 0
    %8371 = vmatprep.subr.bf16.mxu0 0
    %8372 = vmatpush1.bf16.msra.mxu0 0
    %8373 = vmatprep.mubr.bf16.mxu0 0
    %8374 = vmatmul.mubr.bf16.gmra.mrb[0].mxu0 %v7554
    %v8375 = vpop.f32.mrb[0].mxu0
    %v8376 = vadd.f32 %v8135, %v8375
    %v8377 = vpop.f32.mrb[0].mxu0
    %v8378 = vadd.f32 %v8137, %v8377
    %v8379 = vpop.f32.mrb[0].mxu0
    %v8380 = vpop.f32.mrb[0].mxu0
    %8381 = vdwg.mxu0
    %v8382 = vld [vmem:[#allocation15] sm:$0xf]
    %v8384 = vlaneseq
    %v8385 = vshrl.u32 %v8384, 7
    %v8386 = vsub.s32 0, %v8385
    %v8387 = vrot.slane %v8382, %v8386
    %v8388 = vlaneseq
    %v8389 = vshrl.u32 %v8388, 7
    %v8390 = vsub.s32 2, %v8389
    %v8391 = vrot.slane %v8382, %v8390
    %v8392 = vlaneseq
    %v8393 = vshrl.u32 %v8392, 7
    %v8394 = vsub.s32 3, %v8393
    %v8395 = vrot.slane %v8382, %v8394
    %v8399 = vadd.f32 %v8336, %v8387
    %v8400 = vadd.f32 %v8376, %v8391
    %v8401 = vadd.f32 %v8378, %v8395
    %v8402 = vxor.u32 %v8399, 2147483648
    %v8403 = vmul.f32 %v8402, 1.442695
    %v8404 = vpow.pop %v8403
    %v8405 = vadd.f32 %v8404, 1.0
    %v8406 = vrcp.pop %v8405
    %v8407 = vmul.f32 1.0, %v8406
    %v8408 = vtanh.pop %v8400
    %v8409 = vxor.u32 %v8401, 2147483648
    %v8410 = vmul.f32 %v8409, 1.442695
    %v8411 = vpow.pop %v8410
    %v8412 = vadd.f32 %v8411, 1.0
    %v8413 = vrcp.pop %v8412
    %v8414 = vmul.f32 1.0, %v8413
    %v8415 = vmul.f32 %v8407, %v8408
    %v8416 = vtanh.pop %v8415
    %v8417 = vmul.f32 %v8414, %v8416
    %v8418 = vpack.c.bf16 %v7835, %v7835
    %v8419 = vld [vmem:[%s12] sm:$0xf]
    %v8420 = vld [vmem:[%s12 + $0x4] sm:$0xf]
    %v8421 = vld [vmem:[%s12 + $0x8] sm:$0xf]
    %v8422 = vld [vmem:[%s12 + $0xc] sm:$0xf]
    %v8423 = vld [vmem:[%s12 + $0x10] sm:$0xf]
    %v8424 = vld [vmem:[%s12 + $0x14] sm:$0xf]
    %v8425 = vld [vmem:[%s12 + $0x18] sm:$0xf]
    %v8426 = vld [vmem:[%s12 + $0x1c] sm:$0xf]
    %v8427 = vld [vmem:[%s12 + $0x20] sm:$0xf]
    %v8428 = vld [vmem:[%s12 + $0x24] sm:$0xf]
    %v8429 = vld [vmem:[%s12 + $0x28] sm:$0xf]
    %v8430 = vld [vmem:[%s12 + $0x2c] sm:$0xf]
    %v8431 = vld [vmem:[%s12 + $0x30] sm:$0xf]
    %v8432 = vld [vmem:[%s12 + $0x34] sm:$0xf]
    %v8433 = vld [vmem:[%s12 + $0x38] sm:$0xf]
    %v8434 = vld [vmem:[%s12 + $0x3c] sm:$0xf]
    %v8435 = vpack.c.bf16 %v8417, %v8417
    %v8436 = vld [vmem:[#allocation18] sm:$0xf]
    %v8437 = vld [vmem:[#allocation18 + $0x4] sm:$0xf]
    %v8438 = vld [vmem:[#allocation18 + $0x8] sm:$0xf]
    %v8439 = vld [vmem:[#allocation18 + $0xc] sm:$0xf]
    %v8440 = vld [vmem:[#allocation18 + $0x10] sm:$0xf]
    %v8441 = vld [vmem:[#allocation18 + $0x14] sm:$0xf]
    %v8442 = vld [vmem:[#allocation18 + $0x18] sm:$0xf]
    %v8443 = vld [vmem:[#allocation18 + $0x1c] sm:$0xf]
    %v8444 = vld [vmem:[#allocation18 + $0x20] sm:$0xf]
    %v8445 = vld [vmem:[#allocation18 + $0x24] sm:$0xf]
    %v8446 = vld [vmem:[#allocation18 + $0x28] sm:$0xf]
    %v8447 = vld [vmem:[#allocation18 + $0x2c] sm:$0xf]
    %v8448 = vld [vmem:[#allocation18 + $0x30] sm:$0xf]
    %v8449 = vld [vmem:[#allocation18 + $0x34] sm:$0xf]
    %v8450 = vld [vmem:[#allocation18 + $0x38] sm:$0xf]
    %v8451 = vld [vmem:[#allocation18 + $0x3c] sm:$0xf]
    %v8468 = vunpack.c.l.b16 %v8436
    %v8469 = vunpack.c.l.b16 %v8437
    %v8470 = vunpack.c.l.b16 %v8438
    %v8471 = vunpack.c.l.b16 %v8439
    %v8472 = vunpack.c.l.b16 %v8440
    %v8473 = vunpack.c.l.b16 %v8441
    %v8474 = vunpack.c.l.b16 %v8442
    %v8475 = vunpack.c.l.b16 %v8443
    %v8476 = vunpack.c.l.b16 %v8444
    %v8477 = vunpack.c.l.b16 %v8445
    %v8478 = vunpack.c.l.b16 %v8446
    %v8479 = vunpack.c.l.b16 %v8447
    %v8480 = vunpack.c.l.b16 %v8448
    %v8481 = vunpack.c.l.b16 %v8449
    %v8482 = vunpack.c.l.b16 %v8450
    %v8483 = vunpack.c.l.b16 %v8451
    %v8484 = vpack.c.b16 %v8469, %v8468
    %v8485 = vpack.c.b16 %v8471, %v8470
    %v8486 = vpack.c.b16 %v8473, %v8472
    %v8487 = vpack.c.b16 %v8475, %v8474
    %v8488 = vpack.c.b16 %v8477, %v8476
    %v8489 = vpack.c.b16 %v8479, %v8478
    %v8490 = vpack.c.b16 %v8481, %v8480
    %v8491 = vpack.c.b16 %v8483, %v8482
    %8500 = vmatprep.subr.bf16.mxu0 0
    %8501 = vmatpush1.bf16.msra.mxu0 %v8484
    %8502 = vmatprep.subr.bf16.mxu0 0
    %8503 = vmatpush1.bf16.msra.mxu0 %v8485
    %8504 = vmatprep.subr.bf16.mxu0 0
    %8505 = vmatpush1.bf16.msra.mxu0 %v8486
    %8506 = vmatprep.subr.bf16.mxu0 0
    %8507 = vmatpush1.bf16.msra.mxu0 %v8487
    %8508 = vmatprep.subr.bf16.mxu0 0
    %8509 = vmatpush1.bf16.msra.mxu0 %v8488
    %8510 = vmatprep.subr.bf16.mxu0 0
    %8511 = vmatpush1.bf16.msra.mxu0 %v8489
    %8512 = vmatprep.subr.bf16.mxu0 0
    %8513 = vmatpush1.bf16.msra.mxu0 %v8490
    %8514 = vmatprep.subr.bf16.mxu0 0
    %8515 = vmatpush1.bf16.msra.mxu0 %v8491
    %8516 = vmatprep.subr.bf16.mxu0 0
    %8517 = vmatpush1.bf16.msra.mxu0 0
    %8518 = vmatprep.subr.bf16.mxu0 0
    %8519 = vmatpush1.bf16.msra.mxu0 0
    %8520 = vmatprep.subr.bf16.mxu0 0
    %8521 = vmatpush1.bf16.msra.mxu0 0
    %8522 = vmatprep.subr.bf16.mxu0 0
    %8523 = vmatpush1.bf16.msra.mxu0 0
    %8524 = vmatprep.subr.bf16.mxu0 0
    %8525 = vmatpush1.bf16.msra.mxu0 0
    %8526 = vmatprep.subr.bf16.mxu0 0
    %8527 = vmatpush1.bf16.msra.mxu0 0
    %8528 = vmatprep.subr.bf16.mxu0 0
    %8529 = vmatpush1.bf16.msra.mxu0 0
    %8530 = vmatprep.subr.bf16.mxu0 0
    %8531 = vmatpush1.bf16.msra.mxu0 0
    %8532 = vmatprep.mubr.bf16.mxu0 0
    %8533 = vmatmul.mubr.bf16.gmra.mrb[0].mxu0 %v8435
    %v8534 = vpop.f32.mrb[0].mxu0
    %v8535 = vadd.f32 0.0, %v8534
    %v8536 = vpop.f32.mrb[0].mxu0
    %v8537 = vpop.f32.mrb[0].mxu0
    %v8538 = vpop.f32.mrb[0].mxu0
    %8539 = vdwg.mxu0
    %v8556 = vunpack.c.l.b16 %v8419
    %v8557 = vunpack.c.l.b16 %v8420
    %v8558 = vunpack.c.l.b16 %v8421
    %v8559 = vunpack.c.l.b16 %v8422
    %v8560 = vunpack.c.l.b16 %v8423
    %v8561 = vunpack.c.l.b16 %v8424
    %v8562 = vunpack.c.l.b16 %v8425
    %v8563 = vunpack.c.l.b16 %v8426
    %v8564 = vunpack.c.l.b16 %v8427
    %v8565 = vunpack.c.l.b16 %v8428
    %v8566 = vunpack.c.l.b16 %v8429
    %v8567 = vunpack.c.l.b16 %v8430
    %v8568 = vunpack.c.l.b16 %v8431
    %v8569 = vunpack.c.l.b16 %v8432
    %v8570 = vunpack.c.l.b16 %v8433
    %v8571 = vunpack.c.l.b16 %v8434
    %v8572 = vpack.c.b16 %v8557, %v8556
    %v8573 = vpack.c.b16 %v8559, %v8558
    %v8574 = vpack.c.b16 %v8561, %v8560
    %v8575 = vpack.c.b16 %v8563, %v8562
    %v8576 = vpack.c.b16 %v8565, %v8564
    %v8577 = vpack.c.b16 %v8567, %v8566
    %v8578 = vpack.c.b16 %v8569, %v8568
    %v8579 = vpack.c.b16 %v8571, %v8570
    %8588 = vmatprep.subr.bf16.mxu0 0
    %8589 = vmatpush1.bf16.msra.mxu0 %v8572
    %8590 = vmatprep.subr.bf16.mxu0 0
    %8591 = vmatpush1.bf16.msra.mxu0 %v8573
    %8592 = vmatprep.subr.bf16.mxu0 0
    %8593 = vmatpush1.bf16.msra.mxu0 %v8574
    %8594 = vmatprep.subr.bf16.mxu0 0
    %8595 = vmatpush1.bf16.msra.mxu0 %v8575
    %8596 = vmatprep.subr.bf16.mxu0 0
    %8597 = vmatpush1.bf16.msra.mxu0 %v8576
    %8598 = vmatprep.subr.bf16.mxu0 0
    %8599 = vmatpush1.bf16.msra.mxu0 %v8577
    %8600 = vmatprep.subr.bf16.mxu0 0
    %8601 = vmatpush1.bf16.msra.mxu0 %v8578
    %8602 = vmatprep.subr.bf16.mxu0 0
    %8603 = vmatpush1.bf16.msra.mxu0 %v8579
    %8604 = vmatprep.subr.bf16.mxu0 0
    %8605 = vmatpush1.bf16.msra.mxu0 0
    %8606 = vmatprep.subr.bf16.mxu0 0
    %8607 = vmatpush1.bf16.msra.mxu0 0
    %8608 = vmatprep.subr.bf16.mxu0 0
    %8609 = vmatpush1.bf16.msra.mxu0 0
    %8610 = vmatprep.subr.bf16.mxu0 0
    %8611 = vmatpush1.bf16.msra.mxu0 0
    %8612 = vmatprep.subr.bf16.mxu0 0
    %8613 = vmatpush1.bf16.msra.mxu0 0
    %8614 = vmatprep.subr.bf16.mxu0 0
    %8615 = vmatpush1.bf16.msra.mxu0 0
    %8616 = vmatprep.subr.bf16.mxu0 0
    %8617 = vmatpush1.bf16.msra.mxu0 0
    %8618 = vmatprep.subr.bf16.mxu0 0
    %8619 = vmatpush1.bf16.msra.mxu0 0
    %8620 = vmatprep.mubr.bf16.mxu0 0
    %8621 = vmatmul.mubr.bf16.gmra.mrb[0].mxu0 %v8418
    %v8622 = vpop.f32.mrb[0].mxu0
    %v8623 = vadd.f32 %v8535, %v8622
    %v8624 = vpop.f32.mrb[0].mxu0
    %v8625 = vpop.f32.mrb[0].mxu0
    %v8626 = vpop.f32.mrb[0].mxu0
    %8627 = vdwg.mxu0
    %v8628 = vld [vmem:[%s14] sm:$0x1]
    %v8630 = vlaneseq
    %v8631 = vshrl.u32 %v8630, 7
    %v8632 = vsub.s32 0, %v8631
    %v8633 = vrot.slane %v8628, %v8632
    %v8635 = vadd.f32 %v8623, %v8633
    %8636 = vst [vmem:[%s15] sm:$0xff] %v8635
    // Predicated region
    $region98: #{bi_emotion_lstm_forward.1} parent=1 // pred_check
      _
    $region99: #{bi_emotion_lstm_forward.1} parent=1 // pred_check_branch
      %8638 = sbr.rel (0) target = $region101
    $region100: #{bi_emotion_lstm_forward.1} parent=1 // pred_region
      _
    $region101: #{bi_emotion_lstm_forward.1} parent=1 // pred_fallthru
      _
    // Predicated region
    $region102: #{bi_emotion_lstm_forward.1} parent=1 // pred_check
      _
    $region103: #{bi_emotion_lstm_forward.1} parent=1 // pred_check_branch
      %8640 = sbr.rel (0) target = $region105
    $region104: #{bi_emotion_lstm_forward.1} parent=1 // pred_region
      _
    $region105: #{bi_emotion_lstm_forward.1} parent=1 // pred_fallthru
      _
    %8641 = vsyncpa [#allocation6], 1
    %8642 = vsyncpa [#allocation8], 1
    %8643 = vsyncpa [#allocation11], 1
    %8644 = vsyncpa [#allocation14], 1
    %8645 = vsyncpa [#allocation17], 1

</llo_original>
